<compile_context>
chip_gen: v7x
topology: tpu7x:2x2x1
jax: 0.10.0
libtpu: 0.0.40
codegen_flags: <defaults>
</compile_context>

<pallas_src>
import functools

import jax
import jax.numpy as jnp
from jax.experimental import pallas as pl
from jax.experimental.pallas import tpu as pltpu

EPS = 1e-5
KH = KW = 3
PAD = 16  # zero-margin rows on each side of the flat activation buffer (>= W+1)


def bn_add_relu_conv_kernel(x_ref, r_ref, gamma_ref, beta_ref, w_ref,
                            o_ref, ypad_ref, col_ref, *, H, W):
    """Grid axis = Cout blocks (sequential, "arbitrary").

    x_ref/r_ref: (H*W, C) f32     gamma/beta: (1, C) f32
    w_ref:       (9*C, Cout_blk) bf16 (rows ordered (kh, kw, ci))
    o_ref:       (H*W, Cout_blk) f32
    ypad_ref:    (H*W + 2*PAD, C) bf16 scratch (zero-padded flat activation)
    col_ref:     (H*W, 9*C) bf16 scratch (im2col, built once on step 0)
    """
    C = x_ref.shape[-1]
    HW = H * W
    cout_blk = o_ref.shape[-1]

    # ---- step 0 only: BN(training stats) + add + ReLU, padding, im2col ----
    @pl.when(pl.program_id(0) == 0)
    def _prepare():
        x = x_ref[...]                                        # (HW, C) f32
        inv_n = 1.0 / float(HW)
        mean = jnp.sum(x, axis=0, keepdims=True) * inv_n
        ex2 = jnp.sum(x * x, axis=0, keepdims=True) * inv_n
        var = ex2 - mean * mean                               # biased batch var
        scale = gamma_ref[...] * jax.lax.rsqrt(var + EPS)     # (1, C)
        shift = beta_ref[...] - mean * scale                  # (1, C)
        y = jnp.maximum(x * scale + shift + r_ref[...], 0.0)  # BN + add + ReLU
        yb = y.astype(jnp.bfloat16)

        # zero only the margins; the interior is fully overwritten below
        ypad_ref[0:PAD, :] = jnp.zeros((PAD, C), jnp.bfloat16)
        ypad_ref[PAD + HW:PAD + HW + PAD, :] = jnp.zeros((PAD, C), jnp.bfloat16)
        ypad_ref[PAD:PAD + HW, :] = yb

        # horizontal-wrap validity masks, computed once (f32 floor math only)
        inv_w = 1.0 / float(W)
        ii = jax.lax.broadcasted_iota(jnp.int32, (HW, 1), 0).astype(jnp.float32)
        wcol = ii - jnp.floor(ii * inv_w + 0.5 * inv_w) * float(W)   # == i % W
        mask_l = wcol > 0.5                  # valid when reading column w-1
        mask_r = wcol < float(W) - 1.5       # valid when reading column w+1

        # im2col: 9 shifted + masked copies of the activation, built once
        tap = 0
        for dh in (-1, 0, 1):
            for dw in (-1, 0, 1):
                off = dh * W + dw
                patch = ypad_ref[PAD + off:PAD + off + HW, :]  # (HW, C) bf16
                if dw == -1:
                    patch = jnp.where(mask_l, patch, jnp.zeros_like(patch))
                elif dw == 1:
                    patch = jnp.where(mask_r, patch, jnp.zeros_like(patch))
                col_ref[:, tap * C:(tap + 1) * C] = patch
                tap += 1

    # ---- every step: 3x3 conv for this Cout block = 9 (HW,C)x(C,blk) matmuls ----
    acc = jnp.zeros((HW, cout_blk), jnp.float32)
    for tap in range(KH * KW):
        acc = acc + jnp.dot(col_ref[:, tap * C:(tap + 1) * C],
                            w_ref[tap * C:(tap + 1) * C, :],
                            preferred_element_type=jnp.float32)
    o_ref[...] = acc.astype(o_ref.dtype)                      # lane-dense store


def fused_forward(x103, x106, gamma, beta, conv_w, *, cout_block=256):
    """x103, x106: NCHW float32 (N must be 1). conv_w: (Cout, Cin, 3, 3)."""
    N, C, H, W = x103.shape
    assert N == 1, "kernel handles N == 1 (as in the reference module)"
    assert W + 1 <= PAD, "PAD margin must cover one image row + 1"
    Cout = conv_w.shape[0]
    HW = H * W
    if Cout % cout_block != 0:
        cout_block = Cout
    n_blocks = Cout // cout_block

    # NCHW -> channels-last (H*W, C) lane-dense slabs
    x = jnp.transpose(x103[0], (1, 2, 0)).reshape(HW, C)
    r = jnp.transpose(x106[0], (1, 2, 0)).reshape(HW, C)
    # (Cout, Cin, kh, kw) -> rows ordered (kh, kw, ci), cols = co; bf16 once here
    wmat = jnp.transpose(conv_w, (2, 3, 1, 0)).reshape(KH * KW * C, Cout)
    wmat = wmat.astype(jnp.bfloat16)

    kernel = functools.partial(bn_add_relu_conv_kernel, H=H, W=W)

    out_flat = pl.pallas_call(
        kernel,
        out_shape=jax.ShapeDtypeStruct((HW, Cout), jnp.float32),
        grid_spec=pltpu.PrefetchScalarGridSpec(
            num_scalar_prefetch=0,
            grid=(n_blocks,),
            in_specs=[
                pl.BlockSpec((HW, C), lambda j: (0, 0)),               # x
                pl.BlockSpec((HW, C), lambda j: (0, 0)),               # residual
                pl.BlockSpec((1, C), lambda j: (0, 0)),                # gamma
                pl.BlockSpec((1, C), lambda j: (0, 0)),                # beta
                pl.BlockSpec((KH * KW * C, cout_block), lambda j: (0, j)),  # weight
            ],
            out_specs=pl.BlockSpec((HW, cout_block), lambda j: (0, j)),
            scratch_shapes=[
                pltpu.VMEM((HW + 2 * PAD, C), jnp.bfloat16),   # padded activation
                pltpu.VMEM((HW, KH * KW * C), jnp.bfloat16),   # im2col (persists)
            ],
        ),
        compiler_params=pltpu.CompilerParams(
            dimension_semantics=("arbitrary",),   # sequential: step 0 seeds scratch
            vmem_limit_bytes=32 * 1024 * 1024),
    )(x, r, gamma.reshape(1, C), beta.reshape(1, C), wmat)

    # (H*W, Cout) -> NCHW
    return jnp.transpose(out_flat.reshape(H, W, Cout), (2, 0, 1))[None]


def reference_forward(x103, x106, gamma, beta, conv_w):
    mean = jnp.mean(x103, axis=(0, 2, 3), keepdims=True)
    var = jnp.mean((x103 - mean) ** 2, axis=(0, 2, 3), keepdims=True)
    xn = (x103 - mean) * jax.lax.rsqrt(var + EPS)
    xn = xn * gamma.reshape(1, -1, 1, 1) + beta.reshape(1, -1, 1, 1)
    y = jnp.maximum(xn + x106, 0.0)
    return jax.lax.conv_general_dilated(
        y, conv_w, window_strides=(1, 1), padding=((1, 1), (1, 1)),
        dimension_numbers=("NCHW", "OIHW", "NCHW"),
        precision=jax.lax.Precision.HIGHEST)


if __name__ == "__main__":
    key = jax.random.PRNGKey(0)
    k1, k2, k3, k4, k5 = jax.random.split(key, 5)

    N, C, H, W = 1, 512, 7, 7      # shapes implied by the module
    x103 = jax.random.normal(k1, (N, C, H, W), jnp.float32)
    x106 = jax.random.normal(k2, (N, C, H, W), jnp.float32)

    # deterministic parameter init (BatchNorm affine + conv weight, no bias)
    gamma = 1.0 + 0.1 * jax.random.normal(k3, (C,), jnp.float32)
    beta = 0.1 * jax.random.normal(k4, (C,), jnp.float32)
    fan_in = C * KH * KW
    conv_w = jax.random.normal(k5, (C, C, KH, KW), jnp.float32) / jnp.sqrt(fan_in)

    out = jax.block_until_ready(fused_forward(x103, x106, gamma, beta, conv_w))
    ref = jax.block_until_ready(reference_forward(x103, x106, gamma, beta, conv_w))

    max_err = float(jnp.max(jnp.abs(out - ref)))
    assert out.shape == (N, C, H, W), out.shape
    assert max_err < 5e-2, f"max abs error too large: {max_err}"
    print("KERNEL_OK")
</pallas_src>

<mosaic_0001>
module attributes {stable_mosaic.version = 11 : i64} {
  func.func @bn_add_relu_conv_kernel(%arg0: i32, %arg1: memref<49x512xf32, #tpu.memory_space<vmem>>, %arg2: memref<49x512xf32, #tpu.memory_space<vmem>>, %arg3: memref<1x512xf32, #tpu.memory_space<vmem>>, %arg4: memref<1x512xf32, #tpu.memory_space<vmem>>, %arg5: memref<4608x256xbf16, #tpu.memory_space<vmem>>, %arg6: memref<49x256xf32, #tpu.memory_space<vmem>>, %arg7: memref<81x512xbf16, #tpu.memory_space<vmem>>, %arg8: memref<49x4608xbf16, #tpu.memory_space<vmem>>) attributes {dimension_semantics = [#tpu.dimension_semantics<arbitrary>], iteration_bounds = array<i64: 2>, scalar_prefetch = 0 : i64, scratch_operands = 2 : i64, tpu.core_type = #tpu.core_type<tc>, window_params = [{pipeline_mode = #tpu.pipeline_mode<synchronous>, transform_indices = @transform_0, window_bounds = array<i64: 49, 512>}, {pipeline_mode = #tpu.pipeline_mode<synchronous>, transform_indices = @transform_1, window_bounds = array<i64: 49, 512>}, {pipeline_mode = #tpu.pipeline_mode<synchronous>, transform_indices = @transform_2, window_bounds = array<i64: 1, 512>}, {pipeline_mode = #tpu.pipeline_mode<synchronous>, transform_indices = @transform_3, window_bounds = array<i64: 1, 512>}, {transform_indices = @transform_4, window_bounds = array<i64: 4608, 256>}, {transform_indices = @transform_5, window_bounds = array<i64: 49, 256>}]} {
    %c0_i32 = arith.constant 0 : i32
    %0 = arith.cmpi eq, %arg0, %c0_i32 : i32
    %1 = arith.extui %0 : i1 to i32
    %c0_i32_0 = arith.constant 0 : i32
    %2 = arith.cmpi ne, %1, %c0_i32_0 : i32
    scf.if %2 {
      %c0_39 = arith.constant 0 : index
      %c0_40 = arith.constant 0 : index
      %41 = vector.load %arg1[%c0_39, %c0_40] : memref<49x512xf32, #tpu.memory_space<vmem>>, vector<49x512xf32>
      %cst_41 = arith.constant dense<0.000000e+00> : vector<512xf32>
      %42 = vector.multi_reduction <add>, %41, %cst_41 [0] : vector<49x512xf32> to vector<512xf32>
      %43 = vector.shape_cast %42 : vector<512xf32> to vector<1x512xf32>
      %cst_42 = arith.constant 0.0204081628 : f32
      %44 = vector.broadcast %cst_42 : f32 to vector<1x512xf32>
      %45 = arith.mulf %43, %44 : vector<1x512xf32>
      %46 = arith.mulf %41, %41 : vector<49x512xf32>
      %cst_43 = arith.constant dense<0.000000e+00> : vector<512xf32>
      %47 = vector.multi_reduction <add>, %46, %cst_43 [0] : vector<49x512xf32> to vector<512xf32>
      %48 = vector.shape_cast %47 : vector<512xf32> to vector<1x512xf32>
      %cst_44 = arith.constant 0.0204081628 : f32
      %49 = vector.broadcast %cst_44 : f32 to vector<1x512xf32>
      %50 = arith.mulf %48, %49 : vector<1x512xf32>
      %51 = arith.mulf %45, %45 : vector<1x512xf32>
      %52 = arith.subf %50, %51 : vector<1x512xf32>
      %c0_45 = arith.constant 0 : index
      %c0_46 = arith.constant 0 : index
      %53 = vector.load %arg3[%c0_45, %c0_46] : memref<1x512xf32, #tpu.memory_space<vmem>>, vector<1x512xf32>
      %cst_47 = arith.constant 9.99999974E-6 : f32
      %54 = vector.broadcast %cst_47 : f32 to vector<1x512xf32>
      %55 = arith.addf %52, %54 : vector<1x512xf32>
      %56 = math.rsqrt %55 : vector<1x512xf32>
      %57 = arith.mulf %53, %56 : vector<1x512xf32>
      %c0_48 = arith.constant 0 : index
      %c0_49 = arith.constant 0 : index
      %58 = vector.load %arg4[%c0_48, %c0_49] : memref<1x512xf32, #tpu.memory_space<vmem>>, vector<1x512xf32>
      %59 = arith.mulf %45, %57 : vector<1x512xf32>
      %60 = arith.subf %58, %59 : vector<1x512xf32>
      %61 = vector.broadcast %57 : vector<1x512xf32> to vector<49x512xf32>
      %62 = arith.mulf %41, %61 : vector<49x512xf32>
      %63 = vector.broadcast %60 : vector<1x512xf32> to vector<49x512xf32>
      %64 = arith.addf %62, %63 : vector<49x512xf32>
      %c0_50 = arith.constant 0 : index
      %c0_51 = arith.constant 0 : index
      %65 = vector.load %arg2[%c0_50, %c0_51] : memref<49x512xf32, #tpu.memory_space<vmem>>, vector<49x512xf32>
      %66 = arith.addf %64, %65 : vector<49x512xf32>
      %cst_52 = arith.constant 0.000000e+00 : f32
      %67 = vector.broadcast %cst_52 : f32 to vector<49x512xf32>
      %68 = arith.maximumf %66, %67 : vector<49x512xf32>
      %69 = arith.truncf %68 : vector<49x512xf32> to vector<49x512xbf16>
      %cst_53 = arith.constant 0.000000e+00 : bf16
      %70 = vector.broadcast %cst_53 : bf16 to vector<16x512xbf16>
      %c0_54 = arith.constant 0 : index
      %c0_55 = arith.constant 0 : index
      %71 = vector.load %arg7[%c0_54, %c0_55] : memref<81x512xbf16, #tpu.memory_space<vmem>>, vector<16x512xbf16>
      tpu.vector_store %arg7[%c0_54, %c0_55], %70 {strides = array<i32>} : memref<81x512xbf16, #tpu.memory_space<vmem>>, vector<16x512xbf16>,
      %cst_56 = arith.constant 0.000000e+00 : bf16
      %72 = vector.broadcast %cst_56 : bf16 to vector<16x512xbf16>
      %c65 = arith.constant 65 : index
      %c0_57 = arith.constant 0 : index
      %73 = vector.load %arg7[%c65, %c0_57] : memref<81x512xbf16, #tpu.memory_space<vmem>>, vector<16x512xbf16>
      tpu.vector_store %arg7[%c65, %c0_57], %72 {strides = array<i32>} : memref<81x512xbf16, #tpu.memory_space<vmem>>, vector<16x512xbf16>,
      %c16 = arith.constant 16 : index
      %c0_58 = arith.constant 0 : index
      %74 = vector.load %arg7[%c16, %c0_58] : memref<81x512xbf16, #tpu.memory_space<vmem>>, vector<49x512xbf16>
      tpu.vector_store %arg7[%c16, %c0_58], %69 {strides = array<i32>} : memref<81x512xbf16, #tpu.memory_space<vmem>>, vector<49x512xbf16>,
      %75 = tpu.iota {dimensions = array<i32: 0>} : vector<49x1xi32>
      %76 = arith.sitofp %75 : vector<49x1xi32> to vector<49x1xf32>
      %cst_59 = arith.constant 0.142857149 : f32
      %77 = vector.broadcast %cst_59 : f32 to vector<49x1xf32>
      %78 = arith.mulf %76, %77 : vector<49x1xf32>
      %cst_60 = arith.constant 0.0714285746 : f32
      %79 = vector.broadcast %cst_60 : f32 to vector<49x1xf32>
      %80 = arith.addf %78, %79 : vector<49x1xf32>
      %81 = math.floor %80 : vector<49x1xf32>
      %cst_61 = arith.constant 7.000000e+00 : f32
      %82 = vector.broadcast %cst_61 : f32 to vector<49x1xf32>
      %83 = arith.mulf %81, %82 : vector<49x1xf32>
      %84 = arith.subf %76, %83 : vector<49x1xf32>
      %cst_62 = arith.constant 5.000000e-01 : f32
      %85 = vector.broadcast %cst_62 : f32 to vector<49x1xf32>
      %86 = arith.cmpf ogt, %84, %85 : vector<49x1xf32>
      %cst_63 = arith.constant 5.500000e+00 : f32
      %87 = vector.broadcast %cst_63 : f32 to vector<49x1xf32>
      %88 = arith.cmpf olt, %84, %87 : vector<49x1xf32>
      %c8 = arith.constant 8 : index
      %c0_64 = arith.constant 0 : index
      %89 = vector.load %arg7[%c8, %c0_64] : memref<81x512xbf16, #tpu.memory_space<vmem>>, vector<49x512xbf16>
      %cst_65 = arith.constant 0.000000e+00 : bf16
      %90 = vector.broadcast %cst_65 : bf16 to vector<49x512xbf16>
      %91 = vector.shape_cast %86 : vector<49x1xi1> to vector<49x1xi1>
      %92 = vector.broadcast %91 : vector<49x1xi1> to vector<49x512xi1>
      %93 = arith.select %92, %89, %90 : vector<49x512xi1>, vector<49x512xbf16>
      %c0_66 = arith.constant 0 : index
      %c0_67 = arith.constant 0 : index
      %94 = vector.load %arg8[%c0_66, %c0_67] : memref<49x4608xbf16, #tpu.memory_space<vmem>>, vector<49x512xbf16>
      tpu.vector_store %arg8[%c0_66, %c0_67], %93 {strides = array<i32>} : memref<49x4608xbf16, #tpu.memory_space<vmem>>, vector<49x512xbf16>,
      %c9 = arith.constant 9 : index
      %c0_68 = arith.constant 0 : index
      %95 = vector.load %arg7[%c9, %c0_68] : memref<81x512xbf16, #tpu.memory_space<vmem>>, vector<49x512xbf16>
      %c0_69 = arith.constant 0 : index
      %c512_70 = arith.constant 512 : index
      %96 = vector.load %arg8[%c0_69, %c512_70] : memref<49x4608xbf16, #tpu.memory_space<vmem>>, vector<49x512xbf16>
      tpu.vector_store %arg8[%c0_69, %c512_70], %95 {strides = array<i32>} : memref<49x4608xbf16, #tpu.memory_space<vmem>>, vector<49x512xbf16>,
      %c10 = arith.constant 10 : index
      %c0_71 = arith.constant 0 : index
      %97 = vector.load %arg7[%c10, %c0_71] : memref<81x512xbf16, #tpu.memory_space<vmem>>, vector<49x512xbf16>
      %cst_72 = arith.constant 0.000000e+00 : bf16
      %98 = vector.broadcast %cst_72 : bf16 to vector<49x512xbf16>
      %99 = vector.shape_cast %88 : vector<49x1xi1> to vector<49x1xi1>
      %100 = vector.broadcast %99 : vector<49x1xi1> to vector<49x512xi1>
      %101 = arith.select %100, %97, %98 : vector<49x512xi1>, vector<49x512xbf16>
      %c0_73 = arith.constant 0 : index
      %c1024_74 = arith.constant 1024 : index
      %102 = vector.load %arg8[%c0_73, %c1024_74] : memref<49x4608xbf16, #tpu.memory_space<vmem>>, vector<49x512xbf16>
      tpu.vector_store %arg8[%c0_73, %c1024_74], %101 {strides = array<i32>} : memref<49x4608xbf16, #tpu.memory_space<vmem>>, vector<49x512xbf16>,
      %c15 = arith.constant 15 : index
      %c0_75 = arith.constant 0 : index
      %103 = vector.load %arg7[%c15, %c0_75] : memref<81x512xbf16, #tpu.memory_space<vmem>>, vector<49x512xbf16>
      %cst_76 = arith.constant 0.000000e+00 : bf16
      %104 = vector.broadcast %cst_76 : bf16 to vector<49x512xbf16>
      %105 = vector.shape_cast %86 : vector<49x1xi1> to vector<49x1xi1>
      %106 = vector.broadcast %105 : vector<49x1xi1> to vector<49x512xi1>
      %107 = arith.select %106, %103, %104 : vector<49x512xi1>, vector<49x512xbf16>
      %c0_77 = arith.constant 0 : index
      %c1536_78 = arith.constant 1536 : index
      %108 = vector.load %arg8[%c0_77, %c1536_78] : memref<49x4608xbf16, #tpu.memory_space<vmem>>, vector<49x512xbf16>
      tpu.vector_store %arg8[%c0_77, %c1536_78], %107 {strides = array<i32>} : memref<49x4608xbf16, #tpu.memory_space<vmem>>, vector<49x512xbf16>,
      %c16_79 = arith.constant 16 : index
      %c0_80 = arith.constant 0 : index
      %109 = vector.load %arg7[%c16_79, %c0_80] : memref<81x512xbf16, #tpu.memory_space<vmem>>, vector<49x512xbf16>
      %c0_81 = arith.constant 0 : index
      %c2048_82 = arith.constant 2048 : index
      %110 = vector.load %arg8[%c0_81, %c2048_82] : memref<49x4608xbf16, #tpu.memory_space<vmem>>, vector<49x512xbf16>
      tpu.vector_store %arg8[%c0_81, %c2048_82], %109 {strides = array<i32>} : memref<49x4608xbf16, #tpu.memory_space<vmem>>, vector<49x512xbf16>,
      %c17 = arith.constant 17 : index
      %c0_83 = arith.constant 0 : index
      %111 = vector.load %arg7[%c17, %c0_83] : memref<81x512xbf16, #tpu.memory_space<vmem>>, vector<49x512xbf16>
      %cst_84 = arith.constant 0.000000e+00 : bf16
      %112 = vector.broadcast %cst_84 : bf16 to vector<49x512xbf16>
      %113 = vector.shape_cast %88 : vector<49x1xi1> to vector<49x1xi1>
      %114 = vector.broadcast %113 : vector<49x1xi1> to vector<49x512xi1>
      %115 = arith.select %114, %111, %112 : vector<49x512xi1>, vector<49x512xbf16>
      %c0_85 = arith.constant 0 : index
      %c2560_86 = arith.constant 2560 : index
      %116 = vector.load %arg8[%c0_85, %c2560_86] : memref<49x4608xbf16, #tpu.memory_space<vmem>>, vector<49x512xbf16>
      tpu.vector_store %arg8[%c0_85, %c2560_86], %115 {strides = array<i32>} : memref<49x4608xbf16, #tpu.memory_space<vmem>>, vector<49x512xbf16>,
      %c22 = arith.constant 22 : index
      %c0_87 = arith.constant 0 : index
      %117 = vector.load %arg7[%c22, %c0_87] : memref<81x512xbf16, #tpu.memory_space<vmem>>, vector<49x512xbf16>
      %cst_88 = arith.constant 0.000000e+00 : bf16
      %118 = vector.broadcast %cst_88 : bf16 to vector<49x512xbf16>
      %119 = vector.shape_cast %86 : vector<49x1xi1> to vector<49x1xi1>
      %120 = vector.broadcast %119 : vector<49x1xi1> to vector<49x512xi1>
      %121 = arith.select %120, %117, %118 : vector<49x512xi1>, vector<49x512xbf16>
      %c0_89 = arith.constant 0 : index
      %c3072_90 = arith.constant 3072 : index
      %122 = vector.load %arg8[%c0_89, %c3072_90] : memref<49x4608xbf16, #tpu.memory_space<vmem>>, vector<49x512xbf16>
      tpu.vector_store %arg8[%c0_89, %c3072_90], %121 {strides = array<i32>} : memref<49x4608xbf16, #tpu.memory_space<vmem>>, vector<49x512xbf16>,
      %c23 = arith.constant 23 : index
      %c0_91 = arith.constant 0 : index
      %123 = vector.load %arg7[%c23, %c0_91] : memref<81x512xbf16, #tpu.memory_space<vmem>>, vector<49x512xbf16>
      %c0_92 = arith.constant 0 : index
      %c3584_93 = arith.constant 3584 : index
      %124 = vector.load %arg8[%c0_92, %c3584_93] : memref<49x4608xbf16, #tpu.memory_space<vmem>>, vector<49x512xbf16>
      tpu.vector_store %arg8[%c0_92, %c3584_93], %123 {strides = array<i32>} : memref<49x4608xbf16, #tpu.memory_space<vmem>>, vector<49x512xbf16>,
      %c24 = arith.constant 24 : index
      %c0_94 = arith.constant 0 : index
      %125 = vector.load %arg7[%c24, %c0_94] : memref<81x512xbf16, #tpu.memory_space<vmem>>, vector<49x512xbf16>
      %cst_95 = arith.constant 0.000000e+00 : bf16
      %126 = vector.broadcast %cst_95 : bf16 to vector<49x512xbf16>
      %127 = vector.shape_cast %88 : vector<49x1xi1> to vector<49x1xi1>
      %128 = vector.broadcast %127 : vector<49x1xi1> to vector<49x512xi1>
      %129 = arith.select %128, %125, %126 : vector<49x512xi1>, vector<49x512xbf16>
      %c0_96 = arith.constant 0 : index
      %c4096_97 = arith.constant 4096 : index
      %130 = vector.load %arg8[%c0_96, %c4096_97] : memref<49x4608xbf16, #tpu.memory_space<vmem>>, vector<49x512xbf16>
      tpu.vector_store %arg8[%c0_96, %c4096_97], %129 {strides = array<i32>} : memref<49x4608xbf16, #tpu.memory_space<vmem>>, vector<49x512xbf16>,
    } else {
    }
    %cst = arith.constant 0.000000e+00 : f32
    %3 = vector.broadcast %cst : f32 to vector<49x256xf32>
    %c0 = arith.constant 0 : index
    %c0_1 = arith.constant 0 : index
    %4 = vector.load %arg8[%c0, %c0_1] : memref<49x4608xbf16, #tpu.memory_space<vmem>>, vector<49x512xbf16>
    %c0_2 = arith.constant 0 : index
    %c0_3 = arith.constant 0 : index
    %5 = vector.load %arg5[%c0_2, %c0_3] : memref<4608x256xbf16, #tpu.memory_space<vmem>>, vector<512x256xbf16>
    %cst_4 = arith.constant dense<0.000000e+00> : vector<49x256xf32>
    %6 = tpu.matmul %4, %5, %cst_4 {dimension_numbers = #tpu.dot_dimension_numbers<[1], [0], [0], [1], [0, 0, 1, 1], [], []>} : vector<49x512xbf16>, vector<512x256xbf16>, vector<49x256xf32> -> vector<49x256xf32>
    %7 = arith.addf %3, %6 : vector<49x256xf32>
    %c0_5 = arith.constant 0 : index
    %c512 = arith.constant 512 : index
    %8 = vector.load %arg8[%c0_5, %c512] : memref<49x4608xbf16, #tpu.memory_space<vmem>>, vector<49x512xbf16>
    %c512_6 = arith.constant 512 : index
    %c0_7 = arith.constant 0 : index
    %9 = vector.load %arg5[%c512_6, %c0_7] : memref<4608x256xbf16, #tpu.memory_space<vmem>>, vector<512x256xbf16>
    %cst_8 = arith.constant dense<0.000000e+00> : vector<49x256xf32>
    %10 = tpu.matmul %8, %9, %cst_8 {dimension_numbers = #tpu.dot_dimension_numbers<[1], [0], [0], [1], [0, 0, 1, 1], [], []>} : vector<49x512xbf16>, vector<512x256xbf16>, vector<49x256xf32> -> vector<49x256xf32>
    %11 = arith.addf %7, %10 : vector<49x256xf32>
    %c0_9 = arith.constant 0 : index
    %c1024 = arith.constant 1024 : index
    %12 = vector.load %arg8[%c0_9, %c1024] : memref<49x4608xbf16, #tpu.memory_space<vmem>>, vector<49x512xbf16>
    %c1024_10 = arith.constant 1024 : index
    %c0_11 = arith.constant 0 : index
    %13 = vector.load %arg5[%c1024_10, %c0_11] : memref<4608x256xbf16, #tpu.memory_space<vmem>>, vector<512x256xbf16>
    %cst_12 = arith.constant dense<0.000000e+00> : vector<49x256xf32>
    %14 = tpu.matmul %12, %13, %cst_12 {dimension_numbers = #tpu.dot_dimension_numbers<[1], [0], [0], [1], [0, 0, 1, 1], [], []>} : vector<49x512xbf16>, vector<512x256xbf16>, vector<49x256xf32> -> vector<49x256xf32>
    %15 = arith.addf %11, %14 : vector<49x256xf32>
    %c0_13 = arith.constant 0 : index
    %c1536 = arith.constant 1536 : index
    %16 = vector.load %arg8[%c0_13, %c1536] : memref<49x4608xbf16, #tpu.memory_space<vmem>>, vector<49x512xbf16>
    %c1536_14 = arith.constant 1536 : index
    %c0_15 = arith.constant 0 : index
    %17 = vector.load %arg5[%c1536_14, %c0_15] : memref<4608x256xbf16, #tpu.memory_space<vmem>>, vector<512x256xbf16>
    %cst_16 = arith.constant dense<0.000000e+00> : vector<49x256xf32>
    %18 = tpu.matmul %16, %17, %cst_16 {dimension_numbers = #tpu.dot_dimension_numbers<[1], [0], [0], [1], [0, 0, 1, 1], [], []>} : vector<49x512xbf16>, vector<512x256xbf16>, vector<49x256xf32> -> vector<49x256xf32>
    %19 = arith.addf %15, %18 : vector<49x256xf32>
    %c0_17 = arith.constant 0 : index
    %c2048 = arith.constant 2048 : index
    %20 = vector.load %arg8[%c0_17, %c2048] : memref<49x4608xbf16, #tpu.memory_space<vmem>>, vector<49x512xbf16>
    %c2048_18 = arith.constant 2048 : index
    %c0_19 = arith.constant 0 : index
    %21 = vector.load %arg5[%c2048_18, %c0_19] : memref<4608x256xbf16, #tpu.memory_space<vmem>>, vector<512x256xbf16>
    %cst_20 = arith.constant dense<0.000000e+00> : vector<49x256xf32>
    %22 = tpu.matmul %20, %21, %cst_20 {dimension_numbers = #tpu.dot_dimension_numbers<[1], [0], [0], [1], [0, 0, 1, 1], [], []>} : vector<49x512xbf16>, vector<512x256xbf16>, vector<49x256xf32> -> vector<49x256xf32>
    %23 = arith.addf %19, %22 : vector<49x256xf32>
    %c0_21 = arith.constant 0 : index
    %c2560 = arith.constant 2560 : index
    %24 = vector.load %arg8[%c0_21, %c2560] : memref<49x4608xbf16, #tpu.memory_space<vmem>>, vector<49x512xbf16>
    %c2560_22 = arith.constant 2560 : index
    %c0_23 = arith.constant 0 : index
    %25 = vector.load %arg5[%c2560_22, %c0_23] : memref<4608x256xbf16, #tpu.memory_space<vmem>>, vector<512x256xbf16>
    %cst_24 = arith.constant dense<0.000000e+00> : vector<49x256xf32>
    %26 = tpu.matmul %24, %25, %cst_24 {dimension_numbers = #tpu.dot_dimension_numbers<[1], [0], [0], [1], [0, 0, 1, 1], [], []>} : vector<49x512xbf16>, vector<512x256xbf16>, vector<49x256xf32> -> vector<49x256xf32>
    %27 = arith.addf %23, %26 : vector<49x256xf32>
    %c0_25 = arith.constant 0 : index
    %c3072 = arith.constant 3072 : index
    %28 = vector.load %arg8[%c0_25, %c3072] : memref<49x4608xbf16, #tpu.memory_space<vmem>>, vector<49x512xbf16>
    %c3072_26 = arith.constant 3072 : index
    %c0_27 = arith.constant 0 : index
    %29 = vector.load %arg5[%c3072_26, %c0_27] : memref<4608x256xbf16, #tpu.memory_space<vmem>>, vector<512x256xbf16>
    %cst_28 = arith.constant dense<0.000000e+00> : vector<49x256xf32>
    %30 = tpu.matmul %28, %29, %cst_28 {dimension_numbers = #tpu.dot_dimension_numbers<[1], [0], [0], [1], [0, 0, 1, 1], [], []>} : vector<49x512xbf16>, vector<512x256xbf16>, vector<49x256xf32> -> vector<49x256xf32>
    %31 = arith.addf %27, %30 : vector<49x256xf32>
    %c0_29 = arith.constant 0 : index
    %c3584 = arith.constant 3584 : index
    %32 = vector.load %arg8[%c0_29, %c3584] : memref<49x4608xbf16, #tpu.memory_space<vmem>>, vector<49x512xbf16>
    %c3584_30 = arith.constant 3584 : index
    %c0_31 = arith.constant 0 : index
    %33 = vector.load %arg5[%c3584_30, %c0_31] : memref<4608x256xbf16, #tpu.memory_space<vmem>>, vector<512x256xbf16>
    %cst_32 = arith.constant dense<0.000000e+00> : vector<49x256xf32>
    %34 = tpu.matmul %32, %33, %cst_32 {dimension_numbers = #tpu.dot_dimension_numbers<[1], [0], [0], [1], [0, 0, 1, 1], [], []>} : vector<49x512xbf16>, vector<512x256xbf16>, vector<49x256xf32> -> vector<49x256xf32>
    %35 = arith.addf %31, %34 : vector<49x256xf32>
    %c0_33 = arith.constant 0 : index
    %c4096 = arith.constant 4096 : index
    %36 = vector.load %arg8[%c0_33, %c4096] : memref<49x4608xbf16, #tpu.memory_space<vmem>>, vector<49x512xbf16>
    %c4096_34 = arith.constant 4096 : index
    %c0_35 = arith.constant 0 : index
    %37 = vector.load %arg5[%c4096_34, %c0_35] : memref<4608x256xbf16, #tpu.memory_space<vmem>>, vector<512x256xbf16>
    %cst_36 = arith.constant dense<0.000000e+00> : vector<49x256xf32>
    %38 = tpu.matmul %36, %37, %cst_36 {dimension_numbers = #tpu.dot_dimension_numbers<[1], [0], [0], [1], [0, 0, 1, 1], [], []>} : vector<49x512xbf16>, vector<512x256xbf16>, vector<49x256xf32> -> vector<49x256xf32>
    %39 = arith.addf %35, %38 : vector<49x256xf32>
    %c0_37 = arith.constant 0 : index
    %c0_38 = arith.constant 0 : index
    %40 = vector.load %arg6[%c0_37, %c0_38] : memref<49x256xf32, #tpu.memory_space<vmem>>, vector<49x256xf32>
    tpu.vector_store %arg6[%c0_37, %c0_38], %39 {strides = array<i32>} : memref<49x256xf32, #tpu.memory_space<vmem>>, vector<49x256xf32>,
    return
  }
  func.func @transform_0(%arg0: i32) -> (i32, i32) {
    %c0_i32 = arith.constant 0 : i32
    %c0_i32_0 = arith.constant 0 : i32
    %c0_i32_1 = arith.constant 0 : i32
    return %c0_i32, %c0_i32_0 : i32, i32
  }
  func.func @transform_1(%arg0: i32) -> (i32, i32) {
    %c0_i32 = arith.constant 0 : i32
    %c0_i32_0 = arith.constant 0 : i32
    %c0_i32_1 = arith.constant 0 : i32
    return %c0_i32, %c0_i32_0 : i32, i32
  }
  func.func @transform_2(%arg0: i32) -> (i32, i32) {
    %c0_i32 = arith.constant 0 : i32
    %c0_i32_0 = arith.constant 0 : i32
    %c0_i32_1 = arith.constant 0 : i32
    return %c0_i32, %c0_i32_0 : i32, i32
  }
  func.func @transform_3(%arg0: i32) -> (i32, i32) {
    %c0_i32 = arith.constant 0 : i32
    %c0_i32_0 = arith.constant 0 : i32
    %c0_i32_1 = arith.constant 0 : i32
    return %c0_i32, %c0_i32_0 : i32, i32
  }
  func.func @transform_4(%arg0: i32) -> (i32, i32) {
    %c0_i32 = arith.constant 0 : i32
    %c0_i32_0 = arith.constant 0 : i32
    return %c0_i32, %arg0 : i32, i32
  }
  func.func @transform_5(%arg0: i32) -> (i32, i32) {
    %c0_i32 = arith.constant 0 : i32
    %c0_i32_0 = arith.constant 0 : i32
    return %c0_i32, %arg0 : i32, i32
  }
}

</mosaic_0001>

<llo_original>
// kernel: tpu_custom_call.1
$region0: #{tpu_custom_call.1}
  #allocation0 [shape = 'u32[]', space=smem, size = 0x4, offset = 0x4, fixed_abs, tag = 'smem constant byte address 0x4 - core index']
  #allocation1 [shape = 'u32[144,128]{1,0:T(1,128)}', space=vmem, size = 0x12000, scoped, tag = 'internal scratch']
  #allocation2 [shape = 'bf16[81,512]{1,0:T(8,128)(2,1)}', space=vmem, size = 0x16000, scoped, tag = 'scratch operand']
  #allocation3 [shape = 'bf16[49,4608]{1,0:T(8,128)(2,1)}', space=vmem, size = 0x7e000, scoped, tag = 'scratch operand']
  %s0 = inlined_call_operand.hbm [shape: f32[49,512], index: 0, kind: input, shape index: {}]
  %s1 = inlined_call_operand.hbm [shape: f32[49,512], index: 1, kind: input, shape index: {}]
  %s2 = inlined_call_operand.hbm [shape: f32[1,512], index: 2, kind: input, shape index: {}]
  %s3 = inlined_call_operand.hbm [shape: f32[1,512], index: 3, kind: input, shape index: {}]
  %s4 = inlined_call_operand.hbm [shape: bf16[4608,512], index: 4, kind: input, shape index: {}]
  %s5 = inlined_call_operand.hbm [shape: f32[49,512], index: 5, kind: output, shape index: {}]
  %s6 = sld [smem:[#allocation0]]
  $region77: #{tpu_custom_call.1} parent=0
    _
  %s8 = ssub.s32 1, %s6
  %s9 = scalar_select 0, %s8, %s6
  $region1: #{tpu_custom_call.1} parent=0
    #allocation4 [shape = 'u8[114688]{0}', space=vmem, size = 0x1c000, scoped, tag = 'input window, operand 0, single buffered']
    #allocation5 [shape = 's32[2]{0}', space=sflag, size = 0x8, scoped, tag = 'scoped memory for tpu_custom_call.1']
    #allocation6 [shape = 's32[2]{0}', space=sflag, size = 0x8, scoped, tag = 'scoped memory for tpu_custom_call.1']
    #allocation7 [shape = 'u8[114688]{0}', space=vmem, size = 0x1c000, scoped, tag = 'input window, operand 1, single buffered']
    #allocation8 [shape = 's32[1]{0}', space=sflag, size = 0x4, scoped, tag = 'scoped memory for tpu_custom_call.1']
    #allocation9 [shape = 'u8[2048]{0}', space=vmem, size = 0x800, scoped, tag = 'input window, operand 2, single buffered']
    #allocation10 [shape = 'u8[2048]{0}', space=vmem, size = 0x800, scoped, tag = 'input window, operand 3, single buffered']
    #allocation11 [shape = 's32[1]{0}', space=sflag, size = 0x4, scoped, tag = 'scoped memory for tpu_custom_call.1']
    #allocation12 [shape = 'u8[4718592]{0}', space=vmem, size = 0x480000, scoped, tag = 'input window, operand 4']
    #allocation13 [shape = 'u8[114688]{0}', space=vmem, size = 0x1c000, scoped, tag = 'output window, operand 0']
    %10 = vsyncpa [#allocation5], 0
    %11 = vsyncpa [#allocation8], 0
    %12 = vsyncpa [#allocation11], 0
    %13 = vsyncpa [#allocation6], 0
    %s14 = scalar_lea.sflag [#allocation6], 1
    %15 = vsyncpa %s14, 0
    loop: start=0, step=1, limit=4
    $region2: #{tpu_custom_call.1} parent=1 // loop_pre_header
      _
    $region3: #{tpu_custom_call.1} parent=1 // loop_header
      %s17 = sphi 0, %s21
      %p18 = scmp.ge.s32.totalorder %s17, 4
      %s25 = sphi 0, %s25
      %s27 = sphi 0, %s25
      %s28 = sphi 0, %s27
      %s42 = sphi 0, %s28
      %s46 = sphi 0, %s46
      %s48 = sphi 0, %s46
      %s49 = sphi 0, %s48
      %s63 = sphi 0, %s49
      %s67 = sphi 0, %s67
      %s69 = sphi 0, %s67
      %s70 = sphi 0, %s69
      %s84 = sphi 0, %s70
      %s88 = sphi 0, %s88
      %s90 = sphi 0, %s88
      %s91 = sphi 0, %s90
      %s105 = sphi 0, %s91
      %s111 = sphi 0, %s113
      %s114 = sphi 0, %s111
      %s115 = sphi 0, %s114
      %s131 = sphi 0, %s115
      %s137 = sphi 0, %s139
      %s140 = sphi 0, %s137
      %s141 = sphi 0, %s140
      %s157 = sphi 0, %s141
    $region4: #{tpu_custom_call.1} parent=1 // loop_header_branch
      %20 = sbr.rel (%p18) target = $region8
    $region5: #{tpu_custom_call.1} parent=1 // loop_body
      %s22 = ssub.s32 %s17, 1
      %s23 = ssub.s32 %s17, 2
      %s24 = sadd.s32 %s17, 1
      %s26 = sadd.s32 %s25, 1
      %p29 = scmp.eq.s32.totalorder %s17, 1
      %p30 = scmp.ne.s32.totalorder %s25, %s27
      %p31 = scmp.eq.s32.totalorder %s17, 0
      %p32 = por %p30, %p31
      %p33 = scmp.ne.s32.totalorder %s25, %s27
      %p34 = scmp.eq.s32.totalorder %s22, 1
      %p35 = por %p33, %p34
      %p36 = scmp.ne.s32.totalorder %s27, %s28
      %p37 = scmp.eq.s32.totalorder %s22, 0
      %p38 = por %p36, %p37
      %p39 = scmp.ne.s32.totalorder %s27, %s28
      %p40 = scmp.eq.s32.totalorder %s23, 1
      %p41 = por %p39, %p40
      %p43 = scmp.ne.s32.totalorder %s28, %s42
      %p44 = scmp.eq.s32.totalorder %s23, 0
      %p45 = por %p43, %p44
      %s47 = sadd.s32 %s46, 1
      %p50 = scmp.eq.s32.totalorder %s17, 1
      %p51 = scmp.ne.s32.totalorder %s46, %s48
      %p52 = scmp.eq.s32.totalorder %s17, 0
      %p53 = por %p51, %p52
      %p54 = scmp.ne.s32.totalorder %s46, %s48
      %p55 = scmp.eq.s32.totalorder %s22, 1
      %p56 = por %p54, %p55
      %p57 = scmp.ne.s32.totalorder %s48, %s49
      %p58 = scmp.eq.s32.totalorder %s22, 0
      %p59 = por %p57, %p58
      %p60 = scmp.ne.s32.totalorder %s48, %s49
      %p61 = scmp.eq.s32.totalorder %s23, 1
      %p62 = por %p60, %p61
      %p64 = scmp.ne.s32.totalorder %s49, %s63
      %p65 = scmp.eq.s32.totalorder %s23, 0
      %p66 = por %p64, %p65
      %s68 = sadd.s32 %s67, 1
      %p71 = scmp.eq.s32.totalorder %s17, 1
      %p72 = scmp.ne.s32.totalorder %s67, %s69
      %p73 = scmp.eq.s32.totalorder %s17, 0
      %p74 = por %p72, %p73
      %p75 = scmp.ne.s32.totalorder %s67, %s69
      %p76 = scmp.eq.s32.totalorder %s22, 1
      %p77 = por %p75, %p76
      %p78 = scmp.ne.s32.totalorder %s69, %s70
      %p79 = scmp.eq.s32.totalorder %s22, 0
      %p80 = por %p78, %p79
      %p81 = scmp.ne.s32.totalorder %s69, %s70
      %p82 = scmp.eq.s32.totalorder %s23, 1
      %p83 = por %p81, %p82
      %p85 = scmp.ne.s32.totalorder %s70, %s84
      %p86 = scmp.eq.s32.totalorder %s23, 0
      %p87 = por %p85, %p86
      %s89 = sadd.s32 %s88, 1
      %p92 = scmp.eq.s32.totalorder %s17, 1
      %p93 = scmp.ne.s32.totalorder %s88, %s90
      %p94 = scmp.eq.s32.totalorder %s17, 0
      %p95 = por %p93, %p94
      %p96 = scmp.ne.s32.totalorder %s88, %s90
      %p97 = scmp.eq.s32.totalorder %s22, 1
      %p98 = por %p96, %p97
      %p99 = scmp.ne.s32.totalorder %s90, %s91
      %p100 = scmp.eq.s32.totalorder %s22, 0
      %p101 = por %p99, %p100
      %p102 = scmp.ne.s32.totalorder %s90, %s91
      %p103 = scmp.eq.s32.totalorder %s23, 1
      %p104 = por %p102, %p103
      %p106 = scmp.ne.s32.totalorder %s91, %s105
      %p107 = scmp.eq.s32.totalorder %s23, 0
      %p108 = por %p106, %p107
      %s109 = ssub.s32 %s17, %s24
      %p110 = scmp.eq.s32.totalorder %s109, 0
      %s112 = sadd.s32 %s111, 1
      %s113 = scalar_select %p110, %s111, %s112
      %p116 = pneg %p110
      %p117 = scmp.eq.s32.totalorder %s17, 1
      %p118 = por %p116, %p117
      %p119 = scmp.ne.s32.totalorder %s111, %s114
      %p120 = scmp.eq.s32.totalorder %s17, 0
      %p121 = por %p119, %p120
      %p122 = scmp.ne.s32.totalorder %s111, %s114
      %p123 = scmp.eq.s32.totalorder %s22, 1
      %p124 = por %p122, %p123
      %p125 = scmp.ne.s32.totalorder %s114, %s115
      %p126 = scmp.eq.s32.totalorder %s22, 0
      %p127 = por %p125, %p126
      %p128 = scmp.ne.s32.totalorder %s114, %s115
      %p129 = scmp.eq.s32.totalorder %s23, 1
      %p130 = por %p128, %p129
      %p132 = scmp.ne.s32.totalorder %s115, %s131
      %p133 = scmp.eq.s32.totalorder %s23, 0
      %p134 = por %p132, %p133
      %s135 = ssub.s32 %s17, %s24
      %p136 = scmp.eq.s32.totalorder %s135, 0
      %s138 = sadd.s32 %s137, 1
      %s139 = scalar_select %p136, %s137, %s138
      %p142 = pneg %p136
      %p143 = scmp.eq.s32.totalorder %s17, 1
      %p144 = por %p142, %p143
      %p145 = scmp.ne.s32.totalorder %s137, %s140
      %p146 = scmp.eq.s32.totalorder %s17, 0
      %p147 = por %p145, %p146
      %p148 = scmp.ne.s32.totalorder %s137, %s140
      %p149 = scmp.eq.s32.totalorder %s22, 1
      %p150 = por %p148, %p149
      %p151 = scmp.ne.s32.totalorder %s140, %s141
      %p152 = scmp.eq.s32.totalorder %s22, 0
      %p153 = por %p151, %p152
      %p154 = scmp.ne.s32.totalorder %s140, %s141
      %p155 = scmp.eq.s32.totalorder %s23, 1
      %p156 = por %p154, %p155
      %p158 = scmp.ne.s32.totalorder %s141, %s157
      %p159 = scmp.eq.s32.totalorder %s23, 0
      %p160 = por %p158, %p159
      %p161 = scmp.le.s32.totalorder 1, %s17
      %p162 = scmp.lt.s32.totalorder %s17, 3
      %p163 = pnand %p161, %p162
      %p164 = pneg %p163
      // Predicated region
      $region9: #{tpu_custom_call.1} parent=5 // pred_check
        _
      $region10: #{tpu_custom_call.1} parent=5 // pred_check_branch
        %166 = sbr.rel (%p163) target = $region12
      $region11: #{tpu_custom_call.1} parent=5 // pred_region
        %s167 = ssub.s32 %s17, 1
        // Predicated region
        $region13: #{tpu_custom_call.1} parent=11 // pred_check
          %p168 = pneg %p38
        $region14: #{tpu_custom_call.1} parent=11 // pred_check_branch
          %170 = sbr.rel (%p168) target = $region16
        $region15: #{tpu_custom_call.1} parent=11 // pred_region
          %s172 = ssub.s32 3584, 3584
          %173 = vsyncadd [#allocation5], %s172
          %s174 = sshll.u32 [#allocation4], 4
          %s175 = int_to_ptr.vmem [resolvable:$true] %s174
          %180 = dma.hbm_to_vmem [thread:$0]  %s0, 3584, %s175, [#allocation5], 512, 512, 32
        $region16: #{tpu_custom_call.1} parent=11 // pred_fallthru
          _
        // Predicated region
        $region17: #{tpu_custom_call.1} parent=11 // pred_check
          %p181 = pneg %p59
        $region18: #{tpu_custom_call.1} parent=11 // pred_check_branch
          %183 = sbr.rel (%p181) target = $region20
        $region19: #{tpu_custom_call.1} parent=11 // pred_region
          %s185 = ssub.s32 3584, 3584
          %186 = vsyncadd [#allocation8], %s185
          %s187 = sshll.u32 [#allocation7], 4
          %s188 = int_to_ptr.vmem [resolvable:$true] %s187
          %193 = dma.hbm_to_vmem [thread:$0]  %s1, 3584, %s188, [#allocation8], 512, 512, 32
        $region20: #{tpu_custom_call.1} parent=11 // pred_fallthru
          _
        // Predicated region
        $region21: #{tpu_custom_call.1} parent=11 // pred_check
          %p194 = pneg %p80
        $region22: #{tpu_custom_call.1} parent=11 // pred_check_branch
          %196 = sbr.rel (%p194) target = $region24
        $region23: #{tpu_custom_call.1} parent=11 // pred_region
          %s198 = ssub.s32 64, 64
          %199 = vsyncadd [#allocation8], %s198
          %s201 = sshll.u32 [#allocation9], 4
          %s202 = int_to_ptr.vmem [resolvable:$true] %s201
          %204 = dma.hbm_to_vmem [thread:$0]  %s2, 64, %s202, [#allocation8]
        $region24: #{tpu_custom_call.1} parent=11 // pred_fallthru
          _
        // Predicated region
        $region25: #{tpu_custom_call.1} parent=11 // pred_check
          %p205 = pneg %p101
        $region26: #{tpu_custom_call.1} parent=11 // pred_check_branch
          %207 = sbr.rel (%p205) target = $region28
        $region27: #{tpu_custom_call.1} parent=11 // pred_region
          %s209 = ssub.s32 64, 64
          %210 = vsyncadd [#allocation11], %s209
          %s212 = sshll.u32 [#allocation10], 4
          %s213 = int_to_ptr.vmem [resolvable:$true] %s212
          %215 = dma.hbm_to_vmem [thread:$0]  %s3, 64, %s213, [#allocation11]
        $region28: #{tpu_custom_call.1} parent=11 // pred_fallthru
          _
      $region12: #{tpu_custom_call.1} parent=5 // pred_fallthru
        _
      %p216 = scmp.lt.s32.totalorder %s17, 2
      // Predicated region
      $region29: #{tpu_custom_call.1} parent=5 // pred_check
        %p217 = pneg %p216
      $region30: #{tpu_custom_call.1} parent=5 // pred_check_branch
        %219 = sbr.rel (%p217) target = $region32
      $region31: #{tpu_custom_call.1} parent=5 // pred_region
        // Predicated region
        $region33: #{tpu_custom_call.1} parent=31 // pred_check
          %p220 = pneg %p121
        $region34: #{tpu_custom_call.1} parent=31 // pred_check_branch
          %222 = sbr.rel (%p220) target = $region36
        $region35: #{tpu_custom_call.1} parent=31 // pred_region
          %s223 = sand.u32 %s17, 1
          %s224 = scalar_lea.sflag [#allocation5], %s223
          %s225 = sand.u32 %s111, 1
          %s226 = smul.addr %s225, 4608
          %s227 = scalar_lea.vmem [#allocation12], %s226
          %s228 = smul.u32 2, %s17
          %s230 = ssub.s32 73728, 73728
          %231 = vsyncadd %s224, %s230
          %s232 = smul.addr %s228, 64
          %s233 = scalar_lea.hbm %s4, %s232
          %s234 = sshll.u32 %s227, 4
          %s235 = int_to_ptr.vmem [resolvable:$true] %s234
          %240 = dma.hbm_to_vmem [thread:$0]  %s233, 73728, %s235, %s224, 256, 128, 8
        $region36: #{tpu_custom_call.1} parent=31 // pred_fallthru
          _
      $region32: #{tpu_custom_call.1} parent=5 // pred_fallthru
        _
      %p241 = scmp.le.s32.totalorder 1, %s17
      %p242 = scmp.lt.s32.totalorder %s17, 3
      %p243 = pnand %p241, %p242
      %p244 = pneg %p243
      // Predicated region
      $region37: #{tpu_custom_call.1} parent=5 // pred_check
        _
      $region38: #{tpu_custom_call.1} parent=5 // pred_check_branch
        %246 = sbr.rel (%p243) target = $region40
      $region39: #{tpu_custom_call.1} parent=5 // pred_region
        %s247 = ssub.s32 %s17, 1
        // Predicated region
        $region41: #{tpu_custom_call.1} parent=39 // pred_check
          %p248 = pneg %p38
        $region42: #{tpu_custom_call.1} parent=39 // pred_check_branch
          %250 = sbr.rel (%p248) target = $region44
        $region43: #{tpu_custom_call.1} parent=39 // pred_region
          %251 = dma.done [#allocation5], 3584
        $region44: #{tpu_custom_call.1} parent=39 // pred_fallthru
          _
        // Predicated region
        $region45: #{tpu_custom_call.1} parent=39 // pred_check
          %p252 = pneg %p59
        $region46: #{tpu_custom_call.1} parent=39 // pred_check_branch
          %254 = sbr.rel (%p252) target = $region48
        $region47: #{tpu_custom_call.1} parent=39 // pred_region
          %255 = dma.done [#allocation8], 3584
        $region48: #{tpu_custom_call.1} parent=39 // pred_fallthru
          _
        // Predicated region
        $region49: #{tpu_custom_call.1} parent=39 // pred_check
          %p256 = pneg %p80
        $region50: #{tpu_custom_call.1} parent=39 // pred_check_branch
          %258 = sbr.rel (%p256) target = $region52
        $region51: #{tpu_custom_call.1} parent=39 // pred_region
          %259 = dma.done [#allocation8], 64
        $region52: #{tpu_custom_call.1} parent=39 // pred_fallthru
          _
        // Predicated region
        $region53: #{tpu_custom_call.1} parent=39 // pred_check
          %p260 = pneg %p101
        $region54: #{tpu_custom_call.1} parent=39 // pred_check_branch
          %262 = sbr.rel (%p260) target = $region56
        $region55: #{tpu_custom_call.1} parent=39 // pred_region
          %263 = dma.done [#allocation11], 64
        $region56: #{tpu_custom_call.1} parent=39 // pred_fallthru
          _
        %s264 = sand.u32 %s22, 1
        %s265 = scalar_lea.sflag [#allocation5], %s264
        %s266 = sand.u32 %s114, 1
        %s267 = smul.addr %s266, 4608
        %s268 = scalar_lea.vmem [#allocation12], %s267
        // Predicated region
        $region57: #{tpu_custom_call.1} parent=39 // pred_check
          %p269 = pneg %p127
        $region58: #{tpu_custom_call.1} parent=39 // pred_check_branch
          %271 = sbr.rel (%p269) target = $region60
        $region59: #{tpu_custom_call.1} parent=39 // pred_region
          %272 = dma.done %s265, 73728
        $region60: #{tpu_custom_call.1} parent=39 // pred_fallthru
          _
        %p273 = pneg %p38
        %p274 = pneg %p35
        %p275 = pneg %p59
        %p276 = pneg %p56
        %p277 = pneg %p80
        %p278 = pneg %p77
        %p279 = pneg %p101
        %p280 = pneg %p98
        %s281 = sand.u32 %s22, 1
        %s282 = scalar_lea.sflag [#allocation5], %s281
        %s283 = sand.u32 %s114, 1
        %s284 = smul.addr %s283, 4608
        %s285 = scalar_lea.vmem [#allocation12], %s284
        %p286 = pneg %p127
        %p287 = pneg %p124
        %p288 = pneg %p153
        %p289 = pneg %p150
        %s290 = sand.u32 %s140, 1
        %s291 = scalar_lea.sflag [#allocation6], %s290
        %s292 = sand.u32 %s140, 1
        %s293 = smul.addr %s292, 112
        %s294 = scalar_lea.vmem [#allocation13], %s293
        %s295 = smul.u32 2, %s22
        %s296 = smul.u32 2, %s22
        %p300 = scmp.eq.s32.totalorder %s22, 0
        // Predicated region
        $region61: #{tpu_custom_call.1} parent=39 // pred_check
          %p301 = pneg %p300
        $region62: #{tpu_custom_call.1} parent=39 // pred_check_branch
          %303 = sbr.rel (%p301) target = $region64
        $region63: #{tpu_custom_call.1} parent=39 // pred_region
          %v304 = vld [vmem:[#allocation4] sm:$0xff]
          %v305 = vld [vmem:[#allocation4 + $0x8] sm:$0xff]
          %v306 = vld [vmem:[#allocation4 + $0x10] sm:$0xff]
          %v307 = vld [vmem:[#allocation4 + $0x18] sm:$0xff]
          %v308 = vld [vmem:[#allocation4 + $0x20] sm:$0xff]
          %v309 = vld [vmem:[#allocation4 + $0x28] sm:$0xff]
          %v310 = vld [vmem:[#allocation4 + $0x30] sm:$0xff]
          %v311 = vld [vmem:[#allocation4 + $0x38] sm:$0xff]
          %v312 = vld [vmem:[#allocation4 + $0x40] sm:$0xff]
          %v313 = vld [vmem:[#allocation4 + $0x48] sm:$0xff]
          %v314 = vld [vmem:[#allocation4 + $0x50] sm:$0xff]
          %v315 = vld [vmem:[#allocation4 + $0x58] sm:$0xff]
          %v316 = vld [vmem:[#allocation4 + $0x60] sm:$0xff]
          %v317 = vld [vmem:[#allocation4 + $0x68] sm:$0xff]
          %v318 = vld [vmem:[#allocation4 + $0x70] sm:$0xff]
          %v319 = vld [vmem:[#allocation4 + $0x78] sm:$0xff]
          %v320 = vld [vmem:[#allocation4 + $0x80] sm:$0xff]
          %v321 = vld [vmem:[#allocation4 + $0x88] sm:$0xff]
          %v322 = vld [vmem:[#allocation4 + $0x90] sm:$0xff]
          %v323 = vld [vmem:[#allocation4 + $0x98] sm:$0xff]
          %v324 = vld [vmem:[#allocation4 + $0xa0] sm:$0xff]
          %v325 = vld [vmem:[#allocation4 + $0xa8] sm:$0xff]
          %v326 = vld [vmem:[#allocation4 + $0xb0] sm:$0xff]
          %v327 = vld [vmem:[#allocation4 + $0xb8] sm:$0xff]
          %v328 = vld [vmem:[#allocation4 + $0xc0] sm:$0x1]
          %v329 = vld [vmem:[#allocation4 + $0xc8] sm:$0x1]
          %v330 = vld [vmem:[#allocation4 + $0xd0] sm:$0x1]
          %v331 = vld [vmem:[#allocation4 + $0xd8] sm:$0x1]
          %v332 = vadd.f32 %v304, %v308
          %v333 = vadd.f32 %v332, %v312
          %v334 = vadd.f32 %v333, %v316
          %v335 = vadd.f32 %v334, %v320
          %v336 = vadd.f32 %v335, %v324
          %vm337 = vcmask 1040384
          %v338 = vsel %vm337, %v328, 0.0
          %v339 = vadd.f32 %v336, %v338
          %v340 = vrot.slane %v339, 4
          %v341 = vadd.f32 %v339, %v340
          %v342 = vrot.slane %v341, 2
          %v343 = vadd.f32 %v341, %v342
          %v344 = vrot.slane %v343, 1
          %v345 = vadd.f32 %v343, %v344
          %v346 = vadd.f32 %v305, %v309
          %v347 = vadd.f32 %v346, %v313
          %v348 = vadd.f32 %v347, %v317
          %v349 = vadd.f32 %v348, %v321
          %v350 = vadd.f32 %v349, %v325
          %v351 = vsel %vm337, %v329, 0.0
          %v352 = vadd.f32 %v350, %v351
          %v353 = vrot.slane %v352, 4
          %v354 = vadd.f32 %v352, %v353
          %v355 = vrot.slane %v354, 2
          %v356 = vadd.f32 %v354, %v355
          %v357 = vrot.slane %v356, 1
          %v358 = vadd.f32 %v356, %v357
          %v359 = vadd.f32 %v306, %v310
          %v360 = vadd.f32 %v359, %v314
          %v361 = vadd.f32 %v360, %v318
          %v362 = vadd.f32 %v361, %v322
          %v363 = vadd.f32 %v362, %v326
          %v364 = vsel %vm337, %v330, 0.0
          %v365 = vadd.f32 %v363, %v364
          %v366 = vrot.slane %v365, 4
          %v367 = vadd.f32 %v365, %v366
          %v368 = vrot.slane %v367, 2
          %v369 = vadd.f32 %v367, %v368
          %v370 = vrot.slane %v369, 1
          %v371 = vadd.f32 %v369, %v370
          %v372 = vadd.f32 %v307, %v311
          %v373 = vadd.f32 %v372, %v315
          %v374 = vadd.f32 %v373, %v319
          %v375 = vadd.f32 %v374, %v323
          %v376 = vadd.f32 %v375, %v327
          %v377 = vsel %vm337, %v331, 0.0
          %v378 = vadd.f32 %v376, %v377
          %v379 = vrot.slane %v378, 4
          %v380 = vadd.f32 %v378, %v379
          %v381 = vrot.slane %v380, 2
          %v382 = vadd.f32 %v380, %v381
          %v383 = vrot.slane %v382, 1
          %v384 = vadd.f32 %v382, %v383
          %v385 = vmul.f32 %v345, 0.020408163
          %v386 = vmul.f32 %v358, 0.020408163
          %v387 = vmul.f32 %v371, 0.020408163
          %v388 = vmul.f32 %v384, 0.020408163
          %v389 = vmul.f32 %v304, %v304
          %v390 = vmul.f32 %v305, %v305
          %v391 = vmul.f32 %v306, %v306
          %v392 = vmul.f32 %v307, %v307
          %v393 = vmul.f32 %v308, %v308
          %v394 = vmul.f32 %v309, %v309
          %v395 = vmul.f32 %v310, %v310
          %v396 = vmul.f32 %v311, %v311
          %v397 = vmul.f32 %v312, %v312
          %v398 = vmul.f32 %v313, %v313
          %v399 = vmul.f32 %v314, %v314
          %v400 = vmul.f32 %v315, %v315
          %v401 = vmul.f32 %v316, %v316
          %v402 = vmul.f32 %v317, %v317
          %v403 = vmul.f32 %v318, %v318
          %v404 = vmul.f32 %v319, %v319
          %v405 = vmul.f32 %v320, %v320
          %v406 = vmul.f32 %v321, %v321
          %v407 = vmul.f32 %v322, %v322
          %v408 = vmul.f32 %v323, %v323
          %v409 = vmul.f32 %v324, %v324
          %v410 = vmul.f32 %v325, %v325
          %v411 = vmul.f32 %v326, %v326
          %v412 = vmul.f32 %v327, %v327
          %v413 = vmul.f32 %v328, %v328
          %v414 = vmul.f32 %v329, %v329
          %v415 = vmul.f32 %v330, %v330
          %v416 = vmul.f32 %v331, %v331
          %v417 = vadd.f32 %v389, %v393
          %v418 = vadd.f32 %v417, %v397
          %v419 = vadd.f32 %v418, %v401
          %v420 = vadd.f32 %v419, %v405
          %v421 = vadd.f32 %v420, %v409
          %v422 = vsel %vm337, %v413, 0.0
          %v423 = vadd.f32 %v421, %v422
          %v424 = vrot.slane %v423, 4
          %v425 = vadd.f32 %v423, %v424
          %v426 = vrot.slane %v425, 2
          %v427 = vadd.f32 %v425, %v426
          %v428 = vrot.slane %v427, 1
          %v429 = vadd.f32 %v427, %v428
          %v430 = vadd.f32 %v390, %v394
          %v431 = vadd.f32 %v430, %v398
          %v432 = vadd.f32 %v431, %v402
          %v433 = vadd.f32 %v432, %v406
          %v434 = vadd.f32 %v433, %v410
          %v435 = vsel %vm337, %v414, 0.0
          %v436 = vadd.f32 %v434, %v435
          %v437 = vrot.slane %v436, 4
          %v438 = vadd.f32 %v436, %v437
          %v439 = vrot.slane %v438, 2
          %v440 = vadd.f32 %v438, %v439
          %v441 = vrot.slane %v440, 1
          %v442 = vadd.f32 %v440, %v441
          %v443 = vadd.f32 %v391, %v395
          %v444 = vadd.f32 %v443, %v399
          %v445 = vadd.f32 %v444, %v403
          %v446 = vadd.f32 %v445, %v407
          %v447 = vadd.f32 %v446, %v411
          %v448 = vsel %vm337, %v415, 0.0
          %v449 = vadd.f32 %v447, %v448
          %v450 = vrot.slane %v449, 4
          %v451 = vadd.f32 %v449, %v450
          %v452 = vrot.slane %v451, 2
          %v453 = vadd.f32 %v451, %v452
          %v454 = vrot.slane %v453, 1
          %v455 = vadd.f32 %v453, %v454
          %v456 = vadd.f32 %v392, %v396
          %v457 = vadd.f32 %v456, %v400
          %v458 = vadd.f32 %v457, %v404
          %v459 = vadd.f32 %v458, %v408
          %v460 = vadd.f32 %v459, %v412
          %v461 = vsel %vm337, %v416, 0.0
          %v462 = vadd.f32 %v460, %v461
          %v463 = vrot.slane %v462, 4
          %v464 = vadd.f32 %v462, %v463
          %v465 = vrot.slane %v464, 2
          %v466 = vadd.f32 %v464, %v465
          %v467 = vrot.slane %v466, 1
          %v468 = vadd.f32 %v466, %v467
          %v469 = vmul.f32 %v429, 0.020408163
          %v470 = vmul.f32 %v442, 0.020408163
          %v471 = vmul.f32 %v455, 0.020408163
          %v472 = vmul.f32 %v468, 0.020408163
          %v473 = vmul.f32 %v385, %v385
          %v474 = vmul.f32 %v386, %v386
          %v475 = vmul.f32 %v387, %v387
          %v476 = vmul.f32 %v388, %v388
          %v477 = vsub.f32 %v469, %v473
          %v478 = vsub.f32 %v470, %v474
          %v479 = vsub.f32 %v471, %v475
          %v480 = vsub.f32 %v472, %v476
          %v481 = vld [vmem:[#allocation9] sm:$0xf]
          %v482 = vadd.f32 %v477, 1e-05
          %v483 = vadd.f32 %v478, 1e-05
          %v484 = vadd.f32 %v479, 1e-05
          %v485 = vadd.f32 %v480, 1e-05
          %v486 = vrsqrt.pop %v482
          %v487 = vrsqrt.pop %v483
          %v488 = vrsqrt.pop %v484
          %v489 = vrsqrt.pop %v485
          %v494 = vcombine.low %v486, %v487
          %v495 = vcombine.low %v488, %v489
          %v497 = vunpack.c.l.s4 1966171168
          %v498 = vunpack.c.0.s8 %v497
          %v499 = vlaneseq
          %v500 = vshrl.u32 %v499, 7
          %v501 = vsub.s32 %v498, %v500
          %v502 = vrot.slane %v494, %v501
          %v504 = vunpack.c.l.s4 1966171168
          %v505 = vunpack.c.0.s8 %v504
          %v506 = vlaneseq
          %v507 = vshrl.u32 %v506, 7
          %v508 = vsub.s32 %v505, %v507
          %v509 = vrot.slane %v495, %v508
          %v510 = vcombine.low %v502, %v509
          %v512 = vunpack.c.l.s4 1966171168
          %v513 = vunpack.c.0.s8 %v512
          %v514 = vlaneseq
          %v515 = vshrl.u32 %v514, 7
          %v516 = vsub.s32 %v513, %v515
          %v517 = vrot.slane %v510, %v516
          %v519 = vmul.f32 %v481, %v517
          %v520 = vld [vmem:[#allocation10] sm:$0xf]
          %v522 = vlaneseq
          %v523 = vshrl.u32 %v522, 7
          %v524 = vsub.s32 0, %v523
          %v525 = vrot.slane %v519, %v524
          %v526 = vlaneseq
          %v527 = vshrl.u32 %v526, 7
          %v528 = vsub.s32 1, %v527
          %v529 = vrot.slane %v519, %v528
          %v530 = vlaneseq
          %v531 = vshrl.u32 %v530, 7
          %v532 = vsub.s32 2, %v531
          %v533 = vrot.slane %v519, %v532
          %v534 = vlaneseq
          %v535 = vshrl.u32 %v534, 7
          %v536 = vsub.s32 3, %v535
          %v537 = vrot.slane %v519, %v536
          %v542 = vmul.f32 %v385, %v525
          %v543 = vmul.f32 %v386, %v529
          %v544 = vmul.f32 %v387, %v533
          %v545 = vmul.f32 %v388, %v537
          %v550 = vcombine.low %v542, %v543
          %v551 = vcombine.low %v544, %v545
          %v553 = vunpack.c.l.s4 1966171168
          %v554 = vunpack.c.0.s8 %v553
          %v555 = vlaneseq
          %v556 = vshrl.u32 %v555, 7
          %v557 = vsub.s32 %v554, %v556
          %v558 = vrot.slane %v550, %v557
          %v560 = vunpack.c.l.s4 1966171168
          %v561 = vunpack.c.0.s8 %v560
          %v562 = vlaneseq
          %v563 = vshrl.u32 %v562, 7
          %v564 = vsub.s32 %v561, %v563
          %v565 = vrot.slane %v551, %v564
          %v566 = vcombine.low %v558, %v565
          %v568 = vunpack.c.l.s4 1966171168
          %v569 = vunpack.c.0.s8 %v568
          %v570 = vlaneseq
          %v571 = vshrl.u32 %v570, 7
          %v572 = vsub.s32 %v569, %v571
          %v573 = vrot.slane %v566, %v572
          %v575 = vsub.f32 %v520, %v573
          %v576 = vmul.f32 %v304, %v525
          %v577 = vmul.f32 %v305, %v529
          %v578 = vmul.f32 %v306, %v533
          %v579 = vmul.f32 %v307, %v537
          %v580 = vmul.f32 %v308, %v525
          %v581 = vmul.f32 %v309, %v529
          %v582 = vmul.f32 %v310, %v533
          %v583 = vmul.f32 %v311, %v537
          %v584 = vmul.f32 %v312, %v525
          %v585 = vmul.f32 %v313, %v529
          %v586 = vmul.f32 %v314, %v533
          %v587 = vmul.f32 %v315, %v537
          %v588 = vmul.f32 %v316, %v525
          %v589 = vmul.f32 %v317, %v529
          %v590 = vmul.f32 %v318, %v533
          %v591 = vmul.f32 %v319, %v537
          %v592 = vmul.f32 %v320, %v525
          %v593 = vmul.f32 %v321, %v529
          %v594 = vmul.f32 %v322, %v533
          %v595 = vmul.f32 %v323, %v537
          %v596 = vmul.f32 %v324, %v525
          %v597 = vmul.f32 %v325, %v529
          %v598 = vmul.f32 %v326, %v533
          %v599 = vmul.f32 %v327, %v537
          %v600 = vmul.f32 %v328, %v525
          %v601 = vmul.f32 %v329, %v529
          %v602 = vmul.f32 %v330, %v533
          %v603 = vmul.f32 %v331, %v537
          %v605 = vlaneseq
          %v606 = vshrl.u32 %v605, 7
          %v607 = vsub.s32 0, %v606
          %v608 = vrot.slane %v575, %v607
          %v609 = vlaneseq
          %v610 = vshrl.u32 %v609, 7
          %v611 = vsub.s32 1, %v610
          %v612 = vrot.slane %v575, %v611
          %v613 = vlaneseq
          %v614 = vshrl.u32 %v613, 7
          %v615 = vsub.s32 2, %v614
          %v616 = vrot.slane %v575, %v615
          %v617 = vlaneseq
          %v618 = vshrl.u32 %v617, 7
          %v619 = vsub.s32 3, %v618
          %v620 = vrot.slane %v575, %v619
          %v625 = vadd.f32 %v576, %v608
          %v626 = vadd.f32 %v577, %v612
          %v627 = vadd.f32 %v578, %v616
          %v628 = vadd.f32 %v579, %v620
          %v629 = vadd.f32 %v580, %v608
          %v630 = vadd.f32 %v581, %v612
          %v631 = vadd.f32 %v582, %v616
          %v632 = vadd.f32 %v583, %v620
          %v633 = vadd.f32 %v584, %v608
          %v634 = vadd.f32 %v585, %v612
          %v635 = vadd.f32 %v586, %v616
          %v636 = vadd.f32 %v587, %v620
          %v637 = vadd.f32 %v588, %v608
          %v638 = vadd.f32 %v589, %v612
          %v639 = vadd.f32 %v590, %v616
          %v640 = vadd.f32 %v591, %v620
          %v641 = vadd.f32 %v592, %v608
          %v642 = vadd.f32 %v593, %v612
          %v643 = vadd.f32 %v594, %v616
          %v644 = vadd.f32 %v595, %v620
          %v645 = vadd.f32 %v596, %v608
          %v646 = vadd.f32 %v597, %v612
          %v647 = vadd.f32 %v598, %v616
          %v648 = vadd.f32 %v599, %v620
          %v649 = vadd.f32 %v600, %v608
          %v650 = vadd.f32 %v601, %v612
          %v651 = vadd.f32 %v602, %v616
          %v652 = vadd.f32 %v603, %v620
          %v653 = vld [vmem:[#allocation7] sm:$0xff]
          %v654 = vld [vmem:[#allocation7 + $0x8] sm:$0xff]
          %v655 = vld [vmem:[#allocation7 + $0x10] sm:$0xff]
          %v656 = vld [vmem:[#allocation7 + $0x18] sm:$0xff]
          %v657 = vld [vmem:[#allocation7 + $0x20] sm:$0xff]
          %v658 = vld [vmem:[#allocation7 + $0x28] sm:$0xff]
          %v659 = vld [vmem:[#allocation7 + $0x30] sm:$0xff]
          %v660 = vld [vmem:[#allocation7 + $0x38] sm:$0xff]
          %v661 = vld [vmem:[#allocation7 + $0x40] sm:$0xff]
          %v662 = vld [vmem:[#allocation7 + $0x48] sm:$0xff]
          %v663 = vld [vmem:[#allocation7 + $0x50] sm:$0xff]
          %v664 = vld [vmem:[#allocation7 + $0x58] sm:$0xff]
          %v665 = vld [vmem:[#allocation7 + $0x60] sm:$0xff]
          %v666 = vld [vmem:[#allocation7 + $0x68] sm:$0xff]
          %v667 = vld [vmem:[#allocation7 + $0x70] sm:$0xff]
          %v668 = vld [vmem:[#allocation7 + $0x78] sm:$0xff]
          %v669 = vld [vmem:[#allocation7 + $0x80] sm:$0xff]
          %v670 = vld [vmem:[#allocation7 + $0x88] sm:$0xff]
          %v671 = vld [vmem:[#allocation7 + $0x90] sm:$0xff]
          %v672 = vld [vmem:[#allocation7 + $0x98] sm:$0xff]
          %v673 = vld [vmem:[#allocation7 + $0xa0] sm:$0xff]
          %v674 = vld [vmem:[#allocation7 + $0xa8] sm:$0xff]
          %v675 = vld [vmem:[#allocation7 + $0xb0] sm:$0xff]
          %v676 = vld [vmem:[#allocation7 + $0xb8] sm:$0xff]
          %v677 = vld [vmem:[#allocation7 + $0xc0] sm:$0x1]
          %v678 = vld [vmem:[#allocation7 + $0xc8] sm:$0x1]
          %v679 = vld [vmem:[#allocation7 + $0xd0] sm:$0x1]
          %v680 = vld [vmem:[#allocation7 + $0xd8] sm:$0x1]
          %v681 = vadd.f32 %v625, %v653
          %v682 = vadd.f32 %v626, %v654
          %v683 = vadd.f32 %v627, %v655
          %v684 = vadd.f32 %v628, %v656
          %v685 = vadd.f32 %v629, %v657
          %v686 = vadd.f32 %v630, %v658
          %v687 = vadd.f32 %v631, %v659
          %v688 = vadd.f32 %v632, %v660
          %v689 = vadd.f32 %v633, %v661
          %v690 = vadd.f32 %v634, %v662
          %v691 = vadd.f32 %v635, %v663
          %v692 = vadd.f32 %v636, %v664
          %v693 = vadd.f32 %v637, %v665
          %v694 = vadd.f32 %v638, %v666
          %v695 = vadd.f32 %v639, %v667
          %v696 = vadd.f32 %v640, %v668
          %v697 = vadd.f32 %v641, %v669
          %v698 = vadd.f32 %v642, %v670
          %v699 = vadd.f32 %v643, %v671
          %v700 = vadd.f32 %v644, %v672
          %v701 = vadd.f32 %v645, %v673
          %v702 = vadd.f32 %v646, %v674
          %v703 = vadd.f32 %v647, %v675
          %v704 = vadd.f32 %v648, %v676
          %v705 = vadd.f32 %v649, %v677
          %v706 = vadd.f32 %v650, %v678
          %v707 = vadd.f32 %v651, %v679
          %v708 = vadd.f32 %v652, %v680
          %v709 = vmax.f32 %v681, 0.0
          %v710 = vmax.f32 %v682, 0.0
          %v711 = vmax.f32 %v683, 0.0
          %v712 = vmax.f32 %v684, 0.0
          %v713 = vmax.f32 %v685, 0.0
          %v714 = vmax.f32 %v686, 0.0
          %v715 = vmax.f32 %v687, 0.0
          %v716 = vmax.f32 %v688, 0.0
          %v717 = vmax.f32 %v689, 0.0
          %v718 = vmax.f32 %v690, 0.0
          %v719 = vmax.f32 %v691, 0.0
          %v720 = vmax.f32 %v692, 0.0
          %v721 = vmax.f32 %v693, 0.0
          %v722 = vmax.f32 %v694, 0.0
          %v723 = vmax.f32 %v695, 0.0
          %v724 = vmax.f32 %v696, 0.0
          %v725 = vmax.f32 %v697, 0.0
          %v726 = vmax.f32 %v698, 0.0
          %v727 = vmax.f32 %v699, 0.0
          %v728 = vmax.f32 %v700, 0.0
          %v729 = vmax.f32 %v701, 0.0
          %v730 = vmax.f32 %v702, 0.0
          %v731 = vmax.f32 %v703, 0.0
          %v732 = vmax.f32 %v704, 0.0
          %v733 = vmax.f32 %v705, 0.0
          %v734 = vmax.f32 %v706, 0.0
          %v735 = vmax.f32 %v707, 0.0
          %v736 = vmax.f32 %v708, 0.0
          %v737 = vpack.c.bf16 %v713, %v709
          %v738 = vpack.c.bf16 %v714, %v710
          %v739 = vpack.c.bf16 %v715, %v711
          %v740 = vpack.c.bf16 %v716, %v712
          %v741 = vpack.c.bf16 %v721, %v717
          %v742 = vpack.c.bf16 %v722, %v718
          %v743 = vpack.c.bf16 %v723, %v719
          %v744 = vpack.c.bf16 %v724, %v720
          %v745 = vpack.c.bf16 %v729, %v725
          %v746 = vpack.c.bf16 %v730, %v726
          %v747 = vpack.c.bf16 %v731, %v727
          %v748 = vpack.c.bf16 %v732, %v728
          %v749 = vpack.c.bf16 %v733, %v733
          %v750 = vpack.c.bf16 %v734, %v734
          %v751 = vpack.c.bf16 %v735, %v735
          %v752 = vpack.c.bf16 %v736, %v736
          %753 = vst [vmem:[#allocation2] sm:$0xff] 0
          %754 = vst [vmem:[#allocation2 + $0x8] sm:$0xff] 0
          %755 = vst [vmem:[#allocation2 + $0x10] sm:$0xff] 0
          %756 = vst [vmem:[#allocation2 + $0x18] sm:$0xff] 0
          %vm757 = vcmask 1043456
          %vm758 = vsmask.f32 7938
          %vm759 = vmand %vm757, %vm758
          %vm760 = vcmask 1047556
          %vm761 = vsmask.f32 7954
          %vm762 = vmand %vm760, %vm761
          %vm763 = vmor %vm762, %vm759
          %v764 = vld [vmem:[#allocation2 + $0x80] sm:$0xff]
          %v765 = vsel %vm763, 0, %v764
          %766 = vst [vmem:[#allocation2 + $0x80] sm:$0xff] %v765
          %v767 = vld [vmem:[#allocation2 + $0x88] sm:$0xff]
          %v768 = vsel %vm763, 0, %v767
          %769 = vst [vmem:[#allocation2 + $0x88] sm:$0xff] %v768
          %770 = vst [vmem:[#allocation2 + $0x90] sm:$0xff] 0
          %771 = vst [vmem:[#allocation2 + $0x98] sm:$0xff] 0
          %vm772 = vcmask 1040384
          %vm773 = vsmask.f32 256
          %vm774 = vmand %vm772, %vm773
          %vm775 = vcmask 1044484
          %vm776 = vsmask.f32 4352
          %vm777 = vmand %vm775, %vm776
          %vm778 = vmor %vm777, %vm774
          %v779 = vld [vmem:[#allocation2 + $0xa0] sm:$0x11]
          %v780 = vsel %vm778, 0, %v779
          %781 = vst [vmem:[#allocation2 + $0xa0] sm:$0x11] %v780
          %v782 = vld [vmem:[#allocation2 + $0xa8] sm:$0x11]
          %v783 = vsel %vm778, 0, %v782
          %784 = vst [vmem:[#allocation2 + $0xa8] sm:$0x11] %v783
          %v801 = vunpack.c.l.b16 %v737
          %v802 = vunpack.c.l.b16 %v738
          %v803 = vunpack.c.l.b16 %v739
          %v804 = vunpack.c.l.b16 %v740
          %v805 = vunpack.c.h.b16 %v737
          %v806 = vunpack.c.h.b16 %v738
          %v807 = vunpack.c.h.b16 %v739
          %v808 = vunpack.c.h.b16 %v740
          %v809 = vunpack.c.l.b16 %v741
          %v810 = vunpack.c.l.b16 %v742
          %v811 = vunpack.c.l.b16 %v743
          %v812 = vunpack.c.l.b16 %v744
          %v813 = vunpack.c.h.b16 %v741
          %v814 = vunpack.c.h.b16 %v742
          %v815 = vunpack.c.h.b16 %v743
          %v816 = vunpack.c.h.b16 %v744
          %v817 = vunpack.c.l.b16 %v745
          %v818 = vunpack.c.l.b16 %v746
          %v819 = vunpack.c.l.b16 %v747
          %v820 = vunpack.c.l.b16 %v748
          %v821 = vunpack.c.h.b16 %v745
          %v822 = vunpack.c.h.b16 %v746
          %v823 = vunpack.c.h.b16 %v747
          %v824 = vunpack.c.h.b16 %v748
          %v825 = vunpack.c.l.b16 %v749
          %v826 = vunpack.c.l.b16 %v750
          %v827 = vunpack.c.l.b16 %v751
          %v828 = vunpack.c.l.b16 %v752
          %v829 = vpack.c.b16 %v802, %v801
          %v830 = vpack.c.b16 %v804, %v803
          %v831 = vpack.c.b16 %v806, %v805
          %v832 = vpack.c.b16 %v808, %v807
          %v833 = vpack.c.b16 %v810, %v809
          %v834 = vpack.c.b16 %v812, %v811
          %v835 = vpack.c.b16 %v814, %v813
          %v836 = vpack.c.b16 %v816, %v815
          %v837 = vpack.c.b16 %v818, %v817
          %v838 = vpack.c.b16 %v820, %v819
          %v839 = vpack.c.b16 %v822, %v821
          %v840 = vpack.c.b16 %v824, %v823
          %v841 = vpack.c.b16 %v826, %v825
          %v842 = vpack.c.b16 %v828, %v827
          %857 = vst [vmem:[#allocation2 + $0x20] sm:$0xff] %v829
          %858 = vst [vmem:[#allocation2 + $0x28] sm:$0xff] %v830
          %859 = vst [vmem:[#allocation2 + $0x30] sm:$0xff] %v831
          %860 = vst [vmem:[#allocation2 + $0x38] sm:$0xff] %v832
          %861 = vst [vmem:[#allocation2 + $0x40] sm:$0xff] %v833
          %862 = vst [vmem:[#allocation2 + $0x48] sm:$0xff] %v834
          %863 = vst [vmem:[#allocation2 + $0x50] sm:$0xff] %v835
          %864 = vst [vmem:[#allocation2 + $0x58] sm:$0xff] %v836
          %865 = vst [vmem:[#allocation2 + $0x60] sm:$0xff] %v837
          %866 = vst [vmem:[#allocation2 + $0x68] sm:$0xff] %v838
          %867 = vst [vmem:[#allocation2 + $0x70] sm:$0xff] %v839
          %868 = vst [vmem:[#allocation2 + $0x78] sm:$0xff] %v840
          %v869 = vld [vmem:[#allocation2 + $0x80] sm:$0x11]
          %v870 = vsel %vm778, %v841, %v869
          %871 = vst [vmem:[#allocation2 + $0x80] sm:$0x11] %v870
          %v872 = vld [vmem:[#allocation2 + $0x88] sm:$0x11]
          %v873 = vsel %vm778, %v842, %v872
          %874 = vst [vmem:[#allocation2 + $0x88] sm:$0x11] %v873
          %v875 = vlaneseq
          %v876 = vshrl.u32 %v875, 7
          %v877 = vadd.s32 %v876, 8
          %v878 = vadd.s32 %v876, 16
          %v879 = vadd.s32 %v876, 24
          %v880 = vadd.s32 %v876, 32
          %v881 = vadd.s32 %v876, 40
          %v882 = vadd.s32 %v876, 48
          %v883 = vcvt.s32.f32 %v876
          %v884 = vcvt.s32.f32 %v877
          %v885 = vcvt.s32.f32 %v878
          %v886 = vcvt.s32.f32 %v879
          %v887 = vcvt.s32.f32 %v880
          %v888 = vcvt.s32.f32 %v881
          %v889 = vcvt.s32.f32 %v882
          %v890 = vmul.f32 %v883, 0.14285715
          %v891 = vmul.f32 %v884, 0.14285715
          %v892 = vmul.f32 %v885, 0.14285715
          %v893 = vmul.f32 %v886, 0.14285715
          %v894 = vmul.f32 %v887, 0.14285715
          %v895 = vmul.f32 %v888, 0.14285715
          %v896 = vmul.f32 %v889, 0.14285715
          %v897 = vadd.f32 %v890, 0.071428575
          %v898 = vadd.f32 %v891, 0.071428575
          %v899 = vadd.f32 %v892, 0.071428575
          %v900 = vadd.f32 %v893, 0.071428575
          %v901 = vadd.f32 %v894, 0.071428575
          %v902 = vadd.f32 %v895, 0.071428575
          %v903 = vadd.f32 %v896, 0.071428575
          %v904 = vfloor.f32 %v897
          %v905 = vfloor.f32 %v898
          %v906 = vfloor.f32 %v899
          %v907 = vfloor.f32 %v900
          %v908 = vfloor.f32 %v901
          %v909 = vfloor.f32 %v902
          %v910 = vfloor.f32 %v903
          %v911 = vmul.f32 %v904, 7.0
          %v912 = vmul.f32 %v905, 7.0
          %v913 = vmul.f32 %v906, 7.0
          %v914 = vmul.f32 %v907, 7.0
          %v915 = vmul.f32 %v908, 7.0
          %v916 = vmul.f32 %v909, 7.0
          %v917 = vmul.f32 %v910, 7.0
          %v918 = vsub.f32 %v883, %v911
          %v919 = vsub.f32 %v884, %v912
          %v920 = vsub.f32 %v885, %v913
          %v921 = vsub.f32 %v886, %v914
          %v922 = vsub.f32 %v887, %v915
          %v923 = vsub.f32 %v888, %v916
          %v924 = vsub.f32 %v889, %v917
          %vm925 = vcmp.gt.f32.partialorder %v918, 0.5
          %vm926 = vcmp.gt.f32.partialorder %v919, 0.5
          %vm927 = vcmp.gt.f32.partialorder %v920, 0.5
          %vm928 = vcmp.gt.f32.partialorder %v921, 0.5
          %vm929 = vcmp.gt.f32.partialorder %v922, 0.5
          %vm930 = vcmp.gt.f32.partialorder %v923, 0.5
          %vm931 = vcmp.gt.f32.partialorder %v924, 0.5
          %vm932 = vcmp.lt.f32.partialorder %v918, 5.5
          %vm933 = vcmp.lt.f32.partialorder %v919, 5.5
          %vm934 = vcmp.lt.f32.partialorder %v920, 5.5
          %vm935 = vcmp.lt.f32.partialorder %v921, 5.5
          %vm936 = vcmp.lt.f32.partialorder %v922, 5.5
          %vm937 = vcmp.lt.f32.partialorder %v923, 5.5
          %vm938 = vcmp.lt.f32.partialorder %v924, 5.5
          %v939 = vld [vmem:[#allocation2 + $0x10] sm:$0xff]
          %v940 = vld [vmem:[#allocation2 + $0x18] sm:$0xff]
          %v941 = vld [vmem:[#allocation2 + $0x20] sm:$0xff]
          %v942 = vld [vmem:[#allocation2 + $0x28] sm:$0xff]
          %v943 = vld [vmem:[#allocation2 + $0x30] sm:$0xff]
          %v944 = vld [vmem:[#allocation2 + $0x38] sm:$0xff]
          %v945 = vld [vmem:[#allocation2 + $0x40] sm:$0xff]
          %v946 = vld [vmem:[#allocation2 + $0x48] sm:$0xff]
          %v947 = vld [vmem:[#allocation2 + $0x50] sm:$0xff]
          %v948 = vld [vmem:[#allocation2 + $0x58] sm:$0xff]
          %v949 = vld [vmem:[#allocation2 + $0x60] sm:$0xff]
          %v950 = vld [vmem:[#allocation2 + $0x68] sm:$0xff]
          %v951 = vld [vmem:[#allocation2 + $0x70] sm:$0x11]
          %v952 = vld [vmem:[#allocation2 + $0x78] sm:$0x11]
          %v953 = vsel %vm925, 1, 0
          %v954 = vsel %vm926, 1, 0
          %v955 = vsel %vm927, 1, 0
          %v956 = vsel %vm928, 1, 0
          %v957 = vsel %vm929, 1, 0
          %v958 = vsel %vm930, 1, 0
          %v959 = vsel %vm931, 1, 0
          %vm960 = vcmp.eq.s32.totalorder %v953, 1
          %vm961 = vcmp.eq.s32.totalorder %v954, 1
          %vm962 = vcmp.eq.s32.totalorder %v955, 1
          %vm963 = vcmp.eq.s32.totalorder %v956, 1
          %vm964 = vcmp.eq.s32.totalorder %v957, 1
          %vm965 = vcmp.eq.s32.totalorder %v958, 1
          %vm966 = vcmp.eq.s32.totalorder %v959, 1
          %vm967 = vmpackc.low %vm960, %vm960
          %vm968 = vmpackc.low %vm961, %vm961
          %vm969 = vmpackc.low %vm962, %vm962
          %vm970 = vmpackc.low %vm963, %vm963
          %vm971 = vmpackc.low %vm964, %vm964
          %vm972 = vmpackc.low %vm965, %vm965
          %vm973 = vmpackc.low %vm966, %vm966
          %v974 = vsel %vm967, %v939, 0
          %v975 = vsel %vm967, %v940, 0
          %v976 = vsel %vm968, %v941, 0
          %v977 = vsel %vm968, %v942, 0
          %v978 = vsel %vm969, %v943, 0
          %v979 = vsel %vm969, %v944, 0
          %v980 = vsel %vm970, %v945, 0
          %v981 = vsel %vm970, %v946, 0
          %v982 = vsel %vm971, %v947, 0
          %v983 = vsel %vm971, %v948, 0
          %v984 = vsel %vm972, %v949, 0
          %v985 = vsel %vm972, %v950, 0
          %v986 = vsel %vm973, %v951, 0
          %v987 = vsel %vm973, %v952, 0
          %988 = vst [vmem:[#allocation3] sm:$0xff] %v974
          %989 = vst [vmem:[#allocation3 + $0x8] sm:$0xff] %v975
          %990 = vst [vmem:[#allocation3 + $0x90] sm:$0xff] %v976
          %991 = vst [vmem:[#allocation3 + $0x98] sm:$0xff] %v977
          %992 = vst [vmem:[#allocation3 + $0x120] sm:$0xff] %v978
          %993 = vst [vmem:[#allocation3 + $0x128] sm:$0xff] %v979
          %994 = vst [vmem:[#allocation3 + $0x1b0] sm:$0xff] %v980
          %995 = vst [vmem:[#allocation3 + $0x1b8] sm:$0xff] %v981
          %996 = vst [vmem:[#allocation3 + $0x240] sm:$0xff] %v982
          %997 = vst [vmem:[#allocation3 + $0x248] sm:$0xff] %v983
          %998 = vst [vmem:[#allocation3 + $0x2d0] sm:$0xff] %v984
          %999 = vst [vmem:[#allocation3 + $0x2d8] sm:$0xff] %v985
          %v1000 = vld [vmem:[#allocation3 + $0x360] sm:$0x11]
          %v1001 = vsel %vm778, %v986, %v1000
          %1002 = vst [vmem:[#allocation3 + $0x360] sm:$0x11] %v1001
          %v1003 = vld [vmem:[#allocation3 + $0x368] sm:$0x11]
          %v1004 = vsel %vm778, %v987, %v1003
          %1005 = vst [vmem:[#allocation3 + $0x368] sm:$0x11] %v1004
          %v1006 = vld [vmem:[#allocation2 + $0x10] sm:$0xff]
          %v1007 = vld [vmem:[#allocation2 + $0x18] sm:$0xff]
          %v1008 = vld [vmem:[#allocation2 + $0x20] sm:$0xff]
          %v1009 = vld [vmem:[#allocation2 + $0x28] sm:$0xff]
          %v1010 = vld [vmem:[#allocation2 + $0x30] sm:$0xff]
          %v1011 = vld [vmem:[#allocation2 + $0x38] sm:$0xff]
          %v1012 = vld [vmem:[#allocation2 + $0x40] sm:$0xff]
          %v1013 = vld [vmem:[#allocation2 + $0x48] sm:$0xff]
          %v1014 = vld [vmem:[#allocation2 + $0x50] sm:$0xff]
          %v1015 = vld [vmem:[#allocation2 + $0x58] sm:$0xff]
          %v1016 = vld [vmem:[#allocation2 + $0x60] sm:$0xff]
          %v1017 = vld [vmem:[#allocation2 + $0x68] sm:$0xff]
          %v1018 = vld [vmem:[#allocation2 + $0x70] sm:$0x11]
          %v1019 = vld [vmem:[#allocation2 + $0x78] sm:$0x11]
          %vm1020 = vsmask.f32 3328
          %vm1021 = vsmask.f32 7440
          %vm1022 = vmor %vm1020, %vm1021
          %v1024 = vshrl.u32 %v1006, 16
          %v1026 = vrot.slane %v1024, 4
          %v1027 = vshll.u32 %v1006, 16
          %v1029 = vrot.slane %v1027, 5
          %v1030 = vor.u32 %v1026, %v1029
          %v1031 = vrot.slane %v1030, 4
          %v1033 = vshll.u32 %v1008, 16
          %v1035 = vrot.slane %v1033, 5
          %v1036 = vsel %vm1022, %v1031, %v1035
          %v1038 = vshrl.u32 %v1007, 16
          %v1040 = vrot.slane %v1038, 4
          %v1041 = vshll.u32 %v1007, 16
          %v1043 = vrot.slane %v1041, 5
          %v1044 = vor.u32 %v1040, %v1043
          %v1045 = vrot.slane %v1044, 4
          %v1047 = vshll.u32 %v1009, 16
          %v1049 = vrot.slane %v1047, 5
          %v1050 = vsel %vm1022, %v1045, %v1049
          %v1051 = vshrl.u32 %v1008, 16
          %v1053 = vrot.slane %v1051, 4
          %v1054 = vor.u32 %v1053, %v1035
          %v1055 = vrot.slane %v1054, 4
          %v1057 = vshll.u32 %v1010, 16
          %v1059 = vrot.slane %v1057, 5
          %v1060 = vsel %vm1022, %v1055, %v1059
          %v1061 = vshrl.u32 %v1009, 16
          %v1063 = vrot.slane %v1061, 4
          %v1064 = vor.u32 %v1063, %v1049
          %v1065 = vrot.slane %v1064, 4
          %v1067 = vshll.u32 %v1011, 16
          %v1069 = vrot.slane %v1067, 5
          %v1070 = vsel %vm1022, %v1065, %v1069
          %v1071 = vshrl.u32 %v1010, 16
          %v1073 = vrot.slane %v1071, 4
          %v1074 = vor.u32 %v1073, %v1059
          %v1075 = vrot.slane %v1074, 4
          %v1077 = vshll.u32 %v1012, 16
          %v1079 = vrot.slane %v1077, 5
          %v1080 = vsel %vm1022, %v1075, %v1079
          %v1081 = vshrl.u32 %v1011, 16
          %v1083 = vrot.slane %v1081, 4
          %v1084 = vor.u32 %v1083, %v1069
          %v1085 = vrot.slane %v1084, 4
          %v1087 = vshll.u32 %v1013, 16
          %v1089 = vrot.slane %v1087, 5
          %v1090 = vsel %vm1022, %v1085, %v1089
          %v1091 = vshrl.u32 %v1012, 16
          %v1093 = vrot.slane %v1091, 4
          %v1094 = vor.u32 %v1093, %v1079
          %v1095 = vrot.slane %v1094, 4
          %v1097 = vshll.u32 %v1014, 16
          %v1099 = vrot.slane %v1097, 5
          %v1100 = vsel %vm1022, %v1095, %v1099
          %v1101 = vshrl.u32 %v1013, 16
          %v1103 = vrot.slane %v1101, 4
          %v1104 = vor.u32 %v1103, %v1089
          %v1105 = vrot.slane %v1104, 4
          %v1107 = vshll.u32 %v1015, 16
          %v1109 = vrot.slane %v1107, 5
          %v1110 = vsel %vm1022, %v1105, %v1109
          %v1111 = vshrl.u32 %v1014, 16
          %v1113 = vrot.slane %v1111, 4
          %v1114 = vor.u32 %v1113, %v1099
          %v1115 = vrot.slane %v1114, 4
          %v1117 = vshll.u32 %v1016, 16
          %v1119 = vrot.slane %v1117, 5
          %v1120 = vsel %vm1022, %v1115, %v1119
          %v1121 = vshrl.u32 %v1015, 16
          %v1123 = vrot.slane %v1121, 4
          %v1124 = vor.u32 %v1123, %v1109
          %v1125 = vrot.slane %v1124, 4
          %v1127 = vshll.u32 %v1017, 16
          %v1129 = vrot.slane %v1127, 5
          %v1130 = vsel %vm1022, %v1125, %v1129
          %v1131 = vshrl.u32 %v1016, 16
          %v1133 = vrot.slane %v1131, 4
          %v1134 = vor.u32 %v1133, %v1119
          %v1135 = vrot.slane %v1134, 4
          %v1137 = vshll.u32 %v1018, 16
          %v1139 = vrot.slane %v1137, 5
          %v1140 = vsel %vm1022, %v1135, %v1139
          %v1141 = vshrl.u32 %v1017, 16
          %v1143 = vrot.slane %v1141, 4
          %v1144 = vor.u32 %v1143, %v1129
          %v1145 = vrot.slane %v1144, 4
          %v1147 = vshll.u32 %v1019, 16
          %v1149 = vrot.slane %v1147, 5
          %v1150 = vsel %vm1022, %v1145, %v1149
          %v1151 = vshrl.u32 %v1018, 16
          %v1153 = vrot.slane %v1151, 4
          %v1154 = vrot.slane %v1153, 4
          %v1155 = vshrl.u32 %v1019, 16
          %v1157 = vrot.slane %v1155, 4
          %v1158 = vrot.slane %v1157, 4
          %1173 = vst [vmem:[#allocation3 + $0x10] sm:$0xff] %v1036
          %1174 = vst [vmem:[#allocation3 + $0x18] sm:$0xff] %v1050
          %1175 = vst [vmem:[#allocation3 + $0xa0] sm:$0xff] %v1060
          %1176 = vst [vmem:[#allocation3 + $0xa8] sm:$0xff] %v1070
          %1177 = vst [vmem:[#allocation3 + $0x130] sm:$0xff] %v1080
          %1178 = vst [vmem:[#allocation3 + $0x138] sm:$0xff] %v1090
          %1179 = vst [vmem:[#allocation3 + $0x1c0] sm:$0xff] %v1100
          %1180 = vst [vmem:[#allocation3 + $0x1c8] sm:$0xff] %v1110
          %1181 = vst [vmem:[#allocation3 + $0x250] sm:$0xff] %v1120
          %1182 = vst [vmem:[#allocation3 + $0x258] sm:$0xff] %v1130
          %1183 = vst [vmem:[#allocation3 + $0x2e0] sm:$0xff] %v1140
          %1184 = vst [vmem:[#allocation3 + $0x2e8] sm:$0xff] %v1150
          %v1185 = vld [vmem:[#allocation3 + $0x370] sm:$0x11]
          %v1186 = vsel %vm778, %v1154, %v1185
          %1187 = vst [vmem:[#allocation3 + $0x370] sm:$0x11] %v1186
          %v1188 = vld [vmem:[#allocation3 + $0x378] sm:$0x11]
          %v1189 = vsel %vm778, %v1158, %v1188
          %1190 = vst [vmem:[#allocation3 + $0x378] sm:$0x11] %v1189
          %v1191 = vld [vmem:[#allocation2 + $0x10] sm:$0xee]
          %v1192 = vld [vmem:[#allocation2 + $0x18] sm:$0xee]
          %v1193 = vld [vmem:[#allocation2 + $0x20] sm:$0xff]
          %v1194 = vld [vmem:[#allocation2 + $0x28] sm:$0xff]
          %v1195 = vld [vmem:[#allocation2 + $0x30] sm:$0xff]
          %v1196 = vld [vmem:[#allocation2 + $0x38] sm:$0xff]
          %v1197 = vld [vmem:[#allocation2 + $0x40] sm:$0xff]
          %v1198 = vld [vmem:[#allocation2 + $0x48] sm:$0xff]
          %v1199 = vld [vmem:[#allocation2 + $0x50] sm:$0xff]
          %v1200 = vld [vmem:[#allocation2 + $0x58] sm:$0xff]
          %v1201 = vld [vmem:[#allocation2 + $0x60] sm:$0xff]
          %v1202 = vld [vmem:[#allocation2 + $0x68] sm:$0xff]
          %v1203 = vld [vmem:[#allocation2 + $0x70] sm:$0x33]
          %v1204 = vld [vmem:[#allocation2 + $0x78] sm:$0x33]
          %v1205 = vsel %vm932, 1, 0
          %v1206 = vsel %vm933, 1, 0
          %v1207 = vsel %vm934, 1, 0
          %v1208 = vsel %vm935, 1, 0
          %v1209 = vsel %vm936, 1, 0
          %v1210 = vsel %vm937, 1, 0
          %v1211 = vsel %vm938, 1, 0
          %vm1212 = vcmp.eq.s32.totalorder %v1205, 1
          %vm1213 = vcmp.eq.s32.totalorder %v1206, 1
          %vm1214 = vcmp.eq.s32.totalorder %v1207, 1
          %vm1215 = vcmp.eq.s32.totalorder %v1208, 1
          %vm1216 = vcmp.eq.s32.totalorder %v1209, 1
          %vm1217 = vcmp.eq.s32.totalorder %v1210, 1
          %vm1218 = vcmp.eq.s32.totalorder %v1211, 1
          %vm1219 = vmpackc.low %vm1212, %vm1212
          %vm1220 = vmpackc.low %vm1213, %vm1213
          %vm1221 = vmpackc.low %vm1214, %vm1214
          %vm1222 = vmpackc.low %vm1215, %vm1215
          %vm1223 = vmpackc.low %vm1216, %vm1216
          %vm1224 = vmpackc.low %vm1217, %vm1217
          %vm1225 = vmpackc.low %vm1218, %vm1218
          %v1226 = vsel %vm1219, 65537, 0
          %v1227 = vsel %vm1220, 65537, 0
          %v1228 = vsel %vm1221, 65537, 0
          %v1229 = vsel %vm1222, 65537, 0
          %v1230 = vsel %vm1223, 65537, 0
          %v1231 = vsel %vm1224, 65537, 0
          %v1232 = vsel %vm1225, 65537, 0
          %vm1233 = vmor %vm772, %vm775
          %v1234 = vrot.slane %v1226, 7
          %v1235 = vrot.slane %v1234, 4
          %v1236 = vrot.slane %v1227, 7
          %v1237 = vsel %vm1233, %v1235, %v1236
          %v1238 = vrot.slane %v1236, 4
          %v1239 = vrot.slane %v1228, 7
          %v1240 = vsel %vm1233, %v1238, %v1239
          %v1241 = vrot.slane %v1239, 4
          %v1242 = vrot.slane %v1229, 7
          %v1243 = vsel %vm1233, %v1241, %v1242
          %v1244 = vrot.slane %v1242, 4
          %v1245 = vrot.slane %v1230, 7
          %v1246 = vsel %vm1233, %v1244, %v1245
          %v1247 = vrot.slane %v1245, 4
          %v1248 = vrot.slane %v1231, 7
          %v1249 = vsel %vm1233, %v1247, %v1248
          %v1250 = vrot.slane %v1248, 4
          %v1251 = vrot.slane %v1232, 7
          %v1252 = vsel %vm1233, %v1250, %v1251
          %vm1253 = vcmp.ne.s16.totalorder %v1234, 0
          %vm1254 = vcmp.ne.s16.totalorder %v1237, 0
          %vm1255 = vcmp.ne.s16.totalorder %v1240, 0
          %vm1256 = vcmp.ne.s16.totalorder %v1243, 0
          %vm1257 = vcmp.ne.s16.totalorder %v1246, 0
          %vm1258 = vcmp.ne.s16.totalorder %v1249, 0
          %vm1259 = vcmp.ne.s16.totalorder %v1252, 0
          %v1260 = vsel %vm1253, %v1191, 0
          %v1261 = vsel %vm1253, %v1192, 0
          %v1262 = vsel %vm1254, %v1193, 0
          %v1263 = vsel %vm1254, %v1194, 0
          %v1264 = vsel %vm1255, %v1195, 0
          %v1265 = vsel %vm1255, %v1196, 0
          %v1266 = vsel %vm1256, %v1197, 0
          %v1267 = vsel %vm1256, %v1198, 0
          %v1268 = vsel %vm1257, %v1199, 0
          %v1269 = vsel %vm1257, %v1200, 0
          %v1270 = vsel %vm1258, %v1201, 0
          %v1271 = vsel %vm1258, %v1202, 0
          %v1272 = vsel %vm1259, %v1203, 0
          %v1273 = vsel %vm1259, %v1204, 0
          %vm1288 = vcmask 1042432
          %vm1289 = vcmask 1046532
          %vm1290 = vmor %vm1288, %vm1289
          %v1291 = vrot.slane %v1260, 5
          %v1292 = vrot.slane %v1291, 4
          %v1293 = vrot.slane %v1262, 5
          %v1294 = vsel %vm1290, %v1292, %v1293
          %v1295 = vrot.slane %v1261, 5
          %v1296 = vrot.slane %v1295, 4
          %v1297 = vrot.slane %v1263, 5
          %v1298 = vsel %vm1290, %v1296, %v1297
          %v1299 = vrot.slane %v1293, 4
          %v1300 = vrot.slane %v1264, 5
          %v1301 = vsel %vm1290, %v1299, %v1300
          %v1302 = vrot.slane %v1297, 4
          %v1303 = vrot.slane %v1265, 5
          %v1304 = vsel %vm1290, %v1302, %v1303
          %v1305 = vrot.slane %v1300, 4
          %v1306 = vrot.slane %v1266, 5
          %v1307 = vsel %vm1290, %v1305, %v1306
          %v1308 = vrot.slane %v1303, 4
          %v1309 = vrot.slane %v1267, 5
          %v1310 = vsel %vm1290, %v1308, %v1309
          %v1311 = vrot.slane %v1306, 4
          %v1312 = vrot.slane %v1268, 5
          %v1313 = vsel %vm1290, %v1311, %v1312
          %v1314 = vrot.slane %v1309, 4
          %v1315 = vrot.slane %v1269, 5
          %v1316 = vsel %vm1290, %v1314, %v1315
          %v1317 = vrot.slane %v1312, 4
          %v1318 = vrot.slane %v1270, 5
          %v1319 = vsel %vm1290, %v1317, %v1318
          %v1320 = vrot.slane %v1315, 4
          %v1321 = vrot.slane %v1271, 5
          %v1322 = vsel %vm1290, %v1320, %v1321
          %v1323 = vrot.slane %v1318, 4
          %v1324 = vrot.slane %v1272, 5
          %v1325 = vsel %vm1290, %v1323, %v1324
          %v1326 = vrot.slane %v1321, 4
          %v1327 = vrot.slane %v1273, 5
          %v1328 = vsel %vm1290, %v1326, %v1327
          %v1329 = vrot.slane %v1324, 4
          %v1330 = vrot.slane %v1327, 4
          %1345 = vst [vmem:[#allocation3 + $0x20] sm:$0xff] %v1294
          %1346 = vst [vmem:[#allocation3 + $0x28] sm:$0xff] %v1298
          %1347 = vst [vmem:[#allocation3 + $0xb0] sm:$0xff] %v1301
          %1348 = vst [vmem:[#allocation3 + $0xb8] sm:$0xff] %v1304
          %1349 = vst [vmem:[#allocation3 + $0x140] sm:$0xff] %v1307
          %1350 = vst [vmem:[#allocation3 + $0x148] sm:$0xff] %v1310
          %1351 = vst [vmem:[#allocation3 + $0x1d0] sm:$0xff] %v1313
          %1352 = vst [vmem:[#allocation3 + $0x1d8] sm:$0xff] %v1316
          %1353 = vst [vmem:[#allocation3 + $0x260] sm:$0xff] %v1319
          %1354 = vst [vmem:[#allocation3 + $0x268] sm:$0xff] %v1322
          %1355 = vst [vmem:[#allocation3 + $0x2f0] sm:$0xff] %v1325
          %1356 = vst [vmem:[#allocation3 + $0x2f8] sm:$0xff] %v1328
          %v1357 = vld [vmem:[#allocation3 + $0x380] sm:$0x11]
          %v1358 = vsel %vm778, %v1329, %v1357
          %1359 = vst [vmem:[#allocation3 + $0x380] sm:$0x11] %v1358
          %v1360 = vld [vmem:[#allocation3 + $0x388] sm:$0x11]
          %v1361 = vsel %vm778, %v1330, %v1360
          %1362 = vst [vmem:[#allocation3 + $0x388] sm:$0x11] %v1361
          %v1363 = vld [vmem:[#allocation2 + $0x10] sm:$0x88]
          %v1364 = vld [vmem:[#allocation2 + $0x18] sm:$0x88]
          %v1365 = vld [vmem:[#allocation2 + $0x20] sm:$0xff]
          %v1366 = vld [vmem:[#allocation2 + $0x28] sm:$0xff]
          %v1367 = vld [vmem:[#allocation2 + $0x30] sm:$0xff]
          %v1368 = vld [vmem:[#allocation2 + $0x38] sm:$0xff]
          %v1369 = vld [vmem:[#allocation2 + $0x40] sm:$0xff]
          %v1370 = vld [vmem:[#allocation2 + $0x48] sm:$0xff]
          %v1371 = vld [vmem:[#allocation2 + $0x50] sm:$0xff]
          %v1372 = vld [vmem:[#allocation2 + $0x58] sm:$0xff]
          %v1373 = vld [vmem:[#allocation2 + $0x60] sm:$0xff]
          %v1374 = vld [vmem:[#allocation2 + $0x68] sm:$0xff]
          %v1375 = vld [vmem:[#allocation2 + $0x70] sm:$0xff]
          %v1376 = vld [vmem:[#allocation2 + $0x78] sm:$0xff]
          %v1377 = vsel %vm967, 65537, 0
          %v1378 = vsel %vm968, 65537, 0
          %v1379 = vsel %vm969, 65537, 0
          %v1380 = vsel %vm970, 65537, 0
          %v1381 = vsel %vm971, 65537, 0
          %v1382 = vsel %vm972, 65537, 0
          %v1383 = vsel %vm973, 65537, 0
          %v1385 = vshll.u32 %v1377, 16
          %v1387 = vrot.slane %v1385, 5
          %v1388 = vshrl.u32 %v1377, 16
          %v1390 = vrot.slane %v1388, 4
          %v1391 = vor.u32 %v1390, %v1387
          %v1392 = vrot.slane %v1391, 4
          %v1394 = vshll.u32 %v1378, 16
          %v1396 = vrot.slane %v1394, 5
          %v1397 = vsel %vm1022, %v1392, %v1396
          %v1398 = vshrl.u32 %v1378, 16
          %v1400 = vrot.slane %v1398, 4
          %v1401 = vor.u32 %v1400, %v1396
          %v1402 = vrot.slane %v1401, 4
          %v1404 = vshll.u32 %v1379, 16
          %v1406 = vrot.slane %v1404, 5
          %v1407 = vsel %vm1022, %v1402, %v1406
          %v1408 = vshrl.u32 %v1379, 16
          %v1410 = vrot.slane %v1408, 4
          %v1411 = vor.u32 %v1410, %v1406
          %v1412 = vrot.slane %v1411, 4
          %v1414 = vshll.u32 %v1380, 16
          %v1416 = vrot.slane %v1414, 5
          %v1417 = vsel %vm1022, %v1412, %v1416
          %v1418 = vshrl.u32 %v1380, 16
          %v1420 = vrot.slane %v1418, 4
          %v1421 = vor.u32 %v1420, %v1416
          %v1422 = vrot.slane %v1421, 4
          %v1424 = vshll.u32 %v1381, 16
          %v1426 = vrot.slane %v1424, 5
          %v1427 = vsel %vm1022, %v1422, %v1426
          %v1428 = vshrl.u32 %v1381, 16
          %v1430 = vrot.slane %v1428, 4
          %v1431 = vor.u32 %v1430, %v1426
          %v1432 = vrot.slane %v1431, 4
          %v1434 = vshll.u32 %v1382, 16
          %v1436 = vrot.slane %v1434, 5
          %v1437 = vsel %vm1022, %v1432, %v1436
          %v1438 = vshrl.u32 %v1382, 16
          %v1440 = vrot.slane %v1438, 4
          %v1441 = vor.u32 %v1440, %v1436
          %v1442 = vrot.slane %v1441, 4
          %v1444 = vshll.u32 %v1383, 16
          %v1446 = vrot.slane %v1444, 5
          %v1447 = vsel %vm1022, %v1442, %v1446
          %vm1448 = vcmp.ne.s16.totalorder %v1387, 0
          %vm1449 = vcmp.ne.s16.totalorder %v1397, 0
          %vm1450 = vcmp.ne.s16.totalorder %v1407, 0
          %vm1451 = vcmp.ne.s16.totalorder %v1417, 0
          %vm1452 = vcmp.ne.s16.totalorder %v1427, 0
          %vm1453 = vcmp.ne.s16.totalorder %v1437, 0
          %vm1454 = vcmp.ne.s16.totalorder %v1447, 0
          %v1455 = vsel %vm1448, %v1363, 0
          %v1456 = vsel %vm1448, %v1364, 0
          %v1457 = vsel %vm1449, %v1365, 0
          %v1458 = vsel %vm1449, %v1366, 0
          %v1459 = vsel %vm1450, %v1367, 0
          %v1460 = vsel %vm1450, %v1368, 0
          %v1461 = vsel %vm1451, %v1369, 0
          %v1462 = vsel %vm1451, %v1370, 0
          %v1463 = vsel %vm1452, %v1371, 0
          %v1464 = vsel %vm1452, %v1372, 0
          %v1465 = vsel %vm1453, %v1373, 0
          %v1466 = vsel %vm1453, %v1374, 0
          %v1467 = vsel %vm1454, %v1375, 0
          %v1468 = vsel %vm1454, %v1376, 0
          %vm1469 = vsmask.f32 4368
          %vm1470 = vmor %vm773, %vm1469
          %v1472 = vshrl.u32 %v1455, 16
          %v1474 = vrot.slane %v1472, 7
          %v1475 = vrot.slane %v1474, 4
          %v1477 = vshrl.u32 %v1457, 16
          %v1479 = vrot.slane %v1477, 7
          %v1480 = vshll.u32 %v1457, 16
          %v1482 = vor.u32 %v1479, %v1480
          %v1483 = vsel %vm1470, %v1475, %v1482
          %v1485 = vshrl.u32 %v1456, 16
          %v1487 = vrot.slane %v1485, 7
          %v1488 = vrot.slane %v1487, 4
          %v1490 = vshrl.u32 %v1458, 16
          %v1492 = vrot.slane %v1490, 7
          %v1493 = vshll.u32 %v1458, 16
          %v1495 = vor.u32 %v1492, %v1493
          %v1496 = vsel %vm1470, %v1488, %v1495
          %v1497 = vrot.slane %v1479, 4
          %v1499 = vshrl.u32 %v1459, 16
          %v1501 = vrot.slane %v1499, 7
          %v1502 = vshll.u32 %v1459, 16
          %v1504 = vor.u32 %v1501, %v1502
          %v1505 = vsel %vm1470, %v1497, %v1504
          %v1506 = vrot.slane %v1492, 4
          %v1508 = vshrl.u32 %v1460, 16
          %v1510 = vrot.slane %v1508, 7
          %v1511 = vshll.u32 %v1460, 16
          %v1513 = vor.u32 %v1510, %v1511
          %v1514 = vsel %vm1470, %v1506, %v1513
          %v1515 = vrot.slane %v1501, 4
          %v1517 = vshrl.u32 %v1461, 16
          %v1519 = vrot.slane %v1517, 7
          %v1520 = vshll.u32 %v1461, 16
          %v1522 = vor.u32 %v1519, %v1520
          %v1523 = vsel %vm1470, %v1515, %v1522
          %v1524 = vrot.slane %v1510, 4
          %v1526 = vshrl.u32 %v1462, 16
          %v1528 = vrot.slane %v1526, 7
          %v1529 = vshll.u32 %v1462, 16
          %v1531 = vor.u32 %v1528, %v1529
          %v1532 = vsel %vm1470, %v1524, %v1531
          %v1533 = vrot.slane %v1519, 4
          %v1535 = vshrl.u32 %v1463, 16
          %v1537 = vrot.slane %v1535, 7
          %v1538 = vshll.u32 %v1463, 16
          %v1540 = vor.u32 %v1537, %v1538
          %v1541 = vsel %vm1470, %v1533, %v1540
          %v1542 = vrot.slane %v1528, 4
          %v1544 = vshrl.u32 %v1464, 16
          %v1546 = vrot.slane %v1544, 7
          %v1547 = vshll.u32 %v1464, 16
          %v1549 = vor.u32 %v1546, %v1547
          %v1550 = vsel %vm1470, %v1542, %v1549
          %v1551 = vrot.slane %v1537, 4
          %v1553 = vshrl.u32 %v1465, 16
          %v1555 = vrot.slane %v1553, 7
          %v1556 = vshll.u32 %v1465, 16
          %v1558 = vor.u32 %v1555, %v1556
          %v1559 = vsel %vm1470, %v1551, %v1558
          %v1560 = vrot.slane %v1546, 4
          %v1562 = vshrl.u32 %v1466, 16
          %v1564 = vrot.slane %v1562, 7
          %v1565 = vshll.u32 %v1466, 16
          %v1567 = vor.u32 %v1564, %v1565
          %v1568 = vsel %vm1470, %v1560, %v1567
          %v1569 = vrot.slane %v1555, 4
          %v1571 = vshrl.u32 %v1467, 16
          %v1573 = vrot.slane %v1571, 7
          %v1574 = vshll.u32 %v1467, 16
          %v1576 = vor.u32 %v1573, %v1574
          %v1577 = vsel %vm1470, %v1569, %v1576
          %v1578 = vrot.slane %v1564, 4
          %v1580 = vshrl.u32 %v1468, 16
          %v1582 = vrot.slane %v1580, 7
          %v1583 = vshll.u32 %v1468, 16
          %v1585 = vor.u32 %v1582, %v1583
          %v1586 = vsel %vm1470, %v1578, %v1585
          %v1587 = vrot.slane %v1573, 4
          %v1588 = vrot.slane %v1582, 4
          %1603 = vst [vmem:[#allocation3 + $0x30] sm:$0xff] %v1483
          %1604 = vst [vmem:[#allocation3 + $0x38] sm:$0xff] %v1496
          %1605 = vst [vmem:[#allocation3 + $0xc0] sm:$0xff] %v1505
          %1606 = vst [vmem:[#allocation3 + $0xc8] sm:$0xff] %v1514
          %1607 = vst [vmem:[#allocation3 + $0x150] sm:$0xff] %v1523
          %1608 = vst [vmem:[#allocation3 + $0x158] sm:$0xff] %v1532
          %1609 = vst [vmem:[#allocation3 + $0x1e0] sm:$0xff] %v1541
          %1610 = vst [vmem:[#allocation3 + $0x1e8] sm:$0xff] %v1550
          %1611 = vst [vmem:[#allocation3 + $0x270] sm:$0xff] %v1559
          %1612 = vst [vmem:[#allocation3 + $0x278] sm:$0xff] %v1568
          %1613 = vst [vmem:[#allocation3 + $0x300] sm:$0xff] %v1577
          %1614 = vst [vmem:[#allocation3 + $0x308] sm:$0xff] %v1586
          %v1615 = vld [vmem:[#allocation3 + $0x390] sm:$0x11]
          %v1616 = vsel %vm778, %v1587, %v1615
          %1617 = vst [vmem:[#allocation3 + $0x390] sm:$0x11] %v1616
          %v1618 = vld [vmem:[#allocation3 + $0x398] sm:$0x11]
          %v1619 = vsel %vm778, %v1588, %v1618
          %1620 = vst [vmem:[#allocation3 + $0x398] sm:$0x11] %v1619
          %v1621 = vld [vmem:[#allocation2 + $0x20] sm:$0xff]
          %v1622 = vld [vmem:[#allocation2 + $0x28] sm:$0xff]
          %v1623 = vld [vmem:[#allocation2 + $0x30] sm:$0xff]
          %v1624 = vld [vmem:[#allocation2 + $0x38] sm:$0xff]
          %v1625 = vld [vmem:[#allocation2 + $0x40] sm:$0xff]
          %v1626 = vld [vmem:[#allocation2 + $0x48] sm:$0xff]
          %v1627 = vld [vmem:[#allocation2 + $0x50] sm:$0xff]
          %v1628 = vld [vmem:[#allocation2 + $0x58] sm:$0xff]
          %v1629 = vld [vmem:[#allocation2 + $0x60] sm:$0xff]
          %v1630 = vld [vmem:[#allocation2 + $0x68] sm:$0xff]
          %v1631 = vld [vmem:[#allocation2 + $0x70] sm:$0xff]
          %v1632 = vld [vmem:[#allocation2 + $0x78] sm:$0xff]
          %v1633 = vld [vmem:[#allocation2 + $0x80] sm:$0x11]
          %v1634 = vld [vmem:[#allocation2 + $0x88] sm:$0x11]
          %1635 = vst [vmem:[#allocation3 + $0x40] sm:$0xff] %v1621
          %1636 = vst [vmem:[#allocation3 + $0x48] sm:$0xff] %v1622
          %1637 = vst [vmem:[#allocation3 + $0xd0] sm:$0xff] %v1623
          %1638 = vst [vmem:[#allocation3 + $0xd8] sm:$0xff] %v1624
          %1639 = vst [vmem:[#allocation3 + $0x160] sm:$0xff] %v1625
          %1640 = vst [vmem:[#allocation3 + $0x168] sm:$0xff] %v1626
          %1641 = vst [vmem:[#allocation3 + $0x1f0] sm:$0xff] %v1627
          %1642 = vst [vmem:[#allocation3 + $0x1f8] sm:$0xff] %v1628
          %1643 = vst [vmem:[#allocation3 + $0x280] sm:$0xff] %v1629
          %1644 = vst [vmem:[#allocation3 + $0x288] sm:$0xff] %v1630
          %1645 = vst [vmem:[#allocation3 + $0x310] sm:$0xff] %v1631
          %1646 = vst [vmem:[#allocation3 + $0x318] sm:$0xff] %v1632
          %v1647 = vld [vmem:[#allocation3 + $0x3a0] sm:$0x11]
          %v1648 = vsel %vm778, %v1633, %v1647
          %1649 = vst [vmem:[#allocation3 + $0x3a0] sm:$0x11] %v1648
          %v1650 = vld [vmem:[#allocation3 + $0x3a8] sm:$0x11]
          %v1651 = vsel %vm778, %v1634, %v1650
          %1652 = vst [vmem:[#allocation3 + $0x3a8] sm:$0x11] %v1651
          %v1653 = vld [vmem:[#allocation2 + $0x20] sm:$0xff]
          %v1654 = vld [vmem:[#allocation2 + $0x28] sm:$0xff]
          %v1655 = vld [vmem:[#allocation2 + $0x30] sm:$0xff]
          %v1656 = vld [vmem:[#allocation2 + $0x38] sm:$0xff]
          %v1657 = vld [vmem:[#allocation2 + $0x40] sm:$0xff]
          %v1658 = vld [vmem:[#allocation2 + $0x48] sm:$0xff]
          %v1659 = vld [vmem:[#allocation2 + $0x50] sm:$0xff]
          %v1660 = vld [vmem:[#allocation2 + $0x58] sm:$0xff]
          %v1661 = vld [vmem:[#allocation2 + $0x60] sm:$0xff]
          %v1662 = vld [vmem:[#allocation2 + $0x68] sm:$0xff]
          %v1663 = vld [vmem:[#allocation2 + $0x70] sm:$0xff]
          %v1664 = vld [vmem:[#allocation2 + $0x78] sm:$0xff]
          %v1665 = vld [vmem:[#allocation2 + $0x80] sm:$0x11]
          %v1666 = vld [vmem:[#allocation2 + $0x88] sm:$0x11]
          %v1668 = vshrl.u32 %v1226, 16
          %v1670 = vrot.slane %v1668, 7
          %v1671 = vshll.u32 %v1226, 16
          %v1673 = vor.u32 %v1670, %v1671
          %v1674 = vrot.slane %v1670, 4
          %v1676 = vshrl.u32 %v1227, 16
          %v1678 = vrot.slane %v1676, 7
          %v1679 = vshll.u32 %v1227, 16
          %v1681 = vor.u32 %v1678, %v1679
          %v1682 = vsel %vm1470, %v1674, %v1681
          %v1683 = vrot.slane %v1678, 4
          %v1685 = vshrl.u32 %v1228, 16
          %v1687 = vrot.slane %v1685, 7
          %v1688 = vshll.u32 %v1228, 16
          %v1690 = vor.u32 %v1687, %v1688
          %v1691 = vsel %vm1470, %v1683, %v1690
          %v1692 = vrot.slane %v1687, 4
          %v1694 = vshrl.u32 %v1229, 16
          %v1696 = vrot.slane %v1694, 7
          %v1697 = vshll.u32 %v1229, 16
          %v1699 = vor.u32 %v1696, %v1697
          %v1700 = vsel %vm1470, %v1692, %v1699
          %v1701 = vrot.slane %v1696, 4
          %v1703 = vshrl.u32 %v1230, 16
          %v1705 = vrot.slane %v1703, 7
          %v1706 = vshll.u32 %v1230, 16
          %v1708 = vor.u32 %v1705, %v1706
          %v1709 = vsel %vm1470, %v1701, %v1708
          %v1710 = vrot.slane %v1705, 4
          %v1712 = vshrl.u32 %v1231, 16
          %v1714 = vrot.slane %v1712, 7
          %v1715 = vshll.u32 %v1231, 16
          %v1717 = vor.u32 %v1714, %v1715
          %v1718 = vsel %vm1470, %v1710, %v1717
          %v1719 = vrot.slane %v1714, 4
          %v1721 = vshll.u32 %v1232, 16
          %v1723 = vsel %vm1470, %v1719, %v1721
          %vm1724 = vcmp.ne.s16.totalorder %v1673, 0
          %vm1725 = vcmp.ne.s16.totalorder %v1682, 0
          %vm1726 = vcmp.ne.s16.totalorder %v1691, 0
          %vm1727 = vcmp.ne.s16.totalorder %v1700, 0
          %vm1728 = vcmp.ne.s16.totalorder %v1709, 0
          %vm1729 = vcmp.ne.s16.totalorder %v1718, 0
          %vm1730 = vcmp.ne.s16.totalorder %v1723, 0
          %v1731 = vsel %vm1724, %v1653, 0
          %v1732 = vsel %vm1724, %v1654, 0
          %v1733 = vsel %vm1725, %v1655, 0
          %v1734 = vsel %vm1725, %v1656, 0
          %v1735 = vsel %vm1726, %v1657, 0
          %v1736 = vsel %vm1726, %v1658, 0
          %v1737 = vsel %vm1727, %v1659, 0
          %v1738 = vsel %vm1727, %v1660, 0
          %v1739 = vsel %vm1728, %v1661, 0
          %v1740 = vsel %vm1728, %v1662, 0
          %v1741 = vsel %vm1729, %v1663, 0
          %v1742 = vsel %vm1729, %v1664, 0
          %v1743 = vsel %vm1730, %v1665, 0
          %v1744 = vsel %vm1730, %v1666, 0
          %v1746 = vshrl.u32 %v1731, 16
          %v1748 = vrot.slane %v1746, 4
          %v1749 = vshll.u32 %v1731, 16
          %v1751 = vrot.slane %v1749, 5
          %v1752 = vor.u32 %v1748, %v1751
          %v1753 = vrot.slane %v1752, 4
          %v1755 = vshll.u32 %v1733, 16
          %v1757 = vrot.slane %v1755, 5
          %v1758 = vsel %vm1022, %v1753, %v1757
          %v1760 = vshrl.u32 %v1732, 16
          %v1762 = vrot.slane %v1760, 4
          %v1763 = vshll.u32 %v1732, 16
          %v1765 = vrot.slane %v1763, 5
          %v1766 = vor.u32 %v1762, %v1765
          %v1767 = vrot.slane %v1766, 4
          %v1769 = vshll.u32 %v1734, 16
          %v1771 = vrot.slane %v1769, 5
          %v1772 = vsel %vm1022, %v1767, %v1771
          %v1773 = vshrl.u32 %v1733, 16
          %v1775 = vrot.slane %v1773, 4
          %v1776 = vor.u32 %v1775, %v1757
          %v1777 = vrot.slane %v1776, 4
          %v1779 = vshll.u32 %v1735, 16
          %v1781 = vrot.slane %v1779, 5
          %v1782 = vsel %vm1022, %v1777, %v1781
          %v1783 = vshrl.u32 %v1734, 16
          %v1785 = vrot.slane %v1783, 4
          %v1786 = vor.u32 %v1785, %v1771
          %v1787 = vrot.slane %v1786, 4
          %v1789 = vshll.u32 %v1736, 16
          %v1791 = vrot.slane %v1789, 5
          %v1792 = vsel %vm1022, %v1787, %v1791
          %v1793 = vshrl.u32 %v1735, 16
          %v1795 = vrot.slane %v1793, 4
          %v1796 = vor.u32 %v1795, %v1781
          %v1797 = vrot.slane %v1796, 4
          %v1799 = vshll.u32 %v1737, 16
          %v1801 = vrot.slane %v1799, 5
          %v1802 = vsel %vm1022, %v1797, %v1801
          %v1803 = vshrl.u32 %v1736, 16
          %v1805 = vrot.slane %v1803, 4
          %v1806 = vor.u32 %v1805, %v1791
          %v1807 = vrot.slane %v1806, 4
          %v1809 = vshll.u32 %v1738, 16
          %v1811 = vrot.slane %v1809, 5
          %v1812 = vsel %vm1022, %v1807, %v1811
          %v1813 = vshrl.u32 %v1737, 16
          %v1815 = vrot.slane %v1813, 4
          %v1816 = vor.u32 %v1815, %v1801
          %v1817 = vrot.slane %v1816, 4
          %v1819 = vshll.u32 %v1739, 16
          %v1821 = vrot.slane %v1819, 5
          %v1822 = vsel %vm1022, %v1817, %v1821
          %v1823 = vshrl.u32 %v1738, 16
          %v1825 = vrot.slane %v1823, 4
          %v1826 = vor.u32 %v1825, %v1811
          %v1827 = vrot.slane %v1826, 4
          %v1829 = vshll.u32 %v1740, 16
          %v1831 = vrot.slane %v1829, 5
          %v1832 = vsel %vm1022, %v1827, %v1831
          %v1833 = vshrl.u32 %v1739, 16
          %v1835 = vrot.slane %v1833, 4
          %v1836 = vor.u32 %v1835, %v1821
          %v1837 = vrot.slane %v1836, 4
          %v1839 = vshll.u32 %v1741, 16
          %v1841 = vrot.slane %v1839, 5
          %v1842 = vsel %vm1022, %v1837, %v1841
          %v1843 = vshrl.u32 %v1740, 16
          %v1845 = vrot.slane %v1843, 4
          %v1846 = vor.u32 %v1845, %v1831
          %v1847 = vrot.slane %v1846, 4
          %v1849 = vshll.u32 %v1742, 16
          %v1851 = vrot.slane %v1849, 5
          %v1852 = vsel %vm1022, %v1847, %v1851
          %v1853 = vshrl.u32 %v1741, 16
          %v1855 = vrot.slane %v1853, 4
          %v1856 = vor.u32 %v1855, %v1841
          %v1857 = vrot.slane %v1856, 4
          %v1859 = vshll.u32 %v1743, 16
          %v1861 = vrot.slane %v1859, 5
          %v1862 = vsel %vm1022, %v1857, %v1861
          %v1863 = vshrl.u32 %v1742, 16
          %v1865 = vrot.slane %v1863, 4
          %v1866 = vor.u32 %v1865, %v1851
          %v1867 = vrot.slane %v1866, 4
          %v1869 = vshll.u32 %v1744, 16
          %v1871 = vrot.slane %v1869, 5
          %v1872 = vsel %vm1022, %v1867, %v1871
          %v1873 = vshrl.u32 %v1743, 16
          %v1875 = vrot.slane %v1873, 4
          %v1876 = vrot.slane %v1875, 4
          %v1877 = vshrl.u32 %v1744, 16
          %v1879 = vrot.slane %v1877, 4
          %v1880 = vrot.slane %v1879, 4
          %1895 = vst [vmem:[#allocation3 + $0x50] sm:$0xff] %v1758
          %1896 = vst [vmem:[#allocation3 + $0x58] sm:$0xff] %v1772
          %1897 = vst [vmem:[#allocation3 + $0xe0] sm:$0xff] %v1782
          %1898 = vst [vmem:[#allocation3 + $0xe8] sm:$0xff] %v1792
          %1899 = vst [vmem:[#allocation3 + $0x170] sm:$0xff] %v1802
          %1900 = vst [vmem:[#allocation3 + $0x178] sm:$0xff] %v1812
          %1901 = vst [vmem:[#allocation3 + $0x200] sm:$0xff] %v1822
          %1902 = vst [vmem:[#allocation3 + $0x208] sm:$0xff] %v1832
          %1903 = vst [vmem:[#allocation3 + $0x290] sm:$0xff] %v1842
          %1904 = vst [vmem:[#allocation3 + $0x298] sm:$0xff] %v1852
          %1905 = vst [vmem:[#allocation3 + $0x320] sm:$0xff] %v1862
          %1906 = vst [vmem:[#allocation3 + $0x328] sm:$0xff] %v1872
          %v1907 = vld [vmem:[#allocation3 + $0x3b0] sm:$0x11]
          %v1908 = vsel %vm778, %v1876, %v1907
          %1909 = vst [vmem:[#allocation3 + $0x3b0] sm:$0x11] %v1908
          %v1910 = vld [vmem:[#allocation3 + $0x3b8] sm:$0x11]
          %v1911 = vsel %vm778, %v1880, %v1910
          %1912 = vst [vmem:[#allocation3 + $0x3b8] sm:$0x11] %v1911
          %v1913 = vld [vmem:[#allocation2 + $0x20] sm:$0x88]
          %v1914 = vld [vmem:[#allocation2 + $0x28] sm:$0x88]
          %v1915 = vld [vmem:[#allocation2 + $0x30] sm:$0xff]
          %v1916 = vld [vmem:[#allocation2 + $0x38] sm:$0xff]
          %v1917 = vld [vmem:[#allocation2 + $0x40] sm:$0xff]
          %v1918 = vld [vmem:[#allocation2 + $0x48] sm:$0xff]
          %v1919 = vld [vmem:[#allocation2 + $0x50] sm:$0xff]
          %v1920 = vld [vmem:[#allocation2 + $0x58] sm:$0xff]
          %v1921 = vld [vmem:[#allocation2 + $0x60] sm:$0xff]
          %v1922 = vld [vmem:[#allocation2 + $0x68] sm:$0xff]
          %v1923 = vld [vmem:[#allocation2 + $0x70] sm:$0xff]
          %v1924 = vld [vmem:[#allocation2 + $0x78] sm:$0xff]
          %v1925 = vld [vmem:[#allocation2 + $0x80] sm:$0xff]
          %v1926 = vld [vmem:[#allocation2 + $0x88] sm:$0xff]
          %v1927 = vrot.slane %v1377, 5
          %v1928 = vrot.slane %v1927, 4
          %v1929 = vrot.slane %v1378, 5
          %v1930 = vsel %vm1290, %v1928, %v1929
          %v1931 = vrot.slane %v1929, 4
          %v1932 = vrot.slane %v1379, 5
          %v1933 = vsel %vm1290, %v1931, %v1932
          %v1934 = vrot.slane %v1932, 4
          %v1935 = vrot.slane %v1380, 5
          %v1936 = vsel %vm1290, %v1934, %v1935
          %v1937 = vrot.slane %v1935, 4
          %v1938 = vrot.slane %v1381, 5
          %v1939 = vsel %vm1290, %v1937, %v1938
          %v1940 = vrot.slane %v1938, 4
          %v1941 = vrot.slane %v1382, 5
          %v1942 = vsel %vm1290, %v1940, %v1941
          %v1943 = vrot.slane %v1941, 4
          %v1944 = vrot.slane %v1383, 5
          %v1945 = vsel %vm1290, %v1943, %v1944
          %vm1946 = vcmp.ne.s16.totalorder %v1927, 0
          %vm1947 = vcmp.ne.s16.totalorder %v1930, 0
          %vm1948 = vcmp.ne.s16.totalorder %v1933, 0
          %vm1949 = vcmp.ne.s16.totalorder %v1936, 0
          %vm1950 = vcmp.ne.s16.totalorder %v1939, 0
          %vm1951 = vcmp.ne.s16.totalorder %v1942, 0
          %vm1952 = vcmp.ne.s16.totalorder %v1945, 0
          %v1953 = vsel %vm1946, %v1913, 0
          %v1954 = vsel %vm1946, %v1914, 0
          %v1955 = vsel %vm1947, %v1915, 0
          %v1956 = vsel %vm1947, %v1916, 0
          %v1957 = vsel %vm1948, %v1917, 0
          %v1958 = vsel %vm1948, %v1918, 0
          %v1959 = vsel %vm1949, %v1919, 0
          %v1960 = vsel %vm1949, %v1920, 0
          %v1961 = vsel %vm1950, %v1921, 0
          %v1962 = vsel %vm1950, %v1922, 0
          %v1963 = vsel %vm1951, %v1923, 0
          %v1964 = vsel %vm1951, %v1924, 0
          %v1965 = vsel %vm1952, %v1925, 0
          %v1966 = vsel %vm1952, %v1926, 0
          %v1981 = vrot.slane %v1953, 7
          %v1982 = vrot.slane %v1981, 4
          %v1983 = vrot.slane %v1955, 7
          %v1984 = vsel %vm1233, %v1982, %v1983
          %v1985 = vrot.slane %v1954, 7
          %v1986 = vrot.slane %v1985, 4
          %v1987 = vrot.slane %v1956, 7
          %v1988 = vsel %vm1233, %v1986, %v1987
          %v1989 = vrot.slane %v1983, 4
          %v1990 = vrot.slane %v1957, 7
          %v1991 = vsel %vm1233, %v1989, %v1990
          %v1992 = vrot.slane %v1987, 4
          %v1993 = vrot.slane %v1958, 7
          %v1994 = vsel %vm1233, %v1992, %v1993
          %v1995 = vrot.slane %v1990, 4
          %v1996 = vrot.slane %v1959, 7
          %v1997 = vsel %vm1233, %v1995, %v1996
          %v1998 = vrot.slane %v1993, 4
          %v1999 = vrot.slane %v1960, 7
          %v2000 = vsel %vm1233, %v1998, %v1999
          %v2001 = vrot.slane %v1996, 4
          %v2002 = vrot.slane %v1961, 7
          %v2003 = vsel %vm1233, %v2001, %v2002
          %v2004 = vrot.slane %v1999, 4
          %v2005 = vrot.slane %v1962, 7
          %v2006 = vsel %vm1233, %v2004, %v2005
          %v2007 = vrot.slane %v2002, 4
          %v2008 = vrot.slane %v1963, 7
          %v2009 = vsel %vm1233, %v2007, %v2008
          %v2010 = vrot.slane %v2005, 4
          %v2011 = vrot.slane %v1964, 7
          %v2012 = vsel %vm1233, %v2010, %v2011
          %v2013 = vrot.slane %v2008, 4
          %v2014 = vrot.slane %v1965, 7
          %v2015 = vsel %vm1233, %v2013, %v2014
          %v2016 = vrot.slane %v2011, 4
          %v2017 = vrot.slane %v1966, 7
          %v2018 = vsel %vm1233, %v2016, %v2017
          %v2019 = vrot.slane %v2014, 4
          %v2020 = vrot.slane %v2017, 4
          %2035 = vst [vmem:[#allocation3 + $0x60] sm:$0xff] %v1984
          %2036 = vst [vmem:[#allocation3 + $0x68] sm:$0xff] %v1988
          %2037 = vst [vmem:[#allocation3 + $0xf0] sm:$0xff] %v1991
          %2038 = vst [vmem:[#allocation3 + $0xf8] sm:$0xff] %v1994
          %2039 = vst [vmem:[#allocation3 + $0x180] sm:$0xff] %v1997
          %2040 = vst [vmem:[#allocation3 + $0x188] sm:$0xff] %v2000
          %2041 = vst [vmem:[#allocation3 + $0x210] sm:$0xff] %v2003
          %2042 = vst [vmem:[#allocation3 + $0x218] sm:$0xff] %v2006
          %2043 = vst [vmem:[#allocation3 + $0x2a0] sm:$0xff] %v2009
          %2044 = vst [vmem:[#allocation3 + $0x2a8] sm:$0xff] %v2012
          %2045 = vst [vmem:[#allocation3 + $0x330] sm:$0xff] %v2015
          %2046 = vst [vmem:[#allocation3 + $0x338] sm:$0xff] %v2018
          %v2047 = vld [vmem:[#allocation3 + $0x3c0] sm:$0x11]
          %v2048 = vsel %vm778, %v2019, %v2047
          %2049 = vst [vmem:[#allocation3 + $0x3c0] sm:$0x11] %v2048
          %v2050 = vld [vmem:[#allocation3 + $0x3c8] sm:$0x11]
          %v2051 = vsel %vm778, %v2020, %v2050
          %2052 = vst [vmem:[#allocation3 + $0x3c8] sm:$0x11] %v2051
          %v2053 = vld [vmem:[#allocation2 + $0x20] sm:$0x88]
          %v2054 = vld [vmem:[#allocation2 + $0x28] sm:$0x88]
          %v2055 = vld [vmem:[#allocation2 + $0x30] sm:$0xff]
          %v2056 = vld [vmem:[#allocation2 + $0x38] sm:$0xff]
          %v2057 = vld [vmem:[#allocation2 + $0x40] sm:$0xff]
          %v2058 = vld [vmem:[#allocation2 + $0x48] sm:$0xff]
          %v2059 = vld [vmem:[#allocation2 + $0x50] sm:$0xff]
          %v2060 = vld [vmem:[#allocation2 + $0x58] sm:$0xff]
          %v2061 = vld [vmem:[#allocation2 + $0x60] sm:$0xff]
          %v2062 = vld [vmem:[#allocation2 + $0x68] sm:$0xff]
          %v2063 = vld [vmem:[#allocation2 + $0x70] sm:$0xff]
          %v2064 = vld [vmem:[#allocation2 + $0x78] sm:$0xff]
          %v2065 = vld [vmem:[#allocation2 + $0x80] sm:$0xff]
          %v2066 = vld [vmem:[#allocation2 + $0x88] sm:$0xff]
          %v2068 = vshrl.u32 %v2053, 16
          %v2070 = vrot.slane %v2068, 7
          %v2071 = vrot.slane %v2070, 4
          %v2073 = vshrl.u32 %v2055, 16
          %v2075 = vrot.slane %v2073, 7
          %v2076 = vshll.u32 %v2055, 16
          %v2078 = vor.u32 %v2075, %v2076
          %v2079 = vsel %vm1470, %v2071, %v2078
          %v2081 = vshrl.u32 %v2054, 16
          %v2083 = vrot.slane %v2081, 7
          %v2084 = vrot.slane %v2083, 4
          %v2086 = vshrl.u32 %v2056, 16
          %v2088 = vrot.slane %v2086, 7
          %v2089 = vshll.u32 %v2056, 16
          %v2091 = vor.u32 %v2088, %v2089
          %v2092 = vsel %vm1470, %v2084, %v2091
          %v2093 = vrot.slane %v2075, 4
          %v2095 = vshrl.u32 %v2057, 16
          %v2097 = vrot.slane %v2095, 7
          %v2098 = vshll.u32 %v2057, 16
          %v2100 = vor.u32 %v2097, %v2098
          %v2101 = vsel %vm1470, %v2093, %v2100
          %v2102 = vrot.slane %v2088, 4
          %v2104 = vshrl.u32 %v2058, 16
          %v2106 = vrot.slane %v2104, 7
          %v2107 = vshll.u32 %v2058, 16
          %v2109 = vor.u32 %v2106, %v2107
          %v2110 = vsel %vm1470, %v2102, %v2109
          %v2111 = vrot.slane %v2097, 4
          %v2113 = vshrl.u32 %v2059, 16
          %v2115 = vrot.slane %v2113, 7
          %v2116 = vshll.u32 %v2059, 16
          %v2118 = vor.u32 %v2115, %v2116
          %v2119 = vsel %vm1470, %v2111, %v2118
          %v2120 = vrot.slane %v2106, 4
          %v2122 = vshrl.u32 %v2060, 16
          %v2124 = vrot.slane %v2122, 7
          %v2125 = vshll.u32 %v2060, 16
          %v2127 = vor.u32 %v2124, %v2125
          %v2128 = vsel %vm1470, %v2120, %v2127
          %v2129 = vrot.slane %v2115, 4
          %v2131 = vshrl.u32 %v2061, 16
          %v2133 = vrot.slane %v2131, 7
          %v2134 = vshll.u32 %v2061, 16
          %v2136 = vor.u32 %v2133, %v2134
          %v2137 = vsel %vm1470, %v2129, %v2136
          %v2138 = vrot.slane %v2124, 4
          %v2140 = vshrl.u32 %v2062, 16
          %v2142 = vrot.slane %v2140, 7
          %v2143 = vshll.u32 %v2062, 16
          %v2145 = vor.u32 %v2142, %v2143
          %v2146 = vsel %vm1470, %v2138, %v2145
          %v2147 = vrot.slane %v2133, 4
          %v2149 = vshrl.u32 %v2063, 16
          %v2151 = vrot.slane %v2149, 7
          %v2152 = vshll.u32 %v2063, 16
          %v2154 = vor.u32 %v2151, %v2152
          %v2155 = vsel %vm1470, %v2147, %v2154
          %v2156 = vrot.slane %v2142, 4
          %v2158 = vshrl.u32 %v2064, 16
          %v2160 = vrot.slane %v2158, 7
          %v2161 = vshll.u32 %v2064, 16
          %v2163 = vor.u32 %v2160, %v2161
          %v2164 = vsel %vm1470, %v2156, %v2163
          %v2165 = vrot.slane %v2151, 4
          %v2167 = vshrl.u32 %v2065, 16
          %v2169 = vrot.slane %v2167, 7
          %v2170 = vshll.u32 %v2065, 16
          %v2172 = vor.u32 %v2169, %v2170
          %v2173 = vsel %vm1470, %v2165, %v2172
          %v2174 = vrot.slane %v2160, 4
          %v2176 = vshrl.u32 %v2066, 16
          %v2178 = vrot.slane %v2176, 7
          %v2179 = vshll.u32 %v2066, 16
          %v2181 = vor.u32 %v2178, %v2179
          %v2182 = vsel %vm1470, %v2174, %v2181
          %v2183 = vrot.slane %v2169, 4
          %v2184 = vrot.slane %v2178, 4
          %2199 = vst [vmem:[#allocation3 + $0x70] sm:$0xff] %v2079
          %2200 = vst [vmem:[#allocation3 + $0x78] sm:$0xff] %v2092
          %2201 = vst [vmem:[#allocation3 + $0x100] sm:$0xff] %v2101
          %2202 = vst [vmem:[#allocation3 + $0x108] sm:$0xff] %v2110
          %2203 = vst [vmem:[#allocation3 + $0x190] sm:$0xff] %v2119
          %2204 = vst [vmem:[#allocation3 + $0x198] sm:$0xff] %v2128
          %2205 = vst [vmem:[#allocation3 + $0x220] sm:$0xff] %v2137
          %2206 = vst [vmem:[#allocation3 + $0x228] sm:$0xff] %v2146
          %2207 = vst [vmem:[#allocation3 + $0x2b0] sm:$0xff] %v2155
          %2208 = vst [vmem:[#allocation3 + $0x2b8] sm:$0xff] %v2164
          %2209 = vst [vmem:[#allocation3 + $0x340] sm:$0xff] %v2173
          %2210 = vst [vmem:[#allocation3 + $0x348] sm:$0xff] %v2182
          %v2211 = vld [vmem:[#allocation3 + $0x3d0] sm:$0x11]
          %v2212 = vsel %vm778, %v2183, %v2211
          %2213 = vst [vmem:[#allocation3 + $0x3d0] sm:$0x11] %v2212
          %v2214 = vld [vmem:[#allocation3 + $0x3d8] sm:$0x11]
          %v2215 = vsel %vm778, %v2184, %v2214
          %2216 = vst [vmem:[#allocation3 + $0x3d8] sm:$0x11] %v2215
          %v2217 = vld [vmem:[#allocation2 + $0x30] sm:$0xff]
          %v2218 = vld [vmem:[#allocation2 + $0x38] sm:$0xff]
          %v2219 = vld [vmem:[#allocation2 + $0x40] sm:$0xff]
          %v2220 = vld [vmem:[#allocation2 + $0x48] sm:$0xff]
          %v2221 = vld [vmem:[#allocation2 + $0x50] sm:$0xff]
          %v2222 = vld [vmem:[#allocation2 + $0x58] sm:$0xff]
          %v2223 = vld [vmem:[#allocation2 + $0x60] sm:$0xff]
          %v2224 = vld [vmem:[#allocation2 + $0x68] sm:$0xff]
          %v2225 = vld [vmem:[#allocation2 + $0x70] sm:$0xff]
          %v2226 = vld [vmem:[#allocation2 + $0x78] sm:$0xff]
          %v2227 = vld [vmem:[#allocation2 + $0x80] sm:$0xff]
          %v2228 = vld [vmem:[#allocation2 + $0x88] sm:$0xff]
          %v2229 = vld [vmem:[#allocation2 + $0x90] sm:$0x11]
          %v2230 = vld [vmem:[#allocation2 + $0x98] sm:$0x11]
          %v2231 = vsel %vm1219, %v2217, 0
          %v2232 = vsel %vm1219, %v2218, 0
          %v2233 = vsel %vm1220, %v2219, 0
          %v2234 = vsel %vm1220, %v2220, 0
          %v2235 = vsel %vm1221, %v2221, 0
          %v2236 = vsel %vm1221, %v2222, 0
          %v2237 = vsel %vm1222, %v2223, 0
          %v2238 = vsel %vm1222, %v2224, 0
          %v2239 = vsel %vm1223, %v2225, 0
          %v2240 = vsel %vm1223, %v2226, 0
          %v2241 = vsel %vm1224, %v2227, 0
          %v2242 = vsel %vm1224, %v2228, 0
          %v2243 = vsel %vm1225, %v2229, 0
          %v2244 = vsel %vm1225, %v2230, 0
          %2245 = vst [vmem:[#allocation3 + $0x80] sm:$0xff] %v2231
          %2246 = vst [vmem:[#allocation3 + $0x88] sm:$0xff] %v2232
          %2247 = vst [vmem:[#allocation3 + $0x110] sm:$0xff] %v2233
          %2248 = vst [vmem:[#allocation3 + $0x118] sm:$0xff] %v2234
          %2249 = vst [vmem:[#allocation3 + $0x1a0] sm:$0xff] %v2235
          %2250 = vst [vmem:[#allocation3 + $0x1a8] sm:$0xff] %v2236
          %2251 = vst [vmem:[#allocation3 + $0x230] sm:$0xff] %v2237
          %2252 = vst [vmem:[#allocation3 + $0x238] sm:$0xff] %v2238
          %2253 = vst [vmem:[#allocation3 + $0x2c0] sm:$0xff] %v2239
          %2254 = vst [vmem:[#allocation3 + $0x2c8] sm:$0xff] %v2240
          %2255 = vst [vmem:[#allocation3 + $0x350] sm:$0xff] %v2241
          %2256 = vst [vmem:[#allocation3 + $0x358] sm:$0xff] %v2242
          %v2257 = vld [vmem:[#allocation3 + $0x3e0] sm:$0x11]
          %v2258 = vsel %vm778, %v2243, %v2257
          %2259 = vst [vmem:[#allocation3 + $0x3e0] sm:$0x11] %v2258
          %v2260 = vld [vmem:[#allocation3 + $0x3e8] sm:$0x11]
          %v2261 = vsel %vm778, %v2244, %v2260
          %2262 = vst [vmem:[#allocation3 + $0x3e8] sm:$0x11] %v2261
        $region64: #{tpu_custom_call.1} parent=39 // pred_fallthru
          _
        %v2263 = vld [vmem:[#allocation3] sm:$0xff]
        %v2264 = vld [vmem:[#allocation3 + $0x8] sm:$0xff]
        %v2265 = vld [vmem:[#allocation3 + $0x90] sm:$0xff]
        %v2266 = vld [vmem:[#allocation3 + $0x98] sm:$0xff]
        %v2267 = vld [vmem:[#allocation3 + $0x120] sm:$0xff]
        %v2268 = vld [vmem:[#allocation3 + $0x128] sm:$0xff]
        %v2269 = vld [vmem:[#allocation3 + $0x1b0] sm:$0xff]
        %v2270 = vld [vmem:[#allocation3 + $0x1b8] sm:$0xff]
        %v2271 = vld [vmem:[#allocation3 + $0x240] sm:$0xff]
        %v2272 = vld [vmem:[#allocation3 + $0x248] sm:$0xff]
        %v2273 = vld [vmem:[#allocation3 + $0x2d0] sm:$0xff]
        %v2274 = vld [vmem:[#allocation3 + $0x2d8] sm:$0xff]
        %v2275 = vld [vmem:[#allocation3 + $0x360] sm:$0x11]
        %v2276 = vld [vmem:[#allocation3 + $0x368] sm:$0x11]
        %v2277 = vld [vmem:[%s268] sm:$0xff]
        %v2278 = vld [vmem:[%s268 + $0x8] sm:$0xff]
        %v2279 = vld [vmem:[%s268 + $0x10] sm:$0xff]
        %v2280 = vld [vmem:[%s268 + $0x18] sm:$0xff]
        %v2281 = vld [vmem:[%s268 + $0x20] sm:$0xff]
        %v2282 = vld [vmem:[%s268 + $0x28] sm:$0xff]
        %v2283 = vld [vmem:[%s268 + $0x30] sm:$0xff]
        %v2284 = vld [vmem:[%s268 + $0x38] sm:$0xff]
        %v2285 = vld [vmem:[%s268 + $0x40] sm:$0xff]
        %v2286 = vld [vmem:[%s268 + $0x48] sm:$0xff]
        %v2287 = vld [vmem:[%s268 + $0x50] sm:$0xff]
        %v2288 = vld [vmem:[%s268 + $0x58] sm:$0xff]
        %v2289 = vld [vmem:[%s268 + $0x60] sm:$0xff]
        %v2290 = vld [vmem:[%s268 + $0x68] sm:$0xff]
        %v2291 = vld [vmem:[%s268 + $0x70] sm:$0xff]
        %v2292 = vld [vmem:[%s268 + $0x78] sm:$0xff]
        %v2293 = vld [vmem:[%s268 + $0x80] sm:$0xff]
        %v2294 = vld [vmem:[%s268 + $0x88] sm:$0xff]
        %v2295 = vld [vmem:[%s268 + $0x90] sm:$0xff]
        %v2296 = vld [vmem:[%s268 + $0x98] sm:$0xff]
        %v2297 = vld [vmem:[%s268 + $0xa0] sm:$0xff]
        %v2298 = vld [vmem:[%s268 + $0xa8] sm:$0xff]
        %v2299 = vld [vmem:[%s268 + $0xb0] sm:$0xff]
        %v2300 = vld [vmem:[%s268 + $0xb8] sm:$0xff]
        %v2301 = vld [vmem:[%s268 + $0xc0] sm:$0xff]
        %v2302 = vld [vmem:[%s268 + $0xc8] sm:$0xff]
        %v2303 = vld [vmem:[%s268 + $0xd0] sm:$0xff]
        %v2304 = vld [vmem:[%s268 + $0xd8] sm:$0xff]
        %v2305 = vld [vmem:[%s268 + $0xe0] sm:$0xff]
        %v2306 = vld [vmem:[%s268 + $0xe8] sm:$0xff]
        %v2307 = vld [vmem:[%s268 + $0xf0] sm:$0xff]
        %v2308 = vld [vmem:[%s268 + $0xf8] sm:$0xff]
        %v2309 = vld [vmem:[%s268 + $0x100] sm:$0xff]
        %v2310 = vld [vmem:[%s268 + $0x108] sm:$0xff]
        %v2311 = vld [vmem:[%s268 + $0x110] sm:$0xff]
        %v2312 = vld [vmem:[%s268 + $0x118] sm:$0xff]
        %v2313 = vld [vmem:[%s268 + $0x120] sm:$0xff]
        %v2314 = vld [vmem:[%s268 + $0x128] sm:$0xff]
        %v2315 = vld [vmem:[%s268 + $0x130] sm:$0xff]
        %v2316 = vld [vmem:[%s268 + $0x138] sm:$0xff]
        %v2317 = vld [vmem:[%s268 + $0x140] sm:$0xff]
        %v2318 = vld [vmem:[%s268 + $0x148] sm:$0xff]
        %v2319 = vld [vmem:[%s268 + $0x150] sm:$0xff]
        %v2320 = vld [vmem:[%s268 + $0x158] sm:$0xff]
        %v2321 = vld [vmem:[%s268 + $0x160] sm:$0xff]
        %v2322 = vld [vmem:[%s268 + $0x168] sm:$0xff]
        %v2323 = vld [vmem:[%s268 + $0x170] sm:$0xff]
        %v2324 = vld [vmem:[%s268 + $0x178] sm:$0xff]
        %v2325 = vld [vmem:[%s268 + $0x180] sm:$0xff]
        %v2326 = vld [vmem:[%s268 + $0x188] sm:$0xff]
        %v2327 = vld [vmem:[%s268 + $0x190] sm:$0xff]
        %v2328 = vld [vmem:[%s268 + $0x198] sm:$0xff]
        %v2329 = vld [vmem:[%s268 + $0x1a0] sm:$0xff]
        %v2330 = vld [vmem:[%s268 + $0x1a8] sm:$0xff]
        %v2331 = vld [vmem:[%s268 + $0x1b0] sm:$0xff]
        %v2332 = vld [vmem:[%s268 + $0x1b8] sm:$0xff]
        %v2333 = vld [vmem:[%s268 + $0x1c0] sm:$0xff]
        %v2334 = vld [vmem:[%s268 + $0x1c8] sm:$0xff]
        %v2335 = vld [vmem:[%s268 + $0x1d0] sm:$0xff]
        %v2336 = vld [vmem:[%s268 + $0x1d8] sm:$0xff]
        %v2337 = vld [vmem:[%s268 + $0x1e0] sm:$0xff]
        %v2338 = vld [vmem:[%s268 + $0x1e8] sm:$0xff]
        %v2339 = vld [vmem:[%s268 + $0x1f0] sm:$0xff]
        %v2340 = vld [vmem:[%s268 + $0x1f8] sm:$0xff]
        %v2341 = vld [vmem:[#allocation3 + $0x10] sm:$0xff]
        %v2342 = vld [vmem:[#allocation3 + $0x18] sm:$0xff]
        %v2343 = vld [vmem:[#allocation3 + $0xa0] sm:$0xff]
        %v2344 = vld [vmem:[#allocation3 + $0xa8] sm:$0xff]
        %v2345 = vld [vmem:[#allocation3 + $0x130] sm:$0xff]
        %v2346 = vld [vmem:[#allocation3 + $0x138] sm:$0xff]
        %v2347 = vld [vmem:[#allocation3 + $0x1c0] sm:$0xff]
        %v2348 = vld [vmem:[#allocation3 + $0x1c8] sm:$0xff]
        %v2349 = vld [vmem:[#allocation3 + $0x250] sm:$0xff]
        %v2350 = vld [vmem:[#allocation3 + $0x258] sm:$0xff]
        %v2351 = vld [vmem:[#allocation3 + $0x2e0] sm:$0xff]
        %v2352 = vld [vmem:[#allocation3 + $0x2e8] sm:$0xff]
        %v2353 = vld [vmem:[#allocation3 + $0x370] sm:$0x11]
        %v2354 = vld [vmem:[#allocation3 + $0x378] sm:$0x11]
        %v2355 = vld [vmem:[%s268 + $0x200] sm:$0xff]
        %v2356 = vld [vmem:[%s268 + $0x208] sm:$0xff]
        %v2357 = vld [vmem:[%s268 + $0x210] sm:$0xff]
        %v2358 = vld [vmem:[%s268 + $0x218] sm:$0xff]
        %v2359 = vld [vmem:[%s268 + $0x220] sm:$0xff]
        %v2360 = vld [vmem:[%s268 + $0x228] sm:$0xff]
        %v2361 = vld [vmem:[%s268 + $0x230] sm:$0xff]
        %v2362 = vld [vmem:[%s268 + $0x238] sm:$0xff]
        %v2363 = vld [vmem:[%s268 + $0x240] sm:$0xff]
        %v2364 = vld [vmem:[%s268 + $0x248] sm:$0xff]
        %v2365 = vld [vmem:[%s268 + $0x250] sm:$0xff]
        %v2366 = vld [vmem:[%s268 + $0x258] sm:$0xff]
        %v2367 = vld [vmem:[%s268 + $0x260] sm:$0xff]
        %v2368 = vld [vmem:[%s268 + $0x268] sm:$0xff]
        %v2369 = vld [vmem:[%s268 + $0x270] sm:$0xff]
        %v2370 = vld [vmem:[%s268 + $0x278] sm:$0xff]
        %v2371 = vld [vmem:[%s268 + $0x280] sm:$0xff]
        %v2372 = vld [vmem:[%s268 + $0x288] sm:$0xff]
        %v2373 = vld [vmem:[%s268 + $0x290] sm:$0xff]
        %v2374 = vld [vmem:[%s268 + $0x298] sm:$0xff]
        %v2375 = vld [vmem:[%s268 + $0x2a0] sm:$0xff]
        %v2376 = vld [vmem:[%s268 + $0x2a8] sm:$0xff]
        %v2377 = vld [vmem:[%s268 + $0x2b0] sm:$0xff]
        %v2378 = vld [vmem:[%s268 + $0x2b8] sm:$0xff]
        %v2379 = vld [vmem:[%s268 + $0x2c0] sm:$0xff]
        %v2380 = vld [vmem:[%s268 + $0x2c8] sm:$0xff]
        %v2381 = vld [vmem:[%s268 + $0x2d0] sm:$0xff]
        %v2382 = vld [vmem:[%s268 + $0x2d8] sm:$0xff]
        %v2383 = vld [vmem:[%s268 + $0x2e0] sm:$0xff]
        %v2384 = vld [vmem:[%s268 + $0x2e8] sm:$0xff]
        %v2385 = vld [vmem:[%s268 + $0x2f0] sm:$0xff]
        %v2386 = vld [vmem:[%s268 + $0x2f8] sm:$0xff]
        %v2387 = vld [vmem:[%s268 + $0x300] sm:$0xff]
        %v2388 = vld [vmem:[%s268 + $0x308] sm:$0xff]
        %v2389 = vld [vmem:[%s268 + $0x310] sm:$0xff]
        %v2390 = vld [vmem:[%s268 + $0x318] sm:$0xff]
        %v2391 = vld [vmem:[%s268 + $0x320] sm:$0xff]
        %v2392 = vld [vmem:[%s268 + $0x328] sm:$0xff]
        %v2393 = vld [vmem:[%s268 + $0x330] sm:$0xff]
        %v2394 = vld [vmem:[%s268 + $0x338] sm:$0xff]
        %v2395 = vld [vmem:[%s268 + $0x340] sm:$0xff]
        %v2396 = vld [vmem:[%s268 + $0x348] sm:$0xff]
        %v2397 = vld [vmem:[%s268 + $0x350] sm:$0xff]
        %v2398 = vld [vmem:[%s268 + $0x358] sm:$0xff]
        %v2399 = vld [vmem:[%s268 + $0x360] sm:$0xff]
        %v2400 = vld [vmem:[%s268 + $0x368] sm:$0xff]
        %v2401 = vld [vmem:[%s268 + $0x370] sm:$0xff]
        %v2402 = vld [vmem:[%s268 + $0x378] sm:$0xff]
        %v2403 = vld [vmem:[%s268 + $0x380] sm:$0xff]
        %v2404 = vld [vmem:[%s268 + $0x388] sm:$0xff]
        %v2405 = vld [vmem:[%s268 + $0x390] sm:$0xff]
        %v2406 = vld [vmem:[%s268 + $0x398] sm:$0xff]
        %v2407 = vld [vmem:[%s268 + $0x3a0] sm:$0xff]
        %v2408 = vld [vmem:[%s268 + $0x3a8] sm:$0xff]
        %v2409 = vld [vmem:[%s268 + $0x3b0] sm:$0xff]
        %v2410 = vld [vmem:[%s268 + $0x3b8] sm:$0xff]
        %v2411 = vld [vmem:[%s268 + $0x3c0] sm:$0xff]
        %v2412 = vld [vmem:[%s268 + $0x3c8] sm:$0xff]
        %v2413 = vld [vmem:[%s268 + $0x3d0] sm:$0xff]
        %v2414 = vld [vmem:[%s268 + $0x3d8] sm:$0xff]
        %v2415 = vld [vmem:[%s268 + $0x3e0] sm:$0xff]
        %v2416 = vld [vmem:[%s268 + $0x3e8] sm:$0xff]
        %v2417 = vld [vmem:[%s268 + $0x3f0] sm:$0xff]
        %v2418 = vld [vmem:[%s268 + $0x3f8] sm:$0xff]
        %v2433 = vunpack.c.l.b16 %v2341
        %v2434 = vunpack.c.h.b16 %v2341
        %v2435 = vunpack.c.l.b16 %v2342
        %v2436 = vunpack.c.h.b16 %v2342
        %v2437 = vunpack.c.l.b16 %v2343
        %v2438 = vunpack.c.h.b16 %v2343
        %v2439 = vunpack.c.l.b16 %v2344
        %v2440 = vunpack.c.h.b16 %v2344
        %v2441 = vunpack.c.l.b16 %v2345
        %v2442 = vunpack.c.h.b16 %v2345
        %v2443 = vunpack.c.l.b16 %v2346
        %v2444 = vunpack.c.h.b16 %v2346
        %v2445 = vunpack.c.l.b16 %v2347
        %v2446 = vunpack.c.h.b16 %v2347
        %v2447 = vunpack.c.l.b16 %v2348
        %v2448 = vunpack.c.h.b16 %v2348
        %v2449 = vunpack.c.l.b16 %v2349
        %v2450 = vunpack.c.h.b16 %v2349
        %v2451 = vunpack.c.l.b16 %v2350
        %v2452 = vunpack.c.h.b16 %v2350
        %v2453 = vunpack.c.l.b16 %v2351
        %v2454 = vunpack.c.h.b16 %v2351
        %v2455 = vunpack.c.l.b16 %v2352
        %v2456 = vunpack.c.h.b16 %v2352
        %v2457 = vunpack.c.l.b16 %v2353
        %v2458 = vunpack.c.h.b16 %v2353
        %v2459 = vunpack.c.l.b16 %v2354
        %v2460 = vunpack.c.h.b16 %v2354
        %v2461 = vpack.c.b16 %v2437, %v2433
        %v2462 = vpack.c.b16 %v2438, %v2434
        %v2463 = vpack.c.b16 %v2439, %v2435
        %v2464 = vpack.c.b16 %v2440, %v2436
        %v2465 = vpack.c.b16 %v2445, %v2441
        %v2466 = vpack.c.b16 %v2446, %v2442
        %v2467 = vpack.c.b16 %v2447, %v2443
        %v2468 = vpack.c.b16 %v2448, %v2444
        %v2469 = vpack.c.b16 %v2453, %v2449
        %v2470 = vpack.c.b16 %v2454, %v2450
        %v2471 = vpack.c.b16 %v2455, %v2451
        %v2472 = vpack.c.b16 %v2456, %v2452
        %v2473 = vpack.c.b16 %v2457, %v2457
        %v2474 = vpack.c.b16 %v2458, %v2458
        %v2475 = vpack.c.b16 %v2459, %v2459
        %v2476 = vpack.c.b16 %v2460, %v2460
        %v2557 = vunpack.c.l.b16 %v2355
        %v2558 = vunpack.c.h.b16 %v2355
        %v2559 = vunpack.c.l.b16 %v2356
        %v2560 = vunpack.c.h.b16 %v2356
        %v2561 = vunpack.c.l.b16 %v2357
        %v2562 = vunpack.c.h.b16 %v2357
        %v2563 = vunpack.c.l.b16 %v2358
        %v2564 = vunpack.c.h.b16 %v2358
        %v2565 = vunpack.c.l.b16 %v2359
        %v2566 = vunpack.c.h.b16 %v2359
        %v2567 = vunpack.c.l.b16 %v2360
        %v2568 = vunpack.c.h.b16 %v2360
        %v2569 = vunpack.c.l.b16 %v2361
        %v2570 = vunpack.c.h.b16 %v2361
        %v2571 = vunpack.c.l.b16 %v2362
        %v2572 = vunpack.c.h.b16 %v2362
        %v2573 = vunpack.c.l.b16 %v2363
        %v2574 = vunpack.c.h.b16 %v2363
        %v2575 = vunpack.c.l.b16 %v2364
        %v2576 = vunpack.c.h.b16 %v2364
        %v2577 = vunpack.c.l.b16 %v2365
        %v2578 = vunpack.c.h.b16 %v2365
        %v2579 = vunpack.c.l.b16 %v2366
        %v2580 = vunpack.c.h.b16 %v2366
        %v2581 = vunpack.c.l.b16 %v2367
        %v2582 = vunpack.c.h.b16 %v2367
        %v2583 = vunpack.c.l.b16 %v2368
        %v2584 = vunpack.c.h.b16 %v2368
        %v2585 = vunpack.c.l.b16 %v2369
        %v2586 = vunpack.c.h.b16 %v2369
        %v2587 = vunpack.c.l.b16 %v2370
        %v2588 = vunpack.c.h.b16 %v2370
        %v2589 = vunpack.c.l.b16 %v2371
        %v2590 = vunpack.c.h.b16 %v2371
        %v2591 = vunpack.c.l.b16 %v2372
        %v2592 = vunpack.c.h.b16 %v2372
        %v2593 = vunpack.c.l.b16 %v2373
        %v2594 = vunpack.c.h.b16 %v2373
        %v2595 = vunpack.c.l.b16 %v2374
        %v2596 = vunpack.c.h.b16 %v2374
        %v2597 = vunpack.c.l.b16 %v2375
        %v2598 = vunpack.c.h.b16 %v2375
        %v2599 = vunpack.c.l.b16 %v2376
        %v2600 = vunpack.c.h.b16 %v2376
        %v2601 = vunpack.c.l.b16 %v2377
        %v2602 = vunpack.c.h.b16 %v2377
        %v2603 = vunpack.c.l.b16 %v2378
        %v2604 = vunpack.c.h.b16 %v2378
        %v2605 = vunpack.c.l.b16 %v2379
        %v2606 = vunpack.c.h.b16 %v2379
        %v2607 = vunpack.c.l.b16 %v2380
        %v2608 = vunpack.c.h.b16 %v2380
        %v2609 = vunpack.c.l.b16 %v2381
        %v2610 = vunpack.c.h.b16 %v2381
        %v2611 = vunpack.c.l.b16 %v2382
        %v2612 = vunpack.c.h.b16 %v2382
        %v2613 = vunpack.c.l.b16 %v2383
        %v2614 = vunpack.c.h.b16 %v2383
        %v2615 = vunpack.c.l.b16 %v2384
        %v2616 = vunpack.c.h.b16 %v2384
        %v2617 = vunpack.c.l.b16 %v2385
        %v2618 = vunpack.c.h.b16 %v2385
        %v2619 = vunpack.c.l.b16 %v2386
        %v2620 = vunpack.c.h.b16 %v2386
        %v2621 = vunpack.c.l.b16 %v2387
        %v2622 = vunpack.c.h.b16 %v2387
        %v2623 = vunpack.c.l.b16 %v2388
        %v2624 = vunpack.c.h.b16 %v2388
        %v2625 = vunpack.c.l.b16 %v2389
        %v2626 = vunpack.c.h.b16 %v2389
        %v2627 = vunpack.c.l.b16 %v2390
        %v2628 = vunpack.c.h.b16 %v2390
        %v2629 = vunpack.c.l.b16 %v2391
        %v2630 = vunpack.c.h.b16 %v2391
        %v2631 = vunpack.c.l.b16 %v2392
        %v2632 = vunpack.c.h.b16 %v2392
        %v2633 = vunpack.c.l.b16 %v2393
        %v2634 = vunpack.c.h.b16 %v2393
        %v2635 = vunpack.c.l.b16 %v2394
        %v2636 = vunpack.c.h.b16 %v2394
        %v2637 = vunpack.c.l.b16 %v2395
        %v2638 = vunpack.c.h.b16 %v2395
        %v2639 = vunpack.c.l.b16 %v2396
        %v2640 = vunpack.c.h.b16 %v2396
        %v2641 = vunpack.c.l.b16 %v2397
        %v2642 = vunpack.c.h.b16 %v2397
        %v2643 = vunpack.c.l.b16 %v2398
        %v2644 = vunpack.c.h.b16 %v2398
        %v2645 = vunpack.c.l.b16 %v2399
        %v2646 = vunpack.c.h.b16 %v2399
        %v2647 = vunpack.c.l.b16 %v2400
        %v2648 = vunpack.c.h.b16 %v2400
        %v2649 = vunpack.c.l.b16 %v2401
        %v2650 = vunpack.c.h.b16 %v2401
        %v2651 = vunpack.c.l.b16 %v2402
        %v2652 = vunpack.c.h.b16 %v2402
        %v2653 = vunpack.c.l.b16 %v2403
        %v2654 = vunpack.c.h.b16 %v2403
        %v2655 = vunpack.c.l.b16 %v2404
        %v2656 = vunpack.c.h.b16 %v2404
        %v2657 = vunpack.c.l.b16 %v2405
        %v2658 = vunpack.c.h.b16 %v2405
        %v2659 = vunpack.c.l.b16 %v2406
        %v2660 = vunpack.c.h.b16 %v2406
        %v2661 = vunpack.c.l.b16 %v2407
        %v2662 = vunpack.c.h.b16 %v2407
        %v2663 = vunpack.c.l.b16 %v2408
        %v2664 = vunpack.c.h.b16 %v2408
        %v2665 = vunpack.c.l.b16 %v2409
        %v2666 = vunpack.c.h.b16 %v2409
        %v2667 = vunpack.c.l.b16 %v2410
        %v2668 = vunpack.c.h.b16 %v2410
        %v2669 = vunpack.c.l.b16 %v2411
        %v2670 = vunpack.c.h.b16 %v2411
        %v2671 = vunpack.c.l.b16 %v2412
        %v2672 = vunpack.c.h.b16 %v2412
        %v2673 = vunpack.c.l.b16 %v2413
        %v2674 = vunpack.c.h.b16 %v2413
        %v2675 = vunpack.c.l.b16 %v2414
        %v2676 = vunpack.c.h.b16 %v2414
        %v2677 = vunpack.c.l.b16 %v2415
        %v2678 = vunpack.c.h.b16 %v2415
        %v2679 = vunpack.c.l.b16 %v2416
        %v2680 = vunpack.c.h.b16 %v2416
        %v2681 = vunpack.c.l.b16 %v2417
        %v2682 = vunpack.c.h.b16 %v2417
        %v2683 = vunpack.c.l.b16 %v2418
        %v2684 = vunpack.c.h.b16 %v2418
        %v2685 = vpack.c.b16 %v2559, %v2557
        %v2686 = vpack.c.b16 %v2560, %v2558
        %v2687 = vpack.c.b16 %v2563, %v2561
        %v2688 = vpack.c.b16 %v2564, %v2562
        %v2689 = vpack.c.b16 %v2567, %v2565
        %v2690 = vpack.c.b16 %v2568, %v2566
        %v2691 = vpack.c.b16 %v2571, %v2569
        %v2692 = vpack.c.b16 %v2572, %v2570
        %v2693 = vpack.c.b16 %v2575, %v2573
        %v2694 = vpack.c.b16 %v2576, %v2574
        %v2695 = vpack.c.b16 %v2579, %v2577
        %v2696 = vpack.c.b16 %v2580, %v2578
        %v2697 = vpack.c.b16 %v2583, %v2581
        %v2698 = vpack.c.b16 %v2584, %v2582
        %v2699 = vpack.c.b16 %v2587, %v2585
        %v2700 = vpack.c.b16 %v2588, %v2586
        %v2701 = vpack.c.b16 %v2591, %v2589
        %v2702 = vpack.c.b16 %v2592, %v2590
        %v2703 = vpack.c.b16 %v2595, %v2593
        %v2704 = vpack.c.b16 %v2596, %v2594
        %v2705 = vpack.c.b16 %v2599, %v2597
        %v2706 = vpack.c.b16 %v2600, %v2598
        %v2707 = vpack.c.b16 %v2603, %v2601
        %v2708 = vpack.c.b16 %v2604, %v2602
        %v2709 = vpack.c.b16 %v2607, %v2605
        %v2710 = vpack.c.b16 %v2608, %v2606
        %v2711 = vpack.c.b16 %v2611, %v2609
        %v2712 = vpack.c.b16 %v2612, %v2610
        %v2713 = vpack.c.b16 %v2615, %v2613
        %v2714 = vpack.c.b16 %v2616, %v2614
        %v2715 = vpack.c.b16 %v2619, %v2617
        %v2716 = vpack.c.b16 %v2620, %v2618
        %v2717 = vpack.c.b16 %v2623, %v2621
        %v2718 = vpack.c.b16 %v2624, %v2622
        %v2719 = vpack.c.b16 %v2627, %v2625
        %v2720 = vpack.c.b16 %v2628, %v2626
        %v2721 = vpack.c.b16 %v2631, %v2629
        %v2722 = vpack.c.b16 %v2632, %v2630
        %v2723 = vpack.c.b16 %v2635, %v2633
        %v2724 = vpack.c.b16 %v2636, %v2634
        %v2725 = vpack.c.b16 %v2639, %v2637
        %v2726 = vpack.c.b16 %v2640, %v2638
        %v2727 = vpack.c.b16 %v2643, %v2641
        %v2728 = vpack.c.b16 %v2644, %v2642
        %v2729 = vpack.c.b16 %v2647, %v2645
        %v2730 = vpack.c.b16 %v2648, %v2646
        %v2731 = vpack.c.b16 %v2651, %v2649
        %v2732 = vpack.c.b16 %v2652, %v2650
        %v2733 = vpack.c.b16 %v2655, %v2653
        %v2734 = vpack.c.b16 %v2656, %v2654
        %v2735 = vpack.c.b16 %v2659, %v2657
        %v2736 = vpack.c.b16 %v2660, %v2658
        %v2737 = vpack.c.b16 %v2663, %v2661
        %v2738 = vpack.c.b16 %v2664, %v2662
        %v2739 = vpack.c.b16 %v2667, %v2665
        %v2740 = vpack.c.b16 %v2668, %v2666
        %v2741 = vpack.c.b16 %v2671, %v2669
        %v2742 = vpack.c.b16 %v2672, %v2670
        %v2743 = vpack.c.b16 %v2675, %v2673
        %v2744 = vpack.c.b16 %v2676, %v2674
        %v2745 = vpack.c.b16 %v2679, %v2677
        %v2746 = vpack.c.b16 %v2680, %v2678
        %v2747 = vpack.c.b16 %v2683, %v2681
        %v2748 = vpack.c.b16 %v2684, %v2682
        %2813 = vmatprep.subr.bf16.mxu0 %v2686
        %2814 = vmatpush1.bf16.msra.mxu0 %v2685
        %2815 = vmatprep.subr.bf16.mxu0 %v2688
        %2816 = vmatpush1.bf16.msra.mxu0 %v2687
        %2817 = vmatprep.subr.bf16.mxu0 %v2690
        %2818 = vmatpush1.bf16.msra.mxu0 %v2689
        %2819 = vmatprep.subr.bf16.mxu0 %v2692
        %2820 = vmatpush1.bf16.msra.mxu0 %v2691
        %2821 = vmatprep.subr.bf16.mxu0 %v2694
        %2822 = vmatpush1.bf16.msra.mxu0 %v2693
        %2823 = vmatprep.subr.bf16.mxu0 %v2696
        %2824 = vmatpush1.bf16.msra.mxu0 %v2695
        %2825 = vmatprep.subr.bf16.mxu0 %v2698
        %2826 = vmatpush1.bf16.msra.mxu0 %v2697
        %2827 = vmatprep.subr.bf16.mxu0 %v2700
        %2828 = vmatpush1.bf16.msra.mxu0 %v2699
        %2829 = vmatprep.subr.bf16.mxu0 %v2702
        %2830 = vmatpush1.bf16.msra.mxu0 %v2701
        %2831 = vmatprep.subr.bf16.mxu0 %v2704
        %2832 = vmatpush1.bf16.msra.mxu0 %v2703
        %2833 = vmatprep.subr.bf16.mxu0 %v2706
        %2834 = vmatpush1.bf16.msra.mxu0 %v2705
        %2835 = vmatprep.subr.bf16.mxu0 %v2708
        %2836 = vmatpush1.bf16.msra.mxu0 %v2707
        %2837 = vmatprep.subr.bf16.mxu0 %v2710
        %2838 = vmatpush1.bf16.msra.mxu0 %v2709
        %2839 = vmatprep.subr.bf16.mxu0 %v2712
        %2840 = vmatpush1.bf16.msra.mxu0 %v2711
        %2841 = vmatprep.subr.bf16.mxu0 %v2714
        %2842 = vmatpush1.bf16.msra.mxu0 %v2713
        %2843 = vmatprep.subr.bf16.mxu0 %v2716
        %2844 = vmatpush1.bf16.msra.mxu0 %v2715
        %2845 = vmatprep.mubr.bf16.mxu0 %v2462
        %2846 = vmatmul.mubr.bf16.gmra.mrb[0].mxu0 %v2461
        %v2847 = vpop.f32.mrb[0].mxu0
        %v2848 = vadd.f32 0.0, %v2847
        %v2849 = vpop.f32.mrb[0].mxu0
        %v2850 = vadd.f32 0.0, %v2849
        %v2851 = vpop.f32.mrb[0].mxu0
        %v2852 = vadd.f32 0.0, %v2851
        %v2853 = vpop.f32.mrb[0].mxu0
        %v2854 = vadd.f32 0.0, %v2853
        %2855 = vmatprep.mubr.bf16.mxu0 %v2466
        %2856 = vmatmul.mubr.bf16.gmra.mrb[0].mxu0 %v2465
        %v2857 = vpop.f32.mrb[0].mxu0
        %v2858 = vadd.f32 0.0, %v2857
        %v2859 = vpop.f32.mrb[0].mxu0
        %v2860 = vadd.f32 0.0, %v2859
        %v2861 = vpop.f32.mrb[0].mxu0
        %v2862 = vadd.f32 0.0, %v2861
        %v2863 = vpop.f32.mrb[0].mxu0
        %v2864 = vadd.f32 0.0, %v2863
        %2865 = vmatprep.mubr.bf16.mxu0 %v2470
        %2866 = vmatmul.mubr.bf16.gmra.mrb[0].mxu0 %v2469
        %v2867 = vpop.f32.mrb[0].mxu0
        %v2868 = vadd.f32 0.0, %v2867
        %v2869 = vpop.f32.mrb[0].mxu0
        %v2870 = vadd.f32 0.0, %v2869
        %v2871 = vpop.f32.mrb[0].mxu0
        %v2872 = vadd.f32 0.0, %v2871
        %v2873 = vpop.f32.mrb[0].mxu0
        %v2874 = vadd.f32 0.0, %v2873
        %2875 = vmatprep.mubr.bf16.mxu0 %v2474
        %2876 = vmatmul.mubr.bf16.gmra.mrb[0].mxu0 %v2473
        %v2877 = vpop.f32.mrb[0].mxu0
        %v2878 = vadd.f32 0.0, %v2877
        %v2879 = vpop.f32.mrb[0].mxu0
        %v2880 = vadd.f32 0.0, %v2879
        %v2881 = vpop.f32.mrb[0].mxu0
        %v2882 = vpop.f32.mrb[0].mxu0
        %2883 = vdwg.mxu0
        %2884 = vmatprep.subr.bf16.mxu0 %v2718
        %2885 = vmatpush1.bf16.msra.mxu0 %v2717
        %2886 = vmatprep.subr.bf16.mxu0 %v2720
        %2887 = vmatpush1.bf16.msra.mxu0 %v2719
        %2888 = vmatprep.subr.bf16.mxu0 %v2722
        %2889 = vmatpush1.bf16.msra.mxu0 %v2721
        %2890 = vmatprep.subr.bf16.mxu0 %v2724
        %2891 = vmatpush1.bf16.msra.mxu0 %v2723
        %2892 = vmatprep.subr.bf16.mxu0 %v2726
        %2893 = vmatpush1.bf16.msra.mxu0 %v2725
        %2894 = vmatprep.subr.bf16.mxu0 %v2728
        %2895 = vmatpush1.bf16.msra.mxu0 %v2727
        %2896 = vmatprep.subr.bf16.mxu0 %v2730
        %2897 = vmatpush1.bf16.msra.mxu0 %v2729
        %2898 = vmatprep.subr.bf16.mxu0 %v2732
        %2899 = vmatpush1.bf16.msra.mxu0 %v2731
        %2900 = vmatprep.subr.bf16.mxu0 %v2734
        %2901 = vmatpush1.bf16.msra.mxu0 %v2733
        %2902 = vmatprep.subr.bf16.mxu0 %v2736
        %2903 = vmatpush1.bf16.msra.mxu0 %v2735
        %2904 = vmatprep.subr.bf16.mxu0 %v2738
        %2905 = vmatpush1.bf16.msra.mxu0 %v2737
        %2906 = vmatprep.subr.bf16.mxu0 %v2740
        %2907 = vmatpush1.bf16.msra.mxu0 %v2739
        %2908 = vmatprep.subr.bf16.mxu0 %v2742
        %2909 = vmatpush1.bf16.msra.mxu0 %v2741
        %2910 = vmatprep.subr.bf16.mxu0 %v2744
        %2911 = vmatpush1.bf16.msra.mxu0 %v2743
        %2912 = vmatprep.subr.bf16.mxu0 %v2746
        %2913 = vmatpush1.bf16.msra.mxu0 %v2745
        %2914 = vmatprep.subr.bf16.mxu0 %v2748
        %2915 = vmatpush1.bf16.msra.mxu0 %v2747
        %2916 = vmatprep.mubr.bf16.mxu0 %v2464
        %2917 = vmatmul.mubr.bf16.gmra.mrb[0].mxu0 %v2463
        %v2918 = vpop.f32.mrb[0].mxu0
        %v2919 = vadd.f32 %v2848, %v2918
        %v2920 = vpop.f32.mrb[0].mxu0
        %v2921 = vadd.f32 %v2850, %v2920
        %v2922 = vpop.f32.mrb[0].mxu0
        %v2923 = vadd.f32 %v2852, %v2922
        %v2924 = vpop.f32.mrb[0].mxu0
        %v2925 = vadd.f32 %v2854, %v2924
        %2926 = vmatprep.mubr.bf16.mxu0 %v2468
        %2927 = vmatmul.mubr.bf16.gmra.mrb[0].mxu0 %v2467
        %v2928 = vpop.f32.mrb[0].mxu0
        %v2929 = vadd.f32 %v2858, %v2928
        %v2930 = vpop.f32.mrb[0].mxu0
        %v2931 = vadd.f32 %v2860, %v2930
        %v2932 = vpop.f32.mrb[0].mxu0
        %v2933 = vadd.f32 %v2862, %v2932
        %v2934 = vpop.f32.mrb[0].mxu0
        %v2935 = vadd.f32 %v2864, %v2934
        %2936 = vmatprep.mubr.bf16.mxu0 %v2472
        %2937 = vmatmul.mubr.bf16.gmra.mrb[0].mxu0 %v2471
        %v2938 = vpop.f32.mrb[0].mxu0
        %v2939 = vadd.f32 %v2868, %v2938
        %v2940 = vpop.f32.mrb[0].mxu0
        %v2941 = vadd.f32 %v2870, %v2940
        %v2942 = vpop.f32.mrb[0].mxu0
        %v2943 = vadd.f32 %v2872, %v2942
        %v2944 = vpop.f32.mrb[0].mxu0
        %v2945 = vadd.f32 %v2874, %v2944
        %2946 = vmatprep.mubr.bf16.mxu0 %v2476
        %2947 = vmatmul.mubr.bf16.gmra.mrb[0].mxu0 %v2475
        %v2948 = vpop.f32.mrb[0].mxu0
        %v2949 = vadd.f32 %v2878, %v2948
        %v2950 = vpop.f32.mrb[0].mxu0
        %v2951 = vadd.f32 %v2880, %v2950
        %v2952 = vpop.f32.mrb[0].mxu0
        %v2953 = vpop.f32.mrb[0].mxu0
        %2954 = vdwg.mxu0
        %v2969 = vunpack.c.l.b16 %v2263
        %v2970 = vunpack.c.h.b16 %v2263
        %v2971 = vunpack.c.l.b16 %v2264
        %v2972 = vunpack.c.h.b16 %v2264
        %v2973 = vunpack.c.l.b16 %v2265
        %v2974 = vunpack.c.h.b16 %v2265
        %v2975 = vunpack.c.l.b16 %v2266
        %v2976 = vunpack.c.h.b16 %v2266
        %v2977 = vunpack.c.l.b16 %v2267
        %v2978 = vunpack.c.h.b16 %v2267
        %v2979 = vunpack.c.l.b16 %v2268
        %v2980 = vunpack.c.h.b16 %v2268
        %v2981 = vunpack.c.l.b16 %v2269
        %v2982 = vunpack.c.h.b16 %v2269
        %v2983 = vunpack.c.l.b16 %v2270
        %v2984 = vunpack.c.h.b16 %v2270
        %v2985 = vunpack.c.l.b16 %v2271
        %v2986 = vunpack.c.h.b16 %v2271
        %v2987 = vunpack.c.l.b16 %v2272
        %v2988 = vunpack.c.h.b16 %v2272
        %v2989 = vunpack.c.l.b16 %v2273
        %v2990 = vunpack.c.h.b16 %v2273
        %v2991 = vunpack.c.l.b16 %v2274
        %v2992 = vunpack.c.h.b16 %v2274
        %v2993 = vunpack.c.l.b16 %v2275
        %v2994 = vunpack.c.h.b16 %v2275
        %v2995 = vunpack.c.l.b16 %v2276
        %v2996 = vunpack.c.h.b16 %v2276
        %v2997 = vpack.c.b16 %v2973, %v2969
        %v2998 = vpack.c.b16 %v2974, %v2970
        %v2999 = vpack.c.b16 %v2975, %v2971
        %v3000 = vpack.c.b16 %v2976, %v2972
        %v3001 = vpack.c.b16 %v2981, %v2977
        %v3002 = vpack.c.b16 %v2982, %v2978
        %v3003 = vpack.c.b16 %v2983, %v2979
        %v3004 = vpack.c.b16 %v2984, %v2980
        %v3005 = vpack.c.b16 %v2989, %v2985
        %v3006 = vpack.c.b16 %v2990, %v2986
        %v3007 = vpack.c.b16 %v2991, %v2987
        %v3008 = vpack.c.b16 %v2992, %v2988
        %v3009 = vpack.c.b16 %v2993, %v2993
        %v3010 = vpack.c.b16 %v2994, %v2994
        %v3011 = vpack.c.b16 %v2995, %v2995
        %v3012 = vpack.c.b16 %v2996, %v2996
        %v3093 = vunpack.c.l.b16 %v2277
        %v3094 = vunpack.c.h.b16 %v2277
        %v3095 = vunpack.c.l.b16 %v2278
        %v3096 = vunpack.c.h.b16 %v2278
        %v3097 = vunpack.c.l.b16 %v2279
        %v3098 = vunpack.c.h.b16 %v2279
        %v3099 = vunpack.c.l.b16 %v2280
        %v3100 = vunpack.c.h.b16 %v2280
        %v3101 = vunpack.c.l.b16 %v2281
        %v3102 = vunpack.c.h.b16 %v2281
        %v3103 = vunpack.c.l.b16 %v2282
        %v3104 = vunpack.c.h.b16 %v2282
        %v3105 = vunpack.c.l.b16 %v2283
        %v3106 = vunpack.c.h.b16 %v2283
        %v3107 = vunpack.c.l.b16 %v2284
        %v3108 = vunpack.c.h.b16 %v2284
        %v3109 = vunpack.c.l.b16 %v2285
        %v3110 = vunpack.c.h.b16 %v2285
        %v3111 = vunpack.c.l.b16 %v2286
        %v3112 = vunpack.c.h.b16 %v2286
        %v3113 = vunpack.c.l.b16 %v2287
        %v3114 = vunpack.c.h.b16 %v2287
        %v3115 = vunpack.c.l.b16 %v2288
        %v3116 = vunpack.c.h.b16 %v2288
        %v3117 = vunpack.c.l.b16 %v2289
        %v3118 = vunpack.c.h.b16 %v2289
        %v3119 = vunpack.c.l.b16 %v2290
        %v3120 = vunpack.c.h.b16 %v2290
        %v3121 = vunpack.c.l.b16 %v2291
        %v3122 = vunpack.c.h.b16 %v2291
        %v3123 = vunpack.c.l.b16 %v2292
        %v3124 = vunpack.c.h.b16 %v2292
        %v3125 = vunpack.c.l.b16 %v2293
        %v3126 = vunpack.c.h.b16 %v2293
        %v3127 = vunpack.c.l.b16 %v2294
        %v3128 = vunpack.c.h.b16 %v2294
        %v3129 = vunpack.c.l.b16 %v2295
        %v3130 = vunpack.c.h.b16 %v2295
        %v3131 = vunpack.c.l.b16 %v2296
        %v3132 = vunpack.c.h.b16 %v2296
        %v3133 = vunpack.c.l.b16 %v2297
        %v3134 = vunpack.c.h.b16 %v2297
        %v3135 = vunpack.c.l.b16 %v2298
        %v3136 = vunpack.c.h.b16 %v2298
        %v3137 = vunpack.c.l.b16 %v2299
        %v3138 = vunpack.c.h.b16 %v2299
        %v3139 = vunpack.c.l.b16 %v2300
        %v3140 = vunpack.c.h.b16 %v2300
        %v3141 = vunpack.c.l.b16 %v2301
        %v3142 = vunpack.c.h.b16 %v2301
        %v3143 = vunpack.c.l.b16 %v2302
        %v3144 = vunpack.c.h.b16 %v2302
        %v3145 = vunpack.c.l.b16 %v2303
        %v3146 = vunpack.c.h.b16 %v2303
        %v3147 = vunpack.c.l.b16 %v2304
        %v3148 = vunpack.c.h.b16 %v2304
        %v3149 = vunpack.c.l.b16 %v2305
        %v3150 = vunpack.c.h.b16 %v2305
        %v3151 = vunpack.c.l.b16 %v2306
        %v3152 = vunpack.c.h.b16 %v2306
        %v3153 = vunpack.c.l.b16 %v2307
        %v3154 = vunpack.c.h.b16 %v2307
        %v3155 = vunpack.c.l.b16 %v2308
        %v3156 = vunpack.c.h.b16 %v2308
        %v3157 = vunpack.c.l.b16 %v2309
        %v3158 = vunpack.c.h.b16 %v2309
        %v3159 = vunpack.c.l.b16 %v2310
        %v3160 = vunpack.c.h.b16 %v2310
        %v3161 = vunpack.c.l.b16 %v2311
        %v3162 = vunpack.c.h.b16 %v2311
        %v3163 = vunpack.c.l.b16 %v2312
        %v3164 = vunpack.c.h.b16 %v2312
        %v3165 = vunpack.c.l.b16 %v2313
        %v3166 = vunpack.c.h.b16 %v2313
        %v3167 = vunpack.c.l.b16 %v2314
        %v3168 = vunpack.c.h.b16 %v2314
        %v3169 = vunpack.c.l.b16 %v2315
        %v3170 = vunpack.c.h.b16 %v2315
        %v3171 = vunpack.c.l.b16 %v2316
        %v3172 = vunpack.c.h.b16 %v2316
        %v3173 = vunpack.c.l.b16 %v2317
        %v3174 = vunpack.c.h.b16 %v2317
        %v3175 = vunpack.c.l.b16 %v2318
        %v3176 = vunpack.c.h.b16 %v2318
        %v3177 = vunpack.c.l.b16 %v2319
        %v3178 = vunpack.c.h.b16 %v2319
        %v3179 = vunpack.c.l.b16 %v2320
        %v3180 = vunpack.c.h.b16 %v2320
        %v3181 = vunpack.c.l.b16 %v2321
        %v3182 = vunpack.c.h.b16 %v2321
        %v3183 = vunpack.c.l.b16 %v2322
        %v3184 = vunpack.c.h.b16 %v2322
        %v3185 = vunpack.c.l.b16 %v2323
        %v3186 = vunpack.c.h.b16 %v2323
        %v3187 = vunpack.c.l.b16 %v2324
        %v3188 = vunpack.c.h.b16 %v2324
        %v3189 = vunpack.c.l.b16 %v2325
        %v3190 = vunpack.c.h.b16 %v2325
        %v3191 = vunpack.c.l.b16 %v2326
        %v3192 = vunpack.c.h.b16 %v2326
        %v3193 = vunpack.c.l.b16 %v2327
        %v3194 = vunpack.c.h.b16 %v2327
        %v3195 = vunpack.c.l.b16 %v2328
        %v3196 = vunpack.c.h.b16 %v2328
        %v3197 = vunpack.c.l.b16 %v2329
        %v3198 = vunpack.c.h.b16 %v2329
        %v3199 = vunpack.c.l.b16 %v2330
        %v3200 = vunpack.c.h.b16 %v2330
        %v3201 = vunpack.c.l.b16 %v2331
        %v3202 = vunpack.c.h.b16 %v2331
        %v3203 = vunpack.c.l.b16 %v2332
        %v3204 = vunpack.c.h.b16 %v2332
        %v3205 = vunpack.c.l.b16 %v2333
        %v3206 = vunpack.c.h.b16 %v2333
        %v3207 = vunpack.c.l.b16 %v2334
        %v3208 = vunpack.c.h.b16 %v2334
        %v3209 = vunpack.c.l.b16 %v2335
        %v3210 = vunpack.c.h.b16 %v2335
        %v3211 = vunpack.c.l.b16 %v2336
        %v3212 = vunpack.c.h.b16 %v2336
        %v3213 = vunpack.c.l.b16 %v2337
        %v3214 = vunpack.c.h.b16 %v2337
        %v3215 = vunpack.c.l.b16 %v2338
        %v3216 = vunpack.c.h.b16 %v2338
        %v3217 = vunpack.c.l.b16 %v2339
        %v3218 = vunpack.c.h.b16 %v2339
        %v3219 = vunpack.c.l.b16 %v2340
        %v3220 = vunpack.c.h.b16 %v2340
        %v3221 = vpack.c.b16 %v3095, %v3093
        %v3222 = vpack.c.b16 %v3096, %v3094
        %v3223 = vpack.c.b16 %v3099, %v3097
        %v3224 = vpack.c.b16 %v3100, %v3098
        %v3225 = vpack.c.b16 %v3103, %v3101
        %v3226 = vpack.c.b16 %v3104, %v3102
        %v3227 = vpack.c.b16 %v3107, %v3105
        %v3228 = vpack.c.b16 %v3108, %v3106
        %v3229 = vpack.c.b16 %v3111, %v3109
        %v3230 = vpack.c.b16 %v3112, %v3110
        %v3231 = vpack.c.b16 %v3115, %v3113
        %v3232 = vpack.c.b16 %v3116, %v3114
        %v3233 = vpack.c.b16 %v3119, %v3117
        %v3234 = vpack.c.b16 %v3120, %v3118
        %v3235 = vpack.c.b16 %v3123, %v3121
        %v3236 = vpack.c.b16 %v3124, %v3122
        %v3237 = vpack.c.b16 %v3127, %v3125
        %v3238 = vpack.c.b16 %v3128, %v3126
        %v3239 = vpack.c.b16 %v3131, %v3129
        %v3240 = vpack.c.b16 %v3132, %v3130
        %v3241 = vpack.c.b16 %v3135, %v3133
        %v3242 = vpack.c.b16 %v3136, %v3134
        %v3243 = vpack.c.b16 %v3139, %v3137
        %v3244 = vpack.c.b16 %v3140, %v3138
        %v3245 = vpack.c.b16 %v3143, %v3141
        %v3246 = vpack.c.b16 %v3144, %v3142
        %v3247 = vpack.c.b16 %v3147, %v3145
        %v3248 = vpack.c.b16 %v3148, %v3146
        %v3249 = vpack.c.b16 %v3151, %v3149
        %v3250 = vpack.c.b16 %v3152, %v3150
        %v3251 = vpack.c.b16 %v3155, %v3153
        %v3252 = vpack.c.b16 %v3156, %v3154
        %v3253 = vpack.c.b16 %v3159, %v3157
        %v3254 = vpack.c.b16 %v3160, %v3158
        %v3255 = vpack.c.b16 %v3163, %v3161
        %v3256 = vpack.c.b16 %v3164, %v3162
        %v3257 = vpack.c.b16 %v3167, %v3165
        %v3258 = vpack.c.b16 %v3168, %v3166
        %v3259 = vpack.c.b16 %v3171, %v3169
        %v3260 = vpack.c.b16 %v3172, %v3170
        %v3261 = vpack.c.b16 %v3175, %v3173
        %v3262 = vpack.c.b16 %v3176, %v3174
        %v3263 = vpack.c.b16 %v3179, %v3177
        %v3264 = vpack.c.b16 %v3180, %v3178
        %v3265 = vpack.c.b16 %v3183, %v3181
        %v3266 = vpack.c.b16 %v3184, %v3182
        %v3267 = vpack.c.b16 %v3187, %v3185
        %v3268 = vpack.c.b16 %v3188, %v3186
        %v3269 = vpack.c.b16 %v3191, %v3189
        %v3270 = vpack.c.b16 %v3192, %v3190
        %v3271 = vpack.c.b16 %v3195, %v3193
        %v3272 = vpack.c.b16 %v3196, %v3194
        %v3273 = vpack.c.b16 %v3199, %v3197
        %v3274 = vpack.c.b16 %v3200, %v3198
        %v3275 = vpack.c.b16 %v3203, %v3201
        %v3276 = vpack.c.b16 %v3204, %v3202
        %v3277 = vpack.c.b16 %v3207, %v3205
        %v3278 = vpack.c.b16 %v3208, %v3206
        %v3279 = vpack.c.b16 %v3211, %v3209
        %v3280 = vpack.c.b16 %v3212, %v3210
        %v3281 = vpack.c.b16 %v3215, %v3213
        %v3282 = vpack.c.b16 %v3216, %v3214
        %v3283 = vpack.c.b16 %v3219, %v3217
        %v3284 = vpack.c.b16 %v3220, %v3218
        %3349 = vmatprep.subr.bf16.mxu0 %v3222
        %3350 = vmatpush1.bf16.msra.mxu0 %v3221
        %3351 = vmatprep.subr.bf16.mxu0 %v3224
        %3352 = vmatpush1.bf16.msra.mxu0 %v3223
        %3353 = vmatprep.subr.bf16.mxu0 %v3226
        %3354 = vmatpush1.bf16.msra.mxu0 %v3225
        %3355 = vmatprep.subr.bf16.mxu0 %v3228
        %3356 = vmatpush1.bf16.msra.mxu0 %v3227
        %3357 = vmatprep.subr.bf16.mxu0 %v3230
        %3358 = vmatpush1.bf16.msra.mxu0 %v3229
        %3359 = vmatprep.subr.bf16.mxu0 %v3232
        %3360 = vmatpush1.bf16.msra.mxu0 %v3231
        %3361 = vmatprep.subr.bf16.mxu0 %v3234
        %3362 = vmatpush1.bf16.msra.mxu0 %v3233
        %3363 = vmatprep.subr.bf16.mxu0 %v3236
        %3364 = vmatpush1.bf16.msra.mxu0 %v3235
        %3365 = vmatprep.subr.bf16.mxu0 %v3238
        %3366 = vmatpush1.bf16.msra.mxu0 %v3237
        %3367 = vmatprep.subr.bf16.mxu0 %v3240
        %3368 = vmatpush1.bf16.msra.mxu0 %v3239
        %3369 = vmatprep.subr.bf16.mxu0 %v3242
        %3370 = vmatpush1.bf16.msra.mxu0 %v3241
        %3371 = vmatprep.subr.bf16.mxu0 %v3244
        %3372 = vmatpush1.bf16.msra.mxu0 %v3243
        %3373 = vmatprep.subr.bf16.mxu0 %v3246
        %3374 = vmatpush1.bf16.msra.mxu0 %v3245
        %3375 = vmatprep.subr.bf16.mxu0 %v3248
        %3376 = vmatpush1.bf16.msra.mxu0 %v3247
        %3377 = vmatprep.subr.bf16.mxu0 %v3250
        %3378 = vmatpush1.bf16.msra.mxu0 %v3249
        %3379 = vmatprep.subr.bf16.mxu0 %v3252
        %3380 = vmatpush1.bf16.msra.mxu0 %v3251
        %3381 = vmatprep.mubr.bf16.mxu0 %v2998
        %3382 = vmatmul.mubr.bf16.gmra.mrb[0].mxu0 %v2997
        %v3383 = vpop.f32.mrb[0].mxu0
        %v3384 = vadd.f32 %v2919, %v3383
        %v3385 = vpop.f32.mrb[0].mxu0
        %v3386 = vadd.f32 %v2921, %v3385
        %v3387 = vpop.f32.mrb[0].mxu0
        %v3388 = vadd.f32 %v2923, %v3387
        %v3389 = vpop.f32.mrb[0].mxu0
        %v3390 = vadd.f32 %v2925, %v3389
        %3391 = vmatprep.mubr.bf16.mxu0 %v3002
        %3392 = vmatmul.mubr.bf16.gmra.mrb[0].mxu0 %v3001
        %v3393 = vpop.f32.mrb[0].mxu0
        %v3394 = vadd.f32 %v2929, %v3393
        %v3395 = vpop.f32.mrb[0].mxu0
        %v3396 = vadd.f32 %v2931, %v3395
        %v3397 = vpop.f32.mrb[0].mxu0
        %v3398 = vadd.f32 %v2933, %v3397
        %v3399 = vpop.f32.mrb[0].mxu0
        %v3400 = vadd.f32 %v2935, %v3399
        %3401 = vmatprep.mubr.bf16.mxu0 %v3006
        %3402 = vmatmul.mubr.bf16.gmra.mrb[0].mxu0 %v3005
        %v3403 = vpop.f32.mrb[0].mxu0
        %v3404 = vadd.f32 %v2939, %v3403
        %v3405 = vpop.f32.mrb[0].mxu0
        %v3406 = vadd.f32 %v2941, %v3405
        %v3407 = vpop.f32.mrb[0].mxu0
        %v3408 = vadd.f32 %v2943, %v3407
        %v3409 = vpop.f32.mrb[0].mxu0
        %v3410 = vadd.f32 %v2945, %v3409
        %3411 = vmatprep.mubr.bf16.mxu0 %v3010
        %3412 = vmatmul.mubr.bf16.gmra.mrb[0].mxu0 %v3009
        %v3413 = vpop.f32.mrb[0].mxu0
        %v3414 = vadd.f32 %v2949, %v3413
        %v3415 = vpop.f32.mrb[0].mxu0
        %v3416 = vadd.f32 %v2951, %v3415
        %v3417 = vpop.f32.mrb[0].mxu0
        %v3418 = vpop.f32.mrb[0].mxu0
        %3419 = vdwg.mxu0
        %3420 = vmatprep.subr.bf16.mxu0 %v3254
        %3421 = vmatpush1.bf16.msra.mxu0 %v3253
        %3422 = vmatprep.subr.bf16.mxu0 %v3256
        %3423 = vmatpush1.bf16.msra.mxu0 %v3255
        %3424 = vmatprep.subr.bf16.mxu0 %v3258
        %3425 = vmatpush1.bf16.msra.mxu0 %v3257
        %3426 = vmatprep.subr.bf16.mxu0 %v3260
        %3427 = vmatpush1.bf16.msra.mxu0 %v3259
        %3428 = vmatprep.subr.bf16.mxu0 %v3262
        %3429 = vmatpush1.bf16.msra.mxu0 %v3261
        %3430 = vmatprep.subr.bf16.mxu0 %v3264
        %3431 = vmatpush1.bf16.msra.mxu0 %v3263
        %3432 = vmatprep.subr.bf16.mxu0 %v3266
        %3433 = vmatpush1.bf16.msra.mxu0 %v3265
        %3434 = vmatprep.subr.bf16.mxu0 %v3268
        %3435 = vmatpush1.bf16.msra.mxu0 %v3267
        %3436 = vmatprep.subr.bf16.mxu0 %v3270
        %3437 = vmatpush1.bf16.msra.mxu0 %v3269
        %3438 = vmatprep.subr.bf16.mxu0 %v3272
        %3439 = vmatpush1.bf16.msra.mxu0 %v3271
        %3440 = vmatprep.subr.bf16.mxu0 %v3274
        %3441 = vmatpush1.bf16.msra.mxu0 %v3273
        %3442 = vmatprep.subr.bf16.mxu0 %v3276
        %3443 = vmatpush1.bf16.msra.mxu0 %v3275
        %3444 = vmatprep.subr.bf16.mxu0 %v3278
        %3445 = vmatpush1.bf16.msra.mxu0 %v3277
        %3446 = vmatprep.subr.bf16.mxu0 %v3280
        %3447 = vmatpush1.bf16.msra.mxu0 %v3279
        %3448 = vmatprep.subr.bf16.mxu0 %v3282
        %3449 = vmatpush1.bf16.msra.mxu0 %v3281
        %3450 = vmatprep.subr.bf16.mxu0 %v3284
        %3451 = vmatpush1.bf16.msra.mxu0 %v3283
        %3452 = vmatprep.mubr.bf16.mxu0 %v3000
        %3453 = vmatmul.mubr.bf16.gmra.mrb[0].mxu0 %v2999
        %v3454 = vpop.f32.mrb[0].mxu0
        %v3455 = vadd.f32 %v3384, %v3454
        %v3456 = vpop.f32.mrb[0].mxu0
        %v3457 = vadd.f32 %v3386, %v3456
        %v3458 = vpop.f32.mrb[0].mxu0
        %v3459 = vadd.f32 %v3388, %v3458
        %v3460 = vpop.f32.mrb[0].mxu0
        %v3461 = vadd.f32 %v3390, %v3460
        %3462 = vmatprep.mubr.bf16.mxu0 %v3004
        %3463 = vmatmul.mubr.bf16.gmra.mrb[0].mxu0 %v3003
        %v3464 = vpop.f32.mrb[0].mxu0
        %v3465 = vadd.f32 %v3394, %v3464
        %v3466 = vpop.f32.mrb[0].mxu0
        %v3467 = vadd.f32 %v3396, %v3466
        %v3468 = vpop.f32.mrb[0].mxu0
        %v3469 = vadd.f32 %v3398, %v3468
        %v3470 = vpop.f32.mrb[0].mxu0
        %v3471 = vadd.f32 %v3400, %v3470
        %3472 = vmatprep.mubr.bf16.mxu0 %v3008
        %3473 = vmatmul.mubr.bf16.gmra.mrb[0].mxu0 %v3007
        %v3474 = vpop.f32.mrb[0].mxu0
        %v3475 = vadd.f32 %v3404, %v3474
        %v3476 = vpop.f32.mrb[0].mxu0
        %v3477 = vadd.f32 %v3406, %v3476
        %v3478 = vpop.f32.mrb[0].mxu0
        %v3479 = vadd.f32 %v3408, %v3478
        %v3480 = vpop.f32.mrb[0].mxu0
        %v3481 = vadd.f32 %v3410, %v3480
        %3482 = vmatprep.mubr.bf16.mxu0 %v3012
        %3483 = vmatmul.mubr.bf16.gmra.mrb[0].mxu0 %v3011
        %v3484 = vpop.f32.mrb[0].mxu0
        %v3485 = vadd.f32 %v3414, %v3484
        %v3486 = vpop.f32.mrb[0].mxu0
        %v3487 = vadd.f32 %v3416, %v3486
        %v3488 = vpop.f32.mrb[0].mxu0
        %v3489 = vpop.f32.mrb[0].mxu0
        %3490 = vdwg.mxu0
        %v3491 = vld [vmem:[#allocation3 + $0x20] sm:$0xff]
        %v3492 = vld [vmem:[#allocation3 + $0x28] sm:$0xff]
        %v3493 = vld [vmem:[#allocation3 + $0xb0] sm:$0xff]
        %v3494 = vld [vmem:[#allocation3 + $0xb8] sm:$0xff]
        %v3495 = vld [vmem:[#allocation3 + $0x140] sm:$0xff]
        %v3496 = vld [vmem:[#allocation3 + $0x148] sm:$0xff]
        %v3497 = vld [vmem:[#allocation3 + $0x1d0] sm:$0xff]
        %v3498 = vld [vmem:[#allocation3 + $0x1d8] sm:$0xff]
        %v3499 = vld [vmem:[#allocation3 + $0x260] sm:$0xff]
        %v3500 = vld [vmem:[#allocation3 + $0x268] sm:$0xff]
        %v3501 = vld [vmem:[#allocation3 + $0x2f0] sm:$0xff]
        %v3502 = vld [vmem:[#allocation3 + $0x2f8] sm:$0xff]
        %v3503 = vld [vmem:[#allocation3 + $0x380] sm:$0x11]
        %v3504 = vld [vmem:[#allocation3 + $0x388] sm:$0x11]
        %v3505 = vld [vmem:[%s268 + $0x400] sm:$0xff]
        %v3506 = vld [vmem:[%s268 + $0x408] sm:$0xff]
        %v3507 = vld [vmem:[%s268 + $0x410] sm:$0xff]
        %v3508 = vld [vmem:[%s268 + $0x418] sm:$0xff]
        %v3509 = vld [vmem:[%s268 + $0x420] sm:$0xff]
        %v3510 = vld [vmem:[%s268 + $0x428] sm:$0xff]
        %v3511 = vld [vmem:[%s268 + $0x430] sm:$0xff]
        %v3512 = vld [vmem:[%s268 + $0x438] sm:$0xff]
        %v3513 = vld [vmem:[%s268 + $0x440] sm:$0xff]
        %v3514 = vld [vmem:[%s268 + $0x448] sm:$0xff]
        %v3515 = vld [vmem:[%s268 + $0x450] sm:$0xff]
        %v3516 = vld [vmem:[%s268 + $0x458] sm:$0xff]
        %v3517 = vld [vmem:[%s268 + $0x460] sm:$0xff]
        %v3518 = vld [vmem:[%s268 + $0x468] sm:$0xff]
        %v3519 = vld [vmem:[%s268 + $0x470] sm:$0xff]
        %v3520 = vld [vmem:[%s268 + $0x478] sm:$0xff]
        %v3521 = vld [vmem:[%s268 + $0x480] sm:$0xff]
        %v3522 = vld [vmem:[%s268 + $0x488] sm:$0xff]
        %v3523 = vld [vmem:[%s268 + $0x490] sm:$0xff]
        %v3524 = vld [vmem:[%s268 + $0x498] sm:$0xff]
        %v3525 = vld [vmem:[%s268 + $0x4a0] sm:$0xff]
        %v3526 = vld [vmem:[%s268 + $0x4a8] sm:$0xff]
        %v3527 = vld [vmem:[%s268 + $0x4b0] sm:$0xff]
        %v3528 = vld [vmem:[%s268 + $0x4b8] sm:$0xff]
        %v3529 = vld [vmem:[%s268 + $0x4c0] sm:$0xff]
        %v3530 = vld [vmem:[%s268 + $0x4c8] sm:$0xff]
        %v3531 = vld [vmem:[%s268 + $0x4d0] sm:$0xff]
        %v3532 = vld [vmem:[%s268 + $0x4d8] sm:$0xff]
        %v3533 = vld [vmem:[%s268 + $0x4e0] sm:$0xff]
        %v3534 = vld [vmem:[%s268 + $0x4e8] sm:$0xff]
        %v3535 = vld [vmem:[%s268 + $0x4f0] sm:$0xff]
        %v3536 = vld [vmem:[%s268 + $0x4f8] sm:$0xff]
        %v3537 = vld [vmem:[%s268 + $0x500] sm:$0xff]
        %v3538 = vld [vmem:[%s268 + $0x508] sm:$0xff]
        %v3539 = vld [vmem:[%s268 + $0x510] sm:$0xff]
        %v3540 = vld [vmem:[%s268 + $0x518] sm:$0xff]
        %v3541 = vld [vmem:[%s268 + $0x520] sm:$0xff]
        %v3542 = vld [vmem:[%s268 + $0x528] sm:$0xff]
        %v3543 = vld [vmem:[%s268 + $0x530] sm:$0xff]
        %v3544 = vld [vmem:[%s268 + $0x538] sm:$0xff]
        %v3545 = vld [vmem:[%s268 + $0x540] sm:$0xff]
        %v3546 = vld [vmem:[%s268 + $0x548] sm:$0xff]
        %v3547 = vld [vmem:[%s268 + $0x550] sm:$0xff]
        %v3548 = vld [vmem:[%s268 + $0x558] sm:$0xff]
        %v3549 = vld [vmem:[%s268 + $0x560] sm:$0xff]
        %v3550 = vld [vmem:[%s268 + $0x568] sm:$0xff]
        %v3551 = vld [vmem:[%s268 + $0x570] sm:$0xff]
        %v3552 = vld [vmem:[%s268 + $0x578] sm:$0xff]
        %v3553 = vld [vmem:[%s268 + $0x580] sm:$0xff]
        %v3554 = vld [vmem:[%s268 + $0x588] sm:$0xff]
        %v3555 = vld [vmem:[%s268 + $0x590] sm:$0xff]
        %v3556 = vld [vmem:[%s268 + $0x598] sm:$0xff]
        %v3557 = vld [vmem:[%s268 + $0x5a0] sm:$0xff]
        %v3558 = vld [vmem:[%s268 + $0x5a8] sm:$0xff]
        %v3559 = vld [vmem:[%s268 + $0x5b0] sm:$0xff]
        %v3560 = vld [vmem:[%s268 + $0x5b8] sm:$0xff]
        %v3561 = vld [vmem:[%s268 + $0x5c0] sm:$0xff]
        %v3562 = vld [vmem:[%s268 + $0x5c8] sm:$0xff]
        %v3563 = vld [vmem:[%s268 + $0x5d0] sm:$0xff]
        %v3564 = vld [vmem:[%s268 + $0x5d8] sm:$0xff]
        %v3565 = vld [vmem:[%s268 + $0x5e0] sm:$0xff]
        %v3566 = vld [vmem:[%s268 + $0x5e8] sm:$0xff]
        %v3567 = vld [vmem:[%s268 + $0x5f0] sm:$0xff]
        %v3568 = vld [vmem:[%s268 + $0x5f8] sm:$0xff]
        %v3583 = vunpack.c.l.b16 %v3491
        %v3584 = vunpack.c.h.b16 %v3491
        %v3585 = vunpack.c.l.b16 %v3492
        %v3586 = vunpack.c.h.b16 %v3492
        %v3587 = vunpack.c.l.b16 %v3493
        %v3588 = vunpack.c.h.b16 %v3493
        %v3589 = vunpack.c.l.b16 %v3494
        %v3590 = vunpack.c.h.b16 %v3494
        %v3591 = vunpack.c.l.b16 %v3495
        %v3592 = vunpack.c.h.b16 %v3495
        %v3593 = vunpack.c.l.b16 %v3496
        %v3594 = vunpack.c.h.b16 %v3496
        %v3595 = vunpack.c.l.b16 %v3497
        %v3596 = vunpack.c.h.b16 %v3497
        %v3597 = vunpack.c.l.b16 %v3498
        %v3598 = vunpack.c.h.b16 %v3498
        %v3599 = vunpack.c.l.b16 %v3499
        %v3600 = vunpack.c.h.b16 %v3499
        %v3601 = vunpack.c.l.b16 %v3500
        %v3602 = vunpack.c.h.b16 %v3500
        %v3603 = vunpack.c.l.b16 %v3501
        %v3604 = vunpack.c.h.b16 %v3501
        %v3605 = vunpack.c.l.b16 %v3502
        %v3606 = vunpack.c.h.b16 %v3502
        %v3607 = vunpack.c.l.b16 %v3503
        %v3608 = vunpack.c.h.b16 %v3503
        %v3609 = vunpack.c.l.b16 %v3504
        %v3610 = vunpack.c.h.b16 %v3504
        %v3611 = vpack.c.b16 %v3587, %v3583
        %v3612 = vpack.c.b16 %v3588, %v3584
        %v3613 = vpack.c.b16 %v3589, %v3585
        %v3614 = vpack.c.b16 %v3590, %v3586
        %v3615 = vpack.c.b16 %v3595, %v3591
        %v3616 = vpack.c.b16 %v3596, %v3592
        %v3617 = vpack.c.b16 %v3597, %v3593
        %v3618 = vpack.c.b16 %v3598, %v3594
        %v3619 = vpack.c.b16 %v3603, %v3599
        %v3620 = vpack.c.b16 %v3604, %v3600
        %v3621 = vpack.c.b16 %v3605, %v3601
        %v3622 = vpack.c.b16 %v3606, %v3602
        %v3623 = vpack.c.b16 %v3607, %v3607
        %v3624 = vpack.c.b16 %v3608, %v3608
        %v3625 = vpack.c.b16 %v3609, %v3609
        %v3626 = vpack.c.b16 %v3610, %v3610
        %v3707 = vunpack.c.l.b16 %v3505
        %v3708 = vunpack.c.h.b16 %v3505
        %v3709 = vunpack.c.l.b16 %v3506
        %v3710 = vunpack.c.h.b16 %v3506
        %v3711 = vunpack.c.l.b16 %v3507
        %v3712 = vunpack.c.h.b16 %v3507
        %v3713 = vunpack.c.l.b16 %v3508
        %v3714 = vunpack.c.h.b16 %v3508
        %v3715 = vunpack.c.l.b16 %v3509
        %v3716 = vunpack.c.h.b16 %v3509
        %v3717 = vunpack.c.l.b16 %v3510
        %v3718 = vunpack.c.h.b16 %v3510
        %v3719 = vunpack.c.l.b16 %v3511
        %v3720 = vunpack.c.h.b16 %v3511
        %v3721 = vunpack.c.l.b16 %v3512
        %v3722 = vunpack.c.h.b16 %v3512
        %v3723 = vunpack.c.l.b16 %v3513
        %v3724 = vunpack.c.h.b16 %v3513
        %v3725 = vunpack.c.l.b16 %v3514
        %v3726 = vunpack.c.h.b16 %v3514
        %v3727 = vunpack.c.l.b16 %v3515
        %v3728 = vunpack.c.h.b16 %v3515
        %v3729 = vunpack.c.l.b16 %v3516
        %v3730 = vunpack.c.h.b16 %v3516
        %v3731 = vunpack.c.l.b16 %v3517
        %v3732 = vunpack.c.h.b16 %v3517
        %v3733 = vunpack.c.l.b16 %v3518
        %v3734 = vunpack.c.h.b16 %v3518
        %v3735 = vunpack.c.l.b16 %v3519
        %v3736 = vunpack.c.h.b16 %v3519
        %v3737 = vunpack.c.l.b16 %v3520
        %v3738 = vunpack.c.h.b16 %v3520
        %v3739 = vunpack.c.l.b16 %v3521
        %v3740 = vunpack.c.h.b16 %v3521
        %v3741 = vunpack.c.l.b16 %v3522
        %v3742 = vunpack.c.h.b16 %v3522
        %v3743 = vunpack.c.l.b16 %v3523
        %v3744 = vunpack.c.h.b16 %v3523
        %v3745 = vunpack.c.l.b16 %v3524
        %v3746 = vunpack.c.h.b16 %v3524
        %v3747 = vunpack.c.l.b16 %v3525
        %v3748 = vunpack.c.h.b16 %v3525
        %v3749 = vunpack.c.l.b16 %v3526
        %v3750 = vunpack.c.h.b16 %v3526
        %v3751 = vunpack.c.l.b16 %v3527
        %v3752 = vunpack.c.h.b16 %v3527
        %v3753 = vunpack.c.l.b16 %v3528
        %v3754 = vunpack.c.h.b16 %v3528
        %v3755 = vunpack.c.l.b16 %v3529
        %v3756 = vunpack.c.h.b16 %v3529
        %v3757 = vunpack.c.l.b16 %v3530
        %v3758 = vunpack.c.h.b16 %v3530
        %v3759 = vunpack.c.l.b16 %v3531
        %v3760 = vunpack.c.h.b16 %v3531
        %v3761 = vunpack.c.l.b16 %v3532
        %v3762 = vunpack.c.h.b16 %v3532
        %v3763 = vunpack.c.l.b16 %v3533
        %v3764 = vunpack.c.h.b16 %v3533
        %v3765 = vunpack.c.l.b16 %v3534
        %v3766 = vunpack.c.h.b16 %v3534
        %v3767 = vunpack.c.l.b16 %v3535
        %v3768 = vunpack.c.h.b16 %v3535
        %v3769 = vunpack.c.l.b16 %v3536
        %v3770 = vunpack.c.h.b16 %v3536
        %v3771 = vunpack.c.l.b16 %v3537
        %v3772 = vunpack.c.h.b16 %v3537
        %v3773 = vunpack.c.l.b16 %v3538
        %v3774 = vunpack.c.h.b16 %v3538
        %v3775 = vunpack.c.l.b16 %v3539
        %v3776 = vunpack.c.h.b16 %v3539
        %v3777 = vunpack.c.l.b16 %v3540
        %v3778 = vunpack.c.h.b16 %v3540
        %v3779 = vunpack.c.l.b16 %v3541
        %v3780 = vunpack.c.h.b16 %v3541
        %v3781 = vunpack.c.l.b16 %v3542
        %v3782 = vunpack.c.h.b16 %v3542
        %v3783 = vunpack.c.l.b16 %v3543
        %v3784 = vunpack.c.h.b16 %v3543
        %v3785 = vunpack.c.l.b16 %v3544
        %v3786 = vunpack.c.h.b16 %v3544
        %v3787 = vunpack.c.l.b16 %v3545
        %v3788 = vunpack.c.h.b16 %v3545
        %v3789 = vunpack.c.l.b16 %v3546
        %v3790 = vunpack.c.h.b16 %v3546
        %v3791 = vunpack.c.l.b16 %v3547
        %v3792 = vunpack.c.h.b16 %v3547
        %v3793 = vunpack.c.l.b16 %v3548
        %v3794 = vunpack.c.h.b16 %v3548
        %v3795 = vunpack.c.l.b16 %v3549
        %v3796 = vunpack.c.h.b16 %v3549
        %v3797 = vunpack.c.l.b16 %v3550
        %v3798 = vunpack.c.h.b16 %v3550
        %v3799 = vunpack.c.l.b16 %v3551
        %v3800 = vunpack.c.h.b16 %v3551
        %v3801 = vunpack.c.l.b16 %v3552
        %v3802 = vunpack.c.h.b16 %v3552
        %v3803 = vunpack.c.l.b16 %v3553
        %v3804 = vunpack.c.h.b16 %v3553
        %v3805 = vunpack.c.l.b16 %v3554
        %v3806 = vunpack.c.h.b16 %v3554
        %v3807 = vunpack.c.l.b16 %v3555
        %v3808 = vunpack.c.h.b16 %v3555
        %v3809 = vunpack.c.l.b16 %v3556
        %v3810 = vunpack.c.h.b16 %v3556
        %v3811 = vunpack.c.l.b16 %v3557
        %v3812 = vunpack.c.h.b16 %v3557
        %v3813 = vunpack.c.l.b16 %v3558
        %v3814 = vunpack.c.h.b16 %v3558
        %v3815 = vunpack.c.l.b16 %v3559
        %v3816 = vunpack.c.h.b16 %v3559
        %v3817 = vunpack.c.l.b16 %v3560
        %v3818 = vunpack.c.h.b16 %v3560
        %v3819 = vunpack.c.l.b16 %v3561
        %v3820 = vunpack.c.h.b16 %v3561
        %v3821 = vunpack.c.l.b16 %v3562
        %v3822 = vunpack.c.h.b16 %v3562
        %v3823 = vunpack.c.l.b16 %v3563
        %v3824 = vunpack.c.h.b16 %v3563
        %v3825 = vunpack.c.l.b16 %v3564
        %v3826 = vunpack.c.h.b16 %v3564
        %v3827 = vunpack.c.l.b16 %v3565
        %v3828 = vunpack.c.h.b16 %v3565
        %v3829 = vunpack.c.l.b16 %v3566
        %v3830 = vunpack.c.h.b16 %v3566
        %v3831 = vunpack.c.l.b16 %v3567
        %v3832 = vunpack.c.h.b16 %v3567
        %v3833 = vunpack.c.l.b16 %v3568
        %v3834 = vunpack.c.h.b16 %v3568
        %v3835 = vpack.c.b16 %v3709, %v3707
        %v3836 = vpack.c.b16 %v3710, %v3708
        %v3837 = vpack.c.b16 %v3713, %v3711
        %v3838 = vpack.c.b16 %v3714, %v3712
        %v3839 = vpack.c.b16 %v3717, %v3715
        %v3840 = vpack.c.b16 %v3718, %v3716
        %v3841 = vpack.c.b16 %v3721, %v3719
        %v3842 = vpack.c.b16 %v3722, %v3720
        %v3843 = vpack.c.b16 %v3725, %v3723
        %v3844 = vpack.c.b16 %v3726, %v3724
        %v3845 = vpack.c.b16 %v3729, %v3727
        %v3846 = vpack.c.b16 %v3730, %v3728
        %v3847 = vpack.c.b16 %v3733, %v3731
        %v3848 = vpack.c.b16 %v3734, %v3732
        %v3849 = vpack.c.b16 %v3737, %v3735
        %v3850 = vpack.c.b16 %v3738, %v3736
        %v3851 = vpack.c.b16 %v3741, %v3739
        %v3852 = vpack.c.b16 %v3742, %v3740
        %v3853 = vpack.c.b16 %v3745, %v3743
        %v3854 = vpack.c.b16 %v3746, %v3744
        %v3855 = vpack.c.b16 %v3749, %v3747
        %v3856 = vpack.c.b16 %v3750, %v3748
        %v3857 = vpack.c.b16 %v3753, %v3751
        %v3858 = vpack.c.b16 %v3754, %v3752
        %v3859 = vpack.c.b16 %v3757, %v3755
        %v3860 = vpack.c.b16 %v3758, %v3756
        %v3861 = vpack.c.b16 %v3761, %v3759
        %v3862 = vpack.c.b16 %v3762, %v3760
        %v3863 = vpack.c.b16 %v3765, %v3763
        %v3864 = vpack.c.b16 %v3766, %v3764
        %v3865 = vpack.c.b16 %v3769, %v3767
        %v3866 = vpack.c.b16 %v3770, %v3768
        %v3867 = vpack.c.b16 %v3773, %v3771
        %v3868 = vpack.c.b16 %v3774, %v3772
        %v3869 = vpack.c.b16 %v3777, %v3775
        %v3870 = vpack.c.b16 %v3778, %v3776
        %v3871 = vpack.c.b16 %v3781, %v3779
        %v3872 = vpack.c.b16 %v3782, %v3780
        %v3873 = vpack.c.b16 %v3785, %v3783
        %v3874 = vpack.c.b16 %v3786, %v3784
        %v3875 = vpack.c.b16 %v3789, %v3787
        %v3876 = vpack.c.b16 %v3790, %v3788
        %v3877 = vpack.c.b16 %v3793, %v3791
        %v3878 = vpack.c.b16 %v3794, %v3792
        %v3879 = vpack.c.b16 %v3797, %v3795
        %v3880 = vpack.c.b16 %v3798, %v3796
        %v3881 = vpack.c.b16 %v3801, %v3799
        %v3882 = vpack.c.b16 %v3802, %v3800
        %v3883 = vpack.c.b16 %v3805, %v3803
        %v3884 = vpack.c.b16 %v3806, %v3804
        %v3885 = vpack.c.b16 %v3809, %v3807
        %v3886 = vpack.c.b16 %v3810, %v3808
        %v3887 = vpack.c.b16 %v3813, %v3811
        %v3888 = vpack.c.b16 %v3814, %v3812
        %v3889 = vpack.c.b16 %v3817, %v3815
        %v3890 = vpack.c.b16 %v3818, %v3816
        %v3891 = vpack.c.b16 %v3821, %v3819
        %v3892 = vpack.c.b16 %v3822, %v3820
        %v3893 = vpack.c.b16 %v3825, %v3823
        %v3894 = vpack.c.b16 %v3826, %v3824
        %v3895 = vpack.c.b16 %v3829, %v3827
        %v3896 = vpack.c.b16 %v3830, %v3828
        %v3897 = vpack.c.b16 %v3833, %v3831
        %v3898 = vpack.c.b16 %v3834, %v3832
        %3963 = vmatprep.subr.bf16.mxu0 %v3836
        %3964 = vmatpush1.bf16.msra.mxu0 %v3835
        %3965 = vmatprep.subr.bf16.mxu0 %v3838
        %3966 = vmatpush1.bf16.msra.mxu0 %v3837
        %3967 = vmatprep.subr.bf16.mxu0 %v3840
        %3968 = vmatpush1.bf16.msra.mxu0 %v3839
        %3969 = vmatprep.subr.bf16.mxu0 %v3842
        %3970 = vmatpush1.bf16.msra.mxu0 %v3841
        %3971 = vmatprep.subr.bf16.mxu0 %v3844
        %3972 = vmatpush1.bf16.msra.mxu0 %v3843
        %3973 = vmatprep.subr.bf16.mxu0 %v3846
        %3974 = vmatpush1.bf16.msra.mxu0 %v3845
        %3975 = vmatprep.subr.bf16.mxu0 %v3848
        %3976 = vmatpush1.bf16.msra.mxu0 %v3847
        %3977 = vmatprep.subr.bf16.mxu0 %v3850
        %3978 = vmatpush1.bf16.msra.mxu0 %v3849
        %3979 = vmatprep.subr.bf16.mxu0 %v3852
        %3980 = vmatpush1.bf16.msra.mxu0 %v3851
        %3981 = vmatprep.subr.bf16.mxu0 %v3854
        %3982 = vmatpush1.bf16.msra.mxu0 %v3853
        %3983 = vmatprep.subr.bf16.mxu0 %v3856
        %3984 = vmatpush1.bf16.msra.mxu0 %v3855
        %3985 = vmatprep.subr.bf16.mxu0 %v3858
        %3986 = vmatpush1.bf16.msra.mxu0 %v3857
        %3987 = vmatprep.subr.bf16.mxu0 %v3860
        %3988 = vmatpush1.bf16.msra.mxu0 %v3859
        %3989 = vmatprep.subr.bf16.mxu0 %v3862
        %3990 = vmatpush1.bf16.msra.mxu0 %v3861
        %3991 = vmatprep.subr.bf16.mxu0 %v3864
        %3992 = vmatpush1.bf16.msra.mxu0 %v3863
        %3993 = vmatprep.subr.bf16.mxu0 %v3866
        %3994 = vmatpush1.bf16.msra.mxu0 %v3865
        %3995 = vmatprep.mubr.bf16.mxu0 %v3612
        %3996 = vmatmul.mubr.bf16.gmra.mrb[0].mxu0 %v3611
        %v3997 = vpop.f32.mrb[0].mxu0
        %v3998 = vadd.f32 0.0, %v3997
        %v3999 = vpop.f32.mrb[0].mxu0
        %v4000 = vadd.f32 0.0, %v3999
        %v4001 = vpop.f32.mrb[0].mxu0
        %v4002 = vadd.f32 0.0, %v4001
        %v4003 = vpop.f32.mrb[0].mxu0
        %v4004 = vadd.f32 0.0, %v4003
        %4005 = vmatprep.mubr.bf16.mxu0 %v3616
        %4006 = vmatmul.mubr.bf16.gmra.mrb[0].mxu0 %v3615
        %v4007 = vpop.f32.mrb[0].mxu0
        %v4008 = vadd.f32 0.0, %v4007
        %v4009 = vpop.f32.mrb[0].mxu0
        %v4010 = vadd.f32 0.0, %v4009
        %v4011 = vpop.f32.mrb[0].mxu0
        %v4012 = vadd.f32 0.0, %v4011
        %v4013 = vpop.f32.mrb[0].mxu0
        %v4014 = vadd.f32 0.0, %v4013
        %4015 = vmatprep.mubr.bf16.mxu0 %v3620
        %4016 = vmatmul.mubr.bf16.gmra.mrb[0].mxu0 %v3619
        %v4017 = vpop.f32.mrb[0].mxu0
        %v4018 = vadd.f32 0.0, %v4017
        %v4019 = vpop.f32.mrb[0].mxu0
        %v4020 = vadd.f32 0.0, %v4019
        %v4021 = vpop.f32.mrb[0].mxu0
        %v4022 = vadd.f32 0.0, %v4021
        %v4023 = vpop.f32.mrb[0].mxu0
        %v4024 = vadd.f32 0.0, %v4023
        %4025 = vmatprep.mubr.bf16.mxu0 %v3624
        %4026 = vmatmul.mubr.bf16.gmra.mrb[0].mxu0 %v3623
        %v4027 = vpop.f32.mrb[0].mxu0
        %v4028 = vadd.f32 0.0, %v4027
        %v4029 = vpop.f32.mrb[0].mxu0
        %v4030 = vadd.f32 0.0, %v4029
        %v4031 = vpop.f32.mrb[0].mxu0
        %v4032 = vpop.f32.mrb[0].mxu0
        %4033 = vdwg.mxu0
        %4034 = vmatprep.subr.bf16.mxu0 %v3868
        %4035 = vmatpush1.bf16.msra.mxu0 %v3867
        %4036 = vmatprep.subr.bf16.mxu0 %v3870
        %4037 = vmatpush1.bf16.msra.mxu0 %v3869
        %4038 = vmatprep.subr.bf16.mxu0 %v3872
        %4039 = vmatpush1.bf16.msra.mxu0 %v3871
        %4040 = vmatprep.subr.bf16.mxu0 %v3874
        %4041 = vmatpush1.bf16.msra.mxu0 %v3873
        %4042 = vmatprep.subr.bf16.mxu0 %v3876
        %4043 = vmatpush1.bf16.msra.mxu0 %v3875
        %4044 = vmatprep.subr.bf16.mxu0 %v3878
        %4045 = vmatpush1.bf16.msra.mxu0 %v3877
        %4046 = vmatprep.subr.bf16.mxu0 %v3880
        %4047 = vmatpush1.bf16.msra.mxu0 %v3879
        %4048 = vmatprep.subr.bf16.mxu0 %v3882
        %4049 = vmatpush1.bf16.msra.mxu0 %v3881
        %4050 = vmatprep.subr.bf16.mxu0 %v3884
        %4051 = vmatpush1.bf16.msra.mxu0 %v3883
        %4052 = vmatprep.subr.bf16.mxu0 %v3886
        %4053 = vmatpush1.bf16.msra.mxu0 %v3885
        %4054 = vmatprep.subr.bf16.mxu0 %v3888
        %4055 = vmatpush1.bf16.msra.mxu0 %v3887
        %4056 = vmatprep.subr.bf16.mxu0 %v3890
        %4057 = vmatpush1.bf16.msra.mxu0 %v3889
        %4058 = vmatprep.subr.bf16.mxu0 %v3892
        %4059 = vmatpush1.bf16.msra.mxu0 %v3891
        %4060 = vmatprep.subr.bf16.mxu0 %v3894
        %4061 = vmatpush1.bf16.msra.mxu0 %v3893
        %4062 = vmatprep.subr.bf16.mxu0 %v3896
        %4063 = vmatpush1.bf16.msra.mxu0 %v3895
        %4064 = vmatprep.subr.bf16.mxu0 %v3898
        %4065 = vmatpush1.bf16.msra.mxu0 %v3897
        %4066 = vmatprep.mubr.bf16.mxu0 %v3614
        %4067 = vmatmul.mubr.bf16.gmra.mrb[0].mxu0 %v3613
        %v4068 = vpop.f32.mrb[0].mxu0
        %v4069 = vadd.f32 %v3998, %v4068
        %v4070 = vpop.f32.mrb[0].mxu0
        %v4071 = vadd.f32 %v4000, %v4070
        %v4072 = vpop.f32.mrb[0].mxu0
        %v4073 = vadd.f32 %v4002, %v4072
        %v4074 = vpop.f32.mrb[0].mxu0
        %v4075 = vadd.f32 %v4004, %v4074
        %4076 = vmatprep.mubr.bf16.mxu0 %v3618
        %4077 = vmatmul.mubr.bf16.gmra.mrb[0].mxu0 %v3617
        %v4078 = vpop.f32.mrb[0].mxu0
        %v4079 = vadd.f32 %v4008, %v4078
        %v4080 = vpop.f32.mrb[0].mxu0
        %v4081 = vadd.f32 %v4010, %v4080
        %v4082 = vpop.f32.mrb[0].mxu0
        %v4083 = vadd.f32 %v4012, %v4082
        %v4084 = vpop.f32.mrb[0].mxu0
        %v4085 = vadd.f32 %v4014, %v4084
        %4086 = vmatprep.mubr.bf16.mxu0 %v3622
        %4087 = vmatmul.mubr.bf16.gmra.mrb[0].mxu0 %v3621
        %v4088 = vpop.f32.mrb[0].mxu0
        %v4089 = vadd.f32 %v4018, %v4088
        %v4090 = vpop.f32.mrb[0].mxu0
        %v4091 = vadd.f32 %v4020, %v4090
        %v4092 = vpop.f32.mrb[0].mxu0
        %v4093 = vadd.f32 %v4022, %v4092
        %v4094 = vpop.f32.mrb[0].mxu0
        %v4095 = vadd.f32 %v4024, %v4094
        %4096 = vmatprep.mubr.bf16.mxu0 %v3626
        %4097 = vmatmul.mubr.bf16.gmra.mrb[0].mxu0 %v3625
        %v4098 = vpop.f32.mrb[0].mxu0
        %v4099 = vadd.f32 %v4028, %v4098
        %v4100 = vpop.f32.mrb[0].mxu0
        %v4101 = vadd.f32 %v4030, %v4100
        %v4102 = vpop.f32.mrb[0].mxu0
        %v4103 = vpop.f32.mrb[0].mxu0
        %4104 = vdwg.mxu0
        %v4105 = vadd.f32 %v3455, %v4069
        %v4106 = vadd.f32 %v3457, %v4071
        %v4107 = vadd.f32 %v3459, %v4073
        %v4108 = vadd.f32 %v3461, %v4075
        %v4109 = vadd.f32 %v3465, %v4079
        %v4110 = vadd.f32 %v3467, %v4081
        %v4111 = vadd.f32 %v3469, %v4083
        %v4112 = vadd.f32 %v3471, %v4085
        %v4113 = vadd.f32 %v3475, %v4089
        %v4114 = vadd.f32 %v3477, %v4091
        %v4115 = vadd.f32 %v3479, %v4093
        %v4116 = vadd.f32 %v3481, %v4095
        %v4117 = vadd.f32 %v3485, %v4099
        %v4118 = vadd.f32 %v3487, %v4101
        %v4119 = vld [vmem:[#allocation3 + $0x30] sm:$0xff]
        %v4120 = vld [vmem:[#allocation3 + $0x38] sm:$0xff]
        %v4121 = vld [vmem:[#allocation3 + $0xc0] sm:$0xff]
        %v4122 = vld [vmem:[#allocation3 + $0xc8] sm:$0xff]
        %v4123 = vld [vmem:[#allocation3 + $0x150] sm:$0xff]
        %v4124 = vld [vmem:[#allocation3 + $0x158] sm:$0xff]
        %v4125 = vld [vmem:[#allocation3 + $0x1e0] sm:$0xff]
        %v4126 = vld [vmem:[#allocation3 + $0x1e8] sm:$0xff]
        %v4127 = vld [vmem:[#allocation3 + $0x270] sm:$0xff]
        %v4128 = vld [vmem:[#allocation3 + $0x278] sm:$0xff]
        %v4129 = vld [vmem:[#allocation3 + $0x300] sm:$0xff]
        %v4130 = vld [vmem:[#allocation3 + $0x308] sm:$0xff]
        %v4131 = vld [vmem:[#allocation3 + $0x390] sm:$0x11]
        %v4132 = vld [vmem:[#allocation3 + $0x398] sm:$0x11]
        %v4133 = vld [vmem:[%s268 + $0x600] sm:$0xff]
        %v4134 = vld [vmem:[%s268 + $0x608] sm:$0xff]
        %v4135 = vld [vmem:[%s268 + $0x610] sm:$0xff]
        %v4136 = vld [vmem:[%s268 + $0x618] sm:$0xff]
        %v4137 = vld [vmem:[%s268 + $0x620] sm:$0xff]
        %v4138 = vld [vmem:[%s268 + $0x628] sm:$0xff]
        %v4139 = vld [vmem:[%s268 + $0x630] sm:$0xff]
        %v4140 = vld [vmem:[%s268 + $0x638] sm:$0xff]
        %v4141 = vld [vmem:[%s268 + $0x640] sm:$0xff]
        %v4142 = vld [vmem:[%s268 + $0x648] sm:$0xff]
        %v4143 = vld [vmem:[%s268 + $0x650] sm:$0xff]
        %v4144 = vld [vmem:[%s268 + $0x658] sm:$0xff]
        %v4145 = vld [vmem:[%s268 + $0x660] sm:$0xff]
        %v4146 = vld [vmem:[%s268 + $0x668] sm:$0xff]
        %v4147 = vld [vmem:[%s268 + $0x670] sm:$0xff]
        %v4148 = vld [vmem:[%s268 + $0x678] sm:$0xff]
        %v4149 = vld [vmem:[%s268 + $0x680] sm:$0xff]
        %v4150 = vld [vmem:[%s268 + $0x688] sm:$0xff]
        %v4151 = vld [vmem:[%s268 + $0x690] sm:$0xff]
        %v4152 = vld [vmem:[%s268 + $0x698] sm:$0xff]
        %v4153 = vld [vmem:[%s268 + $0x6a0] sm:$0xff]
        %v4154 = vld [vmem:[%s268 + $0x6a8] sm:$0xff]
        %v4155 = vld [vmem:[%s268 + $0x6b0] sm:$0xff]
        %v4156 = vld [vmem:[%s268 + $0x6b8] sm:$0xff]
        %v4157 = vld [vmem:[%s268 + $0x6c0] sm:$0xff]
        %v4158 = vld [vmem:[%s268 + $0x6c8] sm:$0xff]
        %v4159 = vld [vmem:[%s268 + $0x6d0] sm:$0xff]
        %v4160 = vld [vmem:[%s268 + $0x6d8] sm:$0xff]
        %v4161 = vld [vmem:[%s268 + $0x6e0] sm:$0xff]
        %v4162 = vld [vmem:[%s268 + $0x6e8] sm:$0xff]
        %v4163 = vld [vmem:[%s268 + $0x6f0] sm:$0xff]
        %v4164 = vld [vmem:[%s268 + $0x6f8] sm:$0xff]
        %v4165 = vld [vmem:[%s268 + $0x700] sm:$0xff]
        %v4166 = vld [vmem:[%s268 + $0x708] sm:$0xff]
        %v4167 = vld [vmem:[%s268 + $0x710] sm:$0xff]
        %v4168 = vld [vmem:[%s268 + $0x718] sm:$0xff]
        %v4169 = vld [vmem:[%s268 + $0x720] sm:$0xff]
        %v4170 = vld [vmem:[%s268 + $0x728] sm:$0xff]
        %v4171 = vld [vmem:[%s268 + $0x730] sm:$0xff]
        %v4172 = vld [vmem:[%s268 + $0x738] sm:$0xff]
        %v4173 = vld [vmem:[%s268 + $0x740] sm:$0xff]
        %v4174 = vld [vmem:[%s268 + $0x748] sm:$0xff]
        %v4175 = vld [vmem:[%s268 + $0x750] sm:$0xff]
        %v4176 = vld [vmem:[%s268 + $0x758] sm:$0xff]
        %v4177 = vld [vmem:[%s268 + $0x760] sm:$0xff]
        %v4178 = vld [vmem:[%s268 + $0x768] sm:$0xff]
        %v4179 = vld [vmem:[%s268 + $0x770] sm:$0xff]
        %v4180 = vld [vmem:[%s268 + $0x778] sm:$0xff]
        %v4181 = vld [vmem:[%s268 + $0x780] sm:$0xff]
        %v4182 = vld [vmem:[%s268 + $0x788] sm:$0xff]
        %v4183 = vld [vmem:[%s268 + $0x790] sm:$0xff]
        %v4184 = vld [vmem:[%s268 + $0x798] sm:$0xff]
        %v4185 = vld [vmem:[%s268 + $0x7a0] sm:$0xff]
        %v4186 = vld [vmem:[%s268 + $0x7a8] sm:$0xff]
        %v4187 = vld [vmem:[%s268 + $0x7b0] sm:$0xff]
        %v4188 = vld [vmem:[%s268 + $0x7b8] sm:$0xff]
        %v4189 = vld [vmem:[%s268 + $0x7c0] sm:$0xff]
        %v4190 = vld [vmem:[%s268 + $0x7c8] sm:$0xff]
        %v4191 = vld [vmem:[%s268 + $0x7d0] sm:$0xff]
        %v4192 = vld [vmem:[%s268 + $0x7d8] sm:$0xff]
        %v4193 = vld [vmem:[%s268 + $0x7e0] sm:$0xff]
        %v4194 = vld [vmem:[%s268 + $0x7e8] sm:$0xff]
        %v4195 = vld [vmem:[%s268 + $0x7f0] sm:$0xff]
        %v4196 = vld [vmem:[%s268 + $0x7f8] sm:$0xff]
        %v4211 = vunpack.c.l.b16 %v4119
        %v4212 = vunpack.c.h.b16 %v4119
        %v4213 = vunpack.c.l.b16 %v4120
        %v4214 = vunpack.c.h.b16 %v4120
        %v4215 = vunpack.c.l.b16 %v4121
        %v4216 = vunpack.c.h.b16 %v4121
        %v4217 = vunpack.c.l.b16 %v4122
        %v4218 = vunpack.c.h.b16 %v4122
        %v4219 = vunpack.c.l.b16 %v4123
        %v4220 = vunpack.c.h.b16 %v4123
        %v4221 = vunpack.c.l.b16 %v4124
        %v4222 = vunpack.c.h.b16 %v4124
        %v4223 = vunpack.c.l.b16 %v4125
        %v4224 = vunpack.c.h.b16 %v4125
        %v4225 = vunpack.c.l.b16 %v4126
        %v4226 = vunpack.c.h.b16 %v4126
        %v4227 = vunpack.c.l.b16 %v4127
        %v4228 = vunpack.c.h.b16 %v4127
        %v4229 = vunpack.c.l.b16 %v4128
        %v4230 = vunpack.c.h.b16 %v4128
        %v4231 = vunpack.c.l.b16 %v4129
        %v4232 = vunpack.c.h.b16 %v4129
        %v4233 = vunpack.c.l.b16 %v4130
        %v4234 = vunpack.c.h.b16 %v4130
        %v4235 = vunpack.c.l.b16 %v4131
        %v4236 = vunpack.c.h.b16 %v4131
        %v4237 = vunpack.c.l.b16 %v4132
        %v4238 = vunpack.c.h.b16 %v4132
        %v4239 = vpack.c.b16 %v4215, %v4211
        %v4240 = vpack.c.b16 %v4216, %v4212
        %v4241 = vpack.c.b16 %v4217, %v4213
        %v4242 = vpack.c.b16 %v4218, %v4214
        %v4243 = vpack.c.b16 %v4223, %v4219
        %v4244 = vpack.c.b16 %v4224, %v4220
        %v4245 = vpack.c.b16 %v4225, %v4221
        %v4246 = vpack.c.b16 %v4226, %v4222
        %v4247 = vpack.c.b16 %v4231, %v4227
        %v4248 = vpack.c.b16 %v4232, %v4228
        %v4249 = vpack.c.b16 %v4233, %v4229
        %v4250 = vpack.c.b16 %v4234, %v4230
        %v4251 = vpack.c.b16 %v4235, %v4235
        %v4252 = vpack.c.b16 %v4236, %v4236
        %v4253 = vpack.c.b16 %v4237, %v4237
        %v4254 = vpack.c.b16 %v4238, %v4238
        %v4335 = vunpack.c.l.b16 %v4133
        %v4336 = vunpack.c.h.b16 %v4133
        %v4337 = vunpack.c.l.b16 %v4134
        %v4338 = vunpack.c.h.b16 %v4134
        %v4339 = vunpack.c.l.b16 %v4135
        %v4340 = vunpack.c.h.b16 %v4135
        %v4341 = vunpack.c.l.b16 %v4136
        %v4342 = vunpack.c.h.b16 %v4136
        %v4343 = vunpack.c.l.b16 %v4137
        %v4344 = vunpack.c.h.b16 %v4137
        %v4345 = vunpack.c.l.b16 %v4138
        %v4346 = vunpack.c.h.b16 %v4138
        %v4347 = vunpack.c.l.b16 %v4139
        %v4348 = vunpack.c.h.b16 %v4139
        %v4349 = vunpack.c.l.b16 %v4140
        %v4350 = vunpack.c.h.b16 %v4140
        %v4351 = vunpack.c.l.b16 %v4141
        %v4352 = vunpack.c.h.b16 %v4141
        %v4353 = vunpack.c.l.b16 %v4142
        %v4354 = vunpack.c.h.b16 %v4142
        %v4355 = vunpack.c.l.b16 %v4143
        %v4356 = vunpack.c.h.b16 %v4143
        %v4357 = vunpack.c.l.b16 %v4144
        %v4358 = vunpack.c.h.b16 %v4144
        %v4359 = vunpack.c.l.b16 %v4145
        %v4360 = vunpack.c.h.b16 %v4145
        %v4361 = vunpack.c.l.b16 %v4146
        %v4362 = vunpack.c.h.b16 %v4146
        %v4363 = vunpack.c.l.b16 %v4147
        %v4364 = vunpack.c.h.b16 %v4147
        %v4365 = vunpack.c.l.b16 %v4148
        %v4366 = vunpack.c.h.b16 %v4148
        %v4367 = vunpack.c.l.b16 %v4149
        %v4368 = vunpack.c.h.b16 %v4149
        %v4369 = vunpack.c.l.b16 %v4150
        %v4370 = vunpack.c.h.b16 %v4150
        %v4371 = vunpack.c.l.b16 %v4151
        %v4372 = vunpack.c.h.b16 %v4151
        %v4373 = vunpack.c.l.b16 %v4152
        %v4374 = vunpack.c.h.b16 %v4152
        %v4375 = vunpack.c.l.b16 %v4153
        %v4376 = vunpack.c.h.b16 %v4153
        %v4377 = vunpack.c.l.b16 %v4154
        %v4378 = vunpack.c.h.b16 %v4154
        %v4379 = vunpack.c.l.b16 %v4155
        %v4380 = vunpack.c.h.b16 %v4155
        %v4381 = vunpack.c.l.b16 %v4156
        %v4382 = vunpack.c.h.b16 %v4156
        %v4383 = vunpack.c.l.b16 %v4157
        %v4384 = vunpack.c.h.b16 %v4157
        %v4385 = vunpack.c.l.b16 %v4158
        %v4386 = vunpack.c.h.b16 %v4158
        %v4387 = vunpack.c.l.b16 %v4159
        %v4388 = vunpack.c.h.b16 %v4159
        %v4389 = vunpack.c.l.b16 %v4160
        %v4390 = vunpack.c.h.b16 %v4160
        %v4391 = vunpack.c.l.b16 %v4161
        %v4392 = vunpack.c.h.b16 %v4161
        %v4393 = vunpack.c.l.b16 %v4162
        %v4394 = vunpack.c.h.b16 %v4162
        %v4395 = vunpack.c.l.b16 %v4163
        %v4396 = vunpack.c.h.b16 %v4163
        %v4397 = vunpack.c.l.b16 %v4164
        %v4398 = vunpack.c.h.b16 %v4164
        %v4399 = vunpack.c.l.b16 %v4165
        %v4400 = vunpack.c.h.b16 %v4165
        %v4401 = vunpack.c.l.b16 %v4166
        %v4402 = vunpack.c.h.b16 %v4166
        %v4403 = vunpack.c.l.b16 %v4167
        %v4404 = vunpack.c.h.b16 %v4167
        %v4405 = vunpack.c.l.b16 %v4168
        %v4406 = vunpack.c.h.b16 %v4168
        %v4407 = vunpack.c.l.b16 %v4169
        %v4408 = vunpack.c.h.b16 %v4169
        %v4409 = vunpack.c.l.b16 %v4170
        %v4410 = vunpack.c.h.b16 %v4170
        %v4411 = vunpack.c.l.b16 %v4171
        %v4412 = vunpack.c.h.b16 %v4171
        %v4413 = vunpack.c.l.b16 %v4172
        %v4414 = vunpack.c.h.b16 %v4172
        %v4415 = vunpack.c.l.b16 %v4173
        %v4416 = vunpack.c.h.b16 %v4173
        %v4417 = vunpack.c.l.b16 %v4174
        %v4418 = vunpack.c.h.b16 %v4174
        %v4419 = vunpack.c.l.b16 %v4175
        %v4420 = vunpack.c.h.b16 %v4175
        %v4421 = vunpack.c.l.b16 %v4176
        %v4422 = vunpack.c.h.b16 %v4176
        %v4423 = vunpack.c.l.b16 %v4177
        %v4424 = vunpack.c.h.b16 %v4177
        %v4425 = vunpack.c.l.b16 %v4178
        %v4426 = vunpack.c.h.b16 %v4178
        %v4427 = vunpack.c.l.b16 %v4179
        %v4428 = vunpack.c.h.b16 %v4179
        %v4429 = vunpack.c.l.b16 %v4180
        %v4430 = vunpack.c.h.b16 %v4180
        %v4431 = vunpack.c.l.b16 %v4181
        %v4432 = vunpack.c.h.b16 %v4181
        %v4433 = vunpack.c.l.b16 %v4182
        %v4434 = vunpack.c.h.b16 %v4182
        %v4435 = vunpack.c.l.b16 %v4183
        %v4436 = vunpack.c.h.b16 %v4183
        %v4437 = vunpack.c.l.b16 %v4184
        %v4438 = vunpack.c.h.b16 %v4184
        %v4439 = vunpack.c.l.b16 %v4185
        %v4440 = vunpack.c.h.b16 %v4185
        %v4441 = vunpack.c.l.b16 %v4186
        %v4442 = vunpack.c.h.b16 %v4186
        %v4443 = vunpack.c.l.b16 %v4187
        %v4444 = vunpack.c.h.b16 %v4187
        %v4445 = vunpack.c.l.b16 %v4188
        %v4446 = vunpack.c.h.b16 %v4188
        %v4447 = vunpack.c.l.b16 %v4189
        %v4448 = vunpack.c.h.b16 %v4189
        %v4449 = vunpack.c.l.b16 %v4190
        %v4450 = vunpack.c.h.b16 %v4190
        %v4451 = vunpack.c.l.b16 %v4191
        %v4452 = vunpack.c.h.b16 %v4191
        %v4453 = vunpack.c.l.b16 %v4192
        %v4454 = vunpack.c.h.b16 %v4192
        %v4455 = vunpack.c.l.b16 %v4193
        %v4456 = vunpack.c.h.b16 %v4193
        %v4457 = vunpack.c.l.b16 %v4194
        %v4458 = vunpack.c.h.b16 %v4194
        %v4459 = vunpack.c.l.b16 %v4195
        %v4460 = vunpack.c.h.b16 %v4195
        %v4461 = vunpack.c.l.b16 %v4196
        %v4462 = vunpack.c.h.b16 %v4196
        %v4463 = vpack.c.b16 %v4337, %v4335
        %v4464 = vpack.c.b16 %v4338, %v4336
        %v4465 = vpack.c.b16 %v4341, %v4339
        %v4466 = vpack.c.b16 %v4342, %v4340
        %v4467 = vpack.c.b16 %v4345, %v4343
        %v4468 = vpack.c.b16 %v4346, %v4344
        %v4469 = vpack.c.b16 %v4349, %v4347
        %v4470 = vpack.c.b16 %v4350, %v4348
        %v4471 = vpack.c.b16 %v4353, %v4351
        %v4472 = vpack.c.b16 %v4354, %v4352
        %v4473 = vpack.c.b16 %v4357, %v4355
        %v4474 = vpack.c.b16 %v4358, %v4356
        %v4475 = vpack.c.b16 %v4361, %v4359
        %v4476 = vpack.c.b16 %v4362, %v4360
        %v4477 = vpack.c.b16 %v4365, %v4363
        %v4478 = vpack.c.b16 %v4366, %v4364
        %v4479 = vpack.c.b16 %v4369, %v4367
        %v4480 = vpack.c.b16 %v4370, %v4368
        %v4481 = vpack.c.b16 %v4373, %v4371
        %v4482 = vpack.c.b16 %v4374, %v4372
        %v4483 = vpack.c.b16 %v4377, %v4375
        %v4484 = vpack.c.b16 %v4378, %v4376
        %v4485 = vpack.c.b16 %v4381, %v4379
        %v4486 = vpack.c.b16 %v4382, %v4380
        %v4487 = vpack.c.b16 %v4385, %v4383
        %v4488 = vpack.c.b16 %v4386, %v4384
        %v4489 = vpack.c.b16 %v4389, %v4387
        %v4490 = vpack.c.b16 %v4390, %v4388
        %v4491 = vpack.c.b16 %v4393, %v4391
        %v4492 = vpack.c.b16 %v4394, %v4392
        %v4493 = vpack.c.b16 %v4397, %v4395
        %v4494 = vpack.c.b16 %v4398, %v4396
        %v4495 = vpack.c.b16 %v4401, %v4399
        %v4496 = vpack.c.b16 %v4402, %v4400
        %v4497 = vpack.c.b16 %v4405, %v4403
        %v4498 = vpack.c.b16 %v4406, %v4404
        %v4499 = vpack.c.b16 %v4409, %v4407
        %v4500 = vpack.c.b16 %v4410, %v4408
        %v4501 = vpack.c.b16 %v4413, %v4411
        %v4502 = vpack.c.b16 %v4414, %v4412
        %v4503 = vpack.c.b16 %v4417, %v4415
        %v4504 = vpack.c.b16 %v4418, %v4416
        %v4505 = vpack.c.b16 %v4421, %v4419
        %v4506 = vpack.c.b16 %v4422, %v4420
        %v4507 = vpack.c.b16 %v4425, %v4423
        %v4508 = vpack.c.b16 %v4426, %v4424
        %v4509 = vpack.c.b16 %v4429, %v4427
        %v4510 = vpack.c.b16 %v4430, %v4428
        %v4511 = vpack.c.b16 %v4433, %v4431
        %v4512 = vpack.c.b16 %v4434, %v4432
        %v4513 = vpack.c.b16 %v4437, %v4435
        %v4514 = vpack.c.b16 %v4438, %v4436
        %v4515 = vpack.c.b16 %v4441, %v4439
        %v4516 = vpack.c.b16 %v4442, %v4440
        %v4517 = vpack.c.b16 %v4445, %v4443
        %v4518 = vpack.c.b16 %v4446, %v4444
        %v4519 = vpack.c.b16 %v4449, %v4447
        %v4520 = vpack.c.b16 %v4450, %v4448
        %v4521 = vpack.c.b16 %v4453, %v4451
        %v4522 = vpack.c.b16 %v4454, %v4452
        %v4523 = vpack.c.b16 %v4457, %v4455
        %v4524 = vpack.c.b16 %v4458, %v4456
        %v4525 = vpack.c.b16 %v4461, %v4459
        %v4526 = vpack.c.b16 %v4462, %v4460
        %4591 = vmatprep.subr.bf16.mxu0 %v4464
        %4592 = vmatpush1.bf16.msra.mxu0 %v4463
        %4593 = vmatprep.subr.bf16.mxu0 %v4466
        %4594 = vmatpush1.bf16.msra.mxu0 %v4465
        %4595 = vmatprep.subr.bf16.mxu0 %v4468
        %4596 = vmatpush1.bf16.msra.mxu0 %v4467
        %4597 = vmatprep.subr.bf16.mxu0 %v4470
        %4598 = vmatpush1.bf16.msra.mxu0 %v4469
        %4599 = vmatprep.subr.bf16.mxu0 %v4472
        %4600 = vmatpush1.bf16.msra.mxu0 %v4471
        %4601 = vmatprep.subr.bf16.mxu0 %v4474
        %4602 = vmatpush1.bf16.msra.mxu0 %v4473
        %4603 = vmatprep.subr.bf16.mxu0 %v4476
        %4604 = vmatpush1.bf16.msra.mxu0 %v4475
        %4605 = vmatprep.subr.bf16.mxu0 %v4478
        %4606 = vmatpush1.bf16.msra.mxu0 %v4477
        %4607 = vmatprep.subr.bf16.mxu0 %v4480
        %4608 = vmatpush1.bf16.msra.mxu0 %v4479
        %4609 = vmatprep.subr.bf16.mxu0 %v4482
        %4610 = vmatpush1.bf16.msra.mxu0 %v4481
        %4611 = vmatprep.subr.bf16.mxu0 %v4484
        %4612 = vmatpush1.bf16.msra.mxu0 %v4483
        %4613 = vmatprep.subr.bf16.mxu0 %v4486
        %4614 = vmatpush1.bf16.msra.mxu0 %v4485
        %4615 = vmatprep.subr.bf16.mxu0 %v4488
        %4616 = vmatpush1.bf16.msra.mxu0 %v4487
        %4617 = vmatprep.subr.bf16.mxu0 %v4490
        %4618 = vmatpush1.bf16.msra.mxu0 %v4489
        %4619 = vmatprep.subr.bf16.mxu0 %v4492
        %4620 = vmatpush1.bf16.msra.mxu0 %v4491
        %4621 = vmatprep.subr.bf16.mxu0 %v4494
        %4622 = vmatpush1.bf16.msra.mxu0 %v4493
        %4623 = vmatprep.mubr.bf16.mxu0 %v4240
        %4624 = vmatmul.mubr.bf16.gmra.mrb[0].mxu0 %v4239
        %v4625 = vpop.f32.mrb[0].mxu0
        %v4626 = vadd.f32 0.0, %v4625
        %v4627 = vpop.f32.mrb[0].mxu0
        %v4628 = vadd.f32 0.0, %v4627
        %v4629 = vpop.f32.mrb[0].mxu0
        %v4630 = vadd.f32 0.0, %v4629
        %v4631 = vpop.f32.mrb[0].mxu0
        %v4632 = vadd.f32 0.0, %v4631
        %4633 = vmatprep.mubr.bf16.mxu0 %v4244
        %4634 = vmatmul.mubr.bf16.gmra.mrb[0].mxu0 %v4243
        %v4635 = vpop.f32.mrb[0].mxu0
        %v4636 = vadd.f32 0.0, %v4635
        %v4637 = vpop.f32.mrb[0].mxu0
        %v4638 = vadd.f32 0.0, %v4637
        %v4639 = vpop.f32.mrb[0].mxu0
        %v4640 = vadd.f32 0.0, %v4639
        %v4641 = vpop.f32.mrb[0].mxu0
        %v4642 = vadd.f32 0.0, %v4641
        %4643 = vmatprep.mubr.bf16.mxu0 %v4248
        %4644 = vmatmul.mubr.bf16.gmra.mrb[0].mxu0 %v4247
        %v4645 = vpop.f32.mrb[0].mxu0
        %v4646 = vadd.f32 0.0, %v4645
        %v4647 = vpop.f32.mrb[0].mxu0
        %v4648 = vadd.f32 0.0, %v4647
        %v4649 = vpop.f32.mrb[0].mxu0
        %v4650 = vadd.f32 0.0, %v4649
        %v4651 = vpop.f32.mrb[0].mxu0
        %v4652 = vadd.f32 0.0, %v4651
        %4653 = vmatprep.mubr.bf16.mxu0 %v4252
        %4654 = vmatmul.mubr.bf16.gmra.mrb[0].mxu0 %v4251
        %v4655 = vpop.f32.mrb[0].mxu0
        %v4656 = vadd.f32 0.0, %v4655
        %v4657 = vpop.f32.mrb[0].mxu0
        %v4658 = vadd.f32 0.0, %v4657
        %v4659 = vpop.f32.mrb[0].mxu0
        %v4660 = vpop.f32.mrb[0].mxu0
        %4661 = vdwg.mxu0
        %4662 = vmatprep.subr.bf16.mxu0 %v4496
        %4663 = vmatpush1.bf16.msra.mxu0 %v4495
        %4664 = vmatprep.subr.bf16.mxu0 %v4498
        %4665 = vmatpush1.bf16.msra.mxu0 %v4497
        %4666 = vmatprep.subr.bf16.mxu0 %v4500
        %4667 = vmatpush1.bf16.msra.mxu0 %v4499
        %4668 = vmatprep.subr.bf16.mxu0 %v4502
        %4669 = vmatpush1.bf16.msra.mxu0 %v4501
        %4670 = vmatprep.subr.bf16.mxu0 %v4504
        %4671 = vmatpush1.bf16.msra.mxu0 %v4503
        %4672 = vmatprep.subr.bf16.mxu0 %v4506
        %4673 = vmatpush1.bf16.msra.mxu0 %v4505
        %4674 = vmatprep.subr.bf16.mxu0 %v4508
        %4675 = vmatpush1.bf16.msra.mxu0 %v4507
        %4676 = vmatprep.subr.bf16.mxu0 %v4510
        %4677 = vmatpush1.bf16.msra.mxu0 %v4509
        %4678 = vmatprep.subr.bf16.mxu0 %v4512
        %4679 = vmatpush1.bf16.msra.mxu0 %v4511
        %4680 = vmatprep.subr.bf16.mxu0 %v4514
        %4681 = vmatpush1.bf16.msra.mxu0 %v4513
        %4682 = vmatprep.subr.bf16.mxu0 %v4516
        %4683 = vmatpush1.bf16.msra.mxu0 %v4515
        %4684 = vmatprep.subr.bf16.mxu0 %v4518
        %4685 = vmatpush1.bf16.msra.mxu0 %v4517
        %4686 = vmatprep.subr.bf16.mxu0 %v4520
        %4687 = vmatpush1.bf16.msra.mxu0 %v4519
        %4688 = vmatprep.subr.bf16.mxu0 %v4522
        %4689 = vmatpush1.bf16.msra.mxu0 %v4521
        %4690 = vmatprep.subr.bf16.mxu0 %v4524
        %4691 = vmatpush1.bf16.msra.mxu0 %v4523
        %4692 = vmatprep.subr.bf16.mxu0 %v4526
        %4693 = vmatpush1.bf16.msra.mxu0 %v4525
        %4694 = vmatprep.mubr.bf16.mxu0 %v4242
        %4695 = vmatmul.mubr.bf16.gmra.mrb[0].mxu0 %v4241
        %v4696 = vpop.f32.mrb[0].mxu0
        %v4697 = vadd.f32 %v4626, %v4696
        %v4698 = vpop.f32.mrb[0].mxu0
        %v4699 = vadd.f32 %v4628, %v4698
        %v4700 = vpop.f32.mrb[0].mxu0
        %v4701 = vadd.f32 %v4630, %v4700
        %v4702 = vpop.f32.mrb[0].mxu0
        %v4703 = vadd.f32 %v4632, %v4702
        %4704 = vmatprep.mubr.bf16.mxu0 %v4246
        %4705 = vmatmul.mubr.bf16.gmra.mrb[0].mxu0 %v4245
        %v4706 = vpop.f32.mrb[0].mxu0
        %v4707 = vadd.f32 %v4636, %v4706
        %v4708 = vpop.f32.mrb[0].mxu0
        %v4709 = vadd.f32 %v4638, %v4708
        %v4710 = vpop.f32.mrb[0].mxu0
        %v4711 = vadd.f32 %v4640, %v4710
        %v4712 = vpop.f32.mrb[0].mxu0
        %v4713 = vadd.f32 %v4642, %v4712
        %4714 = vmatprep.mubr.bf16.mxu0 %v4250
        %4715 = vmatmul.mubr.bf16.gmra.mrb[0].mxu0 %v4249
        %v4716 = vpop.f32.mrb[0].mxu0
        %v4717 = vadd.f32 %v4646, %v4716
        %v4718 = vpop.f32.mrb[0].mxu0
        %v4719 = vadd.f32 %v4648, %v4718
        %v4720 = vpop.f32.mrb[0].mxu0
        %v4721 = vadd.f32 %v4650, %v4720
        %v4722 = vpop.f32.mrb[0].mxu0
        %v4723 = vadd.f32 %v4652, %v4722
        %4724 = vmatprep.mubr.bf16.mxu0 %v4254
        %4725 = vmatmul.mubr.bf16.gmra.mrb[0].mxu0 %v4253
        %v4726 = vpop.f32.mrb[0].mxu0
        %v4727 = vadd.f32 %v4656, %v4726
        %v4728 = vpop.f32.mrb[0].mxu0
        %v4729 = vadd.f32 %v4658, %v4728
        %v4730 = vpop.f32.mrb[0].mxu0
        %v4731 = vpop.f32.mrb[0].mxu0
        %4732 = vdwg.mxu0
        %v4733 = vadd.f32 %v4105, %v4697
        %v4734 = vadd.f32 %v4106, %v4699
        %v4735 = vadd.f32 %v4107, %v4701
        %v4736 = vadd.f32 %v4108, %v4703
        %v4737 = vadd.f32 %v4109, %v4707
        %v4738 = vadd.f32 %v4110, %v4709
        %v4739 = vadd.f32 %v4111, %v4711
        %v4740 = vadd.f32 %v4112, %v4713
        %v4741 = vadd.f32 %v4113, %v4717
        %v4742 = vadd.f32 %v4114, %v4719
        %v4743 = vadd.f32 %v4115, %v4721
        %v4744 = vadd.f32 %v4116, %v4723
        %v4745 = vadd.f32 %v4117, %v4727
        %v4746 = vadd.f32 %v4118, %v4729
        %v4747 = vld [vmem:[#allocation3 + $0x40] sm:$0xff]
        %v4748 = vld [vmem:[#allocation3 + $0x48] sm:$0xff]
        %v4749 = vld [vmem:[#allocation3 + $0xd0] sm:$0xff]
        %v4750 = vld [vmem:[#allocation3 + $0xd8] sm:$0xff]
        %v4751 = vld [vmem:[#allocation3 + $0x160] sm:$0xff]
        %v4752 = vld [vmem:[#allocation3 + $0x168] sm:$0xff]
        %v4753 = vld [vmem:[#allocation3 + $0x1f0] sm:$0xff]
        %v4754 = vld [vmem:[#allocation3 + $0x1f8] sm:$0xff]
        %v4755 = vld [vmem:[#allocation3 + $0x280] sm:$0xff]
        %v4756 = vld [vmem:[#allocation3 + $0x288] sm:$0xff]
        %v4757 = vld [vmem:[#allocation3 + $0x310] sm:$0xff]
        %v4758 = vld [vmem:[#allocation3 + $0x318] sm:$0xff]
        %v4759 = vld [vmem:[#allocation3 + $0x3a0] sm:$0x11]
        %v4760 = vld [vmem:[#allocation3 + $0x3a8] sm:$0x11]
        %v4761 = vld [vmem:[%s268 + $0x800] sm:$0xff]
        %v4762 = vld [vmem:[%s268 + $0x808] sm:$0xff]
        %v4763 = vld [vmem:[%s268 + $0x810] sm:$0xff]
        %v4764 = vld [vmem:[%s268 + $0x818] sm:$0xff]
        %v4765 = vld [vmem:[%s268 + $0x820] sm:$0xff]
        %v4766 = vld [vmem:[%s268 + $0x828] sm:$0xff]
        %v4767 = vld [vmem:[%s268 + $0x830] sm:$0xff]
        %v4768 = vld [vmem:[%s268 + $0x838] sm:$0xff]
        %v4769 = vld [vmem:[%s268 + $0x840] sm:$0xff]
        %v4770 = vld [vmem:[%s268 + $0x848] sm:$0xff]
        %v4771 = vld [vmem:[%s268 + $0x850] sm:$0xff]
        %v4772 = vld [vmem:[%s268 + $0x858] sm:$0xff]
        %v4773 = vld [vmem:[%s268 + $0x860] sm:$0xff]
        %v4774 = vld [vmem:[%s268 + $0x868] sm:$0xff]
        %v4775 = vld [vmem:[%s268 + $0x870] sm:$0xff]
        %v4776 = vld [vmem:[%s268 + $0x878] sm:$0xff]
        %v4777 = vld [vmem:[%s268 + $0x880] sm:$0xff]
        %v4778 = vld [vmem:[%s268 + $0x888] sm:$0xff]
        %v4779 = vld [vmem:[%s268 + $0x890] sm:$0xff]
        %v4780 = vld [vmem:[%s268 + $0x898] sm:$0xff]
        %v4781 = vld [vmem:[%s268 + $0x8a0] sm:$0xff]
        %v4782 = vld [vmem:[%s268 + $0x8a8] sm:$0xff]
        %v4783 = vld [vmem:[%s268 + $0x8b0] sm:$0xff]
        %v4784 = vld [vmem:[%s268 + $0x8b8] sm:$0xff]
        %v4785 = vld [vmem:[%s268 + $0x8c0] sm:$0xff]
        %v4786 = vld [vmem:[%s268 + $0x8c8] sm:$0xff]
        %v4787 = vld [vmem:[%s268 + $0x8d0] sm:$0xff]
        %v4788 = vld [vmem:[%s268 + $0x8d8] sm:$0xff]
        %v4789 = vld [vmem:[%s268 + $0x8e0] sm:$0xff]
        %v4790 = vld [vmem:[%s268 + $0x8e8] sm:$0xff]
        %v4791 = vld [vmem:[%s268 + $0x8f0] sm:$0xff]
        %v4792 = vld [vmem:[%s268 + $0x8f8] sm:$0xff]
        %v4793 = vld [vmem:[%s268 + $0x900] sm:$0xff]
        %v4794 = vld [vmem:[%s268 + $0x908] sm:$0xff]
        %v4795 = vld [vmem:[%s268 + $0x910] sm:$0xff]
        %v4796 = vld [vmem:[%s268 + $0x918] sm:$0xff]
        %v4797 = vld [vmem:[%s268 + $0x920] sm:$0xff]
        %v4798 = vld [vmem:[%s268 + $0x928] sm:$0xff]
        %v4799 = vld [vmem:[%s268 + $0x930] sm:$0xff]
        %v4800 = vld [vmem:[%s268 + $0x938] sm:$0xff]
        %v4801 = vld [vmem:[%s268 + $0x940] sm:$0xff]
        %v4802 = vld [vmem:[%s268 + $0x948] sm:$0xff]
        %v4803 = vld [vmem:[%s268 + $0x950] sm:$0xff]
        %v4804 = vld [vmem:[%s268 + $0x958] sm:$0xff]
        %v4805 = vld [vmem:[%s268 + $0x960] sm:$0xff]
        %v4806 = vld [vmem:[%s268 + $0x968] sm:$0xff]
        %v4807 = vld [vmem:[%s268 + $0x970] sm:$0xff]
        %v4808 = vld [vmem:[%s268 + $0x978] sm:$0xff]
        %v4809 = vld [vmem:[%s268 + $0x980] sm:$0xff]
        %v4810 = vld [vmem:[%s268 + $0x988] sm:$0xff]
        %v4811 = vld [vmem:[%s268 + $0x990] sm:$0xff]
        %v4812 = vld [vmem:[%s268 + $0x998] sm:$0xff]
        %v4813 = vld [vmem:[%s268 + $0x9a0] sm:$0xff]
        %v4814 = vld [vmem:[%s268 + $0x9a8] sm:$0xff]
        %v4815 = vld [vmem:[%s268 + $0x9b0] sm:$0xff]
        %v4816 = vld [vmem:[%s268 + $0x9b8] sm:$0xff]
        %v4817 = vld [vmem:[%s268 + $0x9c0] sm:$0xff]
        %v4818 = vld [vmem:[%s268 + $0x9c8] sm:$0xff]
        %v4819 = vld [vmem:[%s268 + $0x9d0] sm:$0xff]
        %v4820 = vld [vmem:[%s268 + $0x9d8] sm:$0xff]
        %v4821 = vld [vmem:[%s268 + $0x9e0] sm:$0xff]
        %v4822 = vld [vmem:[%s268 + $0x9e8] sm:$0xff]
        %v4823 = vld [vmem:[%s268 + $0x9f0] sm:$0xff]
        %v4824 = vld [vmem:[%s268 + $0x9f8] sm:$0xff]
        %v4839 = vunpack.c.l.b16 %v4747
        %v4840 = vunpack.c.h.b16 %v4747
        %v4841 = vunpack.c.l.b16 %v4748
        %v4842 = vunpack.c.h.b16 %v4748
        %v4843 = vunpack.c.l.b16 %v4749
        %v4844 = vunpack.c.h.b16 %v4749
        %v4845 = vunpack.c.l.b16 %v4750
        %v4846 = vunpack.c.h.b16 %v4750
        %v4847 = vunpack.c.l.b16 %v4751
        %v4848 = vunpack.c.h.b16 %v4751
        %v4849 = vunpack.c.l.b16 %v4752
        %v4850 = vunpack.c.h.b16 %v4752
        %v4851 = vunpack.c.l.b16 %v4753
        %v4852 = vunpack.c.h.b16 %v4753
        %v4853 = vunpack.c.l.b16 %v4754
        %v4854 = vunpack.c.h.b16 %v4754
        %v4855 = vunpack.c.l.b16 %v4755
        %v4856 = vunpack.c.h.b16 %v4755
        %v4857 = vunpack.c.l.b16 %v4756
        %v4858 = vunpack.c.h.b16 %v4756
        %v4859 = vunpack.c.l.b16 %v4757
        %v4860 = vunpack.c.h.b16 %v4757
        %v4861 = vunpack.c.l.b16 %v4758
        %v4862 = vunpack.c.h.b16 %v4758
        %v4863 = vunpack.c.l.b16 %v4759
        %v4864 = vunpack.c.h.b16 %v4759
        %v4865 = vunpack.c.l.b16 %v4760
        %v4866 = vunpack.c.h.b16 %v4760
        %v4867 = vpack.c.b16 %v4843, %v4839
        %v4868 = vpack.c.b16 %v4844, %v4840
        %v4869 = vpack.c.b16 %v4845, %v4841
        %v4870 = vpack.c.b16 %v4846, %v4842
        %v4871 = vpack.c.b16 %v4851, %v4847
        %v4872 = vpack.c.b16 %v4852, %v4848
        %v4873 = vpack.c.b16 %v4853, %v4849
        %v4874 = vpack.c.b16 %v4854, %v4850
        %v4875 = vpack.c.b16 %v4859, %v4855
        %v4876 = vpack.c.b16 %v4860, %v4856
        %v4877 = vpack.c.b16 %v4861, %v4857
        %v4878 = vpack.c.b16 %v4862, %v4858
        %v4879 = vpack.c.b16 %v4863, %v4863
        %v4880 = vpack.c.b16 %v4864, %v4864
        %v4881 = vpack.c.b16 %v4865, %v4865
        %v4882 = vpack.c.b16 %v4866, %v4866
        %v4963 = vunpack.c.l.b16 %v4761
        %v4964 = vunpack.c.h.b16 %v4761
        %v4965 = vunpack.c.l.b16 %v4762
        %v4966 = vunpack.c.h.b16 %v4762
        %v4967 = vunpack.c.l.b16 %v4763
        %v4968 = vunpack.c.h.b16 %v4763
        %v4969 = vunpack.c.l.b16 %v4764
        %v4970 = vunpack.c.h.b16 %v4764
        %v4971 = vunpack.c.l.b16 %v4765
        %v4972 = vunpack.c.h.b16 %v4765
        %v4973 = vunpack.c.l.b16 %v4766
        %v4974 = vunpack.c.h.b16 %v4766
        %v4975 = vunpack.c.l.b16 %v4767
        %v4976 = vunpack.c.h.b16 %v4767
        %v4977 = vunpack.c.l.b16 %v4768
        %v4978 = vunpack.c.h.b16 %v4768
        %v4979 = vunpack.c.l.b16 %v4769
        %v4980 = vunpack.c.h.b16 %v4769
        %v4981 = vunpack.c.l.b16 %v4770
        %v4982 = vunpack.c.h.b16 %v4770
        %v4983 = vunpack.c.l.b16 %v4771
        %v4984 = vunpack.c.h.b16 %v4771
        %v4985 = vunpack.c.l.b16 %v4772
        %v4986 = vunpack.c.h.b16 %v4772
        %v4987 = vunpack.c.l.b16 %v4773
        %v4988 = vunpack.c.h.b16 %v4773
        %v4989 = vunpack.c.l.b16 %v4774
        %v4990 = vunpack.c.h.b16 %v4774
        %v4991 = vunpack.c.l.b16 %v4775
        %v4992 = vunpack.c.h.b16 %v4775
        %v4993 = vunpack.c.l.b16 %v4776
        %v4994 = vunpack.c.h.b16 %v4776
        %v4995 = vunpack.c.l.b16 %v4777
        %v4996 = vunpack.c.h.b16 %v4777
        %v4997 = vunpack.c.l.b16 %v4778
        %v4998 = vunpack.c.h.b16 %v4778
        %v4999 = vunpack.c.l.b16 %v4779
        %v5000 = vunpack.c.h.b16 %v4779
        %v5001 = vunpack.c.l.b16 %v4780
        %v5002 = vunpack.c.h.b16 %v4780
        %v5003 = vunpack.c.l.b16 %v4781
        %v5004 = vunpack.c.h.b16 %v4781
        %v5005 = vunpack.c.l.b16 %v4782
        %v5006 = vunpack.c.h.b16 %v4782
        %v5007 = vunpack.c.l.b16 %v4783
        %v5008 = vunpack.c.h.b16 %v4783
        %v5009 = vunpack.c.l.b16 %v4784
        %v5010 = vunpack.c.h.b16 %v4784
        %v5011 = vunpack.c.l.b16 %v4785
        %v5012 = vunpack.c.h.b16 %v4785
        %v5013 = vunpack.c.l.b16 %v4786
        %v5014 = vunpack.c.h.b16 %v4786
        %v5015 = vunpack.c.l.b16 %v4787
        %v5016 = vunpack.c.h.b16 %v4787
        %v5017 = vunpack.c.l.b16 %v4788
        %v5018 = vunpack.c.h.b16 %v4788
        %v5019 = vunpack.c.l.b16 %v4789
        %v5020 = vunpack.c.h.b16 %v4789
        %v5021 = vunpack.c.l.b16 %v4790
        %v5022 = vunpack.c.h.b16 %v4790
        %v5023 = vunpack.c.l.b16 %v4791
        %v5024 = vunpack.c.h.b16 %v4791
        %v5025 = vunpack.c.l.b16 %v4792
        %v5026 = vunpack.c.h.b16 %v4792
        %v5027 = vunpack.c.l.b16 %v4793
        %v5028 = vunpack.c.h.b16 %v4793
        %v5029 = vunpack.c.l.b16 %v4794
        %v5030 = vunpack.c.h.b16 %v4794
        %v5031 = vunpack.c.l.b16 %v4795
        %v5032 = vunpack.c.h.b16 %v4795
        %v5033 = vunpack.c.l.b16 %v4796
        %v5034 = vunpack.c.h.b16 %v4796
        %v5035 = vunpack.c.l.b16 %v4797
        %v5036 = vunpack.c.h.b16 %v4797
        %v5037 = vunpack.c.l.b16 %v4798
        %v5038 = vunpack.c.h.b16 %v4798
        %v5039 = vunpack.c.l.b16 %v4799
        %v5040 = vunpack.c.h.b16 %v4799
        %v5041 = vunpack.c.l.b16 %v4800
        %v5042 = vunpack.c.h.b16 %v4800
        %v5043 = vunpack.c.l.b16 %v4801
        %v5044 = vunpack.c.h.b16 %v4801
        %v5045 = vunpack.c.l.b16 %v4802
        %v5046 = vunpack.c.h.b16 %v4802
        %v5047 = vunpack.c.l.b16 %v4803
        %v5048 = vunpack.c.h.b16 %v4803
        %v5049 = vunpack.c.l.b16 %v4804
        %v5050 = vunpack.c.h.b16 %v4804
        %v5051 = vunpack.c.l.b16 %v4805
        %v5052 = vunpack.c.h.b16 %v4805
        %v5053 = vunpack.c.l.b16 %v4806
        %v5054 = vunpack.c.h.b16 %v4806
        %v5055 = vunpack.c.l.b16 %v4807
        %v5056 = vunpack.c.h.b16 %v4807
        %v5057 = vunpack.c.l.b16 %v4808
        %v5058 = vunpack.c.h.b16 %v4808
        %v5059 = vunpack.c.l.b16 %v4809
        %v5060 = vunpack.c.h.b16 %v4809
        %v5061 = vunpack.c.l.b16 %v4810
        %v5062 = vunpack.c.h.b16 %v4810
        %v5063 = vunpack.c.l.b16 %v4811
        %v5064 = vunpack.c.h.b16 %v4811
        %v5065 = vunpack.c.l.b16 %v4812
        %v5066 = vunpack.c.h.b16 %v4812
        %v5067 = vunpack.c.l.b16 %v4813
        %v5068 = vunpack.c.h.b16 %v4813
        %v5069 = vunpack.c.l.b16 %v4814
        %v5070 = vunpack.c.h.b16 %v4814
        %v5071 = vunpack.c.l.b16 %v4815
        %v5072 = vunpack.c.h.b16 %v4815
        %v5073 = vunpack.c.l.b16 %v4816
        %v5074 = vunpack.c.h.b16 %v4816
        %v5075 = vunpack.c.l.b16 %v4817
        %v5076 = vunpack.c.h.b16 %v4817
        %v5077 = vunpack.c.l.b16 %v4818
        %v5078 = vunpack.c.h.b16 %v4818
        %v5079 = vunpack.c.l.b16 %v4819
        %v5080 = vunpack.c.h.b16 %v4819
        %v5081 = vunpack.c.l.b16 %v4820
        %v5082 = vunpack.c.h.b16 %v4820
        %v5083 = vunpack.c.l.b16 %v4821
        %v5084 = vunpack.c.h.b16 %v4821
        %v5085 = vunpack.c.l.b16 %v4822
        %v5086 = vunpack.c.h.b16 %v4822
        %v5087 = vunpack.c.l.b16 %v4823
        %v5088 = vunpack.c.h.b16 %v4823
        %v5089 = vunpack.c.l.b16 %v4824
        %v5090 = vunpack.c.h.b16 %v4824
        %v5091 = vpack.c.b16 %v4965, %v4963
        %v5092 = vpack.c.b16 %v4966, %v4964
        %v5093 = vpack.c.b16 %v4969, %v4967
        %v5094 = vpack.c.b16 %v4970, %v4968
        %v5095 = vpack.c.b16 %v4973, %v4971
        %v5096 = vpack.c.b16 %v4974, %v4972
        %v5097 = vpack.c.b16 %v4977, %v4975
        %v5098 = vpack.c.b16 %v4978, %v4976
        %v5099 = vpack.c.b16 %v4981, %v4979
        %v5100 = vpack.c.b16 %v4982, %v4980
        %v5101 = vpack.c.b16 %v4985, %v4983
        %v5102 = vpack.c.b16 %v4986, %v4984
        %v5103 = vpack.c.b16 %v4989, %v4987
        %v5104 = vpack.c.b16 %v4990, %v4988
        %v5105 = vpack.c.b16 %v4993, %v4991
        %v5106 = vpack.c.b16 %v4994, %v4992
        %v5107 = vpack.c.b16 %v4997, %v4995
        %v5108 = vpack.c.b16 %v4998, %v4996
        %v5109 = vpack.c.b16 %v5001, %v4999
        %v5110 = vpack.c.b16 %v5002, %v5000
        %v5111 = vpack.c.b16 %v5005, %v5003
        %v5112 = vpack.c.b16 %v5006, %v5004
        %v5113 = vpack.c.b16 %v5009, %v5007
        %v5114 = vpack.c.b16 %v5010, %v5008
        %v5115 = vpack.c.b16 %v5013, %v5011
        %v5116 = vpack.c.b16 %v5014, %v5012
        %v5117 = vpack.c.b16 %v5017, %v5015
        %v5118 = vpack.c.b16 %v5018, %v5016
        %v5119 = vpack.c.b16 %v5021, %v5019
        %v5120 = vpack.c.b16 %v5022, %v5020
        %v5121 = vpack.c.b16 %v5025, %v5023
        %v5122 = vpack.c.b16 %v5026, %v5024
        %v5123 = vpack.c.b16 %v5029, %v5027
        %v5124 = vpack.c.b16 %v5030, %v5028
        %v5125 = vpack.c.b16 %v5033, %v5031
        %v5126 = vpack.c.b16 %v5034, %v5032
        %v5127 = vpack.c.b16 %v5037, %v5035
        %v5128 = vpack.c.b16 %v5038, %v5036
        %v5129 = vpack.c.b16 %v5041, %v5039
        %v5130 = vpack.c.b16 %v5042, %v5040
        %v5131 = vpack.c.b16 %v5045, %v5043
        %v5132 = vpack.c.b16 %v5046, %v5044
        %v5133 = vpack.c.b16 %v5049, %v5047
        %v5134 = vpack.c.b16 %v5050, %v5048
        %v5135 = vpack.c.b16 %v5053, %v5051
        %v5136 = vpack.c.b16 %v5054, %v5052
        %v5137 = vpack.c.b16 %v5057, %v5055
        %v5138 = vpack.c.b16 %v5058, %v5056
        %v5139 = vpack.c.b16 %v5061, %v5059
        %v5140 = vpack.c.b16 %v5062, %v5060
        %v5141 = vpack.c.b16 %v5065, %v5063
        %v5142 = vpack.c.b16 %v5066, %v5064
        %v5143 = vpack.c.b16 %v5069, %v5067
        %v5144 = vpack.c.b16 %v5070, %v5068
        %v5145 = vpack.c.b16 %v5073, %v5071
        %v5146 = vpack.c.b16 %v5074, %v5072
        %v5147 = vpack.c.b16 %v5077, %v5075
        %v5148 = vpack.c.b16 %v5078, %v5076
        %v5149 = vpack.c.b16 %v5081, %v5079
        %v5150 = vpack.c.b16 %v5082, %v5080
        %v5151 = vpack.c.b16 %v5085, %v5083
        %v5152 = vpack.c.b16 %v5086, %v5084
        %v5153 = vpack.c.b16 %v5089, %v5087
        %v5154 = vpack.c.b16 %v5090, %v5088
        %5219 = vmatprep.subr.bf16.mxu0 %v5092
        %5220 = vmatpush1.bf16.msra.mxu0 %v5091
        %5221 = vmatprep.subr.bf16.mxu0 %v5094
        %5222 = vmatpush1.bf16.msra.mxu0 %v5093
        %5223 = vmatprep.subr.bf16.mxu0 %v5096
        %5224 = vmatpush1.bf16.msra.mxu0 %v5095
        %5225 = vmatprep.subr.bf16.mxu0 %v5098
        %5226 = vmatpush1.bf16.msra.mxu0 %v5097
        %5227 = vmatprep.subr.bf16.mxu0 %v5100
        %5228 = vmatpush1.bf16.msra.mxu0 %v5099
        %5229 = vmatprep.subr.bf16.mxu0 %v5102
        %5230 = vmatpush1.bf16.msra.mxu0 %v5101
        %5231 = vmatprep.subr.bf16.mxu0 %v5104
        %5232 = vmatpush1.bf16.msra.mxu0 %v5103
        %5233 = vmatprep.subr.bf16.mxu0 %v5106
        %5234 = vmatpush1.bf16.msra.mxu0 %v5105
        %5235 = vmatprep.subr.bf16.mxu0 %v5108
        %5236 = vmatpush1.bf16.msra.mxu0 %v5107
        %5237 = vmatprep.subr.bf16.mxu0 %v5110
        %5238 = vmatpush1.bf16.msra.mxu0 %v5109
        %5239 = vmatprep.subr.bf16.mxu0 %v5112
        %5240 = vmatpush1.bf16.msra.mxu0 %v5111
        %5241 = vmatprep.subr.bf16.mxu0 %v5114
        %5242 = vmatpush1.bf16.msra.mxu0 %v5113
        %5243 = vmatprep.subr.bf16.mxu0 %v5116
        %5244 = vmatpush1.bf16.msra.mxu0 %v5115
        %5245 = vmatprep.subr.bf16.mxu0 %v5118
        %5246 = vmatpush1.bf16.msra.mxu0 %v5117
        %5247 = vmatprep.subr.bf16.mxu0 %v5120
        %5248 = vmatpush1.bf16.msra.mxu0 %v5119
        %5249 = vmatprep.subr.bf16.mxu0 %v5122
        %5250 = vmatpush1.bf16.msra.mxu0 %v5121
        %5251 = vmatprep.mubr.bf16.mxu0 %v4868
        %5252 = vmatmul.mubr.bf16.gmra.mrb[0].mxu0 %v4867
        %v5253 = vpop.f32.mrb[0].mxu0
        %v5254 = vadd.f32 0.0, %v5253
        %v5255 = vpop.f32.mrb[0].mxu0
        %v5256 = vadd.f32 0.0, %v5255
        %v5257 = vpop.f32.mrb[0].mxu0
        %v5258 = vadd.f32 0.0, %v5257
        %v5259 = vpop.f32.mrb[0].mxu0
        %v5260 = vadd.f32 0.0, %v5259
        %5261 = vmatprep.mubr.bf16.mxu0 %v4872
        %5262 = vmatmul.mubr.bf16.gmra.mrb[0].mxu0 %v4871
        %v5263 = vpop.f32.mrb[0].mxu0
        %v5264 = vadd.f32 0.0, %v5263
        %v5265 = vpop.f32.mrb[0].mxu0
        %v5266 = vadd.f32 0.0, %v5265
        %v5267 = vpop.f32.mrb[0].mxu0
        %v5268 = vadd.f32 0.0, %v5267
        %v5269 = vpop.f32.mrb[0].mxu0
        %v5270 = vadd.f32 0.0, %v5269
        %5271 = vmatprep.mubr.bf16.mxu0 %v4876
        %5272 = vmatmul.mubr.bf16.gmra.mrb[0].mxu0 %v4875
        %v5273 = vpop.f32.mrb[0].mxu0
        %v5274 = vadd.f32 0.0, %v5273
        %v5275 = vpop.f32.mrb[0].mxu0
        %v5276 = vadd.f32 0.0, %v5275
        %v5277 = vpop.f32.mrb[0].mxu0
        %v5278 = vadd.f32 0.0, %v5277
        %v5279 = vpop.f32.mrb[0].mxu0
        %v5280 = vadd.f32 0.0, %v5279
        %5281 = vmatprep.mubr.bf16.mxu0 %v4880
        %5282 = vmatmul.mubr.bf16.gmra.mrb[0].mxu0 %v4879
        %v5283 = vpop.f32.mrb[0].mxu0
        %v5284 = vadd.f32 0.0, %v5283
        %v5285 = vpop.f32.mrb[0].mxu0
        %v5286 = vadd.f32 0.0, %v5285
        %v5287 = vpop.f32.mrb[0].mxu0
        %v5288 = vpop.f32.mrb[0].mxu0
        %5289 = vdwg.mxu0
        %5290 = vmatprep.subr.bf16.mxu0 %v5124
        %5291 = vmatpush1.bf16.msra.mxu0 %v5123
        %5292 = vmatprep.subr.bf16.mxu0 %v5126
        %5293 = vmatpush1.bf16.msra.mxu0 %v5125
        %5294 = vmatprep.subr.bf16.mxu0 %v5128
        %5295 = vmatpush1.bf16.msra.mxu0 %v5127
        %5296 = vmatprep.subr.bf16.mxu0 %v5130
        %5297 = vmatpush1.bf16.msra.mxu0 %v5129
        %5298 = vmatprep.subr.bf16.mxu0 %v5132
        %5299 = vmatpush1.bf16.msra.mxu0 %v5131
        %5300 = vmatprep.subr.bf16.mxu0 %v5134
        %5301 = vmatpush1.bf16.msra.mxu0 %v5133
        %5302 = vmatprep.subr.bf16.mxu0 %v5136
        %5303 = vmatpush1.bf16.msra.mxu0 %v5135
        %5304 = vmatprep.subr.bf16.mxu0 %v5138
        %5305 = vmatpush1.bf16.msra.mxu0 %v5137
        %5306 = vmatprep.subr.bf16.mxu0 %v5140
        %5307 = vmatpush1.bf16.msra.mxu0 %v5139
        %5308 = vmatprep.subr.bf16.mxu0 %v5142
        %5309 = vmatpush1.bf16.msra.mxu0 %v5141
        %5310 = vmatprep.subr.bf16.mxu0 %v5144
        %5311 = vmatpush1.bf16.msra.mxu0 %v5143
        %5312 = vmatprep.subr.bf16.mxu0 %v5146
        %5313 = vmatpush1.bf16.msra.mxu0 %v5145
        %5314 = vmatprep.subr.bf16.mxu0 %v5148
        %5315 = vmatpush1.bf16.msra.mxu0 %v5147
        %5316 = vmatprep.subr.bf16.mxu0 %v5150
        %5317 = vmatpush1.bf16.msra.mxu0 %v5149
        %5318 = vmatprep.subr.bf16.mxu0 %v5152
        %5319 = vmatpush1.bf16.msra.mxu0 %v5151
        %5320 = vmatprep.subr.bf16.mxu0 %v5154
        %5321 = vmatpush1.bf16.msra.mxu0 %v5153
        %5322 = vmatprep.mubr.bf16.mxu0 %v4870
        %5323 = vmatmul.mubr.bf16.gmra.mrb[0].mxu0 %v4869
        %v5324 = vpop.f32.mrb[0].mxu0
        %v5325 = vadd.f32 %v5254, %v5324
        %v5326 = vpop.f32.mrb[0].mxu0
        %v5327 = vadd.f32 %v5256, %v5326
        %v5328 = vpop.f32.mrb[0].mxu0
        %v5329 = vadd.f32 %v5258, %v5328
        %v5330 = vpop.f32.mrb[0].mxu0
        %v5331 = vadd.f32 %v5260, %v5330
        %5332 = vmatprep.mubr.bf16.mxu0 %v4874
        %5333 = vmatmul.mubr.bf16.gmra.mrb[0].mxu0 %v4873
        %v5334 = vpop.f32.mrb[0].mxu0
        %v5335 = vadd.f32 %v5264, %v5334
        %v5336 = vpop.f32.mrb[0].mxu0
        %v5337 = vadd.f32 %v5266, %v5336
        %v5338 = vpop.f32.mrb[0].mxu0
        %v5339 = vadd.f32 %v5268, %v5338
        %v5340 = vpop.f32.mrb[0].mxu0
        %v5341 = vadd.f32 %v5270, %v5340
        %5342 = vmatprep.mubr.bf16.mxu0 %v4878
        %5343 = vmatmul.mubr.bf16.gmra.mrb[0].mxu0 %v4877
        %v5344 = vpop.f32.mrb[0].mxu0
        %v5345 = vadd.f32 %v5274, %v5344
        %v5346 = vpop.f32.mrb[0].mxu0
        %v5347 = vadd.f32 %v5276, %v5346
        %v5348 = vpop.f32.mrb[0].mxu0
        %v5349 = vadd.f32 %v5278, %v5348
        %v5350 = vpop.f32.mrb[0].mxu0
        %v5351 = vadd.f32 %v5280, %v5350
        %5352 = vmatprep.mubr.bf16.mxu0 %v4882
        %5353 = vmatmul.mubr.bf16.gmra.mrb[0].mxu0 %v4881
        %v5354 = vpop.f32.mrb[0].mxu0
        %v5355 = vadd.f32 %v5284, %v5354
        %v5356 = vpop.f32.mrb[0].mxu0
        %v5357 = vadd.f32 %v5286, %v5356
        %v5358 = vpop.f32.mrb[0].mxu0
        %v5359 = vpop.f32.mrb[0].mxu0
        %5360 = vdwg.mxu0
        %v5361 = vadd.f32 %v4733, %v5325
        %v5362 = vadd.f32 %v4734, %v5327
        %v5363 = vadd.f32 %v4735, %v5329
        %v5364 = vadd.f32 %v4736, %v5331
        %v5365 = vadd.f32 %v4737, %v5335
        %v5366 = vadd.f32 %v4738, %v5337
        %v5367 = vadd.f32 %v4739, %v5339
        %v5368 = vadd.f32 %v4740, %v5341
        %v5369 = vadd.f32 %v4741, %v5345
        %v5370 = vadd.f32 %v4742, %v5347
        %v5371 = vadd.f32 %v4743, %v5349
        %v5372 = vadd.f32 %v4744, %v5351
        %v5373 = vadd.f32 %v4745, %v5355
        %v5374 = vadd.f32 %v4746, %v5357
        %v5375 = vld [vmem:[#allocation3 + $0x50] sm:$0xff]
        %v5376 = vld [vmem:[#allocation3 + $0x58] sm:$0xff]
        %v5377 = vld [vmem:[#allocation3 + $0xe0] sm:$0xff]
        %v5378 = vld [vmem:[#allocation3 + $0xe8] sm:$0xff]
        %v5379 = vld [vmem:[#allocation3 + $0x170] sm:$0xff]
        %v5380 = vld [vmem:[#allocation3 + $0x178] sm:$0xff]
        %v5381 = vld [vmem:[#allocation3 + $0x200] sm:$0xff]
        %v5382 = vld [vmem:[#allocation3 + $0x208] sm:$0xff]
        %v5383 = vld [vmem:[#allocation3 + $0x290] sm:$0xff]
        %v5384 = vld [vmem:[#allocation3 + $0x298] sm:$0xff]
        %v5385 = vld [vmem:[#allocation3 + $0x320] sm:$0xff]
        %v5386 = vld [vmem:[#allocation3 + $0x328] sm:$0xff]
        %v5387 = vld [vmem:[#allocation3 + $0x3b0] sm:$0x11]
        %v5388 = vld [vmem:[#allocation3 + $0x3b8] sm:$0x11]
        %v5389 = vld [vmem:[%s268 + $0xa00] sm:$0xff]
        %v5390 = vld [vmem:[%s268 + $0xa08] sm:$0xff]
        %v5391 = vld [vmem:[%s268 + $0xa10] sm:$0xff]
        %v5392 = vld [vmem:[%s268 + $0xa18] sm:$0xff]
        %v5393 = vld [vmem:[%s268 + $0xa20] sm:$0xff]
        %v5394 = vld [vmem:[%s268 + $0xa28] sm:$0xff]
        %v5395 = vld [vmem:[%s268 + $0xa30] sm:$0xff]
        %v5396 = vld [vmem:[%s268 + $0xa38] sm:$0xff]
        %v5397 = vld [vmem:[%s268 + $0xa40] sm:$0xff]
        %v5398 = vld [vmem:[%s268 + $0xa48] sm:$0xff]
        %v5399 = vld [vmem:[%s268 + $0xa50] sm:$0xff]
        %v5400 = vld [vmem:[%s268 + $0xa58] sm:$0xff]
        %v5401 = vld [vmem:[%s268 + $0xa60] sm:$0xff]
        %v5402 = vld [vmem:[%s268 + $0xa68] sm:$0xff]
        %v5403 = vld [vmem:[%s268 + $0xa70] sm:$0xff]
        %v5404 = vld [vmem:[%s268 + $0xa78] sm:$0xff]
        %v5405 = vld [vmem:[%s268 + $0xa80] sm:$0xff]
        %v5406 = vld [vmem:[%s268 + $0xa88] sm:$0xff]
        %v5407 = vld [vmem:[%s268 + $0xa90] sm:$0xff]
        %v5408 = vld [vmem:[%s268 + $0xa98] sm:$0xff]
        %v5409 = vld [vmem:[%s268 + $0xaa0] sm:$0xff]
        %v5410 = vld [vmem:[%s268 + $0xaa8] sm:$0xff]
        %v5411 = vld [vmem:[%s268 + $0xab0] sm:$0xff]
        %v5412 = vld [vmem:[%s268 + $0xab8] sm:$0xff]
        %v5413 = vld [vmem:[%s268 + $0xac0] sm:$0xff]
        %v5414 = vld [vmem:[%s268 + $0xac8] sm:$0xff]
        %v5415 = vld [vmem:[%s268 + $0xad0] sm:$0xff]
        %v5416 = vld [vmem:[%s268 + $0xad8] sm:$0xff]
        %v5417 = vld [vmem:[%s268 + $0xae0] sm:$0xff]
        %v5418 = vld [vmem:[%s268 + $0xae8] sm:$0xff]
        %v5419 = vld [vmem:[%s268 + $0xaf0] sm:$0xff]
        %v5420 = vld [vmem:[%s268 + $0xaf8] sm:$0xff]
        %v5421 = vld [vmem:[%s268 + $0xb00] sm:$0xff]
        %v5422 = vld [vmem:[%s268 + $0xb08] sm:$0xff]
        %v5423 = vld [vmem:[%s268 + $0xb10] sm:$0xff]
        %v5424 = vld [vmem:[%s268 + $0xb18] sm:$0xff]
        %v5425 = vld [vmem:[%s268 + $0xb20] sm:$0xff]
        %v5426 = vld [vmem:[%s268 + $0xb28] sm:$0xff]
        %v5427 = vld [vmem:[%s268 + $0xb30] sm:$0xff]
        %v5428 = vld [vmem:[%s268 + $0xb38] sm:$0xff]
        %v5429 = vld [vmem:[%s268 + $0xb40] sm:$0xff]
        %v5430 = vld [vmem:[%s268 + $0xb48] sm:$0xff]
        %v5431 = vld [vmem:[%s268 + $0xb50] sm:$0xff]
        %v5432 = vld [vmem:[%s268 + $0xb58] sm:$0xff]
        %v5433 = vld [vmem:[%s268 + $0xb60] sm:$0xff]
        %v5434 = vld [vmem:[%s268 + $0xb68] sm:$0xff]
        %v5435 = vld [vmem:[%s268 + $0xb70] sm:$0xff]
        %v5436 = vld [vmem:[%s268 + $0xb78] sm:$0xff]
        %v5437 = vld [vmem:[%s268 + $0xb80] sm:$0xff]
        %v5438 = vld [vmem:[%s268 + $0xb88] sm:$0xff]
        %v5439 = vld [vmem:[%s268 + $0xb90] sm:$0xff]
        %v5440 = vld [vmem:[%s268 + $0xb98] sm:$0xff]
        %v5441 = vld [vmem:[%s268 + $0xba0] sm:$0xff]
        %v5442 = vld [vmem:[%s268 + $0xba8] sm:$0xff]
        %v5443 = vld [vmem:[%s268 + $0xbb0] sm:$0xff]
        %v5444 = vld [vmem:[%s268 + $0xbb8] sm:$0xff]
        %v5445 = vld [vmem:[%s268 + $0xbc0] sm:$0xff]
        %v5446 = vld [vmem:[%s268 + $0xbc8] sm:$0xff]
        %v5447 = vld [vmem:[%s268 + $0xbd0] sm:$0xff]
        %v5448 = vld [vmem:[%s268 + $0xbd8] sm:$0xff]
        %v5449 = vld [vmem:[%s268 + $0xbe0] sm:$0xff]
        %v5450 = vld [vmem:[%s268 + $0xbe8] sm:$0xff]
        %v5451 = vld [vmem:[%s268 + $0xbf0] sm:$0xff]
        %v5452 = vld [vmem:[%s268 + $0xbf8] sm:$0xff]
        %v5467 = vunpack.c.l.b16 %v5375
        %v5468 = vunpack.c.h.b16 %v5375
        %v5469 = vunpack.c.l.b16 %v5376
        %v5470 = vunpack.c.h.b16 %v5376
        %v5471 = vunpack.c.l.b16 %v5377
        %v5472 = vunpack.c.h.b16 %v5377
        %v5473 = vunpack.c.l.b16 %v5378
        %v5474 = vunpack.c.h.b16 %v5378
        %v5475 = vunpack.c.l.b16 %v5379
        %v5476 = vunpack.c.h.b16 %v5379
        %v5477 = vunpack.c.l.b16 %v5380
        %v5478 = vunpack.c.h.b16 %v5380
        %v5479 = vunpack.c.l.b16 %v5381
        %v5480 = vunpack.c.h.b16 %v5381
        %v5481 = vunpack.c.l.b16 %v5382
        %v5482 = vunpack.c.h.b16 %v5382
        %v5483 = vunpack.c.l.b16 %v5383
        %v5484 = vunpack.c.h.b16 %v5383
        %v5485 = vunpack.c.l.b16 %v5384
        %v5486 = vunpack.c.h.b16 %v5384
        %v5487 = vunpack.c.l.b16 %v5385
        %v5488 = vunpack.c.h.b16 %v5385
        %v5489 = vunpack.c.l.b16 %v5386
        %v5490 = vunpack.c.h.b16 %v5386
        %v5491 = vunpack.c.l.b16 %v5387
        %v5492 = vunpack.c.h.b16 %v5387
        %v5493 = vunpack.c.l.b16 %v5388
        %v5494 = vunpack.c.h.b16 %v5388
        %v5495 = vpack.c.b16 %v5471, %v5467
        %v5496 = vpack.c.b16 %v5472, %v5468
        %v5497 = vpack.c.b16 %v5473, %v5469
        %v5498 = vpack.c.b16 %v5474, %v5470
        %v5499 = vpack.c.b16 %v5479, %v5475
        %v5500 = vpack.c.b16 %v5480, %v5476
        %v5501 = vpack.c.b16 %v5481, %v5477
        %v5502 = vpack.c.b16 %v5482, %v5478
        %v5503 = vpack.c.b16 %v5487, %v5483
        %v5504 = vpack.c.b16 %v5488, %v5484
        %v5505 = vpack.c.b16 %v5489, %v5485
        %v5506 = vpack.c.b16 %v5490, %v5486
        %v5507 = vpack.c.b16 %v5491, %v5491
        %v5508 = vpack.c.b16 %v5492, %v5492
        %v5509 = vpack.c.b16 %v5493, %v5493
        %v5510 = vpack.c.b16 %v5494, %v5494
        %v5591 = vunpack.c.l.b16 %v5389
        %v5592 = vunpack.c.h.b16 %v5389
        %v5593 = vunpack.c.l.b16 %v5390
        %v5594 = vunpack.c.h.b16 %v5390
        %v5595 = vunpack.c.l.b16 %v5391
        %v5596 = vunpack.c.h.b16 %v5391
        %v5597 = vunpack.c.l.b16 %v5392
        %v5598 = vunpack.c.h.b16 %v5392
        %v5599 = vunpack.c.l.b16 %v5393
        %v5600 = vunpack.c.h.b16 %v5393
        %v5601 = vunpack.c.l.b16 %v5394
        %v5602 = vunpack.c.h.b16 %v5394
        %v5603 = vunpack.c.l.b16 %v5395
        %v5604 = vunpack.c.h.b16 %v5395
        %v5605 = vunpack.c.l.b16 %v5396
        %v5606 = vunpack.c.h.b16 %v5396
        %v5607 = vunpack.c.l.b16 %v5397
        %v5608 = vunpack.c.h.b16 %v5397
        %v5609 = vunpack.c.l.b16 %v5398
        %v5610 = vunpack.c.h.b16 %v5398
        %v5611 = vunpack.c.l.b16 %v5399
        %v5612 = vunpack.c.h.b16 %v5399
        %v5613 = vunpack.c.l.b16 %v5400
        %v5614 = vunpack.c.h.b16 %v5400
        %v5615 = vunpack.c.l.b16 %v5401
        %v5616 = vunpack.c.h.b16 %v5401
        %v5617 = vunpack.c.l.b16 %v5402
        %v5618 = vunpack.c.h.b16 %v5402
        %v5619 = vunpack.c.l.b16 %v5403
        %v5620 = vunpack.c.h.b16 %v5403
        %v5621 = vunpack.c.l.b16 %v5404
        %v5622 = vunpack.c.h.b16 %v5404
        %v5623 = vunpack.c.l.b16 %v5405
        %v5624 = vunpack.c.h.b16 %v5405
        %v5625 = vunpack.c.l.b16 %v5406
        %v5626 = vunpack.c.h.b16 %v5406
        %v5627 = vunpack.c.l.b16 %v5407
        %v5628 = vunpack.c.h.b16 %v5407
        %v5629 = vunpack.c.l.b16 %v5408
        %v5630 = vunpack.c.h.b16 %v5408
        %v5631 = vunpack.c.l.b16 %v5409
        %v5632 = vunpack.c.h.b16 %v5409
        %v5633 = vunpack.c.l.b16 %v5410
        %v5634 = vunpack.c.h.b16 %v5410
        %v5635 = vunpack.c.l.b16 %v5411
        %v5636 = vunpack.c.h.b16 %v5411
        %v5637 = vunpack.c.l.b16 %v5412
        %v5638 = vunpack.c.h.b16 %v5412
        %v5639 = vunpack.c.l.b16 %v5413
        %v5640 = vunpack.c.h.b16 %v5413
        %v5641 = vunpack.c.l.b16 %v5414
        %v5642 = vunpack.c.h.b16 %v5414
        %v5643 = vunpack.c.l.b16 %v5415
        %v5644 = vunpack.c.h.b16 %v5415
        %v5645 = vunpack.c.l.b16 %v5416
        %v5646 = vunpack.c.h.b16 %v5416
        %v5647 = vunpack.c.l.b16 %v5417
        %v5648 = vunpack.c.h.b16 %v5417
        %v5649 = vunpack.c.l.b16 %v5418
        %v5650 = vunpack.c.h.b16 %v5418
        %v5651 = vunpack.c.l.b16 %v5419
        %v5652 = vunpack.c.h.b16 %v5419
        %v5653 = vunpack.c.l.b16 %v5420
        %v5654 = vunpack.c.h.b16 %v5420
        %v5655 = vunpack.c.l.b16 %v5421
        %v5656 = vunpack.c.h.b16 %v5421
        %v5657 = vunpack.c.l.b16 %v5422
        %v5658 = vunpack.c.h.b16 %v5422
        %v5659 = vunpack.c.l.b16 %v5423
        %v5660 = vunpack.c.h.b16 %v5423
        %v5661 = vunpack.c.l.b16 %v5424
        %v5662 = vunpack.c.h.b16 %v5424
        %v5663 = vunpack.c.l.b16 %v5425
        %v5664 = vunpack.c.h.b16 %v5425
        %v5665 = vunpack.c.l.b16 %v5426
        %v5666 = vunpack.c.h.b16 %v5426
        %v5667 = vunpack.c.l.b16 %v5427
        %v5668 = vunpack.c.h.b16 %v5427
        %v5669 = vunpack.c.l.b16 %v5428
        %v5670 = vunpack.c.h.b16 %v5428
        %v5671 = vunpack.c.l.b16 %v5429
        %v5672 = vunpack.c.h.b16 %v5429
        %v5673 = vunpack.c.l.b16 %v5430
        %v5674 = vunpack.c.h.b16 %v5430
        %v5675 = vunpack.c.l.b16 %v5431
        %v5676 = vunpack.c.h.b16 %v5431
        %v5677 = vunpack.c.l.b16 %v5432
        %v5678 = vunpack.c.h.b16 %v5432
        %v5679 = vunpack.c.l.b16 %v5433
        %v5680 = vunpack.c.h.b16 %v5433
        %v5681 = vunpack.c.l.b16 %v5434
        %v5682 = vunpack.c.h.b16 %v5434
        %v5683 = vunpack.c.l.b16 %v5435
        %v5684 = vunpack.c.h.b16 %v5435
        %v5685 = vunpack.c.l.b16 %v5436
        %v5686 = vunpack.c.h.b16 %v5436
        %v5687 = vunpack.c.l.b16 %v5437
        %v5688 = vunpack.c.h.b16 %v5437
        %v5689 = vunpack.c.l.b16 %v5438
        %v5690 = vunpack.c.h.b16 %v5438
        %v5691 = vunpack.c.l.b16 %v5439
        %v5692 = vunpack.c.h.b16 %v5439
        %v5693 = vunpack.c.l.b16 %v5440
        %v5694 = vunpack.c.h.b16 %v5440
        %v5695 = vunpack.c.l.b16 %v5441
        %v5696 = vunpack.c.h.b16 %v5441
        %v5697 = vunpack.c.l.b16 %v5442
        %v5698 = vunpack.c.h.b16 %v5442
        %v5699 = vunpack.c.l.b16 %v5443
        %v5700 = vunpack.c.h.b16 %v5443
        %v5701 = vunpack.c.l.b16 %v5444
        %v5702 = vunpack.c.h.b16 %v5444
        %v5703 = vunpack.c.l.b16 %v5445
        %v5704 = vunpack.c.h.b16 %v5445
        %v5705 = vunpack.c.l.b16 %v5446
        %v5706 = vunpack.c.h.b16 %v5446
        %v5707 = vunpack.c.l.b16 %v5447
        %v5708 = vunpack.c.h.b16 %v5447
        %v5709 = vunpack.c.l.b16 %v5448
        %v5710 = vunpack.c.h.b16 %v5448
        %v5711 = vunpack.c.l.b16 %v5449
        %v5712 = vunpack.c.h.b16 %v5449
        %v5713 = vunpack.c.l.b16 %v5450
        %v5714 = vunpack.c.h.b16 %v5450
        %v5715 = vunpack.c.l.b16 %v5451
        %v5716 = vunpack.c.h.b16 %v5451
        %v5717 = vunpack.c.l.b16 %v5452
        %v5718 = vunpack.c.h.b16 %v5452
        %v5719 = vpack.c.b16 %v5593, %v5591
        %v5720 = vpack.c.b16 %v5594, %v5592
        %v5721 = vpack.c.b16 %v5597, %v5595
        %v5722 = vpack.c.b16 %v5598, %v5596
        %v5723 = vpack.c.b16 %v5601, %v5599
        %v5724 = vpack.c.b16 %v5602, %v5600
        %v5725 = vpack.c.b16 %v5605, %v5603
        %v5726 = vpack.c.b16 %v5606, %v5604
        %v5727 = vpack.c.b16 %v5609, %v5607
        %v5728 = vpack.c.b16 %v5610, %v5608
        %v5729 = vpack.c.b16 %v5613, %v5611
        %v5730 = vpack.c.b16 %v5614, %v5612
        %v5731 = vpack.c.b16 %v5617, %v5615
        %v5732 = vpack.c.b16 %v5618, %v5616
        %v5733 = vpack.c.b16 %v5621, %v5619
        %v5734 = vpack.c.b16 %v5622, %v5620
        %v5735 = vpack.c.b16 %v5625, %v5623
        %v5736 = vpack.c.b16 %v5626, %v5624
        %v5737 = vpack.c.b16 %v5629, %v5627
        %v5738 = vpack.c.b16 %v5630, %v5628
        %v5739 = vpack.c.b16 %v5633, %v5631
        %v5740 = vpack.c.b16 %v5634, %v5632
        %v5741 = vpack.c.b16 %v5637, %v5635
        %v5742 = vpack.c.b16 %v5638, %v5636
        %v5743 = vpack.c.b16 %v5641, %v5639
        %v5744 = vpack.c.b16 %v5642, %v5640
        %v5745 = vpack.c.b16 %v5645, %v5643
        %v5746 = vpack.c.b16 %v5646, %v5644
        %v5747 = vpack.c.b16 %v5649, %v5647
        %v5748 = vpack.c.b16 %v5650, %v5648
        %v5749 = vpack.c.b16 %v5653, %v5651
        %v5750 = vpack.c.b16 %v5654, %v5652
        %v5751 = vpack.c.b16 %v5657, %v5655
        %v5752 = vpack.c.b16 %v5658, %v5656
        %v5753 = vpack.c.b16 %v5661, %v5659
        %v5754 = vpack.c.b16 %v5662, %v5660
        %v5755 = vpack.c.b16 %v5665, %v5663
        %v5756 = vpack.c.b16 %v5666, %v5664
        %v5757 = vpack.c.b16 %v5669, %v5667
        %v5758 = vpack.c.b16 %v5670, %v5668
        %v5759 = vpack.c.b16 %v5673, %v5671
        %v5760 = vpack.c.b16 %v5674, %v5672
        %v5761 = vpack.c.b16 %v5677, %v5675
        %v5762 = vpack.c.b16 %v5678, %v5676
        %v5763 = vpack.c.b16 %v5681, %v5679
        %v5764 = vpack.c.b16 %v5682, %v5680
        %v5765 = vpack.c.b16 %v5685, %v5683
        %v5766 = vpack.c.b16 %v5686, %v5684
        %v5767 = vpack.c.b16 %v5689, %v5687
        %v5768 = vpack.c.b16 %v5690, %v5688
        %v5769 = vpack.c.b16 %v5693, %v5691
        %v5770 = vpack.c.b16 %v5694, %v5692
        %v5771 = vpack.c.b16 %v5697, %v5695
        %v5772 = vpack.c.b16 %v5698, %v5696
        %v5773 = vpack.c.b16 %v5701, %v5699
        %v5774 = vpack.c.b16 %v5702, %v5700
        %v5775 = vpack.c.b16 %v5705, %v5703
        %v5776 = vpack.c.b16 %v5706, %v5704
        %v5777 = vpack.c.b16 %v5709, %v5707
        %v5778 = vpack.c.b16 %v5710, %v5708
        %v5779 = vpack.c.b16 %v5713, %v5711
        %v5780 = vpack.c.b16 %v5714, %v5712
        %v5781 = vpack.c.b16 %v5717, %v5715
        %v5782 = vpack.c.b16 %v5718, %v5716
        %5847 = vmatprep.subr.bf16.mxu0 %v5720
        %5848 = vmatpush1.bf16.msra.mxu0 %v5719
        %5849 = vmatprep.subr.bf16.mxu0 %v5722
        %5850 = vmatpush1.bf16.msra.mxu0 %v5721
        %5851 = vmatprep.subr.bf16.mxu0 %v5724
        %5852 = vmatpush1.bf16.msra.mxu0 %v5723
        %5853 = vmatprep.subr.bf16.mxu0 %v5726
        %5854 = vmatpush1.bf16.msra.mxu0 %v5725
        %5855 = vmatprep.subr.bf16.mxu0 %v5728
        %5856 = vmatpush1.bf16.msra.mxu0 %v5727
        %5857 = vmatprep.subr.bf16.mxu0 %v5730
        %5858 = vmatpush1.bf16.msra.mxu0 %v5729
        %5859 = vmatprep.subr.bf16.mxu0 %v5732
        %5860 = vmatpush1.bf16.msra.mxu0 %v5731
        %5861 = vmatprep.subr.bf16.mxu0 %v5734
        %5862 = vmatpush1.bf16.msra.mxu0 %v5733
        %5863 = vmatprep.subr.bf16.mxu0 %v5736
        %5864 = vmatpush1.bf16.msra.mxu0 %v5735
        %5865 = vmatprep.subr.bf16.mxu0 %v5738
        %5866 = vmatpush1.bf16.msra.mxu0 %v5737
        %5867 = vmatprep.subr.bf16.mxu0 %v5740
        %5868 = vmatpush1.bf16.msra.mxu0 %v5739
        %5869 = vmatprep.subr.bf16.mxu0 %v5742
        %5870 = vmatpush1.bf16.msra.mxu0 %v5741
        %5871 = vmatprep.subr.bf16.mxu0 %v5744
        %5872 = vmatpush1.bf16.msra.mxu0 %v5743
        %5873 = vmatprep.subr.bf16.mxu0 %v5746
        %5874 = vmatpush1.bf16.msra.mxu0 %v5745
        %5875 = vmatprep.subr.bf16.mxu0 %v5748
        %5876 = vmatpush1.bf16.msra.mxu0 %v5747
        %5877 = vmatprep.subr.bf16.mxu0 %v5750
        %5878 = vmatpush1.bf16.msra.mxu0 %v5749
        %5879 = vmatprep.mubr.bf16.mxu0 %v5496
        %5880 = vmatmul.mubr.bf16.gmra.mrb[0].mxu0 %v5495
        %v5881 = vpop.f32.mrb[0].mxu0
        %v5882 = vadd.f32 0.0, %v5881
        %v5883 = vpop.f32.mrb[0].mxu0
        %v5884 = vadd.f32 0.0, %v5883
        %v5885 = vpop.f32.mrb[0].mxu0
        %v5886 = vadd.f32 0.0, %v5885
        %v5887 = vpop.f32.mrb[0].mxu0
        %v5888 = vadd.f32 0.0, %v5887
        %5889 = vmatprep.mubr.bf16.mxu0 %v5500
        %5890 = vmatmul.mubr.bf16.gmra.mrb[0].mxu0 %v5499
        %v5891 = vpop.f32.mrb[0].mxu0
        %v5892 = vadd.f32 0.0, %v5891
        %v5893 = vpop.f32.mrb[0].mxu0
        %v5894 = vadd.f32 0.0, %v5893
        %v5895 = vpop.f32.mrb[0].mxu0
        %v5896 = vadd.f32 0.0, %v5895
        %v5897 = vpop.f32.mrb[0].mxu0
        %v5898 = vadd.f32 0.0, %v5897
        %5899 = vmatprep.mubr.bf16.mxu0 %v5504
        %5900 = vmatmul.mubr.bf16.gmra.mrb[0].mxu0 %v5503
        %v5901 = vpop.f32.mrb[0].mxu0
        %v5902 = vadd.f32 0.0, %v5901
        %v5903 = vpop.f32.mrb[0].mxu0
        %v5904 = vadd.f32 0.0, %v5903
        %v5905 = vpop.f32.mrb[0].mxu0
        %v5906 = vadd.f32 0.0, %v5905
        %v5907 = vpop.f32.mrb[0].mxu0
        %v5908 = vadd.f32 0.0, %v5907
        %5909 = vmatprep.mubr.bf16.mxu0 %v5508
        %5910 = vmatmul.mubr.bf16.gmra.mrb[0].mxu0 %v5507
        %v5911 = vpop.f32.mrb[0].mxu0
        %v5912 = vadd.f32 0.0, %v5911
        %v5913 = vpop.f32.mrb[0].mxu0
        %v5914 = vadd.f32 0.0, %v5913
        %v5915 = vpop.f32.mrb[0].mxu0
        %v5916 = vpop.f32.mrb[0].mxu0
        %5917 = vdwg.mxu0
        %5918 = vmatprep.subr.bf16.mxu0 %v5752
        %5919 = vmatpush1.bf16.msra.mxu0 %v5751
        %5920 = vmatprep.subr.bf16.mxu0 %v5754
        %5921 = vmatpush1.bf16.msra.mxu0 %v5753
        %5922 = vmatprep.subr.bf16.mxu0 %v5756
        %5923 = vmatpush1.bf16.msra.mxu0 %v5755
        %5924 = vmatprep.subr.bf16.mxu0 %v5758
        %5925 = vmatpush1.bf16.msra.mxu0 %v5757
        %5926 = vmatprep.subr.bf16.mxu0 %v5760
        %5927 = vmatpush1.bf16.msra.mxu0 %v5759
        %5928 = vmatprep.subr.bf16.mxu0 %v5762
        %5929 = vmatpush1.bf16.msra.mxu0 %v5761
        %5930 = vmatprep.subr.bf16.mxu0 %v5764
        %5931 = vmatpush1.bf16.msra.mxu0 %v5763
        %5932 = vmatprep.subr.bf16.mxu0 %v5766
        %5933 = vmatpush1.bf16.msra.mxu0 %v5765
        %5934 = vmatprep.subr.bf16.mxu0 %v5768
        %5935 = vmatpush1.bf16.msra.mxu0 %v5767
        %5936 = vmatprep.subr.bf16.mxu0 %v5770
        %5937 = vmatpush1.bf16.msra.mxu0 %v5769
        %5938 = vmatprep.subr.bf16.mxu0 %v5772
        %5939 = vmatpush1.bf16.msra.mxu0 %v5771
        %5940 = vmatprep.subr.bf16.mxu0 %v5774
        %5941 = vmatpush1.bf16.msra.mxu0 %v5773
        %5942 = vmatprep.subr.bf16.mxu0 %v5776
        %5943 = vmatpush1.bf16.msra.mxu0 %v5775
        %5944 = vmatprep.subr.bf16.mxu0 %v5778
        %5945 = vmatpush1.bf16.msra.mxu0 %v5777
        %5946 = vmatprep.subr.bf16.mxu0 %v5780
        %5947 = vmatpush1.bf16.msra.mxu0 %v5779
        %5948 = vmatprep.subr.bf16.mxu0 %v5782
        %5949 = vmatpush1.bf16.msra.mxu0 %v5781
        %5950 = vmatprep.mubr.bf16.mxu0 %v5498
        %5951 = vmatmul.mubr.bf16.gmra.mrb[0].mxu0 %v5497
        %v5952 = vpop.f32.mrb[0].mxu0
        %v5953 = vadd.f32 %v5882, %v5952
        %v5954 = vpop.f32.mrb[0].mxu0
        %v5955 = vadd.f32 %v5884, %v5954
        %v5956 = vpop.f32.mrb[0].mxu0
        %v5957 = vadd.f32 %v5886, %v5956
        %v5958 = vpop.f32.mrb[0].mxu0
        %v5959 = vadd.f32 %v5888, %v5958
        %5960 = vmatprep.mubr.bf16.mxu0 %v5502
        %5961 = vmatmul.mubr.bf16.gmra.mrb[0].mxu0 %v5501
        %v5962 = vpop.f32.mrb[0].mxu0
        %v5963 = vadd.f32 %v5892, %v5962
        %v5964 = vpop.f32.mrb[0].mxu0
        %v5965 = vadd.f32 %v5894, %v5964
        %v5966 = vpop.f32.mrb[0].mxu0
        %v5967 = vadd.f32 %v5896, %v5966
        %v5968 = vpop.f32.mrb[0].mxu0
        %v5969 = vadd.f32 %v5898, %v5968
        %5970 = vmatprep.mubr.bf16.mxu0 %v5506
        %5971 = vmatmul.mubr.bf16.gmra.mrb[0].mxu0 %v5505
        %v5972 = vpop.f32.mrb[0].mxu0
        %v5973 = vadd.f32 %v5902, %v5972
        %v5974 = vpop.f32.mrb[0].mxu0
        %v5975 = vadd.f32 %v5904, %v5974
        %v5976 = vpop.f32.mrb[0].mxu0
        %v5977 = vadd.f32 %v5906, %v5976
        %v5978 = vpop.f32.mrb[0].mxu0
        %v5979 = vadd.f32 %v5908, %v5978
        %5980 = vmatprep.mubr.bf16.mxu0 %v5510
        %5981 = vmatmul.mubr.bf16.gmra.mrb[0].mxu0 %v5509
        %v5982 = vpop.f32.mrb[0].mxu0
        %v5983 = vadd.f32 %v5912, %v5982
        %v5984 = vpop.f32.mrb[0].mxu0
        %v5985 = vadd.f32 %v5914, %v5984
        %v5986 = vpop.f32.mrb[0].mxu0
        %v5987 = vpop.f32.mrb[0].mxu0
        %5988 = vdwg.mxu0
        %v5989 = vadd.f32 %v5361, %v5953
        %v5990 = vadd.f32 %v5362, %v5955
        %v5991 = vadd.f32 %v5363, %v5957
        %v5992 = vadd.f32 %v5364, %v5959
        %v5993 = vadd.f32 %v5365, %v5963
        %v5994 = vadd.f32 %v5366, %v5965
        %v5995 = vadd.f32 %v5367, %v5967
        %v5996 = vadd.f32 %v5368, %v5969
        %v5997 = vadd.f32 %v5369, %v5973
        %v5998 = vadd.f32 %v5370, %v5975
        %v5999 = vadd.f32 %v5371, %v5977
        %v6000 = vadd.f32 %v5372, %v5979
        %v6001 = vadd.f32 %v5373, %v5983
        %v6002 = vadd.f32 %v5374, %v5985
        %v6003 = vld [vmem:[#allocation3 + $0x60] sm:$0xff]
        %v6004 = vld [vmem:[#allocation3 + $0x68] sm:$0xff]
        %v6005 = vld [vmem:[#allocation3 + $0xf0] sm:$0xff]
        %v6006 = vld [vmem:[#allocation3 + $0xf8] sm:$0xff]
        %v6007 = vld [vmem:[#allocation3 + $0x180] sm:$0xff]
        %v6008 = vld [vmem:[#allocation3 + $0x188] sm:$0xff]
        %v6009 = vld [vmem:[#allocation3 + $0x210] sm:$0xff]
        %v6010 = vld [vmem:[#allocation3 + $0x218] sm:$0xff]
        %v6011 = vld [vmem:[#allocation3 + $0x2a0] sm:$0xff]
        %v6012 = vld [vmem:[#allocation3 + $0x2a8] sm:$0xff]
        %v6013 = vld [vmem:[#allocation3 + $0x330] sm:$0xff]
        %v6014 = vld [vmem:[#allocation3 + $0x338] sm:$0xff]
        %v6015 = vld [vmem:[#allocation3 + $0x3c0] sm:$0x11]
        %v6016 = vld [vmem:[#allocation3 + $0x3c8] sm:$0x11]
        %v6017 = vld [vmem:[%s268 + $0xc00] sm:$0xff]
        %v6018 = vld [vmem:[%s268 + $0xc08] sm:$0xff]
        %v6019 = vld [vmem:[%s268 + $0xc10] sm:$0xff]
        %v6020 = vld [vmem:[%s268 + $0xc18] sm:$0xff]
        %v6021 = vld [vmem:[%s268 + $0xc20] sm:$0xff]
        %v6022 = vld [vmem:[%s268 + $0xc28] sm:$0xff]
        %v6023 = vld [vmem:[%s268 + $0xc30] sm:$0xff]
        %v6024 = vld [vmem:[%s268 + $0xc38] sm:$0xff]
        %v6025 = vld [vmem:[%s268 + $0xc40] sm:$0xff]
        %v6026 = vld [vmem:[%s268 + $0xc48] sm:$0xff]
        %v6027 = vld [vmem:[%s268 + $0xc50] sm:$0xff]
        %v6028 = vld [vmem:[%s268 + $0xc58] sm:$0xff]
        %v6029 = vld [vmem:[%s268 + $0xc60] sm:$0xff]
        %v6030 = vld [vmem:[%s268 + $0xc68] sm:$0xff]
        %v6031 = vld [vmem:[%s268 + $0xc70] sm:$0xff]
        %v6032 = vld [vmem:[%s268 + $0xc78] sm:$0xff]
        %v6033 = vld [vmem:[%s268 + $0xc80] sm:$0xff]
        %v6034 = vld [vmem:[%s268 + $0xc88] sm:$0xff]
        %v6035 = vld [vmem:[%s268 + $0xc90] sm:$0xff]
        %v6036 = vld [vmem:[%s268 + $0xc98] sm:$0xff]
        %v6037 = vld [vmem:[%s268 + $0xca0] sm:$0xff]
        %v6038 = vld [vmem:[%s268 + $0xca8] sm:$0xff]
        %v6039 = vld [vmem:[%s268 + $0xcb0] sm:$0xff]
        %v6040 = vld [vmem:[%s268 + $0xcb8] sm:$0xff]
        %v6041 = vld [vmem:[%s268 + $0xcc0] sm:$0xff]
        %v6042 = vld [vmem:[%s268 + $0xcc8] sm:$0xff]
        %v6043 = vld [vmem:[%s268 + $0xcd0] sm:$0xff]
        %v6044 = vld [vmem:[%s268 + $0xcd8] sm:$0xff]
        %v6045 = vld [vmem:[%s268 + $0xce0] sm:$0xff]
        %v6046 = vld [vmem:[%s268 + $0xce8] sm:$0xff]
        %v6047 = vld [vmem:[%s268 + $0xcf0] sm:$0xff]
        %v6048 = vld [vmem:[%s268 + $0xcf8] sm:$0xff]
        %v6049 = vld [vmem:[%s268 + $0xd00] sm:$0xff]
        %v6050 = vld [vmem:[%s268 + $0xd08] sm:$0xff]
        %v6051 = vld [vmem:[%s268 + $0xd10] sm:$0xff]
        %v6052 = vld [vmem:[%s268 + $0xd18] sm:$0xff]
        %v6053 = vld [vmem:[%s268 + $0xd20] sm:$0xff]
        %v6054 = vld [vmem:[%s268 + $0xd28] sm:$0xff]
        %v6055 = vld [vmem:[%s268 + $0xd30] sm:$0xff]
        %v6056 = vld [vmem:[%s268 + $0xd38] sm:$0xff]
        %v6057 = vld [vmem:[%s268 + $0xd40] sm:$0xff]
        %v6058 = vld [vmem:[%s268 + $0xd48] sm:$0xff]
        %v6059 = vld [vmem:[%s268 + $0xd50] sm:$0xff]
        %v6060 = vld [vmem:[%s268 + $0xd58] sm:$0xff]
        %v6061 = vld [vmem:[%s268 + $0xd60] sm:$0xff]
        %v6062 = vld [vmem:[%s268 + $0xd68] sm:$0xff]
        %v6063 = vld [vmem:[%s268 + $0xd70] sm:$0xff]
        %v6064 = vld [vmem:[%s268 + $0xd78] sm:$0xff]
        %v6065 = vld [vmem:[%s268 + $0xd80] sm:$0xff]
        %v6066 = vld [vmem:[%s268 + $0xd88] sm:$0xff]
        %v6067 = vld [vmem:[%s268 + $0xd90] sm:$0xff]
        %v6068 = vld [vmem:[%s268 + $0xd98] sm:$0xff]
        %v6069 = vld [vmem:[%s268 + $0xda0] sm:$0xff]
        %v6070 = vld [vmem:[%s268 + $0xda8] sm:$0xff]
        %v6071 = vld [vmem:[%s268 + $0xdb0] sm:$0xff]
        %v6072 = vld [vmem:[%s268 + $0xdb8] sm:$0xff]
        %v6073 = vld [vmem:[%s268 + $0xdc0] sm:$0xff]
        %v6074 = vld [vmem:[%s268 + $0xdc8] sm:$0xff]
        %v6075 = vld [vmem:[%s268 + $0xdd0] sm:$0xff]
        %v6076 = vld [vmem:[%s268 + $0xdd8] sm:$0xff]
        %v6077 = vld [vmem:[%s268 + $0xde0] sm:$0xff]
        %v6078 = vld [vmem:[%s268 + $0xde8] sm:$0xff]
        %v6079 = vld [vmem:[%s268 + $0xdf0] sm:$0xff]
        %v6080 = vld [vmem:[%s268 + $0xdf8] sm:$0xff]
        %v6095 = vunpack.c.l.b16 %v6003
        %v6096 = vunpack.c.h.b16 %v6003
        %v6097 = vunpack.c.l.b16 %v6004
        %v6098 = vunpack.c.h.b16 %v6004
        %v6099 = vunpack.c.l.b16 %v6005
        %v6100 = vunpack.c.h.b16 %v6005
        %v6101 = vunpack.c.l.b16 %v6006
        %v6102 = vunpack.c.h.b16 %v6006
        %v6103 = vunpack.c.l.b16 %v6007
        %v6104 = vunpack.c.h.b16 %v6007
        %v6105 = vunpack.c.l.b16 %v6008
        %v6106 = vunpack.c.h.b16 %v6008
        %v6107 = vunpack.c.l.b16 %v6009
        %v6108 = vunpack.c.h.b16 %v6009
        %v6109 = vunpack.c.l.b16 %v6010
        %v6110 = vunpack.c.h.b16 %v6010
        %v6111 = vunpack.c.l.b16 %v6011
        %v6112 = vunpack.c.h.b16 %v6011
        %v6113 = vunpack.c.l.b16 %v6012
        %v6114 = vunpack.c.h.b16 %v6012
        %v6115 = vunpack.c.l.b16 %v6013
        %v6116 = vunpack.c.h.b16 %v6013
        %v6117 = vunpack.c.l.b16 %v6014
        %v6118 = vunpack.c.h.b16 %v6014
        %v6119 = vunpack.c.l.b16 %v6015
        %v6120 = vunpack.c.h.b16 %v6015
        %v6121 = vunpack.c.l.b16 %v6016
        %v6122 = vunpack.c.h.b16 %v6016
        %v6123 = vpack.c.b16 %v6099, %v6095
        %v6124 = vpack.c.b16 %v6100, %v6096
        %v6125 = vpack.c.b16 %v6101, %v6097
        %v6126 = vpack.c.b16 %v6102, %v6098
        %v6127 = vpack.c.b16 %v6107, %v6103
        %v6128 = vpack.c.b16 %v6108, %v6104
        %v6129 = vpack.c.b16 %v6109, %v6105
        %v6130 = vpack.c.b16 %v6110, %v6106
        %v6131 = vpack.c.b16 %v6115, %v6111
        %v6132 = vpack.c.b16 %v6116, %v6112
        %v6133 = vpack.c.b16 %v6117, %v6113
        %v6134 = vpack.c.b16 %v6118, %v6114
        %v6135 = vpack.c.b16 %v6119, %v6119
        %v6136 = vpack.c.b16 %v6120, %v6120
        %v6137 = vpack.c.b16 %v6121, %v6121
        %v6138 = vpack.c.b16 %v6122, %v6122
        %v6219 = vunpack.c.l.b16 %v6017
        %v6220 = vunpack.c.h.b16 %v6017
        %v6221 = vunpack.c.l.b16 %v6018
        %v6222 = vunpack.c.h.b16 %v6018
        %v6223 = vunpack.c.l.b16 %v6019
        %v6224 = vunpack.c.h.b16 %v6019
        %v6225 = vunpack.c.l.b16 %v6020
        %v6226 = vunpack.c.h.b16 %v6020
        %v6227 = vunpack.c.l.b16 %v6021
        %v6228 = vunpack.c.h.b16 %v6021
        %v6229 = vunpack.c.l.b16 %v6022
        %v6230 = vunpack.c.h.b16 %v6022
        %v6231 = vunpack.c.l.b16 %v6023
        %v6232 = vunpack.c.h.b16 %v6023
        %v6233 = vunpack.c.l.b16 %v6024
        %v6234 = vunpack.c.h.b16 %v6024
        %v6235 = vunpack.c.l.b16 %v6025
        %v6236 = vunpack.c.h.b16 %v6025
        %v6237 = vunpack.c.l.b16 %v6026
        %v6238 = vunpack.c.h.b16 %v6026
        %v6239 = vunpack.c.l.b16 %v6027
        %v6240 = vunpack.c.h.b16 %v6027
        %v6241 = vunpack.c.l.b16 %v6028
        %v6242 = vunpack.c.h.b16 %v6028
        %v6243 = vunpack.c.l.b16 %v6029
        %v6244 = vunpack.c.h.b16 %v6029
        %v6245 = vunpack.c.l.b16 %v6030
        %v6246 = vunpack.c.h.b16 %v6030
        %v6247 = vunpack.c.l.b16 %v6031
        %v6248 = vunpack.c.h.b16 %v6031
        %v6249 = vunpack.c.l.b16 %v6032
        %v6250 = vunpack.c.h.b16 %v6032
        %v6251 = vunpack.c.l.b16 %v6033
        %v6252 = vunpack.c.h.b16 %v6033
        %v6253 = vunpack.c.l.b16 %v6034
        %v6254 = vunpack.c.h.b16 %v6034
        %v6255 = vunpack.c.l.b16 %v6035
        %v6256 = vunpack.c.h.b16 %v6035
        %v6257 = vunpack.c.l.b16 %v6036
        %v6258 = vunpack.c.h.b16 %v6036
        %v6259 = vunpack.c.l.b16 %v6037
        %v6260 = vunpack.c.h.b16 %v6037
        %v6261 = vunpack.c.l.b16 %v6038
        %v6262 = vunpack.c.h.b16 %v6038
        %v6263 = vunpack.c.l.b16 %v6039
        %v6264 = vunpack.c.h.b16 %v6039
        %v6265 = vunpack.c.l.b16 %v6040
        %v6266 = vunpack.c.h.b16 %v6040
        %v6267 = vunpack.c.l.b16 %v6041
        %v6268 = vunpack.c.h.b16 %v6041
        %v6269 = vunpack.c.l.b16 %v6042
        %v6270 = vunpack.c.h.b16 %v6042
        %v6271 = vunpack.c.l.b16 %v6043
        %v6272 = vunpack.c.h.b16 %v6043
        %v6273 = vunpack.c.l.b16 %v6044
        %v6274 = vunpack.c.h.b16 %v6044
        %v6275 = vunpack.c.l.b16 %v6045
        %v6276 = vunpack.c.h.b16 %v6045
        %v6277 = vunpack.c.l.b16 %v6046
        %v6278 = vunpack.c.h.b16 %v6046
        %v6279 = vunpack.c.l.b16 %v6047
        %v6280 = vunpack.c.h.b16 %v6047
        %v6281 = vunpack.c.l.b16 %v6048
        %v6282 = vunpack.c.h.b16 %v6048
        %v6283 = vunpack.c.l.b16 %v6049
        %v6284 = vunpack.c.h.b16 %v6049
        %v6285 = vunpack.c.l.b16 %v6050
        %v6286 = vunpack.c.h.b16 %v6050
        %v6287 = vunpack.c.l.b16 %v6051
        %v6288 = vunpack.c.h.b16 %v6051
        %v6289 = vunpack.c.l.b16 %v6052
        %v6290 = vunpack.c.h.b16 %v6052
        %v6291 = vunpack.c.l.b16 %v6053
        %v6292 = vunpack.c.h.b16 %v6053
        %v6293 = vunpack.c.l.b16 %v6054
        %v6294 = vunpack.c.h.b16 %v6054
        %v6295 = vunpack.c.l.b16 %v6055
        %v6296 = vunpack.c.h.b16 %v6055
        %v6297 = vunpack.c.l.b16 %v6056
        %v6298 = vunpack.c.h.b16 %v6056
        %v6299 = vunpack.c.l.b16 %v6057
        %v6300 = vunpack.c.h.b16 %v6057
        %v6301 = vunpack.c.l.b16 %v6058
        %v6302 = vunpack.c.h.b16 %v6058
        %v6303 = vunpack.c.l.b16 %v6059
        %v6304 = vunpack.c.h.b16 %v6059
        %v6305 = vunpack.c.l.b16 %v6060
        %v6306 = vunpack.c.h.b16 %v6060
        %v6307 = vunpack.c.l.b16 %v6061
        %v6308 = vunpack.c.h.b16 %v6061
        %v6309 = vunpack.c.l.b16 %v6062
        %v6310 = vunpack.c.h.b16 %v6062
        %v6311 = vunpack.c.l.b16 %v6063
        %v6312 = vunpack.c.h.b16 %v6063
        %v6313 = vunpack.c.l.b16 %v6064
        %v6314 = vunpack.c.h.b16 %v6064
        %v6315 = vunpack.c.l.b16 %v6065
        %v6316 = vunpack.c.h.b16 %v6065
        %v6317 = vunpack.c.l.b16 %v6066
        %v6318 = vunpack.c.h.b16 %v6066
        %v6319 = vunpack.c.l.b16 %v6067
        %v6320 = vunpack.c.h.b16 %v6067
        %v6321 = vunpack.c.l.b16 %v6068
        %v6322 = vunpack.c.h.b16 %v6068
        %v6323 = vunpack.c.l.b16 %v6069
        %v6324 = vunpack.c.h.b16 %v6069
        %v6325 = vunpack.c.l.b16 %v6070
        %v6326 = vunpack.c.h.b16 %v6070
        %v6327 = vunpack.c.l.b16 %v6071
        %v6328 = vunpack.c.h.b16 %v6071
        %v6329 = vunpack.c.l.b16 %v6072
        %v6330 = vunpack.c.h.b16 %v6072
        %v6331 = vunpack.c.l.b16 %v6073
        %v6332 = vunpack.c.h.b16 %v6073
        %v6333 = vunpack.c.l.b16 %v6074
        %v6334 = vunpack.c.h.b16 %v6074
        %v6335 = vunpack.c.l.b16 %v6075
        %v6336 = vunpack.c.h.b16 %v6075
        %v6337 = vunpack.c.l.b16 %v6076
        %v6338 = vunpack.c.h.b16 %v6076
        %v6339 = vunpack.c.l.b16 %v6077
        %v6340 = vunpack.c.h.b16 %v6077
        %v6341 = vunpack.c.l.b16 %v6078
        %v6342 = vunpack.c.h.b16 %v6078
        %v6343 = vunpack.c.l.b16 %v6079
        %v6344 = vunpack.c.h.b16 %v6079
        %v6345 = vunpack.c.l.b16 %v6080
        %v6346 = vunpack.c.h.b16 %v6080
        %v6347 = vpack.c.b16 %v6221, %v6219
        %v6348 = vpack.c.b16 %v6222, %v6220
        %v6349 = vpack.c.b16 %v6225, %v6223
        %v6350 = vpack.c.b16 %v6226, %v6224
        %v6351 = vpack.c.b16 %v6229, %v6227
        %v6352 = vpack.c.b16 %v6230, %v6228
        %v6353 = vpack.c.b16 %v6233, %v6231
        %v6354 = vpack.c.b16 %v6234, %v6232
        %v6355 = vpack.c.b16 %v6237, %v6235
        %v6356 = vpack.c.b16 %v6238, %v6236
        %v6357 = vpack.c.b16 %v6241, %v6239
        %v6358 = vpack.c.b16 %v6242, %v6240
        %v6359 = vpack.c.b16 %v6245, %v6243
        %v6360 = vpack.c.b16 %v6246, %v6244
        %v6361 = vpack.c.b16 %v6249, %v6247
        %v6362 = vpack.c.b16 %v6250, %v6248
        %v6363 = vpack.c.b16 %v6253, %v6251
        %v6364 = vpack.c.b16 %v6254, %v6252
        %v6365 = vpack.c.b16 %v6257, %v6255
        %v6366 = vpack.c.b16 %v6258, %v6256
        %v6367 = vpack.c.b16 %v6261, %v6259
        %v6368 = vpack.c.b16 %v6262, %v6260
        %v6369 = vpack.c.b16 %v6265, %v6263
        %v6370 = vpack.c.b16 %v6266, %v6264
        %v6371 = vpack.c.b16 %v6269, %v6267
        %v6372 = vpack.c.b16 %v6270, %v6268
        %v6373 = vpack.c.b16 %v6273, %v6271
        %v6374 = vpack.c.b16 %v6274, %v6272
        %v6375 = vpack.c.b16 %v6277, %v6275
        %v6376 = vpack.c.b16 %v6278, %v6276
        %v6377 = vpack.c.b16 %v6281, %v6279
        %v6378 = vpack.c.b16 %v6282, %v6280
        %v6379 = vpack.c.b16 %v6285, %v6283
        %v6380 = vpack.c.b16 %v6286, %v6284
        %v6381 = vpack.c.b16 %v6289, %v6287
        %v6382 = vpack.c.b16 %v6290, %v6288
        %v6383 = vpack.c.b16 %v6293, %v6291
        %v6384 = vpack.c.b16 %v6294, %v6292
        %v6385 = vpack.c.b16 %v6297, %v6295
        %v6386 = vpack.c.b16 %v6298, %v6296
        %v6387 = vpack.c.b16 %v6301, %v6299
        %v6388 = vpack.c.b16 %v6302, %v6300
        %v6389 = vpack.c.b16 %v6305, %v6303
        %v6390 = vpack.c.b16 %v6306, %v6304
        %v6391 = vpack.c.b16 %v6309, %v6307
        %v6392 = vpack.c.b16 %v6310, %v6308
        %v6393 = vpack.c.b16 %v6313, %v6311
        %v6394 = vpack.c.b16 %v6314, %v6312
        %v6395 = vpack.c.b16 %v6317, %v6315
        %v6396 = vpack.c.b16 %v6318, %v6316
        %v6397 = vpack.c.b16 %v6321, %v6319
        %v6398 = vpack.c.b16 %v6322, %v6320
        %v6399 = vpack.c.b16 %v6325, %v6323
        %v6400 = vpack.c.b16 %v6326, %v6324
        %v6401 = vpack.c.b16 %v6329, %v6327
        %v6402 = vpack.c.b16 %v6330, %v6328
        %v6403 = vpack.c.b16 %v6333, %v6331
        %v6404 = vpack.c.b16 %v6334, %v6332
        %v6405 = vpack.c.b16 %v6337, %v6335
        %v6406 = vpack.c.b16 %v6338, %v6336
        %v6407 = vpack.c.b16 %v6341, %v6339
        %v6408 = vpack.c.b16 %v6342, %v6340
        %v6409 = vpack.c.b16 %v6345, %v6343
        %v6410 = vpack.c.b16 %v6346, %v6344
        %6475 = vmatprep.subr.bf16.mxu0 %v6348
        %6476 = vmatpush1.bf16.msra.mxu0 %v6347
        %6477 = vmatprep.subr.bf16.mxu0 %v6350
        %6478 = vmatpush1.bf16.msra.mxu0 %v6349
        %6479 = vmatprep.subr.bf16.mxu0 %v6352
        %6480 = vmatpush1.bf16.msra.mxu0 %v6351
        %6481 = vmatprep.subr.bf16.mxu0 %v6354
        %6482 = vmatpush1.bf16.msra.mxu0 %v6353
        %6483 = vmatprep.subr.bf16.mxu0 %v6356
        %6484 = vmatpush1.bf16.msra.mxu0 %v6355
        %6485 = vmatprep.subr.bf16.mxu0 %v6358
        %6486 = vmatpush1.bf16.msra.mxu0 %v6357
        %6487 = vmatprep.subr.bf16.mxu0 %v6360
        %6488 = vmatpush1.bf16.msra.mxu0 %v6359
        %6489 = vmatprep.subr.bf16.mxu0 %v6362
        %6490 = vmatpush1.bf16.msra.mxu0 %v6361
        %6491 = vmatprep.subr.bf16.mxu0 %v6364
        %6492 = vmatpush1.bf16.msra.mxu0 %v6363
        %6493 = vmatprep.subr.bf16.mxu0 %v6366
        %6494 = vmatpush1.bf16.msra.mxu0 %v6365
        %6495 = vmatprep.subr.bf16.mxu0 %v6368
        %6496 = vmatpush1.bf16.msra.mxu0 %v6367
        %6497 = vmatprep.subr.bf16.mxu0 %v6370
        %6498 = vmatpush1.bf16.msra.mxu0 %v6369
        %6499 = vmatprep.subr.bf16.mxu0 %v6372
        %6500 = vmatpush1.bf16.msra.mxu0 %v6371
        %6501 = vmatprep.subr.bf16.mxu0 %v6374
        %6502 = vmatpush1.bf16.msra.mxu0 %v6373
        %6503 = vmatprep.subr.bf16.mxu0 %v6376
        %6504 = vmatpush1.bf16.msra.mxu0 %v6375
        %6505 = vmatprep.subr.bf16.mxu0 %v6378
        %6506 = vmatpush1.bf16.msra.mxu0 %v6377
        %6507 = vmatprep.mubr.bf16.mxu0 %v6124
        %6508 = vmatmul.mubr.bf16.gmra.mrb[0].mxu0 %v6123
        %v6509 = vpop.f32.mrb[0].mxu0
        %v6510 = vadd.f32 0.0, %v6509
        %v6511 = vpop.f32.mrb[0].mxu0
        %v6512 = vadd.f32 0.0, %v6511
        %v6513 = vpop.f32.mrb[0].mxu0
        %v6514 = vadd.f32 0.0, %v6513
        %v6515 = vpop.f32.mrb[0].mxu0
        %v6516 = vadd.f32 0.0, %v6515
        %6517 = vmatprep.mubr.bf16.mxu0 %v6128
        %6518 = vmatmul.mubr.bf16.gmra.mrb[0].mxu0 %v6127
        %v6519 = vpop.f32.mrb[0].mxu0
        %v6520 = vadd.f32 0.0, %v6519
        %v6521 = vpop.f32.mrb[0].mxu0
        %v6522 = vadd.f32 0.0, %v6521
        %v6523 = vpop.f32.mrb[0].mxu0
        %v6524 = vadd.f32 0.0, %v6523
        %v6525 = vpop.f32.mrb[0].mxu0
        %v6526 = vadd.f32 0.0, %v6525
        %6527 = vmatprep.mubr.bf16.mxu0 %v6132
        %6528 = vmatmul.mubr.bf16.gmra.mrb[0].mxu0 %v6131
        %v6529 = vpop.f32.mrb[0].mxu0
        %v6530 = vadd.f32 0.0, %v6529
        %v6531 = vpop.f32.mrb[0].mxu0
        %v6532 = vadd.f32 0.0, %v6531
        %v6533 = vpop.f32.mrb[0].mxu0
        %v6534 = vadd.f32 0.0, %v6533
        %v6535 = vpop.f32.mrb[0].mxu0
        %v6536 = vadd.f32 0.0, %v6535
        %6537 = vmatprep.mubr.bf16.mxu0 %v6136
        %6538 = vmatmul.mubr.bf16.gmra.mrb[0].mxu0 %v6135
        %v6539 = vpop.f32.mrb[0].mxu0
        %v6540 = vadd.f32 0.0, %v6539
        %v6541 = vpop.f32.mrb[0].mxu0
        %v6542 = vadd.f32 0.0, %v6541
        %v6543 = vpop.f32.mrb[0].mxu0
        %v6544 = vpop.f32.mrb[0].mxu0
        %6545 = vdwg.mxu0
        %6546 = vmatprep.subr.bf16.mxu0 %v6380
        %6547 = vmatpush1.bf16.msra.mxu0 %v6379
        %6548 = vmatprep.subr.bf16.mxu0 %v6382
        %6549 = vmatpush1.bf16.msra.mxu0 %v6381
        %6550 = vmatprep.subr.bf16.mxu0 %v6384
        %6551 = vmatpush1.bf16.msra.mxu0 %v6383
        %6552 = vmatprep.subr.bf16.mxu0 %v6386
        %6553 = vmatpush1.bf16.msra.mxu0 %v6385
        %6554 = vmatprep.subr.bf16.mxu0 %v6388
        %6555 = vmatpush1.bf16.msra.mxu0 %v6387
        %6556 = vmatprep.subr.bf16.mxu0 %v6390
        %6557 = vmatpush1.bf16.msra.mxu0 %v6389
        %6558 = vmatprep.subr.bf16.mxu0 %v6392
        %6559 = vmatpush1.bf16.msra.mxu0 %v6391
        %6560 = vmatprep.subr.bf16.mxu0 %v6394
        %6561 = vmatpush1.bf16.msra.mxu0 %v6393
        %6562 = vmatprep.subr.bf16.mxu0 %v6396
        %6563 = vmatpush1.bf16.msra.mxu0 %v6395
        %6564 = vmatprep.subr.bf16.mxu0 %v6398
        %6565 = vmatpush1.bf16.msra.mxu0 %v6397
        %6566 = vmatprep.subr.bf16.mxu0 %v6400
        %6567 = vmatpush1.bf16.msra.mxu0 %v6399
        %6568 = vmatprep.subr.bf16.mxu0 %v6402
        %6569 = vmatpush1.bf16.msra.mxu0 %v6401
        %6570 = vmatprep.subr.bf16.mxu0 %v6404
        %6571 = vmatpush1.bf16.msra.mxu0 %v6403
        %6572 = vmatprep.subr.bf16.mxu0 %v6406
        %6573 = vmatpush1.bf16.msra.mxu0 %v6405
        %6574 = vmatprep.subr.bf16.mxu0 %v6408
        %6575 = vmatpush1.bf16.msra.mxu0 %v6407
        %6576 = vmatprep.subr.bf16.mxu0 %v6410
        %6577 = vmatpush1.bf16.msra.mxu0 %v6409
        %6578 = vmatprep.mubr.bf16.mxu0 %v6126
        %6579 = vmatmul.mubr.bf16.gmra.mrb[0].mxu0 %v6125
        %v6580 = vpop.f32.mrb[0].mxu0
        %v6581 = vadd.f32 %v6510, %v6580
        %v6582 = vpop.f32.mrb[0].mxu0
        %v6583 = vadd.f32 %v6512, %v6582
        %v6584 = vpop.f32.mrb[0].mxu0
        %v6585 = vadd.f32 %v6514, %v6584
        %v6586 = vpop.f32.mrb[0].mxu0
        %v6587 = vadd.f32 %v6516, %v6586
        %6588 = vmatprep.mubr.bf16.mxu0 %v6130
        %6589 = vmatmul.mubr.bf16.gmra.mrb[0].mxu0 %v6129
        %v6590 = vpop.f32.mrb[0].mxu0
        %v6591 = vadd.f32 %v6520, %v6590
        %v6592 = vpop.f32.mrb[0].mxu0
        %v6593 = vadd.f32 %v6522, %v6592
        %v6594 = vpop.f32.mrb[0].mxu0
        %v6595 = vadd.f32 %v6524, %v6594
        %v6596 = vpop.f32.mrb[0].mxu0
        %v6597 = vadd.f32 %v6526, %v6596
        %6598 = vmatprep.mubr.bf16.mxu0 %v6134
        %6599 = vmatmul.mubr.bf16.gmra.mrb[0].mxu0 %v6133
        %v6600 = vpop.f32.mrb[0].mxu0
        %v6601 = vadd.f32 %v6530, %v6600
        %v6602 = vpop.f32.mrb[0].mxu0
        %v6603 = vadd.f32 %v6532, %v6602
        %v6604 = vpop.f32.mrb[0].mxu0
        %v6605 = vadd.f32 %v6534, %v6604
        %v6606 = vpop.f32.mrb[0].mxu0
        %v6607 = vadd.f32 %v6536, %v6606
        %6608 = vmatprep.mubr.bf16.mxu0 %v6138
        %6609 = vmatmul.mubr.bf16.gmra.mrb[0].mxu0 %v6137
        %v6610 = vpop.f32.mrb[0].mxu0
        %v6611 = vadd.f32 %v6540, %v6610
        %v6612 = vpop.f32.mrb[0].mxu0
        %v6613 = vadd.f32 %v6542, %v6612
        %v6614 = vpop.f32.mrb[0].mxu0
        %v6615 = vpop.f32.mrb[0].mxu0
        %6616 = vdwg.mxu0
        %v6617 = vadd.f32 %v5989, %v6581
        %v6618 = vadd.f32 %v5990, %v6583
        %v6619 = vadd.f32 %v5991, %v6585
        %v6620 = vadd.f32 %v5992, %v6587
        %v6621 = vadd.f32 %v5993, %v6591
        %v6622 = vadd.f32 %v5994, %v6593
        %v6623 = vadd.f32 %v5995, %v6595
        %v6624 = vadd.f32 %v5996, %v6597
        %v6625 = vadd.f32 %v5997, %v6601
        %v6626 = vadd.f32 %v5998, %v6603
        %v6627 = vadd.f32 %v5999, %v6605
        %v6628 = vadd.f32 %v6000, %v6607
        %v6629 = vadd.f32 %v6001, %v6611
        %v6630 = vadd.f32 %v6002, %v6613
        %v6631 = vld [vmem:[#allocation3 + $0x70] sm:$0xff]
        %v6632 = vld [vmem:[#allocation3 + $0x78] sm:$0xff]
        %v6633 = vld [vmem:[#allocation3 + $0x100] sm:$0xff]
        %v6634 = vld [vmem:[#allocation3 + $0x108] sm:$0xff]
        %v6635 = vld [vmem:[#allocation3 + $0x190] sm:$0xff]
        %v6636 = vld [vmem:[#allocation3 + $0x198] sm:$0xff]
        %v6637 = vld [vmem:[#allocation3 + $0x220] sm:$0xff]
        %v6638 = vld [vmem:[#allocation3 + $0x228] sm:$0xff]
        %v6639 = vld [vmem:[#allocation3 + $0x2b0] sm:$0xff]
        %v6640 = vld [vmem:[#allocation3 + $0x2b8] sm:$0xff]
        %v6641 = vld [vmem:[#allocation3 + $0x340] sm:$0xff]
        %v6642 = vld [vmem:[#allocation3 + $0x348] sm:$0xff]
        %v6643 = vld [vmem:[#allocation3 + $0x3d0] sm:$0x11]
        %v6644 = vld [vmem:[#allocation3 + $0x3d8] sm:$0x11]
        %v6645 = vld [vmem:[%s268 + $0xe00] sm:$0xff]
        %v6646 = vld [vmem:[%s268 + $0xe08] sm:$0xff]
        %v6647 = vld [vmem:[%s268 + $0xe10] sm:$0xff]
        %v6648 = vld [vmem:[%s268 + $0xe18] sm:$0xff]
        %v6649 = vld [vmem:[%s268 + $0xe20] sm:$0xff]
        %v6650 = vld [vmem:[%s268 + $0xe28] sm:$0xff]
        %v6651 = vld [vmem:[%s268 + $0xe30] sm:$0xff]
        %v6652 = vld [vmem:[%s268 + $0xe38] sm:$0xff]
        %v6653 = vld [vmem:[%s268 + $0xe40] sm:$0xff]
        %v6654 = vld [vmem:[%s268 + $0xe48] sm:$0xff]
        %v6655 = vld [vmem:[%s268 + $0xe50] sm:$0xff]
        %v6656 = vld [vmem:[%s268 + $0xe58] sm:$0xff]
        %v6657 = vld [vmem:[%s268 + $0xe60] sm:$0xff]
        %v6658 = vld [vmem:[%s268 + $0xe68] sm:$0xff]
        %v6659 = vld [vmem:[%s268 + $0xe70] sm:$0xff]
        %v6660 = vld [vmem:[%s268 + $0xe78] sm:$0xff]
        %v6661 = vld [vmem:[%s268 + $0xe80] sm:$0xff]
        %v6662 = vld [vmem:[%s268 + $0xe88] sm:$0xff]
        %v6663 = vld [vmem:[%s268 + $0xe90] sm:$0xff]
        %v6664 = vld [vmem:[%s268 + $0xe98] sm:$0xff]
        %v6665 = vld [vmem:[%s268 + $0xea0] sm:$0xff]
        %v6666 = vld [vmem:[%s268 + $0xea8] sm:$0xff]
        %v6667 = vld [vmem:[%s268 + $0xeb0] sm:$0xff]
        %v6668 = vld [vmem:[%s268 + $0xeb8] sm:$0xff]
        %v6669 = vld [vmem:[%s268 + $0xec0] sm:$0xff]
        %v6670 = vld [vmem:[%s268 + $0xec8] sm:$0xff]
        %v6671 = vld [vmem:[%s268 + $0xed0] sm:$0xff]
        %v6672 = vld [vmem:[%s268 + $0xed8] sm:$0xff]
        %v6673 = vld [vmem:[%s268 + $0xee0] sm:$0xff]
        %v6674 = vld [vmem:[%s268 + $0xee8] sm:$0xff]
        %v6675 = vld [vmem:[%s268 + $0xef0] sm:$0xff]
        %v6676 = vld [vmem:[%s268 + $0xef8] sm:$0xff]
        %v6677 = vld [vmem:[%s268 + $0xf00] sm:$0xff]
        %v6678 = vld [vmem:[%s268 + $0xf08] sm:$0xff]
        %v6679 = vld [vmem:[%s268 + $0xf10] sm:$0xff]
        %v6680 = vld [vmem:[%s268 + $0xf18] sm:$0xff]
        %v6681 = vld [vmem:[%s268 + $0xf20] sm:$0xff]
        %v6682 = vld [vmem:[%s268 + $0xf28] sm:$0xff]
        %v6683 = vld [vmem:[%s268 + $0xf30] sm:$0xff]
        %v6684 = vld [vmem:[%s268 + $0xf38] sm:$0xff]
        %v6685 = vld [vmem:[%s268 + $0xf40] sm:$0xff]
        %v6686 = vld [vmem:[%s268 + $0xf48] sm:$0xff]
        %v6687 = vld [vmem:[%s268 + $0xf50] sm:$0xff]
        %v6688 = vld [vmem:[%s268 + $0xf58] sm:$0xff]
        %v6689 = vld [vmem:[%s268 + $0xf60] sm:$0xff]
        %v6690 = vld [vmem:[%s268 + $0xf68] sm:$0xff]
        %v6691 = vld [vmem:[%s268 + $0xf70] sm:$0xff]
        %v6692 = vld [vmem:[%s268 + $0xf78] sm:$0xff]
        %v6693 = vld [vmem:[%s268 + $0xf80] sm:$0xff]
        %v6694 = vld [vmem:[%s268 + $0xf88] sm:$0xff]
        %v6695 = vld [vmem:[%s268 + $0xf90] sm:$0xff]
        %v6696 = vld [vmem:[%s268 + $0xf98] sm:$0xff]
        %v6697 = vld [vmem:[%s268 + $0xfa0] sm:$0xff]
        %v6698 = vld [vmem:[%s268 + $0xfa8] sm:$0xff]
        %v6699 = vld [vmem:[%s268 + $0xfb0] sm:$0xff]
        %v6700 = vld [vmem:[%s268 + $0xfb8] sm:$0xff]
        %v6701 = vld [vmem:[%s268 + $0xfc0] sm:$0xff]
        %v6702 = vld [vmem:[%s268 + $0xfc8] sm:$0xff]
        %v6703 = vld [vmem:[%s268 + $0xfd0] sm:$0xff]
        %v6704 = vld [vmem:[%s268 + $0xfd8] sm:$0xff]
        %v6705 = vld [vmem:[%s268 + $0xfe0] sm:$0xff]
        %v6706 = vld [vmem:[%s268 + $0xfe8] sm:$0xff]
        %v6707 = vld [vmem:[%s268 + $0xff0] sm:$0xff]
        %v6708 = vld [vmem:[%s268 + $0xff8] sm:$0xff]
        %v6723 = vunpack.c.l.b16 %v6631
        %v6724 = vunpack.c.h.b16 %v6631
        %v6725 = vunpack.c.l.b16 %v6632
        %v6726 = vunpack.c.h.b16 %v6632
        %v6727 = vunpack.c.l.b16 %v6633
        %v6728 = vunpack.c.h.b16 %v6633
        %v6729 = vunpack.c.l.b16 %v6634
        %v6730 = vunpack.c.h.b16 %v6634
        %v6731 = vunpack.c.l.b16 %v6635
        %v6732 = vunpack.c.h.b16 %v6635
        %v6733 = vunpack.c.l.b16 %v6636
        %v6734 = vunpack.c.h.b16 %v6636
        %v6735 = vunpack.c.l.b16 %v6637
        %v6736 = vunpack.c.h.b16 %v6637
        %v6737 = vunpack.c.l.b16 %v6638
        %v6738 = vunpack.c.h.b16 %v6638
        %v6739 = vunpack.c.l.b16 %v6639
        %v6740 = vunpack.c.h.b16 %v6639
        %v6741 = vunpack.c.l.b16 %v6640
        %v6742 = vunpack.c.h.b16 %v6640
        %v6743 = vunpack.c.l.b16 %v6641
        %v6744 = vunpack.c.h.b16 %v6641
        %v6745 = vunpack.c.l.b16 %v6642
        %v6746 = vunpack.c.h.b16 %v6642
        %v6747 = vunpack.c.l.b16 %v6643
        %v6748 = vunpack.c.h.b16 %v6643
        %v6749 = vunpack.c.l.b16 %v6644
        %v6750 = vunpack.c.h.b16 %v6644
        %v6751 = vpack.c.b16 %v6727, %v6723
        %v6752 = vpack.c.b16 %v6728, %v6724
        %v6753 = vpack.c.b16 %v6729, %v6725
        %v6754 = vpack.c.b16 %v6730, %v6726
        %v6755 = vpack.c.b16 %v6735, %v6731
        %v6756 = vpack.c.b16 %v6736, %v6732
        %v6757 = vpack.c.b16 %v6737, %v6733
        %v6758 = vpack.c.b16 %v6738, %v6734
        %v6759 = vpack.c.b16 %v6743, %v6739
        %v6760 = vpack.c.b16 %v6744, %v6740
        %v6761 = vpack.c.b16 %v6745, %v6741
        %v6762 = vpack.c.b16 %v6746, %v6742
        %v6763 = vpack.c.b16 %v6747, %v6747
        %v6764 = vpack.c.b16 %v6748, %v6748
        %v6765 = vpack.c.b16 %v6749, %v6749
        %v6766 = vpack.c.b16 %v6750, %v6750
        %v6847 = vunpack.c.l.b16 %v6645
        %v6848 = vunpack.c.h.b16 %v6645
        %v6849 = vunpack.c.l.b16 %v6646
        %v6850 = vunpack.c.h.b16 %v6646
        %v6851 = vunpack.c.l.b16 %v6647
        %v6852 = vunpack.c.h.b16 %v6647
        %v6853 = vunpack.c.l.b16 %v6648
        %v6854 = vunpack.c.h.b16 %v6648
        %v6855 = vunpack.c.l.b16 %v6649
        %v6856 = vunpack.c.h.b16 %v6649
        %v6857 = vunpack.c.l.b16 %v6650
        %v6858 = vunpack.c.h.b16 %v6650
        %v6859 = vunpack.c.l.b16 %v6651
        %v6860 = vunpack.c.h.b16 %v6651
        %v6861 = vunpack.c.l.b16 %v6652
        %v6862 = vunpack.c.h.b16 %v6652
        %v6863 = vunpack.c.l.b16 %v6653
        %v6864 = vunpack.c.h.b16 %v6653
        %v6865 = vunpack.c.l.b16 %v6654
        %v6866 = vunpack.c.h.b16 %v6654
        %v6867 = vunpack.c.l.b16 %v6655
        %v6868 = vunpack.c.h.b16 %v6655
        %v6869 = vunpack.c.l.b16 %v6656
        %v6870 = vunpack.c.h.b16 %v6656
        %v6871 = vunpack.c.l.b16 %v6657
        %v6872 = vunpack.c.h.b16 %v6657
        %v6873 = vunpack.c.l.b16 %v6658
        %v6874 = vunpack.c.h.b16 %v6658
        %v6875 = vunpack.c.l.b16 %v6659
        %v6876 = vunpack.c.h.b16 %v6659
        %v6877 = vunpack.c.l.b16 %v6660
        %v6878 = vunpack.c.h.b16 %v6660
        %v6879 = vunpack.c.l.b16 %v6661
        %v6880 = vunpack.c.h.b16 %v6661
        %v6881 = vunpack.c.l.b16 %v6662
        %v6882 = vunpack.c.h.b16 %v6662
        %v6883 = vunpack.c.l.b16 %v6663
        %v6884 = vunpack.c.h.b16 %v6663
        %v6885 = vunpack.c.l.b16 %v6664
        %v6886 = vunpack.c.h.b16 %v6664
        %v6887 = vunpack.c.l.b16 %v6665
        %v6888 = vunpack.c.h.b16 %v6665
        %v6889 = vunpack.c.l.b16 %v6666
        %v6890 = vunpack.c.h.b16 %v6666
        %v6891 = vunpack.c.l.b16 %v6667
        %v6892 = vunpack.c.h.b16 %v6667
        %v6893 = vunpack.c.l.b16 %v6668
        %v6894 = vunpack.c.h.b16 %v6668
        %v6895 = vunpack.c.l.b16 %v6669
        %v6896 = vunpack.c.h.b16 %v6669
        %v6897 = vunpack.c.l.b16 %v6670
        %v6898 = vunpack.c.h.b16 %v6670
        %v6899 = vunpack.c.l.b16 %v6671
        %v6900 = vunpack.c.h.b16 %v6671
        %v6901 = vunpack.c.l.b16 %v6672
        %v6902 = vunpack.c.h.b16 %v6672
        %v6903 = vunpack.c.l.b16 %v6673
        %v6904 = vunpack.c.h.b16 %v6673
        %v6905 = vunpack.c.l.b16 %v6674
        %v6906 = vunpack.c.h.b16 %v6674
        %v6907 = vunpack.c.l.b16 %v6675
        %v6908 = vunpack.c.h.b16 %v6675
        %v6909 = vunpack.c.l.b16 %v6676
        %v6910 = vunpack.c.h.b16 %v6676
        %v6911 = vunpack.c.l.b16 %v6677
        %v6912 = vunpack.c.h.b16 %v6677
        %v6913 = vunpack.c.l.b16 %v6678
        %v6914 = vunpack.c.h.b16 %v6678
        %v6915 = vunpack.c.l.b16 %v6679
        %v6916 = vunpack.c.h.b16 %v6679
        %v6917 = vunpack.c.l.b16 %v6680
        %v6918 = vunpack.c.h.b16 %v6680
        %v6919 = vunpack.c.l.b16 %v6681
        %v6920 = vunpack.c.h.b16 %v6681
        %v6921 = vunpack.c.l.b16 %v6682
        %v6922 = vunpack.c.h.b16 %v6682
        %v6923 = vunpack.c.l.b16 %v6683
        %v6924 = vunpack.c.h.b16 %v6683
        %v6925 = vunpack.c.l.b16 %v6684
        %v6926 = vunpack.c.h.b16 %v6684
        %v6927 = vunpack.c.l.b16 %v6685
        %v6928 = vunpack.c.h.b16 %v6685
        %v6929 = vunpack.c.l.b16 %v6686
        %v6930 = vunpack.c.h.b16 %v6686
        %v6931 = vunpack.c.l.b16 %v6687
        %v6932 = vunpack.c.h.b16 %v6687
        %v6933 = vunpack.c.l.b16 %v6688
        %v6934 = vunpack.c.h.b16 %v6688
        %v6935 = vunpack.c.l.b16 %v6689
        %v6936 = vunpack.c.h.b16 %v6689
        %v6937 = vunpack.c.l.b16 %v6690
        %v6938 = vunpack.c.h.b16 %v6690
        %v6939 = vunpack.c.l.b16 %v6691
        %v6940 = vunpack.c.h.b16 %v6691
        %v6941 = vunpack.c.l.b16 %v6692
        %v6942 = vunpack.c.h.b16 %v6692
        %v6943 = vunpack.c.l.b16 %v6693
        %v6944 = vunpack.c.h.b16 %v6693
        %v6945 = vunpack.c.l.b16 %v6694
        %v6946 = vunpack.c.h.b16 %v6694
        %v6947 = vunpack.c.l.b16 %v6695
        %v6948 = vunpack.c.h.b16 %v6695
        %v6949 = vunpack.c.l.b16 %v6696
        %v6950 = vunpack.c.h.b16 %v6696
        %v6951 = vunpack.c.l.b16 %v6697
        %v6952 = vunpack.c.h.b16 %v6697
        %v6953 = vunpack.c.l.b16 %v6698
        %v6954 = vunpack.c.h.b16 %v6698
        %v6955 = vunpack.c.l.b16 %v6699
        %v6956 = vunpack.c.h.b16 %v6699
        %v6957 = vunpack.c.l.b16 %v6700
        %v6958 = vunpack.c.h.b16 %v6700
        %v6959 = vunpack.c.l.b16 %v6701
        %v6960 = vunpack.c.h.b16 %v6701
        %v6961 = vunpack.c.l.b16 %v6702
        %v6962 = vunpack.c.h.b16 %v6702
        %v6963 = vunpack.c.l.b16 %v6703
        %v6964 = vunpack.c.h.b16 %v6703
        %v6965 = vunpack.c.l.b16 %v6704
        %v6966 = vunpack.c.h.b16 %v6704
        %v6967 = vunpack.c.l.b16 %v6705
        %v6968 = vunpack.c.h.b16 %v6705
        %v6969 = vunpack.c.l.b16 %v6706
        %v6970 = vunpack.c.h.b16 %v6706
        %v6971 = vunpack.c.l.b16 %v6707
        %v6972 = vunpack.c.h.b16 %v6707
        %v6973 = vunpack.c.l.b16 %v6708
        %v6974 = vunpack.c.h.b16 %v6708
        %v6975 = vpack.c.b16 %v6849, %v6847
        %v6976 = vpack.c.b16 %v6850, %v6848
        %v6977 = vpack.c.b16 %v6853, %v6851
        %v6978 = vpack.c.b16 %v6854, %v6852
        %v6979 = vpack.c.b16 %v6857, %v6855
        %v6980 = vpack.c.b16 %v6858, %v6856
        %v6981 = vpack.c.b16 %v6861, %v6859
        %v6982 = vpack.c.b16 %v6862, %v6860
        %v6983 = vpack.c.b16 %v6865, %v6863
        %v6984 = vpack.c.b16 %v6866, %v6864
        %v6985 = vpack.c.b16 %v6869, %v6867
        %v6986 = vpack.c.b16 %v6870, %v6868
        %v6987 = vpack.c.b16 %v6873, %v6871
        %v6988 = vpack.c.b16 %v6874, %v6872
        %v6989 = vpack.c.b16 %v6877, %v6875
        %v6990 = vpack.c.b16 %v6878, %v6876
        %v6991 = vpack.c.b16 %v6881, %v6879
        %v6992 = vpack.c.b16 %v6882, %v6880
        %v6993 = vpack.c.b16 %v6885, %v6883
        %v6994 = vpack.c.b16 %v6886, %v6884
        %v6995 = vpack.c.b16 %v6889, %v6887
        %v6996 = vpack.c.b16 %v6890, %v6888
        %v6997 = vpack.c.b16 %v6893, %v6891
        %v6998 = vpack.c.b16 %v6894, %v6892
        %v6999 = vpack.c.b16 %v6897, %v6895
        %v7000 = vpack.c.b16 %v6898, %v6896
        %v7001 = vpack.c.b16 %v6901, %v6899
        %v7002 = vpack.c.b16 %v6902, %v6900
        %v7003 = vpack.c.b16 %v6905, %v6903
        %v7004 = vpack.c.b16 %v6906, %v6904
        %v7005 = vpack.c.b16 %v6909, %v6907
        %v7006 = vpack.c.b16 %v6910, %v6908
        %v7007 = vpack.c.b16 %v6913, %v6911
        %v7008 = vpack.c.b16 %v6914, %v6912
        %v7009 = vpack.c.b16 %v6917, %v6915
        %v7010 = vpack.c.b16 %v6918, %v6916
        %v7011 = vpack.c.b16 %v6921, %v6919
        %v7012 = vpack.c.b16 %v6922, %v6920
        %v7013 = vpack.c.b16 %v6925, %v6923
        %v7014 = vpack.c.b16 %v6926, %v6924
        %v7015 = vpack.c.b16 %v6929, %v6927
        %v7016 = vpack.c.b16 %v6930, %v6928
        %v7017 = vpack.c.b16 %v6933, %v6931
        %v7018 = vpack.c.b16 %v6934, %v6932
        %v7019 = vpack.c.b16 %v6937, %v6935
        %v7020 = vpack.c.b16 %v6938, %v6936
        %v7021 = vpack.c.b16 %v6941, %v6939
        %v7022 = vpack.c.b16 %v6942, %v6940
        %v7023 = vpack.c.b16 %v6945, %v6943
        %v7024 = vpack.c.b16 %v6946, %v6944
        %v7025 = vpack.c.b16 %v6949, %v6947
        %v7026 = vpack.c.b16 %v6950, %v6948
        %v7027 = vpack.c.b16 %v6953, %v6951
        %v7028 = vpack.c.b16 %v6954, %v6952
        %v7029 = vpack.c.b16 %v6957, %v6955
        %v7030 = vpack.c.b16 %v6958, %v6956
        %v7031 = vpack.c.b16 %v6961, %v6959
        %v7032 = vpack.c.b16 %v6962, %v6960
        %v7033 = vpack.c.b16 %v6965, %v6963
        %v7034 = vpack.c.b16 %v6966, %v6964
        %v7035 = vpack.c.b16 %v6969, %v6967
        %v7036 = vpack.c.b16 %v6970, %v6968
        %v7037 = vpack.c.b16 %v6973, %v6971
        %v7038 = vpack.c.b16 %v6974, %v6972
        %7103 = vmatprep.subr.bf16.mxu0 %v6976
        %7104 = vmatpush1.bf16.msra.mxu0 %v6975
        %7105 = vmatprep.subr.bf16.mxu0 %v6978
        %7106 = vmatpush1.bf16.msra.mxu0 %v6977
        %7107 = vmatprep.subr.bf16.mxu0 %v6980
        %7108 = vmatpush1.bf16.msra.mxu0 %v6979
        %7109 = vmatprep.subr.bf16.mxu0 %v6982
        %7110 = vmatpush1.bf16.msra.mxu0 %v6981
        %7111 = vmatprep.subr.bf16.mxu0 %v6984
        %7112 = vmatpush1.bf16.msra.mxu0 %v6983
        %7113 = vmatprep.subr.bf16.mxu0 %v6986
        %7114 = vmatpush1.bf16.msra.mxu0 %v6985
        %7115 = vmatprep.subr.bf16.mxu0 %v6988
        %7116 = vmatpush1.bf16.msra.mxu0 %v6987
        %7117 = vmatprep.subr.bf16.mxu0 %v6990
        %7118 = vmatpush1.bf16.msra.mxu0 %v6989
        %7119 = vmatprep.subr.bf16.mxu0 %v6992
        %7120 = vmatpush1.bf16.msra.mxu0 %v6991
        %7121 = vmatprep.subr.bf16.mxu0 %v6994
        %7122 = vmatpush1.bf16.msra.mxu0 %v6993
        %7123 = vmatprep.subr.bf16.mxu0 %v6996
        %7124 = vmatpush1.bf16.msra.mxu0 %v6995
        %7125 = vmatprep.subr.bf16.mxu0 %v6998
        %7126 = vmatpush1.bf16.msra.mxu0 %v6997
        %7127 = vmatprep.subr.bf16.mxu0 %v7000
        %7128 = vmatpush1.bf16.msra.mxu0 %v6999
        %7129 = vmatprep.subr.bf16.mxu0 %v7002
        %7130 = vmatpush1.bf16.msra.mxu0 %v7001
        %7131 = vmatprep.subr.bf16.mxu0 %v7004
        %7132 = vmatpush1.bf16.msra.mxu0 %v7003
        %7133 = vmatprep.subr.bf16.mxu0 %v7006
        %7134 = vmatpush1.bf16.msra.mxu0 %v7005
        %7135 = vmatprep.mubr.bf16.mxu0 %v6752
        %7136 = vmatmul.mubr.bf16.gmra.mrb[0].mxu0 %v6751
        %v7137 = vpop.f32.mrb[0].mxu0
        %v7138 = vadd.f32 0.0, %v7137
        %v7139 = vpop.f32.mrb[0].mxu0
        %v7140 = vadd.f32 0.0, %v7139
        %v7141 = vpop.f32.mrb[0].mxu0
        %v7142 = vadd.f32 0.0, %v7141
        %v7143 = vpop.f32.mrb[0].mxu0
        %v7144 = vadd.f32 0.0, %v7143
        %7145 = vmatprep.mubr.bf16.mxu0 %v6756
        %7146 = vmatmul.mubr.bf16.gmra.mrb[0].mxu0 %v6755
        %v7147 = vpop.f32.mrb[0].mxu0
        %v7148 = vadd.f32 0.0, %v7147
        %v7149 = vpop.f32.mrb[0].mxu0
        %v7150 = vadd.f32 0.0, %v7149
        %v7151 = vpop.f32.mrb[0].mxu0
        %v7152 = vadd.f32 0.0, %v7151
        %v7153 = vpop.f32.mrb[0].mxu0
        %v7154 = vadd.f32 0.0, %v7153
        %7155 = vmatprep.mubr.bf16.mxu0 %v6760
        %7156 = vmatmul.mubr.bf16.gmra.mrb[0].mxu0 %v6759
        %v7157 = vpop.f32.mrb[0].mxu0
        %v7158 = vadd.f32 0.0, %v7157
        %v7159 = vpop.f32.mrb[0].mxu0
        %v7160 = vadd.f32 0.0, %v7159
        %v7161 = vpop.f32.mrb[0].mxu0
        %v7162 = vadd.f32 0.0, %v7161
        %v7163 = vpop.f32.mrb[0].mxu0
        %v7164 = vadd.f32 0.0, %v7163
        %7165 = vmatprep.mubr.bf16.mxu0 %v6764
        %7166 = vmatmul.mubr.bf16.gmra.mrb[0].mxu0 %v6763
        %v7167 = vpop.f32.mrb[0].mxu0
        %v7168 = vadd.f32 0.0, %v7167
        %v7169 = vpop.f32.mrb[0].mxu0
        %v7170 = vadd.f32 0.0, %v7169
        %v7171 = vpop.f32.mrb[0].mxu0
        %v7172 = vpop.f32.mrb[0].mxu0
        %7173 = vdwg.mxu0
        %7174 = vmatprep.subr.bf16.mxu0 %v7008
        %7175 = vmatpush1.bf16.msra.mxu0 %v7007
        %7176 = vmatprep.subr.bf16.mxu0 %v7010
        %7177 = vmatpush1.bf16.msra.mxu0 %v7009
        %7178 = vmatprep.subr.bf16.mxu0 %v7012
        %7179 = vmatpush1.bf16.msra.mxu0 %v7011
        %7180 = vmatprep.subr.bf16.mxu0 %v7014
        %7181 = vmatpush1.bf16.msra.mxu0 %v7013
        %7182 = vmatprep.subr.bf16.mxu0 %v7016
        %7183 = vmatpush1.bf16.msra.mxu0 %v7015
        %7184 = vmatprep.subr.bf16.mxu0 %v7018
        %7185 = vmatpush1.bf16.msra.mxu0 %v7017
        %7186 = vmatprep.subr.bf16.mxu0 %v7020
        %7187 = vmatpush1.bf16.msra.mxu0 %v7019
        %7188 = vmatprep.subr.bf16.mxu0 %v7022
        %7189 = vmatpush1.bf16.msra.mxu0 %v7021
        %7190 = vmatprep.subr.bf16.mxu0 %v7024
        %7191 = vmatpush1.bf16.msra.mxu0 %v7023
        %7192 = vmatprep.subr.bf16.mxu0 %v7026
        %7193 = vmatpush1.bf16.msra.mxu0 %v7025
        %7194 = vmatprep.subr.bf16.mxu0 %v7028
        %7195 = vmatpush1.bf16.msra.mxu0 %v7027
        %7196 = vmatprep.subr.bf16.mxu0 %v7030
        %7197 = vmatpush1.bf16.msra.mxu0 %v7029
        %7198 = vmatprep.subr.bf16.mxu0 %v7032
        %7199 = vmatpush1.bf16.msra.mxu0 %v7031
        %7200 = vmatprep.subr.bf16.mxu0 %v7034
        %7201 = vmatpush1.bf16.msra.mxu0 %v7033
        %7202 = vmatprep.subr.bf16.mxu0 %v7036
        %7203 = vmatpush1.bf16.msra.mxu0 %v7035
        %7204 = vmatprep.subr.bf16.mxu0 %v7038
        %7205 = vmatpush1.bf16.msra.mxu0 %v7037
        %7206 = vmatprep.mubr.bf16.mxu0 %v6754
        %7207 = vmatmul.mubr.bf16.gmra.mrb[0].mxu0 %v6753
        %v7208 = vpop.f32.mrb[0].mxu0
        %v7209 = vadd.f32 %v7138, %v7208
        %v7210 = vpop.f32.mrb[0].mxu0
        %v7211 = vadd.f32 %v7140, %v7210
        %v7212 = vpop.f32.mrb[0].mxu0
        %v7213 = vadd.f32 %v7142, %v7212
        %v7214 = vpop.f32.mrb[0].mxu0
        %v7215 = vadd.f32 %v7144, %v7214
        %7216 = vmatprep.mubr.bf16.mxu0 %v6758
        %7217 = vmatmul.mubr.bf16.gmra.mrb[0].mxu0 %v6757
        %v7218 = vpop.f32.mrb[0].mxu0
        %v7219 = vadd.f32 %v7148, %v7218
        %v7220 = vpop.f32.mrb[0].mxu0
        %v7221 = vadd.f32 %v7150, %v7220
        %v7222 = vpop.f32.mrb[0].mxu0
        %v7223 = vadd.f32 %v7152, %v7222
        %v7224 = vpop.f32.mrb[0].mxu0
        %v7225 = vadd.f32 %v7154, %v7224
        %7226 = vmatprep.mubr.bf16.mxu0 %v6762
        %7227 = vmatmul.mubr.bf16.gmra.mrb[0].mxu0 %v6761
        %v7228 = vpop.f32.mrb[0].mxu0
        %v7229 = vadd.f32 %v7158, %v7228
        %v7230 = vpop.f32.mrb[0].mxu0
        %v7231 = vadd.f32 %v7160, %v7230
        %v7232 = vpop.f32.mrb[0].mxu0
        %v7233 = vadd.f32 %v7162, %v7232
        %v7234 = vpop.f32.mrb[0].mxu0
        %v7235 = vadd.f32 %v7164, %v7234
        %7236 = vmatprep.mubr.bf16.mxu0 %v6766
        %7237 = vmatmul.mubr.bf16.gmra.mrb[0].mxu0 %v6765
        %v7238 = vpop.f32.mrb[0].mxu0
        %v7239 = vadd.f32 %v7168, %v7238
        %v7240 = vpop.f32.mrb[0].mxu0
        %v7241 = vadd.f32 %v7170, %v7240
        %v7242 = vpop.f32.mrb[0].mxu0
        %v7243 = vpop.f32.mrb[0].mxu0
        %7244 = vdwg.mxu0
        %v7245 = vadd.f32 %v6617, %v7209
        %v7246 = vadd.f32 %v6618, %v7211
        %v7247 = vadd.f32 %v6619, %v7213
        %v7248 = vadd.f32 %v6620, %v7215
        %v7249 = vadd.f32 %v6621, %v7219
        %v7250 = vadd.f32 %v6622, %v7221
        %v7251 = vadd.f32 %v6623, %v7223
        %v7252 = vadd.f32 %v6624, %v7225
        %v7253 = vadd.f32 %v6625, %v7229
        %v7254 = vadd.f32 %v6626, %v7231
        %v7255 = vadd.f32 %v6627, %v7233
        %v7256 = vadd.f32 %v6628, %v7235
        %v7257 = vadd.f32 %v6629, %v7239
        %v7258 = vadd.f32 %v6630, %v7241
        %v7259 = vld [vmem:[#allocation3 + $0x80] sm:$0xff]
        %v7260 = vld [vmem:[#allocation3 + $0x88] sm:$0xff]
        %v7261 = vld [vmem:[#allocation3 + $0x110] sm:$0xff]
        %v7262 = vld [vmem:[#allocation3 + $0x118] sm:$0xff]
        %v7263 = vld [vmem:[#allocation3 + $0x1a0] sm:$0xff]
        %v7264 = vld [vmem:[#allocation3 + $0x1a8] sm:$0xff]
        %v7265 = vld [vmem:[#allocation3 + $0x230] sm:$0xff]
        %v7266 = vld [vmem:[#allocation3 + $0x238] sm:$0xff]
        %v7267 = vld [vmem:[#allocation3 + $0x2c0] sm:$0xff]
        %v7268 = vld [vmem:[#allocation3 + $0x2c8] sm:$0xff]
        %v7269 = vld [vmem:[#allocation3 + $0x350] sm:$0xff]
        %v7270 = vld [vmem:[#allocation3 + $0x358] sm:$0xff]
        %v7271 = vld [vmem:[#allocation3 + $0x3e0] sm:$0x11]
        %v7272 = vld [vmem:[#allocation3 + $0x3e8] sm:$0x11]
        %v7273 = vld [vmem:[%s268 + $0x1000] sm:$0xff]
        %v7274 = vld [vmem:[%s268 + $0x1008] sm:$0xff]
        %v7275 = vld [vmem:[%s268 + $0x1010] sm:$0xff]
        %v7276 = vld [vmem:[%s268 + $0x1018] sm:$0xff]
        %v7277 = vld [vmem:[%s268 + $0x1020] sm:$0xff]
        %v7278 = vld [vmem:[%s268 + $0x1028] sm:$0xff]
        %v7279 = vld [vmem:[%s268 + $0x1030] sm:$0xff]
        %v7280 = vld [vmem:[%s268 + $0x1038] sm:$0xff]
        %v7281 = vld [vmem:[%s268 + $0x1040] sm:$0xff]
        %v7282 = vld [vmem:[%s268 + $0x1048] sm:$0xff]
        %v7283 = vld [vmem:[%s268 + $0x1050] sm:$0xff]
        %v7284 = vld [vmem:[%s268 + $0x1058] sm:$0xff]
        %v7285 = vld [vmem:[%s268 + $0x1060] sm:$0xff]
        %v7286 = vld [vmem:[%s268 + $0x1068] sm:$0xff]
        %v7287 = vld [vmem:[%s268 + $0x1070] sm:$0xff]
        %v7288 = vld [vmem:[%s268 + $0x1078] sm:$0xff]
        %v7289 = vld [vmem:[%s268 + $0x1080] sm:$0xff]
        %v7290 = vld [vmem:[%s268 + $0x1088] sm:$0xff]
        %v7291 = vld [vmem:[%s268 + $0x1090] sm:$0xff]
        %v7292 = vld [vmem:[%s268 + $0x1098] sm:$0xff]
        %v7293 = vld [vmem:[%s268 + $0x10a0] sm:$0xff]
        %v7294 = vld [vmem:[%s268 + $0x10a8] sm:$0xff]
        %v7295 = vld [vmem:[%s268 + $0x10b0] sm:$0xff]
        %v7296 = vld [vmem:[%s268 + $0x10b8] sm:$0xff]
        %v7297 = vld [vmem:[%s268 + $0x10c0] sm:$0xff]
        %v7298 = vld [vmem:[%s268 + $0x10c8] sm:$0xff]
        %v7299 = vld [vmem:[%s268 + $0x10d0] sm:$0xff]
        %v7300 = vld [vmem:[%s268 + $0x10d8] sm:$0xff]
        %v7301 = vld [vmem:[%s268 + $0x10e0] sm:$0xff]
        %v7302 = vld [vmem:[%s268 + $0x10e8] sm:$0xff]
        %v7303 = vld [vmem:[%s268 + $0x10f0] sm:$0xff]
        %v7304 = vld [vmem:[%s268 + $0x10f8] sm:$0xff]
        %v7305 = vld [vmem:[%s268 + $0x1100] sm:$0xff]
        %v7306 = vld [vmem:[%s268 + $0x1108] sm:$0xff]
        %v7307 = vld [vmem:[%s268 + $0x1110] sm:$0xff]
        %v7308 = vld [vmem:[%s268 + $0x1118] sm:$0xff]
        %v7309 = vld [vmem:[%s268 + $0x1120] sm:$0xff]
        %v7310 = vld [vmem:[%s268 + $0x1128] sm:$0xff]
        %v7311 = vld [vmem:[%s268 + $0x1130] sm:$0xff]
        %v7312 = vld [vmem:[%s268 + $0x1138] sm:$0xff]
        %v7313 = vld [vmem:[%s268 + $0x1140] sm:$0xff]
        %v7314 = vld [vmem:[%s268 + $0x1148] sm:$0xff]
        %v7315 = vld [vmem:[%s268 + $0x1150] sm:$0xff]
        %v7316 = vld [vmem:[%s268 + $0x1158] sm:$0xff]
        %v7317 = vld [vmem:[%s268 + $0x1160] sm:$0xff]
        %v7318 = vld [vmem:[%s268 + $0x1168] sm:$0xff]
        %v7319 = vld [vmem:[%s268 + $0x1170] sm:$0xff]
        %v7320 = vld [vmem:[%s268 + $0x1178] sm:$0xff]
        %v7321 = vld [vmem:[%s268 + $0x1180] sm:$0xff]
        %v7322 = vld [vmem:[%s268 + $0x1188] sm:$0xff]
        %v7323 = vld [vmem:[%s268 + $0x1190] sm:$0xff]
        %v7324 = vld [vmem:[%s268 + $0x1198] sm:$0xff]
        %v7325 = vld [vmem:[%s268 + $0x11a0] sm:$0xff]
        %v7326 = vld [vmem:[%s268 + $0x11a8] sm:$0xff]
        %v7327 = vld [vmem:[%s268 + $0x11b0] sm:$0xff]
        %v7328 = vld [vmem:[%s268 + $0x11b8] sm:$0xff]
        %v7329 = vld [vmem:[%s268 + $0x11c0] sm:$0xff]
        %v7330 = vld [vmem:[%s268 + $0x11c8] sm:$0xff]
        %v7331 = vld [vmem:[%s268 + $0x11d0] sm:$0xff]
        %v7332 = vld [vmem:[%s268 + $0x11d8] sm:$0xff]
        %v7333 = vld [vmem:[%s268 + $0x11e0] sm:$0xff]
        %v7334 = vld [vmem:[%s268 + $0x11e8] sm:$0xff]
        %v7335 = vld [vmem:[%s268 + $0x11f0] sm:$0xff]
        %v7336 = vld [vmem:[%s268 + $0x11f8] sm:$0xff]
        %v7351 = vunpack.c.l.b16 %v7259
        %v7352 = vunpack.c.h.b16 %v7259
        %v7353 = vunpack.c.l.b16 %v7260
        %v7354 = vunpack.c.h.b16 %v7260
        %v7355 = vunpack.c.l.b16 %v7261
        %v7356 = vunpack.c.h.b16 %v7261
        %v7357 = vunpack.c.l.b16 %v7262
        %v7358 = vunpack.c.h.b16 %v7262
        %v7359 = vunpack.c.l.b16 %v7263
        %v7360 = vunpack.c.h.b16 %v7263
        %v7361 = vunpack.c.l.b16 %v7264
        %v7362 = vunpack.c.h.b16 %v7264
        %v7363 = vunpack.c.l.b16 %v7265
        %v7364 = vunpack.c.h.b16 %v7265
        %v7365 = vunpack.c.l.b16 %v7266
        %v7366 = vunpack.c.h.b16 %v7266
        %v7367 = vunpack.c.l.b16 %v7267
        %v7368 = vunpack.c.h.b16 %v7267
        %v7369 = vunpack.c.l.b16 %v7268
        %v7370 = vunpack.c.h.b16 %v7268
        %v7371 = vunpack.c.l.b16 %v7269
        %v7372 = vunpack.c.h.b16 %v7269
        %v7373 = vunpack.c.l.b16 %v7270
        %v7374 = vunpack.c.h.b16 %v7270
        %v7375 = vunpack.c.l.b16 %v7271
        %v7376 = vunpack.c.h.b16 %v7271
        %v7377 = vunpack.c.l.b16 %v7272
        %v7378 = vunpack.c.h.b16 %v7272
        %v7379 = vpack.c.b16 %v7355, %v7351
        %v7380 = vpack.c.b16 %v7356, %v7352
        %v7381 = vpack.c.b16 %v7357, %v7353
        %v7382 = vpack.c.b16 %v7358, %v7354
        %v7383 = vpack.c.b16 %v7363, %v7359
        %v7384 = vpack.c.b16 %v7364, %v7360
        %v7385 = vpack.c.b16 %v7365, %v7361
        %v7386 = vpack.c.b16 %v7366, %v7362
        %v7387 = vpack.c.b16 %v7371, %v7367
        %v7388 = vpack.c.b16 %v7372, %v7368
        %v7389 = vpack.c.b16 %v7373, %v7369
        %v7390 = vpack.c.b16 %v7374, %v7370
        %v7391 = vpack.c.b16 %v7375, %v7375
        %v7392 = vpack.c.b16 %v7376, %v7376
        %v7393 = vpack.c.b16 %v7377, %v7377
        %v7394 = vpack.c.b16 %v7378, %v7378
        %v7475 = vunpack.c.l.b16 %v7273
        %v7476 = vunpack.c.h.b16 %v7273
        %v7477 = vunpack.c.l.b16 %v7274
        %v7478 = vunpack.c.h.b16 %v7274
        %v7479 = vunpack.c.l.b16 %v7275
        %v7480 = vunpack.c.h.b16 %v7275
        %v7481 = vunpack.c.l.b16 %v7276
        %v7482 = vunpack.c.h.b16 %v7276
        %v7483 = vunpack.c.l.b16 %v7277
        %v7484 = vunpack.c.h.b16 %v7277
        %v7485 = vunpack.c.l.b16 %v7278
        %v7486 = vunpack.c.h.b16 %v7278
        %v7487 = vunpack.c.l.b16 %v7279
        %v7488 = vunpack.c.h.b16 %v7279
        %v7489 = vunpack.c.l.b16 %v7280
        %v7490 = vunpack.c.h.b16 %v7280
        %v7491 = vunpack.c.l.b16 %v7281
        %v7492 = vunpack.c.h.b16 %v7281
        %v7493 = vunpack.c.l.b16 %v7282
        %v7494 = vunpack.c.h.b16 %v7282
        %v7495 = vunpack.c.l.b16 %v7283
        %v7496 = vunpack.c.h.b16 %v7283
        %v7497 = vunpack.c.l.b16 %v7284
        %v7498 = vunpack.c.h.b16 %v7284
        %v7499 = vunpack.c.l.b16 %v7285
        %v7500 = vunpack.c.h.b16 %v7285
        %v7501 = vunpack.c.l.b16 %v7286
        %v7502 = vunpack.c.h.b16 %v7286
        %v7503 = vunpack.c.l.b16 %v7287
        %v7504 = vunpack.c.h.b16 %v7287
        %v7505 = vunpack.c.l.b16 %v7288
        %v7506 = vunpack.c.h.b16 %v7288
        %v7507 = vunpack.c.l.b16 %v7289
        %v7508 = vunpack.c.h.b16 %v7289
        %v7509 = vunpack.c.l.b16 %v7290
        %v7510 = vunpack.c.h.b16 %v7290
        %v7511 = vunpack.c.l.b16 %v7291
        %v7512 = vunpack.c.h.b16 %v7291
        %v7513 = vunpack.c.l.b16 %v7292
        %v7514 = vunpack.c.h.b16 %v7292
        %v7515 = vunpack.c.l.b16 %v7293
        %v7516 = vunpack.c.h.b16 %v7293
        %v7517 = vunpack.c.l.b16 %v7294
        %v7518 = vunpack.c.h.b16 %v7294
        %v7519 = vunpack.c.l.b16 %v7295
        %v7520 = vunpack.c.h.b16 %v7295
        %v7521 = vunpack.c.l.b16 %v7296
        %v7522 = vunpack.c.h.b16 %v7296
        %v7523 = vunpack.c.l.b16 %v7297
        %v7524 = vunpack.c.h.b16 %v7297
        %v7525 = vunpack.c.l.b16 %v7298
        %v7526 = vunpack.c.h.b16 %v7298
        %v7527 = vunpack.c.l.b16 %v7299
        %v7528 = vunpack.c.h.b16 %v7299
        %v7529 = vunpack.c.l.b16 %v7300
        %v7530 = vunpack.c.h.b16 %v7300
        %v7531 = vunpack.c.l.b16 %v7301
        %v7532 = vunpack.c.h.b16 %v7301
        %v7533 = vunpack.c.l.b16 %v7302
        %v7534 = vunpack.c.h.b16 %v7302
        %v7535 = vunpack.c.l.b16 %v7303
        %v7536 = vunpack.c.h.b16 %v7303
        %v7537 = vunpack.c.l.b16 %v7304
        %v7538 = vunpack.c.h.b16 %v7304
        %v7539 = vunpack.c.l.b16 %v7305
        %v7540 = vunpack.c.h.b16 %v7305
        %v7541 = vunpack.c.l.b16 %v7306
        %v7542 = vunpack.c.h.b16 %v7306
        %v7543 = vunpack.c.l.b16 %v7307
        %v7544 = vunpack.c.h.b16 %v7307
        %v7545 = vunpack.c.l.b16 %v7308
        %v7546 = vunpack.c.h.b16 %v7308
        %v7547 = vunpack.c.l.b16 %v7309
        %v7548 = vunpack.c.h.b16 %v7309
        %v7549 = vunpack.c.l.b16 %v7310
        %v7550 = vunpack.c.h.b16 %v7310
        %v7551 = vunpack.c.l.b16 %v7311
        %v7552 = vunpack.c.h.b16 %v7311
        %v7553 = vunpack.c.l.b16 %v7312
        %v7554 = vunpack.c.h.b16 %v7312
        %v7555 = vunpack.c.l.b16 %v7313
        %v7556 = vunpack.c.h.b16 %v7313
        %v7557 = vunpack.c.l.b16 %v7314
        %v7558 = vunpack.c.h.b16 %v7314
        %v7559 = vunpack.c.l.b16 %v7315
        %v7560 = vunpack.c.h.b16 %v7315
        %v7561 = vunpack.c.l.b16 %v7316
        %v7562 = vunpack.c.h.b16 %v7316
        %v7563 = vunpack.c.l.b16 %v7317
        %v7564 = vunpack.c.h.b16 %v7317
        %v7565 = vunpack.c.l.b16 %v7318
        %v7566 = vunpack.c.h.b16 %v7318
        %v7567 = vunpack.c.l.b16 %v7319
        %v7568 = vunpack.c.h.b16 %v7319
        %v7569 = vunpack.c.l.b16 %v7320
        %v7570 = vunpack.c.h.b16 %v7320
        %v7571 = vunpack.c.l.b16 %v7321
        %v7572 = vunpack.c.h.b16 %v7321
        %v7573 = vunpack.c.l.b16 %v7322
        %v7574 = vunpack.c.h.b16 %v7322
        %v7575 = vunpack.c.l.b16 %v7323
        %v7576 = vunpack.c.h.b16 %v7323
        %v7577 = vunpack.c.l.b16 %v7324
        %v7578 = vunpack.c.h.b16 %v7324
        %v7579 = vunpack.c.l.b16 %v7325
        %v7580 = vunpack.c.h.b16 %v7325
        %v7581 = vunpack.c.l.b16 %v7326
        %v7582 = vunpack.c.h.b16 %v7326
        %v7583 = vunpack.c.l.b16 %v7327
        %v7584 = vunpack.c.h.b16 %v7327
        %v7585 = vunpack.c.l.b16 %v7328
        %v7586 = vunpack.c.h.b16 %v7328
        %v7587 = vunpack.c.l.b16 %v7329
        %v7588 = vunpack.c.h.b16 %v7329
        %v7589 = vunpack.c.l.b16 %v7330
        %v7590 = vunpack.c.h.b16 %v7330
        %v7591 = vunpack.c.l.b16 %v7331
        %v7592 = vunpack.c.h.b16 %v7331
        %v7593 = vunpack.c.l.b16 %v7332
        %v7594 = vunpack.c.h.b16 %v7332
        %v7595 = vunpack.c.l.b16 %v7333
        %v7596 = vunpack.c.h.b16 %v7333
        %v7597 = vunpack.c.l.b16 %v7334
        %v7598 = vunpack.c.h.b16 %v7334
        %v7599 = vunpack.c.l.b16 %v7335
        %v7600 = vunpack.c.h.b16 %v7335
        %v7601 = vunpack.c.l.b16 %v7336
        %v7602 = vunpack.c.h.b16 %v7336
        %v7603 = vpack.c.b16 %v7477, %v7475
        %v7604 = vpack.c.b16 %v7478, %v7476
        %v7605 = vpack.c.b16 %v7481, %v7479
        %v7606 = vpack.c.b16 %v7482, %v7480
        %v7607 = vpack.c.b16 %v7485, %v7483
        %v7608 = vpack.c.b16 %v7486, %v7484
        %v7609 = vpack.c.b16 %v7489, %v7487
        %v7610 = vpack.c.b16 %v7490, %v7488
        %v7611 = vpack.c.b16 %v7493, %v7491
        %v7612 = vpack.c.b16 %v7494, %v7492
        %v7613 = vpack.c.b16 %v7497, %v7495
        %v7614 = vpack.c.b16 %v7498, %v7496
        %v7615 = vpack.c.b16 %v7501, %v7499
        %v7616 = vpack.c.b16 %v7502, %v7500
        %v7617 = vpack.c.b16 %v7505, %v7503
        %v7618 = vpack.c.b16 %v7506, %v7504
        %v7619 = vpack.c.b16 %v7509, %v7507
        %v7620 = vpack.c.b16 %v7510, %v7508
        %v7621 = vpack.c.b16 %v7513, %v7511
        %v7622 = vpack.c.b16 %v7514, %v7512
        %v7623 = vpack.c.b16 %v7517, %v7515
        %v7624 = vpack.c.b16 %v7518, %v7516
        %v7625 = vpack.c.b16 %v7521, %v7519
        %v7626 = vpack.c.b16 %v7522, %v7520
        %v7627 = vpack.c.b16 %v7525, %v7523
        %v7628 = vpack.c.b16 %v7526, %v7524
        %v7629 = vpack.c.b16 %v7529, %v7527
        %v7630 = vpack.c.b16 %v7530, %v7528
        %v7631 = vpack.c.b16 %v7533, %v7531
        %v7632 = vpack.c.b16 %v7534, %v7532
        %v7633 = vpack.c.b16 %v7537, %v7535
        %v7634 = vpack.c.b16 %v7538, %v7536
        %v7635 = vpack.c.b16 %v7541, %v7539
        %v7636 = vpack.c.b16 %v7542, %v7540
        %v7637 = vpack.c.b16 %v7545, %v7543
        %v7638 = vpack.c.b16 %v7546, %v7544
        %v7639 = vpack.c.b16 %v7549, %v7547
        %v7640 = vpack.c.b16 %v7550, %v7548
        %v7641 = vpack.c.b16 %v7553, %v7551
        %v7642 = vpack.c.b16 %v7554, %v7552
        %v7643 = vpack.c.b16 %v7557, %v7555
        %v7644 = vpack.c.b16 %v7558, %v7556
        %v7645 = vpack.c.b16 %v7561, %v7559
        %v7646 = vpack.c.b16 %v7562, %v7560
        %v7647 = vpack.c.b16 %v7565, %v7563
        %v7648 = vpack.c.b16 %v7566, %v7564
        %v7649 = vpack.c.b16 %v7569, %v7567
        %v7650 = vpack.c.b16 %v7570, %v7568
        %v7651 = vpack.c.b16 %v7573, %v7571
        %v7652 = vpack.c.b16 %v7574, %v7572
        %v7653 = vpack.c.b16 %v7577, %v7575
        %v7654 = vpack.c.b16 %v7578, %v7576
        %v7655 = vpack.c.b16 %v7581, %v7579
        %v7656 = vpack.c.b16 %v7582, %v7580
        %v7657 = vpack.c.b16 %v7585, %v7583
        %v7658 = vpack.c.b16 %v7586, %v7584
        %v7659 = vpack.c.b16 %v7589, %v7587
        %v7660 = vpack.c.b16 %v7590, %v7588
        %v7661 = vpack.c.b16 %v7593, %v7591
        %v7662 = vpack.c.b16 %v7594, %v7592
        %v7663 = vpack.c.b16 %v7597, %v7595
        %v7664 = vpack.c.b16 %v7598, %v7596
        %v7665 = vpack.c.b16 %v7601, %v7599
        %v7666 = vpack.c.b16 %v7602, %v7600
        %7731 = vmatprep.subr.bf16.mxu0 %v7604
        %7732 = vmatpush1.bf16.msra.mxu0 %v7603
        %7733 = vmatprep.subr.bf16.mxu0 %v7606
        %7734 = vmatpush1.bf16.msra.mxu0 %v7605
        %7735 = vmatprep.subr.bf16.mxu0 %v7608
        %7736 = vmatpush1.bf16.msra.mxu0 %v7607
        %7737 = vmatprep.subr.bf16.mxu0 %v7610
        %7738 = vmatpush1.bf16.msra.mxu0 %v7609
        %7739 = vmatprep.subr.bf16.mxu0 %v7612
        %7740 = vmatpush1.bf16.msra.mxu0 %v7611
        %7741 = vmatprep.subr.bf16.mxu0 %v7614
        %7742 = vmatpush1.bf16.msra.mxu0 %v7613
        %7743 = vmatprep.subr.bf16.mxu0 %v7616
        %7744 = vmatpush1.bf16.msra.mxu0 %v7615
        %7745 = vmatprep.subr.bf16.mxu0 %v7618
        %7746 = vmatpush1.bf16.msra.mxu0 %v7617
        %7747 = vmatprep.subr.bf16.mxu0 %v7620
        %7748 = vmatpush1.bf16.msra.mxu0 %v7619
        %7749 = vmatprep.subr.bf16.mxu0 %v7622
        %7750 = vmatpush1.bf16.msra.mxu0 %v7621
        %7751 = vmatprep.subr.bf16.mxu0 %v7624
        %7752 = vmatpush1.bf16.msra.mxu0 %v7623
        %7753 = vmatprep.subr.bf16.mxu0 %v7626
        %7754 = vmatpush1.bf16.msra.mxu0 %v7625
        %7755 = vmatprep.subr.bf16.mxu0 %v7628
        %7756 = vmatpush1.bf16.msra.mxu0 %v7627
        %7757 = vmatprep.subr.bf16.mxu0 %v7630
        %7758 = vmatpush1.bf16.msra.mxu0 %v7629
        %7759 = vmatprep.subr.bf16.mxu0 %v7632
        %7760 = vmatpush1.bf16.msra.mxu0 %v7631
        %7761 = vmatprep.subr.bf16.mxu0 %v7634
        %7762 = vmatpush1.bf16.msra.mxu0 %v7633
        %7763 = vmatprep.mubr.bf16.mxu0 %v7380
        %7764 = vmatmul.mubr.bf16.gmra.mrb[0].mxu0 %v7379
        %v7765 = vpop.f32.mrb[0].mxu0
        %v7766 = vadd.f32 0.0, %v7765
        %v7767 = vpop.f32.mrb[0].mxu0
        %v7768 = vadd.f32 0.0, %v7767
        %v7769 = vpop.f32.mrb[0].mxu0
        %v7770 = vadd.f32 0.0, %v7769
        %v7771 = vpop.f32.mrb[0].mxu0
        %v7772 = vadd.f32 0.0, %v7771
        %7773 = vmatprep.mubr.bf16.mxu0 %v7384
        %7774 = vmatmul.mubr.bf16.gmra.mrb[0].mxu0 %v7383
        %v7775 = vpop.f32.mrb[0].mxu0
        %v7776 = vadd.f32 0.0, %v7775
        %v7777 = vpop.f32.mrb[0].mxu0
        %v7778 = vadd.f32 0.0, %v7777
        %v7779 = vpop.f32.mrb[0].mxu0
        %v7780 = vadd.f32 0.0, %v7779
        %v7781 = vpop.f32.mrb[0].mxu0
        %v7782 = vadd.f32 0.0, %v7781
        %7783 = vmatprep.mubr.bf16.mxu0 %v7388
        %7784 = vmatmul.mubr.bf16.gmra.mrb[0].mxu0 %v7387
        %v7785 = vpop.f32.mrb[0].mxu0
        %v7786 = vadd.f32 0.0, %v7785
        %v7787 = vpop.f32.mrb[0].mxu0
        %v7788 = vadd.f32 0.0, %v7787
        %v7789 = vpop.f32.mrb[0].mxu0
        %v7790 = vadd.f32 0.0, %v7789
        %v7791 = vpop.f32.mrb[0].mxu0
        %v7792 = vadd.f32 0.0, %v7791
        %7793 = vmatprep.mubr.bf16.mxu0 %v7392
        %7794 = vmatmul.mubr.bf16.gmra.mrb[0].mxu0 %v7391
        %v7795 = vpop.f32.mrb[0].mxu0
        %v7796 = vadd.f32 0.0, %v7795
        %v7797 = vpop.f32.mrb[0].mxu0
        %v7798 = vadd.f32 0.0, %v7797
        %v7799 = vpop.f32.mrb[0].mxu0
        %v7800 = vpop.f32.mrb[0].mxu0
        %7801 = vdwg.mxu0
        %7802 = vmatprep.subr.bf16.mxu0 %v7636
        %7803 = vmatpush1.bf16.msra.mxu0 %v7635
        %7804 = vmatprep.subr.bf16.mxu0 %v7638
        %7805 = vmatpush1.bf16.msra.mxu0 %v7637
        %7806 = vmatprep.subr.bf16.mxu0 %v7640
        %7807 = vmatpush1.bf16.msra.mxu0 %v7639
        %7808 = vmatprep.subr.bf16.mxu0 %v7642
        %7809 = vmatpush1.bf16.msra.mxu0 %v7641
        %7810 = vmatprep.subr.bf16.mxu0 %v7644
        %7811 = vmatpush1.bf16.msra.mxu0 %v7643
        %7812 = vmatprep.subr.bf16.mxu0 %v7646
        %7813 = vmatpush1.bf16.msra.mxu0 %v7645
        %7814 = vmatprep.subr.bf16.mxu0 %v7648
        %7815 = vmatpush1.bf16.msra.mxu0 %v7647
        %7816 = vmatprep.subr.bf16.mxu0 %v7650
        %7817 = vmatpush1.bf16.msra.mxu0 %v7649
        %7818 = vmatprep.subr.bf16.mxu0 %v7652
        %7819 = vmatpush1.bf16.msra.mxu0 %v7651
        %7820 = vmatprep.subr.bf16.mxu0 %v7654
        %7821 = vmatpush1.bf16.msra.mxu0 %v7653
        %7822 = vmatprep.subr.bf16.mxu0 %v7656
        %7823 = vmatpush1.bf16.msra.mxu0 %v7655
        %7824 = vmatprep.subr.bf16.mxu0 %v7658
        %7825 = vmatpush1.bf16.msra.mxu0 %v7657
        %7826 = vmatprep.subr.bf16.mxu0 %v7660
        %7827 = vmatpush1.bf16.msra.mxu0 %v7659
        %7828 = vmatprep.subr.bf16.mxu0 %v7662
        %7829 = vmatpush1.bf16.msra.mxu0 %v7661
        %7830 = vmatprep.subr.bf16.mxu0 %v7664
        %7831 = vmatpush1.bf16.msra.mxu0 %v7663
        %7832 = vmatprep.subr.bf16.mxu0 %v7666
        %7833 = vmatpush1.bf16.msra.mxu0 %v7665
        %7834 = vmatprep.mubr.bf16.mxu0 %v7382
        %7835 = vmatmul.mubr.bf16.gmra.mrb[0].mxu0 %v7381
        %v7836 = vpop.f32.mrb[0].mxu0
        %v7837 = vadd.f32 %v7766, %v7836
        %v7838 = vpop.f32.mrb[0].mxu0
        %v7839 = vadd.f32 %v7768, %v7838
        %v7840 = vpop.f32.mrb[0].mxu0
        %v7841 = vadd.f32 %v7770, %v7840
        %v7842 = vpop.f32.mrb[0].mxu0
        %v7843 = vadd.f32 %v7772, %v7842
        %7844 = vmatprep.mubr.bf16.mxu0 %v7386
        %7845 = vmatmul.mubr.bf16.gmra.mrb[0].mxu0 %v7385
        %v7846 = vpop.f32.mrb[0].mxu0
        %v7847 = vadd.f32 %v7776, %v7846
        %v7848 = vpop.f32.mrb[0].mxu0
        %v7849 = vadd.f32 %v7778, %v7848
        %v7850 = vpop.f32.mrb[0].mxu0
        %v7851 = vadd.f32 %v7780, %v7850
        %v7852 = vpop.f32.mrb[0].mxu0
        %v7853 = vadd.f32 %v7782, %v7852
        %7854 = vmatprep.mubr.bf16.mxu0 %v7390
        %7855 = vmatmul.mubr.bf16.gmra.mrb[0].mxu0 %v7389
        %v7856 = vpop.f32.mrb[0].mxu0
        %v7857 = vadd.f32 %v7786, %v7856
        %v7858 = vpop.f32.mrb[0].mxu0
        %v7859 = vadd.f32 %v7788, %v7858
        %v7860 = vpop.f32.mrb[0].mxu0
        %v7861 = vadd.f32 %v7790, %v7860
        %v7862 = vpop.f32.mrb[0].mxu0
        %v7863 = vadd.f32 %v7792, %v7862
        %7864 = vmatprep.mubr.bf16.mxu0 %v7394
        %7865 = vmatmul.mubr.bf16.gmra.mrb[0].mxu0 %v7393
        %v7866 = vpop.f32.mrb[0].mxu0
        %v7867 = vadd.f32 %v7796, %v7866
        %v7868 = vpop.f32.mrb[0].mxu0
        %v7869 = vadd.f32 %v7798, %v7868
        %v7870 = vpop.f32.mrb[0].mxu0
        %v7871 = vpop.f32.mrb[0].mxu0
        %7872 = vdwg.mxu0
        %v7873 = vadd.f32 %v7245, %v7837
        %v7874 = vadd.f32 %v7246, %v7839
        %v7875 = vadd.f32 %v7247, %v7841
        %v7876 = vadd.f32 %v7248, %v7843
        %v7877 = vadd.f32 %v7249, %v7847
        %v7878 = vadd.f32 %v7250, %v7849
        %v7879 = vadd.f32 %v7251, %v7851
        %v7880 = vadd.f32 %v7252, %v7853
        %v7881 = vadd.f32 %v7253, %v7857
        %v7882 = vadd.f32 %v7254, %v7859
        %v7883 = vadd.f32 %v7255, %v7861
        %v7884 = vadd.f32 %v7256, %v7863
        %v7885 = vadd.f32 %v7257, %v7867
        %v7886 = vadd.f32 %v7258, %v7869
        %7887 = vst [vmem:[%s294] sm:$0xff] %v7873
        %7888 = vst [vmem:[%s294 + $0x8] sm:$0xff] %v7874
        %7889 = vst [vmem:[%s294 + $0x10] sm:$0xff] %v7875
        %7890 = vst [vmem:[%s294 + $0x18] sm:$0xff] %v7876
        %7891 = vst [vmem:[%s294 + $0x20] sm:$0xff] %v7877
        %7892 = vst [vmem:[%s294 + $0x28] sm:$0xff] %v7878
        %7893 = vst [vmem:[%s294 + $0x30] sm:$0xff] %v7879
        %7894 = vst [vmem:[%s294 + $0x38] sm:$0xff] %v7880
        %7895 = vst [vmem:[%s294 + $0x40] sm:$0xff] %v7881
        %7896 = vst [vmem:[%s294 + $0x48] sm:$0xff] %v7882
        %7897 = vst [vmem:[%s294 + $0x50] sm:$0xff] %v7883
        %7898 = vst [vmem:[%s294 + $0x58] sm:$0xff] %v7884
        %7899 = vst [vmem:[%s294 + $0x60] sm:$0x1] %v7885
        %7900 = vst [vmem:[%s294 + $0x68] sm:$0x1] %v7886
        %s7901 = sand.u32 %s140, 1
        %s7902 = scalar_lea.sflag [#allocation6], %s7901
        %s7903 = sand.u32 %s140, 1
        %s7904 = smul.addr %s7903, 112
        %s7905 = scalar_lea.vmem [#allocation13], %s7904
        // Predicated region
        $region65: #{tpu_custom_call.1} parent=39 // pred_check
          %p7906 = pneg %p150
        $region66: #{tpu_custom_call.1} parent=39 // pred_check_branch
          %7908 = sbr.rel (%p7906) target = $region68
        $region67: #{tpu_custom_call.1} parent=39 // pred_region
          %s7909 = smul.u32 2, %s22
          %s7911 = ssub.s32 1792, 1792
          %7912 = vsyncadd %s7902, %s7911
          %s7913 = smul.addr %s7909, 128
          %s7914 = scalar_lea.hbm %s5, %s7913
          %s7915 = sshll.u32 %s7905, 4
          %s7916 = int_to_ptr.vmem [resolvable:$true] %s7915
          %7921 = dma.vmem_to_hbm [thread:$0]  %s7916, 1792, %s7914, %s7902, 256, 512, 16
        $region68: #{tpu_custom_call.1} parent=39 // pred_fallthru
          _
      $region40: #{tpu_custom_call.1} parent=5 // pred_fallthru
        _
      %p7922 = scmp.le.s32.totalorder 2, %s17
      // Predicated region
      $region69: #{tpu_custom_call.1} parent=5 // pred_check
        %p7923 = pneg %p7922
      $region70: #{tpu_custom_call.1} parent=5 // pred_check_branch
        %7925 = sbr.rel (%p7923) target = $region72
      $region71: #{tpu_custom_call.1} parent=5 // pred_region
        %s7926 = ssub.s32 %s17, 2
        // Predicated region
        $region73: #{tpu_custom_call.1} parent=71 // pred_check
          %p7927 = pneg %p156
        $region74: #{tpu_custom_call.1} parent=71 // pred_check_branch
          %7929 = sbr.rel (%p7927) target = $region76
        $region75: #{tpu_custom_call.1} parent=71 // pred_region
          %s7930 = sand.u32 %s141, 1
          %s7931 = scalar_lea.sflag [#allocation6], %s7930
          %s7932 = sand.u32 %s141, 1
          %s7933 = smul.addr %s7932, 112
          %s7934 = scalar_lea.vmem [#allocation13], %s7933
          %7935 = dma.done %s7931, 1792
        $region76: #{tpu_custom_call.1} parent=71 // pred_fallthru
          _
      $region72: #{tpu_custom_call.1} parent=5 // pred_fallthru
        _
    $region6: #{tpu_custom_call.1} parent=1 // loop_footer
      %s21 = sadd.s32 1, %s17
    $region7: #{tpu_custom_call.1} parent=1 // loop_footer_branch
      %16 = sbr.rel target = $region3
    $region8: #{tpu_custom_call.1} parent=1 // loop_exit
      _
    %7936 = vsyncpa [#allocation5], 1
    %s7937 = scalar_lea.sflag [#allocation5], 1
    %7938 = vsyncpa %s7937, 1
    %7939 = vsyncpa [#allocation8], 1
    %7940 = vsyncpa [#allocation11], 1
    %7941 = vsyncpa [#allocation6], 1
    %s7942 = scalar_lea.sflag [#allocation6], 1
    %7943 = vsyncpa %s7942, 1

</llo_original>
